<compile_context>
chip_gen: v6e
topology: v6e:2x2x1
jax: 0.10.0
libtpu: 0.0.40
codegen_flags: <defaults>
</compile_context>

<pallas_src>
import functools

import numpy as np
import jax
import jax.numpy as jnp
from jax import lax
from jax.experimental import pallas as pl
from jax.experimental.pallas import tpu as pltpu

EPS = 1e-5
LANE = 128


def _round_up(v, m):
    return (v + m - 1) // m * m


def _mish_kernel(x):
    # mish(x) = x * tanh(softplus(x)) = x * n / (n + 2),  n = e*(e+2),  e = exp(x).
    # For x > 20 mish(x) == x to f32 precision, so clamping the exp argument is exact.
    e = jnp.exp(jnp.minimum(x, 20.0))
    n = e * (e + 2.0)
    return x * n * pl.reciprocal(n + 2.0, approx=True)


def _mish_ref(x):
    # Exact formulation for the pure-JAX reference.
    sp = jnp.maximum(x, 0.0) + jnp.log1p(jnp.exp(-jnp.abs(x)))
    return x * jnp.tanh(sp)


# ---------------------------- fused Pallas kernel ----------------------------

def _residual_block_kernel(x_ref, halo_ref, w1_ref, b1_ref, w2_ref, b2_ref,
                           o_ref, *, h_img):
    # x_ref    : (TH, W+2, Cp)   bf16  row tile of x (width zero-halo, channel pad)
    # halo_ref : (2,  W+2, Cp)   bf16  row above / row below this tile
    # w1_ref   : (Cp, Cm)        bf16  1x1 conv weight, BN1 scale folded in
    # b1_ref   : (1, Cm)         f32   folded BN1 bias
    # w2_ref   : (9*Cm, Cp)      bf16  3x3 conv weight, BN2 scale folded in
    # b2_ref   : (1, Cp)         f32   folded BN2 bias
    # o_ref    : (TH, W, Cp)     bf16  x + mish(conv3x3(mish(conv1x1(x))))
    th, w2d, cp = x_ref.shape
    wd = w2d - 2
    cm = w1_ref.shape[1]
    t = pl.program_id(1)

    x = x_ref[...]                                                  # bf16
    halo = halo_ref[...]                                            # bf16
    xa = jnp.concatenate([halo[0:1], x, halo[1:2]], axis=0)         # (TH+2, W+2, Cp)

    # ---- stage 1: 1x1 conv (one MXU matmul over all TH+2 rows) + bias + Mish ----
    h = jnp.dot(xa.reshape((th + 2) * w2d, cp), w1_ref[...],
                preferred_element_type=jnp.float32)                 # bf16 in, f32 acc
    h = _mish_kernel(h + b1_ref[...]).reshape(th + 2, w2d, cm)      # f32 epilogue

    # Zero h outside the real image (reproduces the 3x3 conv's zero padding; the 1x1
    # conv has padding 0) and drop straight to bf16 so im2col is assembled in bf16.
    row_img = t * th + lax.broadcasted_iota(jnp.int32, (th + 2, w2d, 1), 0) - 1
    col_img = lax.broadcasted_iota(jnp.int32, (th + 2, w2d, 1), 1) - 1
    valid = (row_img >= 0) & (row_img < h_img) & (col_img >= 0) & (col_img < wd)
    hm = jnp.where(valid, h, 0.0).astype(jnp.bfloat16)

    # ---- stage 2: 3x3 conv as ONE matmul with K = 9*Cm (in-VMEM bf16 im2col) ----
    taps = [hm[ky:ky + th, kx:kx + wd, :] for ky in range(3) for kx in range(3)]
    patches = jnp.concatenate(taps, axis=-1).reshape(th * wd, 9 * cm)
    y = jnp.dot(patches, w2_ref[...], preferred_element_type=jnp.float32)
    y = _mish_kernel(y + b2_ref[...]).reshape(th, wd, cp)           # f32 epilogue

    # ---- residual add in f32, store bf16 (lane-dense, Cp >= 128) ----
    res = x[:, 1:1 + wd, :].astype(jnp.float32)
    o_ref[...] = (res + y).astype(o_ref.dtype)


# ------------------------------- host wrapper --------------------------------

def _tile_vmem_bytes(th, wd, cp, cm):
    """Per-grid-step VMEM estimate: tiles (double-buffered), weights, temporaries."""
    hw = (th + 2) * (wd + 2)
    return int(
        2 * th * (wd + 2) * cp * 2                      # x tile, bf16, double-buffered
        + 2 * 2 * (wd + 2) * cp * 2                     # halo tile, bf16, double-buffered
        + 2 * th * wd * cp * 2                          # out tile, bf16, double-buffered
        + 2 * (10 * cm * cp * 2 + (cm + cp) * 4)        # w1 + w2 (bf16) + biases, x2 buffers
        + hw * cp * 2                                   # concatenated xa copy (bf16)
        + hw * cm * (4 + 2)                             # h (f32) + masked bf16 copy
        + th * wd * 9 * cm * 2                          # bf16 im2col patches
        + 3 * th * wd * cp * 4                          # y / residual / sum (f32)
        + 8 * hw * 4                                    # iota / mask temporaries
    )


def _vmem_capacity_bytes():
    try:
        return int(pltpu.get_tpu_info().vmem_capacity_bytes)
    except Exception:
        return 64 << 20  # conservative fallback (smallest per-core VMEM: v7x)


def _choose_tile_rows(n, h, wd, cp, cm, budget_bytes):
    """Largest row tile that fits the VMEM budget; force >=2 tiles when batch==1."""
    th = min(h, 256)
    while th > 8 and _tile_vmem_bytes(th, wd, cp, cm) > budget_bytes:
        th = max(8, (th + 1) // 2)
    if n == 1 and h > 8:          # ensure >=2 grid programs so both v7x TCs get work
        th = min(th, -(-h // 2))
    return max(1, min(th, h))


def residual_block_pallas(x_nchw, params, *, tile_rows=None, vmem_budget_bytes=None):
    """ResidualBlock forward: (N, C, H, W) -> (N, C, H, W) bf16."""
    # NCHW -> NHWC (channels on lanes); activations stored bf16 in HBM.
    x = jnp.transpose(x_nchw, (0, 2, 3, 1)).astype(jnp.bfloat16)
    n, h, wd, c = x.shape
    mid = params["w1"].shape[-1]
    cp = _round_up(c, LANE)
    cm = _round_up(mid, LANE)

    cap = _vmem_capacity_bytes()            # 128 MiB (v5e/v6e) / 64 MiB per core (v7x)
    if vmem_budget_bytes is None:
        vmem_budget_bytes = int(cap * 0.70)
    vmem_limit = max(32 << 20, min(cap - (4 << 20), vmem_budget_bytes + (16 << 20)))

    th = tile_rows if tile_rows is not None else _choose_tile_rows(
        n, h, wd, cp, cm, vmem_budget_bytes)
    nt = pl.cdiv(h, th)
    h_pad = nt * th

    # Weights: fold BN scale into conv weights, pad channels to 128-lane multiples,
    # store bf16 for the MXU.  Biases stay f32.
    w1f = params["w1"].reshape(c, mid) * params["s1"].reshape(1, mid)
    w1 = jnp.zeros((cp, cm), jnp.float32).at[:c, :mid].set(w1f).astype(jnp.bfloat16)
    w2f = params["w2"] * params["s2"].reshape(1, 1, 1, c)
    w2 = (jnp.zeros((3, 3, cm, cp), jnp.float32).at[:, :, :mid, :c].set(w2f)
          .reshape(9 * cm, cp).astype(jnp.bfloat16))
    b1 = jnp.zeros((1, cm), jnp.float32).at[:, :mid].set(params["b1"].reshape(1, mid))
    b2 = jnp.zeros((1, cp), jnp.float32).at[:, :c].set(params["b2"].reshape(1, c))

    # Activations: ONE pad -> (N, H_pad, W+2, Cp) bf16, plus a tiny halo side array
    # holding the row above / below each row tile (the only overlap traffic, ~2/TH).
    x_main = jnp.pad(x, ((0, 0), (0, h_pad - h), (1, 1), (0, cp - c)))
    zrow = jnp.zeros((n, 1, wd + 2, cp), jnp.bfloat16)
    if nt > 1:
        top = jnp.concatenate([zrow, x_main[:, th - 1:(nt - 1) * th:th]], axis=1)
        bot = jnp.concatenate([x_main[:, th:(nt - 1) * th + 1:th], zrow], axis=1)
    else:
        top, bot = zrow, zrow
    halo = jnp.stack([top, bot], axis=2)                  # (N, NT, 2, W+2, Cp)

    m_in = n * nt * (th + 2) * (wd + 2)
    m_out = n * nt * th * wd
    cost = pl.CostEstimate(
        flops=2 * m_in * cp * cm + 2 * m_out * 9 * cm * cp,
        transcendentals=2 * (m_in * cm + m_out * cp),
        bytes_accessed=int(x_main.size + halo.size + n * h_pad * wd * cp) * 2
                       + int(w1.size + w2.size) * 2 + int(b1.size + b2.size) * 4,
    )

    kernel = functools.partial(_residual_block_kernel, h_img=h)
    out = pl.pallas_call(
        kernel,
        out_shape=jax.ShapeDtypeStruct((n, h_pad, wd, cp), jnp.bfloat16),
        grid=(n, nt),
        in_specs=[
            pl.BlockSpec((None, th, wd + 2, cp), lambda b, t: (b, t, 0, 0)),
            pl.BlockSpec((None, None, 2, wd + 2, cp), lambda b, t: (b, t, 0, 0, 0)),
            pl.BlockSpec((cp, cm), lambda b, t: (0, 0)),
            pl.BlockSpec((1, cm), lambda b, t: (0, 0)),
            pl.BlockSpec((9 * cm, cp), lambda b, t: (0, 0)),
            pl.BlockSpec((1, cp), lambda b, t: (0, 0)),
        ],
        out_specs=pl.BlockSpec((None, th, wd, cp), lambda b, t: (b, t, 0, 0)),
        compiler_params=pltpu.CompilerParams(
            dimension_semantics=("parallel", "parallel"),
            vmem_limit_bytes=int(vmem_limit)),
        cost_estimate=cost,
    )(x_main, halo, w1, b1, w2, b2)

    if h_pad != h or cp != c:
        out = out[:, :h, :, :c]
    return jnp.transpose(out, (0, 3, 1, 2))               # NHWC -> NCHW (bf16)


# -------------------- synthetic params (folded eval-mode BN) --------------------

def init_residual_params(key, channels):
    mid = channels // 2
    ks = jax.random.split(key, 10)

    def bn_fold(kg, kb, km, kv, cout):
        gamma = 1.0 + 0.1 * jax.random.normal(kg, (cout,), jnp.float32)
        beta = 0.1 * jax.random.normal(kb, (cout,), jnp.float32)
        mean = 0.1 * jax.random.normal(km, (cout,), jnp.float32)
        var = jax.random.uniform(kv, (cout,), jnp.float32, minval=0.5, maxval=1.5)
        scale = gamma * lax.rsqrt(var + EPS)
        bias = beta - mean * scale
        return scale.reshape(1, cout), bias.reshape(1, cout)

    w1 = jax.random.normal(ks[0], (1, 1, channels, mid), jnp.float32) / np.sqrt(channels)
    w2 = jax.random.normal(ks[1], (3, 3, mid, channels), jnp.float32) / np.sqrt(9 * mid)
    s1, b1 = bn_fold(ks[2], ks[3], ks[4], ks[5], mid)
    s2, b2 = bn_fold(ks[6], ks[7], ks[8], ks[9], channels)
    return {"w1": w1, "w2": w2, "s1": s1, "b1": b1, "s2": s2, "b2": b2}


# ------------------------- pure-JAX reference (f32) -------------------------

def residual_block_ref(x_nchw, p):
    x = jnp.transpose(x_nchw, (0, 2, 3, 1))
    h = lax.conv_general_dilated(x, p["w1"], (1, 1), [(0, 0), (0, 0)],
                                 dimension_numbers=("NHWC", "HWIO", "NHWC"))
    h = _mish_ref(h * p["s1"].reshape(1, 1, 1, -1) + p["b1"].reshape(1, 1, 1, -1))
    y = lax.conv_general_dilated(h, p["w2"], (1, 1), [(1, 1), (1, 1)],
                                 dimension_numbers=("NHWC", "HWIO", "NHWC"))
    y = _mish_ref(y * p["s2"].reshape(1, 1, 1, -1) + p["b2"].reshape(1, 1, 1, -1))
    return jnp.transpose(x + y, (0, 3, 1, 2))


if __name__ == "__main__":
    key = jax.random.PRNGKey(0)
    kx, kp, kx2, kp2 = jax.random.split(key, 4)

    # Tolerances sized for bf16 activation storage + bf16 MXU operands (f32 reference).
    RTOL, ATOL = 5e-2, 7e-2

    # Primary check: batch=2, channels=8, 16x16 spatial (default tile chooser).
    N, C, H, W = 2, 8, 16, 16
    x = jax.random.normal(kx, (N, C, H, W), jnp.float32)
    params = init_residual_params(kp, C)
    fwd = jax.jit(residual_block_pallas)
    out = jax.block_until_ready(fwd(x, params))
    ref = jax.block_until_ready(residual_block_ref(x, params))
    assert out.shape == (N, C, H, W), out.shape
    np.testing.assert_allclose(np.asarray(out.astype(jnp.float32)),
                               np.asarray(ref), rtol=RTOL, atol=ATOL)

    # Ragged check: H not a multiple of the row tile (pad + mask + halo path).
    N2, C2, H2, W2 = 1, 4, 12, 20
    x2 = jax.random.normal(kx2, (N2, C2, H2, W2), jnp.float32)
    params2 = init_residual_params(kp2, C2)
    fwd2 = jax.jit(functools.partial(residual_block_pallas, tile_rows=8))
    out2 = jax.block_until_ready(fwd2(x2, params2))
    ref2 = jax.block_until_ready(residual_block_ref(x2, params2))
    np.testing.assert_allclose(np.asarray(out2.astype(jnp.float32)),
                               np.asarray(ref2), rtol=RTOL, atol=ATOL)

    print("KERNEL_OK")
</pallas_src>

<mosaic_0001>
module attributes {stable_mosaic.version = 11 : i64} {
  func.func @_residual_block_kernel(%arg0: i32, %arg1: i32, %arg2: memref<1x16x18x128xbf16, #tpu.memory_space<vmem>>, %arg3: memref<1x1x2x18x128xbf16, #tpu.memory_space<vmem>>, %arg4: memref<128x128xbf16, #tpu.memory_space<vmem>>, %arg5: memref<1x128xf32, #tpu.memory_space<vmem>>, %arg6: memref<1152x128xbf16, #tpu.memory_space<vmem>>, %arg7: memref<1x128xf32, #tpu.memory_space<vmem>>, %arg8: memref<1x16x16x128xbf16, #tpu.memory_space<vmem>>) attributes {dimension_semantics = [#tpu.dimension_semantics<parallel>, #tpu.dimension_semantics<parallel>], iteration_bounds = array<i64: 2, 1>, scalar_prefetch = 0 : i64, scratch_operands = 0 : i64, tpu.core_type = #tpu.core_type<tc>, window_params = [{transform_indices = @transform_0, window_bounds = array<i64: 1, 16, 18, 128>}, {transform_indices = @transform_1, window_bounds = array<i64: 1, 1, 2, 18, 128>}, {pipeline_mode = #tpu.pipeline_mode<synchronous>, transform_indices = @transform_2, window_bounds = array<i64: 128, 128>}, {pipeline_mode = #tpu.pipeline_mode<synchronous>, transform_indices = @transform_3, window_bounds = array<i64: 1, 128>}, {pipeline_mode = #tpu.pipeline_mode<synchronous>, transform_indices = @transform_4, window_bounds = array<i64: 1152, 128>}, {pipeline_mode = #tpu.pipeline_mode<synchronous>, transform_indices = @transform_5, window_bounds = array<i64: 1, 128>}, {transform_indices = @transform_6, window_bounds = array<i64: 1, 16, 16, 128>}]} {
    %c0 = arith.constant 0 : index
    %c0_0 = arith.constant 0 : index
    %c0_1 = arith.constant 0 : index
    %c0_2 = arith.constant 0 : index
    %0 = vector.load %arg2[%c0, %c0_0, %c0_1, %c0_2] : memref<1x16x18x128xbf16, #tpu.memory_space<vmem>>, vector<1x16x18x128xbf16>
    %1 = vector.shape_cast %0 : vector<1x16x18x128xbf16> to vector<16x18x128xbf16>
    %c0_3 = arith.constant 0 : index
    %c0_4 = arith.constant 0 : index
    %c0_5 = arith.constant 0 : index
    %c0_6 = arith.constant 0 : index
    %c0_7 = arith.constant 0 : index
    %2 = vector.load %arg3[%c0_3, %c0_4, %c0_5, %c0_6, %c0_7] : memref<1x1x2x18x128xbf16, #tpu.memory_space<vmem>>, vector<1x1x2x18x128xbf16>
    %3 = vector.shape_cast %2 : vector<1x1x2x18x128xbf16> to vector<2x18x128xbf16>
    %4 = vector.extract_strided_slice %3 {offsets = [0, 0, 0], sizes = [1, 18, 128], strides = [1, 1, 1]} : vector<2x18x128xbf16> to vector<1x18x128xbf16>
    %5 = vector.extract_strided_slice %3 {offsets = [1, 0, 0], sizes = [1, 18, 128], strides = [1, 1, 1]} : vector<2x18x128xbf16> to vector<1x18x128xbf16>
    %6 = tpu.concatenate %4, %1, %5 in 0 : vector<1x18x128xbf16>, vector<16x18x128xbf16>, vector<1x18x128xbf16> -> vector<18x18x128xbf16>
    %7 = vector.shape_cast %6 : vector<18x18x128xbf16> to vector<324x128xbf16>
    %c0_8 = arith.constant 0 : index
    %c0_9 = arith.constant 0 : index
    %8 = vector.load %arg4[%c0_8, %c0_9] : memref<128x128xbf16, #tpu.memory_space<vmem>>, vector<128x128xbf16>
    %cst = arith.constant dense<0.000000e+00> : vector<324x128xf32>
    %9 = tpu.matmul %7, %8, %cst {dimension_numbers = #tpu.dot_dimension_numbers<[1], [0], [0], [1], [0, 0, 1, 1], [], []>} : vector<324x128xbf16>, vector<128x128xbf16>, vector<324x128xf32> -> vector<324x128xf32>
    %c0_10 = arith.constant 0 : index
    %c0_11 = arith.constant 0 : index
    %10 = vector.load %arg5[%c0_10, %c0_11] : memref<1x128xf32, #tpu.memory_space<vmem>>, vector<1x128xf32>
    %11 = vector.broadcast %10 : vector<1x128xf32> to vector<324x128xf32>
    %12 = arith.addf %9, %11 : vector<324x128xf32>
    %cst_12 = arith.constant 2.000000e+01 : f32
    %13 = vector.broadcast %cst_12 : f32 to vector<324x128xf32>
    %14 = arith.minimumf %12, %13 : vector<324x128xf32>
    %15 = math.exp %14 : vector<324x128xf32>
    %cst_13 = arith.constant 2.000000e+00 : f32
    %16 = vector.broadcast %cst_13 : f32 to vector<324x128xf32>
    %17 = arith.addf %15, %16 : vector<324x128xf32>
    %18 = arith.mulf %15, %17 : vector<324x128xf32>
    %19 = arith.mulf %12, %18 : vector<324x128xf32>
    %cst_14 = arith.constant 2.000000e+00 : f32
    %20 = vector.broadcast %cst_14 : f32 to vector<324x128xf32>
    %21 = arith.addf %18, %20 : vector<324x128xf32>
    %22 = tpu.reciprocal %21 {approx = true} : vector<324x128xf32> -> vector<324x128xf32>
    %23 = arith.mulf %19, %22 : vector<324x128xf32>
    %24 = vector.shape_cast %23 : vector<324x128xf32> to vector<18x18x128xf32>
    %c16_i32 = arith.constant 16 : i32
    %25 = arith.muli %arg1, %c16_i32 : i32
    %26 = tpu.iota {dimensions = array<i32: 0>} : vector<18x18x1xi32>
    %27 = vector.broadcast %25 : i32 to vector<18x18x1xi32>
    %28 = arith.addi %27, %26 : vector<18x18x1xi32>
    %c1_i32 = arith.constant 1 : i32
    %29 = vector.broadcast %c1_i32 : i32 to vector<18x18x1xi32>
    %30 = arith.subi %28, %29 : vector<18x18x1xi32>
    %31 = tpu.iota {dimensions = array<i32: 1>} : vector<18x18x1xi32>
    %c1_i32_15 = arith.constant 1 : i32
    %32 = vector.broadcast %c1_i32_15 : i32 to vector<18x18x1xi32>
    %33 = arith.subi %31, %32 : vector<18x18x1xi32>
    %c0_i32 = arith.constant 0 : i32
    %34 = vector.broadcast %c0_i32 : i32 to vector<18x18x1xi32>
    %35 = arith.cmpi sge, %30, %34 : vector<18x18x1xi32>
    %c16_i32_16 = arith.constant 16 : i32
    %36 = vector.broadcast %c16_i32_16 : i32 to vector<18x18x1xi32>
    %37 = arith.cmpi slt, %30, %36 : vector<18x18x1xi32>
    %38 = arith.andi %35, %37 : vector<18x18x1xi1>
    %c0_i32_17 = arith.constant 0 : i32
    %39 = vector.broadcast %c0_i32_17 : i32 to vector<18x18x1xi32>
    %40 = arith.cmpi sge, %33, %39 : vector<18x18x1xi32>
    %41 = arith.andi %38, %40 : vector<18x18x1xi1>
    %c16_i32_18 = arith.constant 16 : i32
    %42 = vector.broadcast %c16_i32_18 : i32 to vector<18x18x1xi32>
    %43 = arith.cmpi slt, %33, %42 : vector<18x18x1xi32>
    %44 = arith.andi %41, %43 : vector<18x18x1xi1>
    %cst_19 = arith.constant 0.000000e+00 : f32
    %45 = vector.shape_cast %44 : vector<18x18x1xi1> to vector<18x18x1xi1>
    %46 = vector.broadcast %45 : vector<18x18x1xi1> to vector<18x18x128xi1>
    %47 = vector.broadcast %cst_19 : f32 to vector<18x18x128xf32>
    %48 = arith.select %46, %24, %47 : vector<18x18x128xi1>, vector<18x18x128xf32>
    %49 = arith.truncf %48 : vector<18x18x128xf32> to vector<18x18x128xbf16>
    %50 = vector.extract_strided_slice %49 {offsets = [0, 0, 0], sizes = [16, 16, 128], strides = [1, 1, 1]} : vector<18x18x128xbf16> to vector<16x16x128xbf16>
    %51 = vector.extract_strided_slice %49 {offsets = [0, 1, 0], sizes = [16, 16, 128], strides = [1, 1, 1]} : vector<18x18x128xbf16> to vector<16x16x128xbf16>
    %52 = vector.extract_strided_slice %49 {offsets = [0, 2, 0], sizes = [16, 16, 128], strides = [1, 1, 1]} : vector<18x18x128xbf16> to vector<16x16x128xbf16>
    %53 = vector.extract_strided_slice %49 {offsets = [1, 0, 0], sizes = [16, 16, 128], strides = [1, 1, 1]} : vector<18x18x128xbf16> to vector<16x16x128xbf16>
    %54 = vector.extract_strided_slice %49 {offsets = [1, 1, 0], sizes = [16, 16, 128], strides = [1, 1, 1]} : vector<18x18x128xbf16> to vector<16x16x128xbf16>
    %55 = vector.extract_strided_slice %49 {offsets = [1, 2, 0], sizes = [16, 16, 128], strides = [1, 1, 1]} : vector<18x18x128xbf16> to vector<16x16x128xbf16>
    %56 = vector.extract_strided_slice %49 {offsets = [2, 0, 0], sizes = [16, 16, 128], strides = [1, 1, 1]} : vector<18x18x128xbf16> to vector<16x16x128xbf16>
    %57 = vector.extract_strided_slice %49 {offsets = [2, 1, 0], sizes = [16, 16, 128], strides = [1, 1, 1]} : vector<18x18x128xbf16> to vector<16x16x128xbf16>
    %58 = vector.extract_strided_slice %49 {offsets = [2, 2, 0], sizes = [16, 16, 128], strides = [1, 1, 1]} : vector<18x18x128xbf16> to vector<16x16x128xbf16>
    %59 = tpu.concatenate %50, %51, %52, %53, %54, %55, %56, %57, %58 in 2 : vector<16x16x128xbf16>, vector<16x16x128xbf16>, vector<16x16x128xbf16>, vector<16x16x128xbf16>, vector<16x16x128xbf16>, vector<16x16x128xbf16>, vector<16x16x128xbf16>, vector<16x16x128xbf16>, vector<16x16x128xbf16> -> vector<16x16x1152xbf16>
    %60 = vector.shape_cast %59 : vector<16x16x1152xbf16> to vector<256x1152xbf16>
    %c0_20 = arith.constant 0 : index
    %c0_21 = arith.constant 0 : index
    %61 = vector.load %arg6[%c0_20, %c0_21] : memref<1152x128xbf16, #tpu.memory_space<vmem>>, vector<1152x128xbf16>
    %cst_22 = arith.constant dense<0.000000e+00> : vector<256x128xf32>
    %62 = tpu.matmul %60, %61, %cst_22 {dimension_numbers = #tpu.dot_dimension_numbers<[1], [0], [0], [1], [0, 0, 1, 1], [], []>} : vector<256x1152xbf16>, vector<1152x128xbf16>, vector<256x128xf32> -> vector<256x128xf32>
    %c0_23 = arith.constant 0 : index
    %c0_24 = arith.constant 0 : index
    %63 = vector.load %arg7[%c0_23, %c0_24] : memref<1x128xf32, #tpu.memory_space<vmem>>, vector<1x128xf32>
    %64 = vector.broadcast %63 : vector<1x128xf32> to vector<256x128xf32>
    %65 = arith.addf %62, %64 : vector<256x128xf32>
    %cst_25 = arith.constant 2.000000e+01 : f32
    %66 = vector.broadcast %cst_25 : f32 to vector<256x128xf32>
    %67 = arith.minimumf %65, %66 : vector<256x128xf32>
    %68 = math.exp %67 : vector<256x128xf32>
    %cst_26 = arith.constant 2.000000e+00 : f32
    %69 = vector.broadcast %cst_26 : f32 to vector<256x128xf32>
    %70 = arith.addf %68, %69 : vector<256x128xf32>
    %71 = arith.mulf %68, %70 : vector<256x128xf32>
    %72 = arith.mulf %65, %71 : vector<256x128xf32>
    %cst_27 = arith.constant 2.000000e+00 : f32
    %73 = vector.broadcast %cst_27 : f32 to vector<256x128xf32>
    %74 = arith.addf %71, %73 : vector<256x128xf32>
    %75 = tpu.reciprocal %74 {approx = true} : vector<256x128xf32> -> vector<256x128xf32>
    %76 = arith.mulf %72, %75 : vector<256x128xf32>
    %77 = vector.shape_cast %76 : vector<256x128xf32> to vector<16x16x128xf32>
    %78 = vector.extract_strided_slice %1 {offsets = [0, 1, 0], sizes = [16, 16, 128], strides = [1, 1, 1]} : vector<16x18x128xbf16> to vector<16x16x128xbf16>
    %79 = arith.extf %78 : vector<16x16x128xbf16> to vector<16x16x128xf32>
    %80 = arith.addf %79, %77 : vector<16x16x128xf32>
    %81 = arith.truncf %80 : vector<16x16x128xf32> to vector<16x16x128xbf16>
    %c0_28 = arith.constant 0 : index
    %c0_29 = arith.constant 0 : index
    %c0_30 = arith.constant 0 : index
    %c0_31 = arith.constant 0 : index
    %82 = vector.load %arg8[%c0_28, %c0_29, %c0_30, %c0_31] : memref<1x16x16x128xbf16, #tpu.memory_space<vmem>>, vector<1x16x16x128xbf16>
    %83 = vector.shape_cast %82 : vector<1x16x16x128xbf16> to vector<16x16x128xbf16>
    %84 = vector.shape_cast %81 : vector<16x16x128xbf16> to vector<1x16x16x128xbf16>
    tpu.vector_store %arg8[%c0_28, %c0_29, %c0_30, %c0_31], %84 {strides = array<i32>} : memref<1x16x16x128xbf16, #tpu.memory_space<vmem>>, vector<1x16x16x128xbf16>,
    return
  }
  func.func @transform_0(%arg0: i32, %arg1: i32) -> (i32, i32, i32, i32) {
    %c0_i32 = arith.constant 0 : i32
    %c0_i32_0 = arith.constant 0 : i32
    %c0_i32_1 = arith.constant 0 : i32
    return %arg0, %arg1, %c0_i32, %c0_i32_0 : i32, i32, i32, i32
  }
  func.func @transform_1(%arg0: i32, %arg1: i32) -> (i32, i32, i32, i32, i32) {
    %c0_i32 = arith.constant 0 : i32
    %c0_i32_0 = arith.constant 0 : i32
    %c0_i32_1 = arith.constant 0 : i32
    %c0_i32_2 = arith.constant 0 : i32
    return %arg0, %arg1, %c0_i32, %c0_i32_0, %c0_i32_1 : i32, i32, i32, i32, i32
  }
  func.func @transform_2(%arg0: i32, %arg1: i32) -> (i32, i32) {
    %c0_i32 = arith.constant 0 : i32
    %c0_i32_0 = arith.constant 0 : i32
    %c0_i32_1 = arith.constant 0 : i32
    return %c0_i32, %c0_i32_0 : i32, i32
  }
  func.func @transform_3(%arg0: i32, %arg1: i32) -> (i32, i32) {
    %c0_i32 = arith.constant 0 : i32
    %c0_i32_0 = arith.constant 0 : i32
    %c0_i32_1 = arith.constant 0 : i32
    return %c0_i32, %c0_i32_0 : i32, i32
  }
  func.func @transform_4(%arg0: i32, %arg1: i32) -> (i32, i32) {
    %c0_i32 = arith.constant 0 : i32
    %c0_i32_0 = arith.constant 0 : i32
    %c0_i32_1 = arith.constant 0 : i32
    return %c0_i32, %c0_i32_0 : i32, i32
  }
  func.func @transform_5(%arg0: i32, %arg1: i32) -> (i32, i32) {
    %c0_i32 = arith.constant 0 : i32
    %c0_i32_0 = arith.constant 0 : i32
    %c0_i32_1 = arith.constant 0 : i32
    return %c0_i32, %c0_i32_0 : i32, i32
  }
  func.func @transform_6(%arg0: i32, %arg1: i32) -> (i32, i32, i32, i32) {
    %c0_i32 = arith.constant 0 : i32
    %c0_i32_0 = arith.constant 0 : i32
    %c0_i32_1 = arith.constant 0 : i32
    return %arg0, %arg1, %c0_i32, %c0_i32_0 : i32, i32, i32, i32
  }
}

</mosaic_0001>

<llo_original>
// kernel: residual_block_pallas.1
$region0: #{residual_block_pallas.1}
  #allocation0 [shape = 'u32[]', space=smem, size = 0x4, offset = 0x4, fixed_abs, tag = 'smem constant byte address 0x4 - core index']
  #allocation1 [shape = 'u32[144,128]{1,0:T(1,128)}', space=vmem, size = 0x12000, scoped, tag = 'internal scratch']
  %s0 = inlined_call_operand.vmem [shape: bf16[2,16,18,128], index: 0, kind: input, shape index: {}]
  %s1 = inlined_call_operand.vmem [shape: bf16[2,1,2,18,128], index: 1, kind: input, shape index: {}]
  %s2 = inlined_call_operand.vmem [shape: bf16[128,128], index: 2, kind: input, shape index: {}]
  %s3 = inlined_call_operand.vmem [shape: f32[1,128], index: 3, kind: input, shape index: {}]
  %s4 = inlined_call_operand.vmem [shape: bf16[1152,128], index: 4, kind: input, shape index: {}]
  %s5 = inlined_call_operand.vmem [shape: f32[1,128], index: 5, kind: input, shape index: {}]
  %s6 = inlined_call_operand.vmem [shape: bf16[2,16,16,128], index: 6, kind: output, shape index: {}]
  %s7 = sld [smem:[#allocation0]]
  $region57: #{residual_block_pallas.1} parent=0
    _
  %s9 = ssub.s32 1, %s7
  %s10 = scalar_select 0, %s9, %s7
  loop: start=0, step=1, limit=4
  $region2: #{residual_block_pallas.1} parent=0 // loop_pre_header
    _
  $region3: #{residual_block_pallas.1} parent=0 // loop_header
    %s12 = sphi 0, %s16
    %p13 = scmp.ge.s32.totalorder %s12, 4
    %s19 = sphi 0, %s31
    %s20 = sphi 0, %s27
    %s21 = sphi 0, %s19
    %s22 = sphi 0, %s20
    %s23 = sphi 0, %s21
    %s24 = sphi 0, %s22
    %s36 = sphi 0, %s38
    %s39 = sphi 0, %s36
    %s40 = sphi 0, %s39
    %s56 = sphi 0, %s40
    %s64 = sphi 0, %s66
    %s67 = sphi 0, %s64
    %s68 = sphi 0, %s67
    %s84 = sphi 0, %s68
    %s88 = sphi 0, %s88
    %s90 = sphi 0, %s88
    %s91 = sphi 0, %s90
    %s105 = sphi 0, %s91
    %s109 = sphi 0, %s109
    %s111 = sphi 0, %s109
    %s112 = sphi 0, %s111
    %s126 = sphi 0, %s112
    %s130 = sphi 0, %s130
    %s132 = sphi 0, %s130
    %s133 = sphi 0, %s132
    %s147 = sphi 0, %s133
    %s151 = sphi 0, %s151
    %s153 = sphi 0, %s151
    %s154 = sphi 0, %s153
    %s168 = sphi 0, %s154
    %s176 = sphi 0, %s178
    %s179 = sphi 0, %s176
    %s180 = sphi 0, %s179
    %s196 = sphi 0, %s180
  $region4: #{residual_block_pallas.1} parent=0 // loop_header_branch
    %15 = sbr.rel (%p13) target = $region8
  $region5: #{residual_block_pallas.1} parent=0 // loop_body
    %s17 = ssub.s32 %s12, 1
    %s18 = ssub.s32 %s12, 2
    %s25 = sadd.s32 1, %s20
    %p26 = scmp.ge.s32.totalorder %s25, 1
    %s27 = scalar_select %p26, 0, %s25
    %s28 = sadd.s32 1, %s19
    %s29 = scalar_select %p26, %s28, %s19
    %p30 = scmp.ge.s32.totalorder %s29, 2
    %s31 = scalar_select %p30, 0, %s29
    %s32 = ssub.s32 %s19, %s31
    %s33 = ssub.s32 %s20, %s27
    %s34 = sor.u32 %s32, %s33
    %p35 = scmp.eq.s32.totalorder %s34, 0
    %s37 = sadd.s32 %s36, 1
    %s38 = scalar_select %p35, %s36, %s37
    %p41 = pneg %p35
    %p42 = scmp.eq.s32.totalorder %s12, 1
    %p43 = por %p41, %p42
    %p44 = scmp.ne.s32.totalorder %s36, %s39
    %p45 = scmp.eq.s32.totalorder %s12, 0
    %p46 = por %p44, %p45
    %p47 = scmp.ne.s32.totalorder %s36, %s39
    %p48 = scmp.eq.s32.totalorder %s17, 1
    %p49 = por %p47, %p48
    %p50 = scmp.ne.s32.totalorder %s39, %s40
    %p51 = scmp.eq.s32.totalorder %s17, 0
    %p52 = por %p50, %p51
    %p53 = scmp.ne.s32.totalorder %s39, %s40
    %p54 = scmp.eq.s32.totalorder %s18, 1
    %p55 = por %p53, %p54
    %p57 = scmp.ne.s32.totalorder %s40, %s56
    %p58 = scmp.eq.s32.totalorder %s18, 0
    %p59 = por %p57, %p58
    %s60 = ssub.s32 %s19, %s31
    %s61 = ssub.s32 %s20, %s27
    %s62 = sor.u32 %s60, %s61
    %p63 = scmp.eq.s32.totalorder %s62, 0
    %s65 = sadd.s32 %s64, 1
    %s66 = scalar_select %p63, %s64, %s65
    %p69 = pneg %p63
    %p70 = scmp.eq.s32.totalorder %s12, 1
    %p71 = por %p69, %p70
    %p72 = scmp.ne.s32.totalorder %s64, %s67
    %p73 = scmp.eq.s32.totalorder %s12, 0
    %p74 = por %p72, %p73
    %p75 = scmp.ne.s32.totalorder %s64, %s67
    %p76 = scmp.eq.s32.totalorder %s17, 1
    %p77 = por %p75, %p76
    %p78 = scmp.ne.s32.totalorder %s67, %s68
    %p79 = scmp.eq.s32.totalorder %s17, 0
    %p80 = por %p78, %p79
    %p81 = scmp.ne.s32.totalorder %s67, %s68
    %p82 = scmp.eq.s32.totalorder %s18, 1
    %p83 = por %p81, %p82
    %p85 = scmp.ne.s32.totalorder %s68, %s84
    %p86 = scmp.eq.s32.totalorder %s18, 0
    %p87 = por %p85, %p86
    %s89 = sadd.s32 %s88, 1
    %p92 = scmp.eq.s32.totalorder %s12, 1
    %p93 = scmp.ne.s32.totalorder %s88, %s90
    %p94 = scmp.eq.s32.totalorder %s12, 0
    %p95 = por %p93, %p94
    %p96 = scmp.ne.s32.totalorder %s88, %s90
    %p97 = scmp.eq.s32.totalorder %s17, 1
    %p98 = por %p96, %p97
    %p99 = scmp.ne.s32.totalorder %s90, %s91
    %p100 = scmp.eq.s32.totalorder %s17, 0
    %p101 = por %p99, %p100
    %p102 = scmp.ne.s32.totalorder %s90, %s91
    %p103 = scmp.eq.s32.totalorder %s18, 1
    %p104 = por %p102, %p103
    %p106 = scmp.ne.s32.totalorder %s91, %s105
    %p107 = scmp.eq.s32.totalorder %s18, 0
    %p108 = por %p106, %p107
    %s110 = sadd.s32 %s109, 1
    %p113 = scmp.eq.s32.totalorder %s12, 1
    %p114 = scmp.ne.s32.totalorder %s109, %s111
    %p115 = scmp.eq.s32.totalorder %s12, 0
    %p116 = por %p114, %p115
    %p117 = scmp.ne.s32.totalorder %s109, %s111
    %p118 = scmp.eq.s32.totalorder %s17, 1
    %p119 = por %p117, %p118
    %p120 = scmp.ne.s32.totalorder %s111, %s112
    %p121 = scmp.eq.s32.totalorder %s17, 0
    %p122 = por %p120, %p121
    %p123 = scmp.ne.s32.totalorder %s111, %s112
    %p124 = scmp.eq.s32.totalorder %s18, 1
    %p125 = por %p123, %p124
    %p127 = scmp.ne.s32.totalorder %s112, %s126
    %p128 = scmp.eq.s32.totalorder %s18, 0
    %p129 = por %p127, %p128
    %s131 = sadd.s32 %s130, 1
    %p134 = scmp.eq.s32.totalorder %s12, 1
    %p135 = scmp.ne.s32.totalorder %s130, %s132
    %p136 = scmp.eq.s32.totalorder %s12, 0
    %p137 = por %p135, %p136
    %p138 = scmp.ne.s32.totalorder %s130, %s132
    %p139 = scmp.eq.s32.totalorder %s17, 1
    %p140 = por %p138, %p139
    %p141 = scmp.ne.s32.totalorder %s132, %s133
    %p142 = scmp.eq.s32.totalorder %s17, 0
    %p143 = por %p141, %p142
    %p144 = scmp.ne.s32.totalorder %s132, %s133
    %p145 = scmp.eq.s32.totalorder %s18, 1
    %p146 = por %p144, %p145
    %p148 = scmp.ne.s32.totalorder %s133, %s147
    %p149 = scmp.eq.s32.totalorder %s18, 0
    %p150 = por %p148, %p149
    %s152 = sadd.s32 %s151, 1
    %p155 = scmp.eq.s32.totalorder %s12, 1
    %p156 = scmp.ne.s32.totalorder %s151, %s153
    %p157 = scmp.eq.s32.totalorder %s12, 0
    %p158 = por %p156, %p157
    %p159 = scmp.ne.s32.totalorder %s151, %s153
    %p160 = scmp.eq.s32.totalorder %s17, 1
    %p161 = por %p159, %p160
    %p162 = scmp.ne.s32.totalorder %s153, %s154
    %p163 = scmp.eq.s32.totalorder %s17, 0
    %p164 = por %p162, %p163
    %p165 = scmp.ne.s32.totalorder %s153, %s154
    %p166 = scmp.eq.s32.totalorder %s18, 1
    %p167 = por %p165, %p166
    %p169 = scmp.ne.s32.totalorder %s154, %s168
    %p170 = scmp.eq.s32.totalorder %s18, 0
    %p171 = por %p169, %p170
    %s172 = ssub.s32 %s19, %s31
    %s173 = ssub.s32 %s20, %s27
    %s174 = sor.u32 %s172, %s173
    %p175 = scmp.eq.s32.totalorder %s174, 0
    %s177 = sadd.s32 %s176, 1
    %s178 = scalar_select %p175, %s176, %s177
    %p181 = pneg %p175
    %p182 = scmp.eq.s32.totalorder %s12, 1
    %p183 = por %p181, %p182
    %p184 = scmp.ne.s32.totalorder %s176, %s179
    %p185 = scmp.eq.s32.totalorder %s12, 0
    %p186 = por %p184, %p185
    %p187 = scmp.ne.s32.totalorder %s176, %s179
    %p188 = scmp.eq.s32.totalorder %s17, 1
    %p189 = por %p187, %p188
    %p190 = scmp.ne.s32.totalorder %s179, %s180
    %p191 = scmp.eq.s32.totalorder %s17, 0
    %p192 = por %p190, %p191
    %p193 = scmp.ne.s32.totalorder %s179, %s180
    %p194 = scmp.eq.s32.totalorder %s18, 1
    %p195 = por %p193, %p194
    %p197 = scmp.ne.s32.totalorder %s180, %s196
    %p198 = scmp.eq.s32.totalorder %s18, 0
    %p199 = por %p197, %p198
    %p200 = scmp.le.s32.totalorder 1, %s12
    %p201 = scmp.lt.s32.totalorder %s12, 3
    %p202 = pnand %p200, %p201
    %p203 = pneg %p202
    // Predicated region
    $region9: #{residual_block_pallas.1} parent=5 // pred_check
      _
    $region10: #{residual_block_pallas.1} parent=5 // pred_check_branch
      %205 = sbr.rel (%p202) target = $region12
    $region11: #{residual_block_pallas.1} parent=5 // pred_region
      %s206 = ssub.s32 %s12, 1
      // Predicated region
      $region13: #{residual_block_pallas.1} parent=11 // pred_check
        %p207 = pneg %p101
      $region14: #{residual_block_pallas.1} parent=11 // pred_check_branch
        %209 = sbr.rel (%p207) target = $region16
      $region15: #{residual_block_pallas.1} parent=11 // pred_region
        _
      $region16: #{residual_block_pallas.1} parent=11 // pred_fallthru
        _
      // Predicated region
      $region17: #{residual_block_pallas.1} parent=11 // pred_check
        %p210 = pneg %p122
      $region18: #{residual_block_pallas.1} parent=11 // pred_check_branch
        %212 = sbr.rel (%p210) target = $region20
      $region19: #{residual_block_pallas.1} parent=11 // pred_region
        _
      $region20: #{residual_block_pallas.1} parent=11 // pred_fallthru
        _
      // Predicated region
      $region21: #{residual_block_pallas.1} parent=11 // pred_check
        %p213 = pneg %p143
      $region22: #{residual_block_pallas.1} parent=11 // pred_check_branch
        %215 = sbr.rel (%p213) target = $region24
      $region23: #{residual_block_pallas.1} parent=11 // pred_region
        _
      $region24: #{residual_block_pallas.1} parent=11 // pred_fallthru
        _
      // Predicated region
      $region25: #{residual_block_pallas.1} parent=11 // pred_check
        %p216 = pneg %p164
      $region26: #{residual_block_pallas.1} parent=11 // pred_check_branch
        %218 = sbr.rel (%p216) target = $region28
      $region27: #{residual_block_pallas.1} parent=11 // pred_region
        _
      $region28: #{residual_block_pallas.1} parent=11 // pred_fallthru
        _
    $region12: #{residual_block_pallas.1} parent=5 // pred_fallthru
      _
    %p219 = scmp.lt.s32.totalorder %s12, 2
    // Predicated region
    $region29: #{residual_block_pallas.1} parent=5 // pred_check
      %p220 = pneg %p219
    $region30: #{residual_block_pallas.1} parent=5 // pred_check_branch
      %222 = sbr.rel (%p220) target = $region32
    $region31: #{residual_block_pallas.1} parent=5 // pred_region
      // Predicated region
      $region33: #{residual_block_pallas.1} parent=31 // pred_check
        %p223 = pneg %p46
      $region34: #{residual_block_pallas.1} parent=31 // pred_check_branch
        %225 = sbr.rel (%p223) target = $region36
      $region35: #{residual_block_pallas.1} parent=31 // pred_region
        %s226 = smul.u32 16, %s20
        %p227 = scmp.lt.s32.totalorder %s19, 1
        %s228 = scalar_select %p227, %s19, 1
        %p229 = scmp.lt.s32.totalorder %s226, 15
        %s230 = scalar_select %p229, %s226, 15
        %s231 = smul.addr %s230, 3
        %s232 = smul.addr %s228, 48
        %s233 = sadd.s32 %s231, %s232
        %s234 = smul.addr %s233, 4
        %s235 = scalar_lea.vmem %s0, %s234
        %s236 = smul.u32 16, %s20
      $region36: #{residual_block_pallas.1} parent=31 // pred_fallthru
        _
      // Predicated region
      $region37: #{residual_block_pallas.1} parent=31 // pred_check
        %p237 = pneg %p74
      $region38: #{residual_block_pallas.1} parent=31 // pred_check_branch
        %239 = sbr.rel (%p237) target = $region40
      $region39: #{residual_block_pallas.1} parent=31 // pred_region
        %p240 = scmp.lt.s32.totalorder %s19, 1
        %s241 = scalar_select %p240, %s19, 1
        %p242 = scmp.lt.s32.totalorder %s20, 0
        %s243 = scalar_select %p242, %s20, 0
        %s244 = smul.addr %s243, 6
        %s245 = smul.addr %s241, 6
        %s246 = sadd.s32 %s244, %s245
        %s247 = smul.addr %s246, 4
        %s248 = scalar_lea.vmem %s1, %s247
      $region40: #{residual_block_pallas.1} parent=31 // pred_fallthru
        _
    $region32: #{residual_block_pallas.1} parent=5 // pred_fallthru
      _
    %p249 = scmp.le.s32.totalorder 1, %s12
    %p250 = scmp.lt.s32.totalorder %s12, 3
    %p251 = pnand %p249, %p250
    %p252 = pneg %p251
    // Predicated region
    $region41: #{residual_block_pallas.1} parent=5 // pred_check
      _
    $region42: #{residual_block_pallas.1} parent=5 // pred_check_branch
      %254 = sbr.rel (%p251) target = $region44
    $region43: #{residual_block_pallas.1} parent=5 // pred_region
      %s255 = ssub.s32 %s12, 1
      %s256 = smul.u32 16, %s22
      %p257 = scmp.lt.s32.totalorder %s21, 1
      %s258 = scalar_select %p257, %s21, 1
      %p259 = scmp.lt.s32.totalorder %s256, 15
      %s260 = scalar_select %p259, %s256, 15
      %s261 = smul.addr %s260, 3
      %s262 = smul.addr %s258, 48
      %s263 = sadd.s32 %s261, %s262
      %s264 = smul.addr %s263, 4
      %s265 = scalar_lea.vmem %s0, %s264
      %p266 = pneg %p52
      %p267 = pneg %p49
      %p268 = scmp.lt.s32.totalorder %s21, 1
      %s269 = scalar_select %p268, %s21, 1
      %p270 = scmp.lt.s32.totalorder %s22, 0
      %s271 = scalar_select %p270, %s22, 0
      %s272 = smul.addr %s271, 6
      %s273 = smul.addr %s269, 6
      %s274 = sadd.s32 %s272, %s273
      %s275 = smul.addr %s274, 4
      %s276 = scalar_lea.vmem %s1, %s275
      %p277 = pneg %p80
      %p278 = pneg %p77
      %p279 = pneg %p101
      %p280 = pneg %p98
      %p281 = pneg %p122
      %p282 = pneg %p119
      %p283 = pneg %p143
      %p284 = pneg %p140
      %p285 = pneg %p164
      %p286 = pneg %p161
      %p287 = pneg %p192
      %p288 = pneg %p189
      %s289 = smul.u32 16, %s22
      %p290 = scmp.lt.s32.totalorder %s21, 1
      %s291 = scalar_select %p290, %s21, 1
      %p292 = scmp.lt.s32.totalorder %s289, 15
      %s293 = scalar_select %p292, %s289, 15
      %s294 = smul.addr %s293, 2
      %s295 = smul.addr %s291, 32
      %s296 = sadd.s32 %s294, %s295
      %s297 = smul.addr %s296, 4
      %s298 = scalar_lea.vmem %s6, %s297
      %s299 = smul.u32 16, %s22
      %p300 = scmp.lt.s32.totalorder %s21, 1
      %s301 = scalar_select %p300, %s21, 1
      %p302 = scmp.lt.s32.totalorder %s299, 15
      %s303 = scalar_select %p302, %s299, 15
      %s304 = smul.addr %s303, 3
      %s305 = smul.addr %s301, 48
      %s306 = sadd.s32 %s304, %s305
      %s307 = smul.addr %s306, 4
      %s308 = scalar_lea.vmem %s0, %s307
      %s309 = smul.u32 16, %s22
      %p310 = scmp.lt.s32.totalorder %s21, 1
      %s311 = scalar_select %p310, %s21, 1
      %p312 = scmp.lt.s32.totalorder %s22, 0
      %s313 = scalar_select %p312, %s22, 0
      %s314 = smul.addr %s313, 6
      %s315 = smul.addr %s311, 6
      %s316 = sadd.s32 %s314, %s315
      %s317 = smul.addr %s316, 4
      %s318 = scalar_lea.vmem %s1, %s317
      %s319 = smul.u32 16, %s22
      %p320 = scmp.lt.s32.totalorder %s21, 1
      %s321 = scalar_select %p320, %s21, 1
      %p322 = scmp.lt.s32.totalorder %s319, 15
      %s323 = scalar_select %p322, %s319, 15
      %s324 = smul.addr %s323, 2
      %s325 = smul.addr %s321, 32
      %s326 = sadd.s32 %s324, %s325
      %s327 = smul.addr %s326, 4
      %s328 = scalar_lea.vmem %s6, %s327
      %s329 = smul.u32 16, %s22
      %v331 = vld [vmem:[%s308] sm:$0xf]
      %v332 = vld [vmem:[%s308 + $0x4] sm:$0xf]
      %v333 = vld [vmem:[%s308 + $0x8] sm:$0x1]
      %v334 = vld [vmem:[%s308 + $0xc] sm:$0xf]
      %v335 = vld [vmem:[%s308 + $0x10] sm:$0xf]
      %v336 = vld [vmem:[%s308 + $0x14] sm:$0x1]
      %v337 = vld [vmem:[%s308 + $0x18] sm:$0xf]
      %v338 = vld [vmem:[%s308 + $0x1c] sm:$0xf]
      %v339 = vld [vmem:[%s308 + $0x20] sm:$0x1]
      %v340 = vld [vmem:[%s308 + $0x24] sm:$0xf]
      %v341 = vld [vmem:[%s308 + $0x28] sm:$0xf]
      %v342 = vld [vmem:[%s308 + $0x2c] sm:$0x1]
      %v343 = vld [vmem:[%s308 + $0x30] sm:$0xf]
      %v344 = vld [vmem:[%s308 + $0x34] sm:$0xf]
      %v345 = vld [vmem:[%s308 + $0x38] sm:$0x1]
      %v346 = vld [vmem:[%s308 + $0x3c] sm:$0xf]
      %v347 = vld [vmem:[%s308 + $0x40] sm:$0xf]
      %v348 = vld [vmem:[%s308 + $0x44] sm:$0x1]
      %v349 = vld [vmem:[%s308 + $0x48] sm:$0xf]
      %v350 = vld [vmem:[%s308 + $0x4c] sm:$0xf]
      %v351 = vld [vmem:[%s308 + $0x50] sm:$0x1]
      %v352 = vld [vmem:[%s308 + $0x54] sm:$0xf]
      %v353 = vld [vmem:[%s308 + $0x58] sm:$0xf]
      %v354 = vld [vmem:[%s308 + $0x5c] sm:$0x1]
      %v355 = vld [vmem:[%s308 + $0x60] sm:$0xf]
      %v356 = vld [vmem:[%s308 + $0x64] sm:$0xf]
      %v357 = vld [vmem:[%s308 + $0x68] sm:$0x1]
      %v358 = vld [vmem:[%s308 + $0x6c] sm:$0xf]
      %v359 = vld [vmem:[%s308 + $0x70] sm:$0xf]
      %v360 = vld [vmem:[%s308 + $0x74] sm:$0x1]
      %v361 = vld [vmem:[%s308 + $0x78] sm:$0xf]
      %v362 = vld [vmem:[%s308 + $0x7c] sm:$0xf]
      %v363 = vld [vmem:[%s308 + $0x80] sm:$0x1]
      %v364 = vld [vmem:[%s308 + $0x84] sm:$0xf]
      %v365 = vld [vmem:[%s308 + $0x88] sm:$0xf]
      %v366 = vld [vmem:[%s308 + $0x8c] sm:$0x1]
      %v367 = vld [vmem:[%s308 + $0x90] sm:$0xf]
      %v368 = vld [vmem:[%s308 + $0x94] sm:$0xf]
      %v369 = vld [vmem:[%s308 + $0x98] sm:$0x1]
      %v370 = vld [vmem:[%s308 + $0x9c] sm:$0xf]
      %v371 = vld [vmem:[%s308 + $0xa0] sm:$0xf]
      %v372 = vld [vmem:[%s308 + $0xa4] sm:$0x1]
      %v373 = vld [vmem:[%s308 + $0xa8] sm:$0xf]
      %v374 = vld [vmem:[%s308 + $0xac] sm:$0xf]
      %v375 = vld [vmem:[%s308 + $0xb0] sm:$0x1]
      %v376 = vld [vmem:[%s308 + $0xb4] sm:$0xf]
      %v377 = vld [vmem:[%s308 + $0xb8] sm:$0xf]
      %v378 = vld [vmem:[%s308 + $0xbc] sm:$0x1]
      %v379 = vld [vmem:[%s318] sm:$0xf]
      %v380 = vld [vmem:[%s318 + $0x4] sm:$0xf]
      %v381 = vld [vmem:[%s318 + $0x8] sm:$0x1]
      %v382 = vld [vmem:[%s318 + $0xc] sm:$0xf]
      %v383 = vld [vmem:[%s318 + $0x10] sm:$0xf]
      %v384 = vld [vmem:[%s318 + $0x14] sm:$0x1]
      %v440 = vunpack.c.l.s4 1966171168
      %v441 = vunpack.c.0.s8 %v440
      %v442 = vlaneseq
      %v443 = vshrl.u32 %v442, 7
      %v444 = vsub.s32 %v441, %v443
      %v445 = vrot.slane %v379, %v444
      %v446 = vcombine.high %v445, %v445
      %v448 = vunpack.c.l.s4 1966171168
      %v449 = vunpack.c.0.s8 %v448
      %v450 = vlaneseq
      %v451 = vshrl.u32 %v450, 7
      %v452 = vsub.s32 %v449, %v451
      %v453 = vrot.slane %v445, %v452
      %v455 = vunpack.c.l.s4 1966171168
      %v456 = vunpack.c.0.s8 %v455
      %v457 = vlaneseq
      %v458 = vshrl.u32 %v457, 7
      %v459 = vsub.s32 %v456, %v458
      %v460 = vrot.slane %v446, %v459
      %v461 = vcombine.high %v453, %v453
      %v462 = vcombine.high %v460, %v460
      %v464 = vunpack.c.l.s4 1966171168
      %v465 = vunpack.c.0.s8 %v464
      %v466 = vlaneseq
      %v467 = vshrl.u32 %v466, 7
      %v468 = vsub.s32 %v465, %v467
      %v469 = vrot.slane %v380, %v468
      %v470 = vcombine.high %v469, %v469
      %v472 = vunpack.c.l.s4 1966171168
      %v473 = vunpack.c.0.s8 %v472
      %v474 = vlaneseq
      %v475 = vshrl.u32 %v474, 7
      %v476 = vsub.s32 %v473, %v475
      %v477 = vrot.slane %v469, %v476
      %v479 = vunpack.c.l.s4 1966171168
      %v480 = vunpack.c.0.s8 %v479
      %v481 = vlaneseq
      %v482 = vshrl.u32 %v481, 7
      %v483 = vsub.s32 %v480, %v482
      %v484 = vrot.slane %v470, %v483
      %v485 = vcombine.high %v477, %v477
      %v486 = vcombine.high %v484, %v484
      %v488 = vunpack.c.l.s4 1966171168
      %v489 = vunpack.c.0.s8 %v488
      %v490 = vlaneseq
      %v491 = vshrl.u32 %v490, 7
      %v492 = vsub.s32 %v489, %v491
      %v493 = vrot.slane %v381, %v492
      %v495 = vunpack.c.l.s4 1966171168
      %v496 = vunpack.c.0.s8 %v495
      %v497 = vlaneseq
      %v498 = vshrl.u32 %v497, 7
      %v499 = vsub.s32 %v496, %v498
      %v500 = vrot.slane %v493, %v499
      %v502 = vunpack.c.l.s4 1966171168
      %v503 = vunpack.c.0.s8 %v502
      %v504 = vlaneseq
      %v505 = vshrl.u32 %v504, 7
      %v506 = vsub.s32 %v503, %v505
      %v507 = vrot.slane %v331, %v506
      %v508 = vcombine.high %v507, %v507
      %v510 = vunpack.c.l.s4 1966171168
      %v511 = vunpack.c.0.s8 %v510
      %v512 = vlaneseq
      %v513 = vshrl.u32 %v512, 7
      %v514 = vsub.s32 %v511, %v513
      %v515 = vrot.slane %v507, %v514
      %v517 = vunpack.c.l.s4 1966171168
      %v518 = vunpack.c.0.s8 %v517
      %v519 = vlaneseq
      %v520 = vshrl.u32 %v519, 7
      %v521 = vsub.s32 %v518, %v520
      %v522 = vrot.slane %v508, %v521
      %v523 = vcombine.high %v515, %v515
      %v524 = vcombine.high %v522, %v522
      %v526 = vunpack.c.l.s4 1966171168
      %v527 = vunpack.c.0.s8 %v526
      %v528 = vlaneseq
      %v529 = vshrl.u32 %v528, 7
      %v530 = vsub.s32 %v527, %v529
      %v531 = vrot.slane %v332, %v530
      %v532 = vcombine.high %v531, %v531
      %v534 = vunpack.c.l.s4 1966171168
      %v535 = vunpack.c.0.s8 %v534
      %v536 = vlaneseq
      %v537 = vshrl.u32 %v536, 7
      %v538 = vsub.s32 %v535, %v537
      %v539 = vrot.slane %v531, %v538
      %v541 = vunpack.c.l.s4 1966171168
      %v542 = vunpack.c.0.s8 %v541
      %v543 = vlaneseq
      %v544 = vshrl.u32 %v543, 7
      %v545 = vsub.s32 %v542, %v544
      %v546 = vrot.slane %v532, %v545
      %v547 = vcombine.high %v539, %v539
      %v548 = vcombine.high %v546, %v546
      %v550 = vunpack.c.l.s4 1966171168
      %v551 = vunpack.c.0.s8 %v550
      %v552 = vlaneseq
      %v553 = vshrl.u32 %v552, 7
      %v554 = vsub.s32 %v551, %v553
      %v555 = vrot.slane %v333, %v554
      %v557 = vunpack.c.l.s4 1966171168
      %v558 = vunpack.c.0.s8 %v557
      %v559 = vlaneseq
      %v560 = vshrl.u32 %v559, 7
      %v561 = vsub.s32 %v558, %v560
      %v562 = vrot.slane %v555, %v561
      %v564 = vunpack.c.l.s4 1966171168
      %v565 = vunpack.c.0.s8 %v564
      %v566 = vlaneseq
      %v567 = vshrl.u32 %v566, 7
      %v568 = vsub.s32 %v565, %v567
      %v569 = vrot.slane %v334, %v568
      %v570 = vcombine.high %v569, %v569
      %v572 = vunpack.c.l.s4 1966171168
      %v573 = vunpack.c.0.s8 %v572
      %v574 = vlaneseq
      %v575 = vshrl.u32 %v574, 7
      %v576 = vsub.s32 %v573, %v575
      %v577 = vrot.slane %v569, %v576
      %v579 = vunpack.c.l.s4 1966171168
      %v580 = vunpack.c.0.s8 %v579
      %v581 = vlaneseq
      %v582 = vshrl.u32 %v581, 7
      %v583 = vsub.s32 %v580, %v582
      %v584 = vrot.slane %v570, %v583
      %v585 = vcombine.high %v577, %v577
      %v586 = vcombine.high %v584, %v584
      %v588 = vunpack.c.l.s4 1966171168
      %v589 = vunpack.c.0.s8 %v588
      %v590 = vlaneseq
      %v591 = vshrl.u32 %v590, 7
      %v592 = vsub.s32 %v589, %v591
      %v593 = vrot.slane %v335, %v592
      %v594 = vcombine.high %v593, %v593
      %v596 = vunpack.c.l.s4 1966171168
      %v597 = vunpack.c.0.s8 %v596
      %v598 = vlaneseq
      %v599 = vshrl.u32 %v598, 7
      %v600 = vsub.s32 %v597, %v599
      %v601 = vrot.slane %v593, %v600
      %v603 = vunpack.c.l.s4 1966171168
      %v604 = vunpack.c.0.s8 %v603
      %v605 = vlaneseq
      %v606 = vshrl.u32 %v605, 7
      %v607 = vsub.s32 %v604, %v606
      %v608 = vrot.slane %v594, %v607
      %v609 = vcombine.high %v601, %v601
      %v610 = vcombine.high %v608, %v608
      %v612 = vunpack.c.l.s4 1966171168
      %v613 = vunpack.c.0.s8 %v612
      %v614 = vlaneseq
      %v615 = vshrl.u32 %v614, 7
      %v616 = vsub.s32 %v613, %v615
      %v617 = vrot.slane %v336, %v616
      %v619 = vunpack.c.l.s4 1966171168
      %v620 = vunpack.c.0.s8 %v619
      %v621 = vlaneseq
      %v622 = vshrl.u32 %v621, 7
      %v623 = vsub.s32 %v620, %v622
      %v624 = vrot.slane %v617, %v623
      %v626 = vunpack.c.l.s4 1966171168
      %v627 = vunpack.c.0.s8 %v626
      %v628 = vlaneseq
      %v629 = vshrl.u32 %v628, 7
      %v630 = vsub.s32 %v627, %v629
      %v631 = vrot.slane %v337, %v630
      %v632 = vcombine.high %v631, %v631
      %v634 = vunpack.c.l.s4 1966171168
      %v635 = vunpack.c.0.s8 %v634
      %v636 = vlaneseq
      %v637 = vshrl.u32 %v636, 7
      %v638 = vsub.s32 %v635, %v637
      %v639 = vrot.slane %v631, %v638
      %v641 = vunpack.c.l.s4 1966171168
      %v642 = vunpack.c.0.s8 %v641
      %v643 = vlaneseq
      %v644 = vshrl.u32 %v643, 7
      %v645 = vsub.s32 %v642, %v644
      %v646 = vrot.slane %v632, %v645
      %v647 = vcombine.high %v639, %v639
      %v648 = vcombine.high %v646, %v646
      %v650 = vunpack.c.l.s4 1966171168
      %v651 = vunpack.c.0.s8 %v650
      %v652 = vlaneseq
      %v653 = vshrl.u32 %v652, 7
      %v654 = vsub.s32 %v651, %v653
      %v655 = vrot.slane %v338, %v654
      %v656 = vcombine.high %v655, %v655
      %v658 = vunpack.c.l.s4 1966171168
      %v659 = vunpack.c.0.s8 %v658
      %v660 = vlaneseq
      %v661 = vshrl.u32 %v660, 7
      %v662 = vsub.s32 %v659, %v661
      %v663 = vrot.slane %v655, %v662
      %v665 = vunpack.c.l.s4 1966171168
      %v666 = vunpack.c.0.s8 %v665
      %v667 = vlaneseq
      %v668 = vshrl.u32 %v667, 7
      %v669 = vsub.s32 %v666, %v668
      %v670 = vrot.slane %v656, %v669
      %v671 = vcombine.high %v663, %v663
      %v672 = vcombine.high %v670, %v670
      %v674 = vunpack.c.l.s4 1966171168
      %v675 = vunpack.c.0.s8 %v674
      %v676 = vlaneseq
      %v677 = vshrl.u32 %v676, 7
      %v678 = vsub.s32 %v675, %v677
      %v679 = vrot.slane %v339, %v678
      %v681 = vunpack.c.l.s4 1966171168
      %v682 = vunpack.c.0.s8 %v681
      %v683 = vlaneseq
      %v684 = vshrl.u32 %v683, 7
      %v685 = vsub.s32 %v682, %v684
      %v686 = vrot.slane %v679, %v685
      %v688 = vunpack.c.l.s4 1966171168
      %v689 = vunpack.c.0.s8 %v688
      %v690 = vlaneseq
      %v691 = vshrl.u32 %v690, 7
      %v692 = vsub.s32 %v689, %v691
      %v693 = vrot.slane %v340, %v692
      %v694 = vcombine.high %v693, %v693
      %v696 = vunpack.c.l.s4 1966171168
      %v697 = vunpack.c.0.s8 %v696
      %v698 = vlaneseq
      %v699 = vshrl.u32 %v698, 7
      %v700 = vsub.s32 %v697, %v699
      %v701 = vrot.slane %v693, %v700
      %v703 = vunpack.c.l.s4 1966171168
      %v704 = vunpack.c.0.s8 %v703
      %v705 = vlaneseq
      %v706 = vshrl.u32 %v705, 7
      %v707 = vsub.s32 %v704, %v706
      %v708 = vrot.slane %v694, %v707
      %v709 = vcombine.high %v701, %v701
      %v710 = vcombine.high %v708, %v708
      %v712 = vunpack.c.l.s4 1966171168
      %v713 = vunpack.c.0.s8 %v712
      %v714 = vlaneseq
      %v715 = vshrl.u32 %v714, 7
      %v716 = vsub.s32 %v713, %v715
      %v717 = vrot.slane %v341, %v716
      %v718 = vcombine.high %v717, %v717
      %v720 = vunpack.c.l.s4 1966171168
      %v721 = vunpack.c.0.s8 %v720
      %v722 = vlaneseq
      %v723 = vshrl.u32 %v722, 7
      %v724 = vsub.s32 %v721, %v723
      %v725 = vrot.slane %v717, %v724
      %v727 = vunpack.c.l.s4 1966171168
      %v728 = vunpack.c.0.s8 %v727
      %v729 = vlaneseq
      %v730 = vshrl.u32 %v729, 7
      %v731 = vsub.s32 %v728, %v730
      %v732 = vrot.slane %v718, %v731
      %v733 = vcombine.high %v725, %v725
      %v734 = vcombine.high %v732, %v732
      %v736 = vunpack.c.l.s4 1966171168
      %v737 = vunpack.c.0.s8 %v736
      %v738 = vlaneseq
      %v739 = vshrl.u32 %v738, 7
      %v740 = vsub.s32 %v737, %v739
      %v741 = vrot.slane %v342, %v740
      %v743 = vunpack.c.l.s4 1966171168
      %v744 = vunpack.c.0.s8 %v743
      %v745 = vlaneseq
      %v746 = vshrl.u32 %v745, 7
      %v747 = vsub.s32 %v744, %v746
      %v748 = vrot.slane %v741, %v747
      %v750 = vunpack.c.l.s4 1966171168
      %v751 = vunpack.c.0.s8 %v750
      %v752 = vlaneseq
      %v753 = vshrl.u32 %v752, 7
      %v754 = vsub.s32 %v751, %v753
      %v755 = vrot.slane %v343, %v754
      %v756 = vcombine.high %v755, %v755
      %v758 = vunpack.c.l.s4 1966171168
      %v759 = vunpack.c.0.s8 %v758
      %v760 = vlaneseq
      %v761 = vshrl.u32 %v760, 7
      %v762 = vsub.s32 %v759, %v761
      %v763 = vrot.slane %v755, %v762
      %v765 = vunpack.c.l.s4 1966171168
      %v766 = vunpack.c.0.s8 %v765
      %v767 = vlaneseq
      %v768 = vshrl.u32 %v767, 7
      %v769 = vsub.s32 %v766, %v768
      %v770 = vrot.slane %v756, %v769
      %v771 = vcombine.high %v763, %v763
      %v772 = vcombine.high %v770, %v770
      %v774 = vunpack.c.l.s4 1966171168
      %v775 = vunpack.c.0.s8 %v774
      %v776 = vlaneseq
      %v777 = vshrl.u32 %v776, 7
      %v778 = vsub.s32 %v775, %v777
      %v779 = vrot.slane %v344, %v778
      %v780 = vcombine.high %v779, %v779
      %v782 = vunpack.c.l.s4 1966171168
      %v783 = vunpack.c.0.s8 %v782
      %v784 = vlaneseq
      %v785 = vshrl.u32 %v784, 7
      %v786 = vsub.s32 %v783, %v785
      %v787 = vrot.slane %v779, %v786
      %v789 = vunpack.c.l.s4 1966171168
      %v790 = vunpack.c.0.s8 %v789
      %v791 = vlaneseq
      %v792 = vshrl.u32 %v791, 7
      %v793 = vsub.s32 %v790, %v792
      %v794 = vrot.slane %v780, %v793
      %v795 = vcombine.high %v787, %v787
      %v796 = vcombine.high %v794, %v794
      %v798 = vunpack.c.l.s4 1966171168
      %v799 = vunpack.c.0.s8 %v798
      %v800 = vlaneseq
      %v801 = vshrl.u32 %v800, 7
      %v802 = vsub.s32 %v799, %v801
      %v803 = vrot.slane %v345, %v802
      %v805 = vunpack.c.l.s4 1966171168
      %v806 = vunpack.c.0.s8 %v805
      %v807 = vlaneseq
      %v808 = vshrl.u32 %v807, 7
      %v809 = vsub.s32 %v806, %v808
      %v810 = vrot.slane %v803, %v809
      %v812 = vunpack.c.l.s4 1966171168
      %v813 = vunpack.c.0.s8 %v812
      %v814 = vlaneseq
      %v815 = vshrl.u32 %v814, 7
      %v816 = vsub.s32 %v813, %v815
      %v817 = vrot.slane %v346, %v816
      %v818 = vcombine.high %v817, %v817
      %v820 = vunpack.c.l.s4 1966171168
      %v821 = vunpack.c.0.s8 %v820
      %v822 = vlaneseq
      %v823 = vshrl.u32 %v822, 7
      %v824 = vsub.s32 %v821, %v823
      %v825 = vrot.slane %v817, %v824
      %v827 = vunpack.c.l.s4 1966171168
      %v828 = vunpack.c.0.s8 %v827
      %v829 = vlaneseq
      %v830 = vshrl.u32 %v829, 7
      %v831 = vsub.s32 %v828, %v830
      %v832 = vrot.slane %v818, %v831
      %v833 = vcombine.high %v825, %v825
      %v834 = vcombine.high %v832, %v832
      %v836 = vunpack.c.l.s4 1966171168
      %v837 = vunpack.c.0.s8 %v836
      %v838 = vlaneseq
      %v839 = vshrl.u32 %v838, 7
      %v840 = vsub.s32 %v837, %v839
      %v841 = vrot.slane %v347, %v840
      %v842 = vcombine.high %v841, %v841
      %v844 = vunpack.c.l.s4 1966171168
      %v845 = vunpack.c.0.s8 %v844
      %v846 = vlaneseq
      %v847 = vshrl.u32 %v846, 7
      %v848 = vsub.s32 %v845, %v847
      %v849 = vrot.slane %v841, %v848
      %v851 = vunpack.c.l.s4 1966171168
      %v852 = vunpack.c.0.s8 %v851
      %v853 = vlaneseq
      %v854 = vshrl.u32 %v853, 7
      %v855 = vsub.s32 %v852, %v854
      %v856 = vrot.slane %v842, %v855
      %v857 = vcombine.high %v849, %v849
      %v858 = vcombine.high %v856, %v856
      %v860 = vunpack.c.l.s4 1966171168
      %v861 = vunpack.c.0.s8 %v860
      %v862 = vlaneseq
      %v863 = vshrl.u32 %v862, 7
      %v864 = vsub.s32 %v861, %v863
      %v865 = vrot.slane %v348, %v864
      %v867 = vunpack.c.l.s4 1966171168
      %v868 = vunpack.c.0.s8 %v867
      %v869 = vlaneseq
      %v870 = vshrl.u32 %v869, 7
      %v871 = vsub.s32 %v868, %v870
      %v872 = vrot.slane %v865, %v871
      %v874 = vunpack.c.l.s4 1966171168
      %v875 = vunpack.c.0.s8 %v874
      %v876 = vlaneseq
      %v877 = vshrl.u32 %v876, 7
      %v878 = vsub.s32 %v875, %v877
      %v879 = vrot.slane %v349, %v878
      %v880 = vcombine.high %v879, %v879
      %v882 = vunpack.c.l.s4 1966171168
      %v883 = vunpack.c.0.s8 %v882
      %v884 = vlaneseq
      %v885 = vshrl.u32 %v884, 7
      %v886 = vsub.s32 %v883, %v885
      %v887 = vrot.slane %v879, %v886
      %v889 = vunpack.c.l.s4 1966171168
      %v890 = vunpack.c.0.s8 %v889
      %v891 = vlaneseq
      %v892 = vshrl.u32 %v891, 7
      %v893 = vsub.s32 %v890, %v892
      %v894 = vrot.slane %v880, %v893
      %v895 = vcombine.high %v887, %v887
      %v896 = vcombine.high %v894, %v894
      %v898 = vunpack.c.l.s4 1966171168
      %v899 = vunpack.c.0.s8 %v898
      %v900 = vlaneseq
      %v901 = vshrl.u32 %v900, 7
      %v902 = vsub.s32 %v899, %v901
      %v903 = vrot.slane %v350, %v902
      %v904 = vcombine.high %v903, %v903
      %v906 = vunpack.c.l.s4 1966171168
      %v907 = vunpack.c.0.s8 %v906
      %v908 = vlaneseq
      %v909 = vshrl.u32 %v908, 7
      %v910 = vsub.s32 %v907, %v909
      %v911 = vrot.slane %v903, %v910
      %v913 = vunpack.c.l.s4 1966171168
      %v914 = vunpack.c.0.s8 %v913
      %v915 = vlaneseq
      %v916 = vshrl.u32 %v915, 7
      %v917 = vsub.s32 %v914, %v916
      %v918 = vrot.slane %v904, %v917
      %v919 = vcombine.high %v911, %v911
      %v920 = vcombine.high %v918, %v918
      %v922 = vunpack.c.l.s4 1966171168
      %v923 = vunpack.c.0.s8 %v922
      %v924 = vlaneseq
      %v925 = vshrl.u32 %v924, 7
      %v926 = vsub.s32 %v923, %v925
      %v927 = vrot.slane %v351, %v926
      %v929 = vunpack.c.l.s4 1966171168
      %v930 = vunpack.c.0.s8 %v929
      %v931 = vlaneseq
      %v932 = vshrl.u32 %v931, 7
      %v933 = vsub.s32 %v930, %v932
      %v934 = vrot.slane %v927, %v933
      %v936 = vunpack.c.l.s4 1966171168
      %v937 = vunpack.c.0.s8 %v936
      %v938 = vlaneseq
      %v939 = vshrl.u32 %v938, 7
      %v940 = vsub.s32 %v937, %v939
      %v941 = vrot.slane %v352, %v940
      %v942 = vcombine.high %v941, %v941
      %v944 = vunpack.c.l.s4 1966171168
      %v945 = vunpack.c.0.s8 %v944
      %v946 = vlaneseq
      %v947 = vshrl.u32 %v946, 7
      %v948 = vsub.s32 %v945, %v947
      %v949 = vrot.slane %v941, %v948
      %v951 = vunpack.c.l.s4 1966171168
      %v952 = vunpack.c.0.s8 %v951
      %v953 = vlaneseq
      %v954 = vshrl.u32 %v953, 7
      %v955 = vsub.s32 %v952, %v954
      %v956 = vrot.slane %v942, %v955
      %v957 = vcombine.high %v949, %v949
      %v958 = vcombine.high %v956, %v956
      %v960 = vunpack.c.l.s4 1966171168
      %v961 = vunpack.c.0.s8 %v960
      %v962 = vlaneseq
      %v963 = vshrl.u32 %v962, 7
      %v964 = vsub.s32 %v961, %v963
      %v965 = vrot.slane %v353, %v964
      %v966 = vcombine.high %v965, %v965
      %v968 = vunpack.c.l.s4 1966171168
      %v969 = vunpack.c.0.s8 %v968
      %v970 = vlaneseq
      %v971 = vshrl.u32 %v970, 7
      %v972 = vsub.s32 %v969, %v971
      %v973 = vrot.slane %v965, %v972
      %v975 = vunpack.c.l.s4 1966171168
      %v976 = vunpack.c.0.s8 %v975
      %v977 = vlaneseq
      %v978 = vshrl.u32 %v977, 7
      %v979 = vsub.s32 %v976, %v978
      %v980 = vrot.slane %v966, %v979
      %v981 = vcombine.high %v973, %v973
      %v982 = vcombine.high %v980, %v980
      %v984 = vunpack.c.l.s4 1966171168
      %v985 = vunpack.c.0.s8 %v984
      %v986 = vlaneseq
      %v987 = vshrl.u32 %v986, 7
      %v988 = vsub.s32 %v985, %v987
      %v989 = vrot.slane %v354, %v988
      %v991 = vunpack.c.l.s4 1966171168
      %v992 = vunpack.c.0.s8 %v991
      %v993 = vlaneseq
      %v994 = vshrl.u32 %v993, 7
      %v995 = vsub.s32 %v992, %v994
      %v996 = vrot.slane %v989, %v995
      %v998 = vunpack.c.l.s4 1966171168
      %v999 = vunpack.c.0.s8 %v998
      %v1000 = vlaneseq
      %v1001 = vshrl.u32 %v1000, 7
      %v1002 = vsub.s32 %v999, %v1001
      %v1003 = vrot.slane %v355, %v1002
      %v1004 = vcombine.high %v1003, %v1003
      %v1006 = vunpack.c.l.s4 1966171168
      %v1007 = vunpack.c.0.s8 %v1006
      %v1008 = vlaneseq
      %v1009 = vshrl.u32 %v1008, 7
      %v1010 = vsub.s32 %v1007, %v1009
      %v1011 = vrot.slane %v1003, %v1010
      %v1013 = vunpack.c.l.s4 1966171168
      %v1014 = vunpack.c.0.s8 %v1013
      %v1015 = vlaneseq
      %v1016 = vshrl.u32 %v1015, 7
      %v1017 = vsub.s32 %v1014, %v1016
      %v1018 = vrot.slane %v1004, %v1017
      %v1019 = vcombine.high %v1011, %v1011
      %v1020 = vcombine.high %v1018, %v1018
      %v1022 = vunpack.c.l.s4 1966171168
      %v1023 = vunpack.c.0.s8 %v1022
      %v1024 = vlaneseq
      %v1025 = vshrl.u32 %v1024, 7
      %v1026 = vsub.s32 %v1023, %v1025
      %v1027 = vrot.slane %v356, %v1026
      %v1028 = vcombine.high %v1027, %v1027
      %v1030 = vunpack.c.l.s4 1966171168
      %v1031 = vunpack.c.0.s8 %v1030
      %v1032 = vlaneseq
      %v1033 = vshrl.u32 %v1032, 7
      %v1034 = vsub.s32 %v1031, %v1033
      %v1035 = vrot.slane %v1027, %v1034
      %v1037 = vunpack.c.l.s4 1966171168
      %v1038 = vunpack.c.0.s8 %v1037
      %v1039 = vlaneseq
      %v1040 = vshrl.u32 %v1039, 7
      %v1041 = vsub.s32 %v1038, %v1040
      %v1042 = vrot.slane %v1028, %v1041
      %v1043 = vcombine.high %v1035, %v1035
      %v1044 = vcombine.high %v1042, %v1042
      %v1046 = vunpack.c.l.s4 1966171168
      %v1047 = vunpack.c.0.s8 %v1046
      %v1048 = vlaneseq
      %v1049 = vshrl.u32 %v1048, 7
      %v1050 = vsub.s32 %v1047, %v1049
      %v1051 = vrot.slane %v357, %v1050
      %v1053 = vunpack.c.l.s4 1966171168
      %v1054 = vunpack.c.0.s8 %v1053
      %v1055 = vlaneseq
      %v1056 = vshrl.u32 %v1055, 7
      %v1057 = vsub.s32 %v1054, %v1056
      %v1058 = vrot.slane %v1051, %v1057
      %v1060 = vunpack.c.l.s4 1966171168
      %v1061 = vunpack.c.0.s8 %v1060
      %v1062 = vlaneseq
      %v1063 = vshrl.u32 %v1062, 7
      %v1064 = vsub.s32 %v1061, %v1063
      %v1065 = vrot.slane %v358, %v1064
      %v1066 = vcombine.high %v1065, %v1065
      %v1068 = vunpack.c.l.s4 1966171168
      %v1069 = vunpack.c.0.s8 %v1068
      %v1070 = vlaneseq
      %v1071 = vshrl.u32 %v1070, 7
      %v1072 = vsub.s32 %v1069, %v1071
      %v1073 = vrot.slane %v1065, %v1072
      %v1075 = vunpack.c.l.s4 1966171168
      %v1076 = vunpack.c.0.s8 %v1075
      %v1077 = vlaneseq
      %v1078 = vshrl.u32 %v1077, 7
      %v1079 = vsub.s32 %v1076, %v1078
      %v1080 = vrot.slane %v1066, %v1079
      %v1081 = vcombine.high %v1073, %v1073
      %v1082 = vcombine.high %v1080, %v1080
      %v1084 = vunpack.c.l.s4 1966171168
      %v1085 = vunpack.c.0.s8 %v1084
      %v1086 = vlaneseq
      %v1087 = vshrl.u32 %v1086, 7
      %v1088 = vsub.s32 %v1085, %v1087
      %v1089 = vrot.slane %v359, %v1088
      %v1090 = vcombine.high %v1089, %v1089
      %v1092 = vunpack.c.l.s4 1966171168
      %v1093 = vunpack.c.0.s8 %v1092
      %v1094 = vlaneseq
      %v1095 = vshrl.u32 %v1094, 7
      %v1096 = vsub.s32 %v1093, %v1095
      %v1097 = vrot.slane %v1089, %v1096
      %v1099 = vunpack.c.l.s4 1966171168
      %v1100 = vunpack.c.0.s8 %v1099
      %v1101 = vlaneseq
      %v1102 = vshrl.u32 %v1101, 7
      %v1103 = vsub.s32 %v1100, %v1102
      %v1104 = vrot.slane %v1090, %v1103
      %v1105 = vcombine.high %v1097, %v1097
      %v1106 = vcombine.high %v1104, %v1104
      %v1108 = vunpack.c.l.s4 1966171168
      %v1109 = vunpack.c.0.s8 %v1108
      %v1110 = vlaneseq
      %v1111 = vshrl.u32 %v1110, 7
      %v1112 = vsub.s32 %v1109, %v1111
      %v1113 = vrot.slane %v360, %v1112
      %v1115 = vunpack.c.l.s4 1966171168
      %v1116 = vunpack.c.0.s8 %v1115
      %v1117 = vlaneseq
      %v1118 = vshrl.u32 %v1117, 7
      %v1119 = vsub.s32 %v1116, %v1118
      %v1120 = vrot.slane %v1113, %v1119
      %v1122 = vunpack.c.l.s4 1966171168
      %v1123 = vunpack.c.0.s8 %v1122
      %v1124 = vlaneseq
      %v1125 = vshrl.u32 %v1124, 7
      %v1126 = vsub.s32 %v1123, %v1125
      %v1127 = vrot.slane %v361, %v1126
      %v1128 = vcombine.high %v1127, %v1127
      %v1130 = vunpack.c.l.s4 1966171168
      %v1131 = vunpack.c.0.s8 %v1130
      %v1132 = vlaneseq
      %v1133 = vshrl.u32 %v1132, 7
      %v1134 = vsub.s32 %v1131, %v1133
      %v1135 = vrot.slane %v1127, %v1134
      %v1137 = vunpack.c.l.s4 1966171168
      %v1138 = vunpack.c.0.s8 %v1137
      %v1139 = vlaneseq
      %v1140 = vshrl.u32 %v1139, 7
      %v1141 = vsub.s32 %v1138, %v1140
      %v1142 = vrot.slane %v1128, %v1141
      %v1143 = vcombine.high %v1135, %v1135
      %v1144 = vcombine.high %v1142, %v1142
      %v1146 = vunpack.c.l.s4 1966171168
      %v1147 = vunpack.c.0.s8 %v1146
      %v1148 = vlaneseq
      %v1149 = vshrl.u32 %v1148, 7
      %v1150 = vsub.s32 %v1147, %v1149
      %v1151 = vrot.slane %v362, %v1150
      %v1152 = vcombine.high %v1151, %v1151
      %v1154 = vunpack.c.l.s4 1966171168
      %v1155 = vunpack.c.0.s8 %v1154
      %v1156 = vlaneseq
      %v1157 = vshrl.u32 %v1156, 7
      %v1158 = vsub.s32 %v1155, %v1157
      %v1159 = vrot.slane %v1151, %v1158
      %v1161 = vunpack.c.l.s4 1966171168
      %v1162 = vunpack.c.0.s8 %v1161
      %v1163 = vlaneseq
      %v1164 = vshrl.u32 %v1163, 7
      %v1165 = vsub.s32 %v1162, %v1164
      %v1166 = vrot.slane %v1152, %v1165
      %v1167 = vcombine.high %v1159, %v1159
      %v1168 = vcombine.high %v1166, %v1166
      %v1170 = vunpack.c.l.s4 1966171168
      %v1171 = vunpack.c.0.s8 %v1170
      %v1172 = vlaneseq
      %v1173 = vshrl.u32 %v1172, 7
      %v1174 = vsub.s32 %v1171, %v1173
      %v1175 = vrot.slane %v363, %v1174
      %v1177 = vunpack.c.l.s4 1966171168
      %v1178 = vunpack.c.0.s8 %v1177
      %v1179 = vlaneseq
      %v1180 = vshrl.u32 %v1179, 7
      %v1181 = vsub.s32 %v1178, %v1180
      %v1182 = vrot.slane %v1175, %v1181
      %v1184 = vunpack.c.l.s4 1966171168
      %v1185 = vunpack.c.0.s8 %v1184
      %v1186 = vlaneseq
      %v1187 = vshrl.u32 %v1186, 7
      %v1188 = vsub.s32 %v1185, %v1187
      %v1189 = vrot.slane %v364, %v1188
      %v1190 = vcombine.high %v1189, %v1189
      %v1192 = vunpack.c.l.s4 1966171168
      %v1193 = vunpack.c.0.s8 %v1192
      %v1194 = vlaneseq
      %v1195 = vshrl.u32 %v1194, 7
      %v1196 = vsub.s32 %v1193, %v1195
      %v1197 = vrot.slane %v1189, %v1196
      %v1199 = vunpack.c.l.s4 1966171168
      %v1200 = vunpack.c.0.s8 %v1199
      %v1201 = vlaneseq
      %v1202 = vshrl.u32 %v1201, 7
      %v1203 = vsub.s32 %v1200, %v1202
      %v1204 = vrot.slane %v1190, %v1203
      %v1205 = vcombine.high %v1197, %v1197
      %v1206 = vcombine.high %v1204, %v1204
      %v1208 = vunpack.c.l.s4 1966171168
      %v1209 = vunpack.c.0.s8 %v1208
      %v1210 = vlaneseq
      %v1211 = vshrl.u32 %v1210, 7
      %v1212 = vsub.s32 %v1209, %v1211
      %v1213 = vrot.slane %v365, %v1212
      %v1214 = vcombine.high %v1213, %v1213
      %v1216 = vunpack.c.l.s4 1966171168
      %v1217 = vunpack.c.0.s8 %v1216
      %v1218 = vlaneseq
      %v1219 = vshrl.u32 %v1218, 7
      %v1220 = vsub.s32 %v1217, %v1219
      %v1221 = vrot.slane %v1213, %v1220
      %v1223 = vunpack.c.l.s4 1966171168
      %v1224 = vunpack.c.0.s8 %v1223
      %v1225 = vlaneseq
      %v1226 = vshrl.u32 %v1225, 7
      %v1227 = vsub.s32 %v1224, %v1226
      %v1228 = vrot.slane %v1214, %v1227
      %v1229 = vcombine.high %v1221, %v1221
      %v1230 = vcombine.high %v1228, %v1228
      %v1232 = vunpack.c.l.s4 1966171168
      %v1233 = vunpack.c.0.s8 %v1232
      %v1234 = vlaneseq
      %v1235 = vshrl.u32 %v1234, 7
      %v1236 = vsub.s32 %v1233, %v1235
      %v1237 = vrot.slane %v366, %v1236
      %v1239 = vunpack.c.l.s4 1966171168
      %v1240 = vunpack.c.0.s8 %v1239
      %v1241 = vlaneseq
      %v1242 = vshrl.u32 %v1241, 7
      %v1243 = vsub.s32 %v1240, %v1242
      %v1244 = vrot.slane %v1237, %v1243
      %v1246 = vunpack.c.l.s4 1966171168
      %v1247 = vunpack.c.0.s8 %v1246
      %v1248 = vlaneseq
      %v1249 = vshrl.u32 %v1248, 7
      %v1250 = vsub.s32 %v1247, %v1249
      %v1251 = vrot.slane %v367, %v1250
      %v1252 = vcombine.high %v1251, %v1251
      %v1254 = vunpack.c.l.s4 1966171168
      %v1255 = vunpack.c.0.s8 %v1254
      %v1256 = vlaneseq
      %v1257 = vshrl.u32 %v1256, 7
      %v1258 = vsub.s32 %v1255, %v1257
      %v1259 = vrot.slane %v1251, %v1258
      %v1261 = vunpack.c.l.s4 1966171168
      %v1262 = vunpack.c.0.s8 %v1261
      %v1263 = vlaneseq
      %v1264 = vshrl.u32 %v1263, 7
      %v1265 = vsub.s32 %v1262, %v1264
      %v1266 = vrot.slane %v1252, %v1265
      %v1267 = vcombine.high %v1259, %v1259
      %v1268 = vcombine.high %v1266, %v1266
      %v1270 = vunpack.c.l.s4 1966171168
      %v1271 = vunpack.c.0.s8 %v1270
      %v1272 = vlaneseq
      %v1273 = vshrl.u32 %v1272, 7
      %v1274 = vsub.s32 %v1271, %v1273
      %v1275 = vrot.slane %v368, %v1274
      %v1276 = vcombine.high %v1275, %v1275
      %v1278 = vunpack.c.l.s4 1966171168
      %v1279 = vunpack.c.0.s8 %v1278
      %v1280 = vlaneseq
      %v1281 = vshrl.u32 %v1280, 7
      %v1282 = vsub.s32 %v1279, %v1281
      %v1283 = vrot.slane %v1275, %v1282
      %v1285 = vunpack.c.l.s4 1966171168
      %v1286 = vunpack.c.0.s8 %v1285
      %v1287 = vlaneseq
      %v1288 = vshrl.u32 %v1287, 7
      %v1289 = vsub.s32 %v1286, %v1288
      %v1290 = vrot.slane %v1276, %v1289
      %v1291 = vcombine.high %v1283, %v1283
      %v1292 = vcombine.high %v1290, %v1290
      %v1294 = vunpack.c.l.s4 1966171168
      %v1295 = vunpack.c.0.s8 %v1294
      %v1296 = vlaneseq
      %v1297 = vshrl.u32 %v1296, 7
      %v1298 = vsub.s32 %v1295, %v1297
      %v1299 = vrot.slane %v369, %v1298
      %v1301 = vunpack.c.l.s4 1966171168
      %v1302 = vunpack.c.0.s8 %v1301
      %v1303 = vlaneseq
      %v1304 = vshrl.u32 %v1303, 7
      %v1305 = vsub.s32 %v1302, %v1304
      %v1306 = vrot.slane %v1299, %v1305
      %v1308 = vunpack.c.l.s4 1966171168
      %v1309 = vunpack.c.0.s8 %v1308
      %v1310 = vlaneseq
      %v1311 = vshrl.u32 %v1310, 7
      %v1312 = vsub.s32 %v1309, %v1311
      %v1313 = vrot.slane %v370, %v1312
      %v1314 = vcombine.high %v1313, %v1313
      %v1316 = vunpack.c.l.s4 1966171168
      %v1317 = vunpack.c.0.s8 %v1316
      %v1318 = vlaneseq
      %v1319 = vshrl.u32 %v1318, 7
      %v1320 = vsub.s32 %v1317, %v1319
      %v1321 = vrot.slane %v1313, %v1320
      %v1323 = vunpack.c.l.s4 1966171168
      %v1324 = vunpack.c.0.s8 %v1323
      %v1325 = vlaneseq
      %v1326 = vshrl.u32 %v1325, 7
      %v1327 = vsub.s32 %v1324, %v1326
      %v1328 = vrot.slane %v1314, %v1327
      %v1329 = vcombine.high %v1321, %v1321
      %v1330 = vcombine.high %v1328, %v1328
      %v1332 = vunpack.c.l.s4 1966171168
      %v1333 = vunpack.c.0.s8 %v1332
      %v1334 = vlaneseq
      %v1335 = vshrl.u32 %v1334, 7
      %v1336 = vsub.s32 %v1333, %v1335
      %v1337 = vrot.slane %v371, %v1336
      %v1338 = vcombine.high %v1337, %v1337
      %v1340 = vunpack.c.l.s4 1966171168
      %v1341 = vunpack.c.0.s8 %v1340
      %v1342 = vlaneseq
      %v1343 = vshrl.u32 %v1342, 7
      %v1344 = vsub.s32 %v1341, %v1343
      %v1345 = vrot.slane %v1337, %v1344
      %v1347 = vunpack.c.l.s4 1966171168
      %v1348 = vunpack.c.0.s8 %v1347
      %v1349 = vlaneseq
      %v1350 = vshrl.u32 %v1349, 7
      %v1351 = vsub.s32 %v1348, %v1350
      %v1352 = vrot.slane %v1338, %v1351
      %v1353 = vcombine.high %v1345, %v1345
      %v1354 = vcombine.high %v1352, %v1352
      %v1356 = vunpack.c.l.s4 1966171168
      %v1357 = vunpack.c.0.s8 %v1356
      %v1358 = vlaneseq
      %v1359 = vshrl.u32 %v1358, 7
      %v1360 = vsub.s32 %v1357, %v1359
      %v1361 = vrot.slane %v372, %v1360
      %v1363 = vunpack.c.l.s4 1966171168
      %v1364 = vunpack.c.0.s8 %v1363
      %v1365 = vlaneseq
      %v1366 = vshrl.u32 %v1365, 7
      %v1367 = vsub.s32 %v1364, %v1366
      %v1368 = vrot.slane %v1361, %v1367
      %v1370 = vunpack.c.l.s4 1966171168
      %v1371 = vunpack.c.0.s8 %v1370
      %v1372 = vlaneseq
      %v1373 = vshrl.u32 %v1372, 7
      %v1374 = vsub.s32 %v1371, %v1373
      %v1375 = vrot.slane %v373, %v1374
      %v1376 = vcombine.high %v1375, %v1375
      %v1378 = vunpack.c.l.s4 1966171168
      %v1379 = vunpack.c.0.s8 %v1378
      %v1380 = vlaneseq
      %v1381 = vshrl.u32 %v1380, 7
      %v1382 = vsub.s32 %v1379, %v1381
      %v1383 = vrot.slane %v1375, %v1382
      %v1385 = vunpack.c.l.s4 1966171168
      %v1386 = vunpack.c.0.s8 %v1385
      %v1387 = vlaneseq
      %v1388 = vshrl.u32 %v1387, 7
      %v1389 = vsub.s32 %v1386, %v1388
      %v1390 = vrot.slane %v1376, %v1389
      %v1391 = vcombine.high %v1383, %v1383
      %v1392 = vcombine.high %v1390, %v1390
      %v1394 = vunpack.c.l.s4 1966171168
      %v1395 = vunpack.c.0.s8 %v1394
      %v1396 = vlaneseq
      %v1397 = vshrl.u32 %v1396, 7
      %v1398 = vsub.s32 %v1395, %v1397
      %v1399 = vrot.slane %v374, %v1398
      %v1400 = vcombine.high %v1399, %v1399
      %v1402 = vunpack.c.l.s4 1966171168
      %v1403 = vunpack.c.0.s8 %v1402
      %v1404 = vlaneseq
      %v1405 = vshrl.u32 %v1404, 7
      %v1406 = vsub.s32 %v1403, %v1405
      %v1407 = vrot.slane %v1399, %v1406
      %v1409 = vunpack.c.l.s4 1966171168
      %v1410 = vunpack.c.0.s8 %v1409
      %v1411 = vlaneseq
      %v1412 = vshrl.u32 %v1411, 7
      %v1413 = vsub.s32 %v1410, %v1412
      %v1414 = vrot.slane %v1400, %v1413
      %v1415 = vcombine.high %v1407, %v1407
      %v1416 = vcombine.high %v1414, %v1414
      %v1418 = vunpack.c.l.s4 1966171168
      %v1419 = vunpack.c.0.s8 %v1418
      %v1420 = vlaneseq
      %v1421 = vshrl.u32 %v1420, 7
      %v1422 = vsub.s32 %v1419, %v1421
      %v1423 = vrot.slane %v375, %v1422
      %v1425 = vunpack.c.l.s4 1966171168
      %v1426 = vunpack.c.0.s8 %v1425
      %v1427 = vlaneseq
      %v1428 = vshrl.u32 %v1427, 7
      %v1429 = vsub.s32 %v1426, %v1428
      %v1430 = vrot.slane %v1423, %v1429
      %v1432 = vunpack.c.l.s4 1966171168
      %v1433 = vunpack.c.0.s8 %v1432
      %v1434 = vlaneseq
      %v1435 = vshrl.u32 %v1434, 7
      %v1436 = vsub.s32 %v1433, %v1435
      %v1437 = vrot.slane %v376, %v1436
      %v1438 = vcombine.high %v1437, %v1437
      %v1440 = vunpack.c.l.s4 1966171168
      %v1441 = vunpack.c.0.s8 %v1440
      %v1442 = vlaneseq
      %v1443 = vshrl.u32 %v1442, 7
      %v1444 = vsub.s32 %v1441, %v1443
      %v1445 = vrot.slane %v1437, %v1444
      %v1447 = vunpack.c.l.s4 1966171168
      %v1448 = vunpack.c.0.s8 %v1447
      %v1449 = vlaneseq
      %v1450 = vshrl.u32 %v1449, 7
      %v1451 = vsub.s32 %v1448, %v1450
      %v1452 = vrot.slane %v1438, %v1451
      %v1453 = vcombine.high %v1445, %v1445
      %v1454 = vcombine.high %v1452, %v1452
      %v1456 = vunpack.c.l.s4 1966171168
      %v1457 = vunpack.c.0.s8 %v1456
      %v1458 = vlaneseq
      %v1459 = vshrl.u32 %v1458, 7
      %v1460 = vsub.s32 %v1457, %v1459
      %v1461 = vrot.slane %v377, %v1460
      %v1462 = vcombine.high %v1461, %v1461
      %v1464 = vunpack.c.l.s4 1966171168
      %v1465 = vunpack.c.0.s8 %v1464
      %v1466 = vlaneseq
      %v1467 = vshrl.u32 %v1466, 7
      %v1468 = vsub.s32 %v1465, %v1467
      %v1469 = vrot.slane %v1461, %v1468
      %v1471 = vunpack.c.l.s4 1966171168
      %v1472 = vunpack.c.0.s8 %v1471
      %v1473 = vlaneseq
      %v1474 = vshrl.u32 %v1473, 7
      %v1475 = vsub.s32 %v1472, %v1474
      %v1476 = vrot.slane %v1462, %v1475
      %v1477 = vcombine.high %v1469, %v1469
      %v1478 = vcombine.high %v1476, %v1476
      %v1480 = vunpack.c.l.s4 1966171168
      %v1481 = vunpack.c.0.s8 %v1480
      %v1482 = vlaneseq
      %v1483 = vshrl.u32 %v1482, 7
      %v1484 = vsub.s32 %v1481, %v1483
      %v1485 = vrot.slane %v378, %v1484
      %v1487 = vunpack.c.l.s4 1966171168
      %v1488 = vunpack.c.0.s8 %v1487
      %v1489 = vlaneseq
      %v1490 = vshrl.u32 %v1489, 7
      %v1491 = vsub.s32 %v1488, %v1490
      %v1492 = vrot.slane %v1485, %v1491
      %v1494 = vunpack.c.l.s4 1966171168
      %v1495 = vunpack.c.0.s8 %v1494
      %v1496 = vlaneseq
      %v1497 = vshrl.u32 %v1496, 7
      %v1498 = vsub.s32 %v1495, %v1497
      %v1499 = vrot.slane %v382, %v1498
      %v1500 = vcombine.high %v1499, %v1499
      %v1502 = vunpack.c.l.s4 1966171168
      %v1503 = vunpack.c.0.s8 %v1502
      %v1504 = vlaneseq
      %v1505 = vshrl.u32 %v1504, 7
      %v1506 = vsub.s32 %v1503, %v1505
      %v1507 = vrot.slane %v1499, %v1506
      %v1509 = vunpack.c.l.s4 1966171168
      %v1510 = vunpack.c.0.s8 %v1509
      %v1511 = vlaneseq
      %v1512 = vshrl.u32 %v1511, 7
      %v1513 = vsub.s32 %v1510, %v1512
      %v1514 = vrot.slane %v1500, %v1513
      %v1515 = vcombine.high %v1507, %v1507
      %v1516 = vcombine.high %v1514, %v1514
      %v1518 = vunpack.c.l.s4 1966171168
      %v1519 = vunpack.c.0.s8 %v1518
      %v1520 = vlaneseq
      %v1521 = vshrl.u32 %v1520, 7
      %v1522 = vsub.s32 %v1519, %v1521
      %v1523 = vrot.slane %v383, %v1522
      %v1524 = vcombine.high %v1523, %v1523
      %v1526 = vunpack.c.l.s4 1966171168
      %v1527 = vunpack.c.0.s8 %v1526
      %v1528 = vlaneseq
      %v1529 = vshrl.u32 %v1528, 7
      %v1530 = vsub.s32 %v1527, %v1529
      %v1531 = vrot.slane %v1523, %v1530
      %v1533 = vunpack.c.l.s4 1966171168
      %v1534 = vunpack.c.0.s8 %v1533
      %v1535 = vlaneseq
      %v1536 = vshrl.u32 %v1535, 7
      %v1537 = vsub.s32 %v1534, %v1536
      %v1538 = vrot.slane %v1524, %v1537
      %v1539 = vcombine.high %v1531, %v1531
      %v1540 = vcombine.high %v1538, %v1538
      %v1542 = vunpack.c.l.s4 1966171168
      %v1543 = vunpack.c.0.s8 %v1542
      %v1544 = vlaneseq
      %v1545 = vshrl.u32 %v1544, 7
      %v1546 = vsub.s32 %v1543, %v1545
      %v1547 = vrot.slane %v384, %v1546
      %v1549 = vunpack.c.l.s4 1966171168
      %v1550 = vunpack.c.0.s8 %v1549
      %v1551 = vlaneseq
      %v1552 = vshrl.u32 %v1551, 7
      %v1553 = vsub.s32 %v1550, %v1552
      %v1554 = vrot.slane %v1547, %v1553
      %v1555 = vld [vmem:[%s2] sm:$0xf]
      %v1556 = vld [vmem:[%s2 + $0x4] sm:$0xf]
      %v1557 = vld [vmem:[%s2 + $0x8] sm:$0xf]
      %v1558 = vld [vmem:[%s2 + $0xc] sm:$0xf]
      %v1559 = vld [vmem:[%s2 + $0x10] sm:$0xf]
      %v1560 = vld [vmem:[%s2 + $0x14] sm:$0xf]
      %v1561 = vld [vmem:[%s2 + $0x18] sm:$0xf]
      %v1562 = vld [vmem:[%s2 + $0x1c] sm:$0xf]
      %v1563 = vld [vmem:[%s2 + $0x20] sm:$0xf]
      %v1564 = vld [vmem:[%s2 + $0x24] sm:$0xf]
      %v1565 = vld [vmem:[%s2 + $0x28] sm:$0xf]
      %v1566 = vld [vmem:[%s2 + $0x2c] sm:$0xf]
      %v1567 = vld [vmem:[%s2 + $0x30] sm:$0xf]
      %v1568 = vld [vmem:[%s2 + $0x34] sm:$0xf]
      %v1569 = vld [vmem:[%s2 + $0x38] sm:$0xf]
      %v1570 = vld [vmem:[%s2 + $0x3c] sm:$0xf]
      %v1571 = vld [vmem:[%s3] sm:$0x1]
      %v1573 = vlaneseq
      %v1574 = vshrl.u32 %v1573, 7
      %v1575 = vsub.s32 0, %v1574
      %v1576 = vrot.slane %v1571, %v1575
      %v1578 = vcombine.low %v453, %v460
      %v1579 = vcombine.low %v461, %v462
      %v1580 = vcombine.low %v477, %v484
      %v1581 = vcombine.low %v485, %v486
      %v1583 = vunpack.c.l.s4 1966171168
      %v1584 = vunpack.c.0.s8 %v1583
      %v1585 = vlaneseq
      %v1586 = vshrl.u32 %v1585, 7
      %v1587 = vsub.s32 %v1584, %v1586
      %v1588 = vrot.slane %v1578, %v1587
      %v1590 = vunpack.c.l.s4 1966171168
      %v1591 = vunpack.c.0.s8 %v1590
      %v1592 = vlaneseq
      %v1593 = vshrl.u32 %v1592, 7
      %v1594 = vsub.s32 %v1591, %v1593
      %v1595 = vrot.slane %v1579, %v1594
      %v1597 = vunpack.c.l.s4 1966171168
      %v1598 = vunpack.c.0.s8 %v1597
      %v1599 = vlaneseq
      %v1600 = vshrl.u32 %v1599, 7
      %v1601 = vsub.s32 %v1598, %v1600
      %v1602 = vrot.slane %v1580, %v1601
      %v1604 = vunpack.c.l.s4 1966171168
      %v1605 = vunpack.c.0.s8 %v1604
      %v1606 = vlaneseq
      %v1607 = vshrl.u32 %v1606, 7
      %v1608 = vsub.s32 %v1605, %v1607
      %v1609 = vrot.slane %v1581, %v1608
      %v1610 = vcombine.low %v1588, %v1595
      %v1611 = vcombine.low %v1602, %v1609
      %v1613 = vunpack.c.l.s4 1966171168
      %v1614 = vunpack.c.0.s8 %v1613
      %v1615 = vlaneseq
      %v1616 = vshrl.u32 %v1615, 7
      %v1617 = vsub.s32 %v1614, %v1616
      %v1618 = vrot.slane %v1610, %v1617
      %v1620 = vunpack.c.l.s4 1966171168
      %v1621 = vunpack.c.0.s8 %v1620
      %v1622 = vlaneseq
      %v1623 = vshrl.u32 %v1622, 7
      %v1624 = vsub.s32 %v1621, %v1623
      %v1625 = vrot.slane %v1611, %v1624
      %v1626 = vcombine.low %v1618, %v1625
      %v1627 = vcombine.low %v500, %v515
      %v1628 = vcombine.low %v522, %v523
      %v1629 = vcombine.low %v524, %v539
      %v1630 = vcombine.low %v546, %v547
      %v1632 = vunpack.c.l.s4 1966171168
      %v1633 = vunpack.c.0.s8 %v1632
      %v1634 = vlaneseq
      %v1635 = vshrl.u32 %v1634, 7
      %v1636 = vsub.s32 %v1633, %v1635
      %v1637 = vrot.slane %v1627, %v1636
      %v1639 = vunpack.c.l.s4 1966171168
      %v1640 = vunpack.c.0.s8 %v1639
      %v1641 = vlaneseq
      %v1642 = vshrl.u32 %v1641, 7
      %v1643 = vsub.s32 %v1640, %v1642
      %v1644 = vrot.slane %v1628, %v1643
      %v1646 = vunpack.c.l.s4 1966171168
      %v1647 = vunpack.c.0.s8 %v1646
      %v1648 = vlaneseq
      %v1649 = vshrl.u32 %v1648, 7
      %v1650 = vsub.s32 %v1647, %v1649
      %v1651 = vrot.slane %v1629, %v1650
      %v1653 = vunpack.c.l.s4 1966171168
      %v1654 = vunpack.c.0.s8 %v1653
      %v1655 = vlaneseq
      %v1656 = vshrl.u32 %v1655, 7
      %v1657 = vsub.s32 %v1654, %v1656
      %v1658 = vrot.slane %v1630, %v1657
      %v1659 = vcombine.low %v1637, %v1644
      %v1660 = vcombine.low %v1651, %v1658
      %v1662 = vunpack.c.l.s4 1966171168
      %v1663 = vunpack.c.0.s8 %v1662
      %v1664 = vlaneseq
      %v1665 = vshrl.u32 %v1664, 7
      %v1666 = vsub.s32 %v1663, %v1665
      %v1667 = vrot.slane %v1659, %v1666
      %v1669 = vunpack.c.l.s4 1966171168
      %v1670 = vunpack.c.0.s8 %v1669
      %v1671 = vlaneseq
      %v1672 = vshrl.u32 %v1671, 7
      %v1673 = vsub.s32 %v1670, %v1672
      %v1674 = vrot.slane %v1660, %v1673
      %v1675 = vcombine.low %v1667, %v1674
      %v1676 = vcombine.low %v548, %v562
      %v1677 = vcombine.low %v577, %v584
      %v1678 = vcombine.low %v585, %v586
      %v1679 = vcombine.low %v601, %v608
      %v1681 = vunpack.c.l.s4 1966171168
      %v1682 = vunpack.c.0.s8 %v1681
      %v1683 = vlaneseq
      %v1684 = vshrl.u32 %v1683, 7
      %v1685 = vsub.s32 %v1682, %v1684
      %v1686 = vrot.slane %v1676, %v1685
      %v1688 = vunpack.c.l.s4 1966171168
      %v1689 = vunpack.c.0.s8 %v1688
      %v1690 = vlaneseq
      %v1691 = vshrl.u32 %v1690, 7
      %v1692 = vsub.s32 %v1689, %v1691
      %v1693 = vrot.slane %v1677, %v1692
      %v1695 = vunpack.c.l.s4 1966171168
      %v1696 = vunpack.c.0.s8 %v1695
      %v1697 = vlaneseq
      %v1698 = vshrl.u32 %v1697, 7
      %v1699 = vsub.s32 %v1696, %v1698
      %v1700 = vrot.slane %v1678, %v1699
      %v1702 = vunpack.c.l.s4 1966171168
      %v1703 = vunpack.c.0.s8 %v1702
      %v1704 = vlaneseq
      %v1705 = vshrl.u32 %v1704, 7
      %v1706 = vsub.s32 %v1703, %v1705
      %v1707 = vrot.slane %v1679, %v1706
      %v1708 = vcombine.low %v1686, %v1693
      %v1709 = vcombine.low %v1700, %v1707
      %v1711 = vunpack.c.l.s4 1966171168
      %v1712 = vunpack.c.0.s8 %v1711
      %v1713 = vlaneseq
      %v1714 = vshrl.u32 %v1713, 7
      %v1715 = vsub.s32 %v1712, %v1714
      %v1716 = vrot.slane %v1708, %v1715
      %v1718 = vunpack.c.l.s4 1966171168
      %v1719 = vunpack.c.0.s8 %v1718
      %v1720 = vlaneseq
      %v1721 = vshrl.u32 %v1720, 7
      %v1722 = vsub.s32 %v1719, %v1721
      %v1723 = vrot.slane %v1709, %v1722
      %v1724 = vcombine.low %v1716, %v1723
      %v1725 = vcombine.low %v609, %v610
      %v1726 = vcombine.low %v624, %v639
      %v1727 = vcombine.low %v646, %v647
      %v1728 = vcombine.low %v648, %v663
      %v1730 = vunpack.c.l.s4 1966171168
      %v1731 = vunpack.c.0.s8 %v1730
      %v1732 = vlaneseq
      %v1733 = vshrl.u32 %v1732, 7
      %v1734 = vsub.s32 %v1731, %v1733
      %v1735 = vrot.slane %v1725, %v1734
      %v1737 = vunpack.c.l.s4 1966171168
      %v1738 = vunpack.c.0.s8 %v1737
      %v1739 = vlaneseq
      %v1740 = vshrl.u32 %v1739, 7
      %v1741 = vsub.s32 %v1738, %v1740
      %v1742 = vrot.slane %v1726, %v1741
      %v1744 = vunpack.c.l.s4 1966171168
      %v1745 = vunpack.c.0.s8 %v1744
      %v1746 = vlaneseq
      %v1747 = vshrl.u32 %v1746, 7
      %v1748 = vsub.s32 %v1745, %v1747
      %v1749 = vrot.slane %v1727, %v1748
      %v1751 = vunpack.c.l.s4 1966171168
      %v1752 = vunpack.c.0.s8 %v1751
      %v1753 = vlaneseq
      %v1754 = vshrl.u32 %v1753, 7
      %v1755 = vsub.s32 %v1752, %v1754
      %v1756 = vrot.slane %v1728, %v1755
      %v1757 = vcombine.low %v1735, %v1742
      %v1758 = vcombine.low %v1749, %v1756
      %v1760 = vunpack.c.l.s4 1966171168
      %v1761 = vunpack.c.0.s8 %v1760
      %v1762 = vlaneseq
      %v1763 = vshrl.u32 %v1762, 7
      %v1764 = vsub.s32 %v1761, %v1763
      %v1765 = vrot.slane %v1757, %v1764
      %v1767 = vunpack.c.l.s4 1966171168
      %v1768 = vunpack.c.0.s8 %v1767
      %v1769 = vlaneseq
      %v1770 = vshrl.u32 %v1769, 7
      %v1771 = vsub.s32 %v1768, %v1770
      %v1772 = vrot.slane %v1758, %v1771
      %v1773 = vcombine.low %v1765, %v1772
      %v1774 = vcombine.low %v670, %v671
      %v1775 = vcombine.low %v672, %v686
      %v1776 = vcombine.low %v701, %v708
      %v1777 = vcombine.low %v709, %v710
      %v1779 = vunpack.c.l.s4 1966171168
      %v1780 = vunpack.c.0.s8 %v1779
      %v1781 = vlaneseq
      %v1782 = vshrl.u32 %v1781, 7
      %v1783 = vsub.s32 %v1780, %v1782
      %v1784 = vrot.slane %v1774, %v1783
      %v1786 = vunpack.c.l.s4 1966171168
      %v1787 = vunpack.c.0.s8 %v1786
      %v1788 = vlaneseq
      %v1789 = vshrl.u32 %v1788, 7
      %v1790 = vsub.s32 %v1787, %v1789
      %v1791 = vrot.slane %v1775, %v1790
      %v1793 = vunpack.c.l.s4 1966171168
      %v1794 = vunpack.c.0.s8 %v1793
      %v1795 = vlaneseq
      %v1796 = vshrl.u32 %v1795, 7
      %v1797 = vsub.s32 %v1794, %v1796
      %v1798 = vrot.slane %v1776, %v1797
      %v1800 = vunpack.c.l.s4 1966171168
      %v1801 = vunpack.c.0.s8 %v1800
      %v1802 = vlaneseq
      %v1803 = vshrl.u32 %v1802, 7
      %v1804 = vsub.s32 %v1801, %v1803
      %v1805 = vrot.slane %v1777, %v1804
      %v1806 = vcombine.low %v1784, %v1791
      %v1807 = vcombine.low %v1798, %v1805
      %v1809 = vunpack.c.l.s4 1966171168
      %v1810 = vunpack.c.0.s8 %v1809
      %v1811 = vlaneseq
      %v1812 = vshrl.u32 %v1811, 7
      %v1813 = vsub.s32 %v1810, %v1812
      %v1814 = vrot.slane %v1806, %v1813
      %v1816 = vunpack.c.l.s4 1966171168
      %v1817 = vunpack.c.0.s8 %v1816
      %v1818 = vlaneseq
      %v1819 = vshrl.u32 %v1818, 7
      %v1820 = vsub.s32 %v1817, %v1819
      %v1821 = vrot.slane %v1807, %v1820
      %v1822 = vcombine.low %v1814, %v1821
      %v1823 = vcombine.low %v725, %v732
      %v1824 = vcombine.low %v733, %v734
      %v1825 = vcombine.low %v748, %v763
      %v1826 = vcombine.low %v770, %v771
      %v1828 = vunpack.c.l.s4 1966171168
      %v1829 = vunpack.c.0.s8 %v1828
      %v1830 = vlaneseq
      %v1831 = vshrl.u32 %v1830, 7
      %v1832 = vsub.s32 %v1829, %v1831
      %v1833 = vrot.slane %v1823, %v1832
      %v1835 = vunpack.c.l.s4 1966171168
      %v1836 = vunpack.c.0.s8 %v1835
      %v1837 = vlaneseq
      %v1838 = vshrl.u32 %v1837, 7
      %v1839 = vsub.s32 %v1836, %v1838
      %v1840 = vrot.slane %v1824, %v1839
      %v1842 = vunpack.c.l.s4 1966171168
      %v1843 = vunpack.c.0.s8 %v1842
      %v1844 = vlaneseq
      %v1845 = vshrl.u32 %v1844, 7
      %v1846 = vsub.s32 %v1843, %v1845
      %v1847 = vrot.slane %v1825, %v1846
      %v1849 = vunpack.c.l.s4 1966171168
      %v1850 = vunpack.c.0.s8 %v1849
      %v1851 = vlaneseq
      %v1852 = vshrl.u32 %v1851, 7
      %v1853 = vsub.s32 %v1850, %v1852
      %v1854 = vrot.slane %v1826, %v1853
      %v1855 = vcombine.low %v1833, %v1840
      %v1856 = vcombine.low %v1847, %v1854
      %v1858 = vunpack.c.l.s4 1966171168
      %v1859 = vunpack.c.0.s8 %v1858
      %v1860 = vlaneseq
      %v1861 = vshrl.u32 %v1860, 7
      %v1862 = vsub.s32 %v1859, %v1861
      %v1863 = vrot.slane %v1855, %v1862
      %v1865 = vunpack.c.l.s4 1966171168
      %v1866 = vunpack.c.0.s8 %v1865
      %v1867 = vlaneseq
      %v1868 = vshrl.u32 %v1867, 7
      %v1869 = vsub.s32 %v1866, %v1868
      %v1870 = vrot.slane %v1856, %v1869
      %v1871 = vcombine.low %v1863, %v1870
      %v1872 = vcombine.low %v772, %v787
      %v1873 = vcombine.low %v794, %v795
      %v1874 = vcombine.low %v796, %v810
      %v1875 = vcombine.low %v825, %v832
      %v1877 = vunpack.c.l.s4 1966171168
      %v1878 = vunpack.c.0.s8 %v1877
      %v1879 = vlaneseq
      %v1880 = vshrl.u32 %v1879, 7
      %v1881 = vsub.s32 %v1878, %v1880
      %v1882 = vrot.slane %v1872, %v1881
      %v1884 = vunpack.c.l.s4 1966171168
      %v1885 = vunpack.c.0.s8 %v1884
      %v1886 = vlaneseq
      %v1887 = vshrl.u32 %v1886, 7
      %v1888 = vsub.s32 %v1885, %v1887
      %v1889 = vrot.slane %v1873, %v1888
      %v1891 = vunpack.c.l.s4 1966171168
      %v1892 = vunpack.c.0.s8 %v1891
      %v1893 = vlaneseq
      %v1894 = vshrl.u32 %v1893, 7
      %v1895 = vsub.s32 %v1892, %v1894
      %v1896 = vrot.slane %v1874, %v1895
      %v1898 = vunpack.c.l.s4 1966171168
      %v1899 = vunpack.c.0.s8 %v1898
      %v1900 = vlaneseq
      %v1901 = vshrl.u32 %v1900, 7
      %v1902 = vsub.s32 %v1899, %v1901
      %v1903 = vrot.slane %v1875, %v1902
      %v1904 = vcombine.low %v1882, %v1889
      %v1905 = vcombine.low %v1896, %v1903
      %v1907 = vunpack.c.l.s4 1966171168
      %v1908 = vunpack.c.0.s8 %v1907
      %v1909 = vlaneseq
      %v1910 = vshrl.u32 %v1909, 7
      %v1911 = vsub.s32 %v1908, %v1910
      %v1912 = vrot.slane %v1904, %v1911
      %v1914 = vunpack.c.l.s4 1966171168
      %v1915 = vunpack.c.0.s8 %v1914
      %v1916 = vlaneseq
      %v1917 = vshrl.u32 %v1916, 7
      %v1918 = vsub.s32 %v1915, %v1917
      %v1919 = vrot.slane %v1905, %v1918
      %v1920 = vcombine.low %v1912, %v1919
      %v1921 = vcombine.low %v833, %v834
      %v1922 = vcombine.low %v849, %v856
      %v1923 = vcombine.low %v857, %v858
      %v1924 = vcombine.low %v872, %v887
      %v1926 = vunpack.c.l.s4 1966171168
      %v1927 = vunpack.c.0.s8 %v1926
      %v1928 = vlaneseq
      %v1929 = vshrl.u32 %v1928, 7
      %v1930 = vsub.s32 %v1927, %v1929
      %v1931 = vrot.slane %v1921, %v1930
      %v1933 = vunpack.c.l.s4 1966171168
      %v1934 = vunpack.c.0.s8 %v1933
      %v1935 = vlaneseq
      %v1936 = vshrl.u32 %v1935, 7
      %v1937 = vsub.s32 %v1934, %v1936
      %v1938 = vrot.slane %v1922, %v1937
      %v1940 = vunpack.c.l.s4 1966171168
      %v1941 = vunpack.c.0.s8 %v1940
      %v1942 = vlaneseq
      %v1943 = vshrl.u32 %v1942, 7
      %v1944 = vsub.s32 %v1941, %v1943
      %v1945 = vrot.slane %v1923, %v1944
      %v1947 = vunpack.c.l.s4 1966171168
      %v1948 = vunpack.c.0.s8 %v1947
      %v1949 = vlaneseq
      %v1950 = vshrl.u32 %v1949, 7
      %v1951 = vsub.s32 %v1948, %v1950
      %v1952 = vrot.slane %v1924, %v1951
      %v1953 = vcombine.low %v1931, %v1938
      %v1954 = vcombine.low %v1945, %v1952
      %v1956 = vunpack.c.l.s4 1966171168
      %v1957 = vunpack.c.0.s8 %v1956
      %v1958 = vlaneseq
      %v1959 = vshrl.u32 %v1958, 7
      %v1960 = vsub.s32 %v1957, %v1959
      %v1961 = vrot.slane %v1953, %v1960
      %v1963 = vunpack.c.l.s4 1966171168
      %v1964 = vunpack.c.0.s8 %v1963
      %v1965 = vlaneseq
      %v1966 = vshrl.u32 %v1965, 7
      %v1967 = vsub.s32 %v1964, %v1966
      %v1968 = vrot.slane %v1954, %v1967
      %v1969 = vcombine.low %v1961, %v1968
      %v1970 = vcombine.low %v894, %v895
      %v1971 = vcombine.low %v896, %v911
      %v1972 = vcombine.low %v918, %v919
      %v1973 = vcombine.low %v920, %v934
      %v1975 = vunpack.c.l.s4 1966171168
      %v1976 = vunpack.c.0.s8 %v1975
      %v1977 = vlaneseq
      %v1978 = vshrl.u32 %v1977, 7
      %v1979 = vsub.s32 %v1976, %v1978
      %v1980 = vrot.slane %v1970, %v1979
      %v1982 = vunpack.c.l.s4 1966171168
      %v1983 = vunpack.c.0.s8 %v1982
      %v1984 = vlaneseq
      %v1985 = vshrl.u32 %v1984, 7
      %v1986 = vsub.s32 %v1983, %v1985
      %v1987 = vrot.slane %v1971, %v1986
      %v1989 = vunpack.c.l.s4 1966171168
      %v1990 = vunpack.c.0.s8 %v1989
      %v1991 = vlaneseq
      %v1992 = vshrl.u32 %v1991, 7
      %v1993 = vsub.s32 %v1990, %v1992
      %v1994 = vrot.slane %v1972, %v1993
      %v1996 = vunpack.c.l.s4 1966171168
      %v1997 = vunpack.c.0.s8 %v1996
      %v1998 = vlaneseq
      %v1999 = vshrl.u32 %v1998, 7
      %v2000 = vsub.s32 %v1997, %v1999
      %v2001 = vrot.slane %v1973, %v2000
      %v2002 = vcombine.low %v1980, %v1987
      %v2003 = vcombine.low %v1994, %v2001
      %v2005 = vunpack.c.l.s4 1966171168
      %v2006 = vunpack.c.0.s8 %v2005
      %v2007 = vlaneseq
      %v2008 = vshrl.u32 %v2007, 7
      %v2009 = vsub.s32 %v2006, %v2008
      %v2010 = vrot.slane %v2002, %v2009
      %v2012 = vunpack.c.l.s4 1966171168
      %v2013 = vunpack.c.0.s8 %v2012
      %v2014 = vlaneseq
      %v2015 = vshrl.u32 %v2014, 7
      %v2016 = vsub.s32 %v2013, %v2015
      %v2017 = vrot.slane %v2003, %v2016
      %v2018 = vcombine.low %v2010, %v2017
      %v2019 = vcombine.low %v949, %v956
      %v2020 = vcombine.low %v957, %v958
      %v2021 = vcombine.low %v973, %v980
      %v2022 = vcombine.low %v981, %v982
      %v2024 = vunpack.c.l.s4 1966171168
      %v2025 = vunpack.c.0.s8 %v2024
      %v2026 = vlaneseq
      %v2027 = vshrl.u32 %v2026, 7
      %v2028 = vsub.s32 %v2025, %v2027
      %v2029 = vrot.slane %v2019, %v2028
      %v2031 = vunpack.c.l.s4 1966171168
      %v2032 = vunpack.c.0.s8 %v2031
      %v2033 = vlaneseq
      %v2034 = vshrl.u32 %v2033, 7
      %v2035 = vsub.s32 %v2032, %v2034
      %v2036 = vrot.slane %v2020, %v2035
      %v2038 = vunpack.c.l.s4 1966171168
      %v2039 = vunpack.c.0.s8 %v2038
      %v2040 = vlaneseq
      %v2041 = vshrl.u32 %v2040, 7
      %v2042 = vsub.s32 %v2039, %v2041
      %v2043 = vrot.slane %v2021, %v2042
      %v2045 = vunpack.c.l.s4 1966171168
      %v2046 = vunpack.c.0.s8 %v2045
      %v2047 = vlaneseq
      %v2048 = vshrl.u32 %v2047, 7
      %v2049 = vsub.s32 %v2046, %v2048
      %v2050 = vrot.slane %v2022, %v2049
      %v2051 = vcombine.low %v2029, %v2036
      %v2052 = vcombine.low %v2043, %v2050
      %v2054 = vunpack.c.l.s4 1966171168
      %v2055 = vunpack.c.0.s8 %v2054
      %v2056 = vlaneseq
      %v2057 = vshrl.u32 %v2056, 7
      %v2058 = vsub.s32 %v2055, %v2057
      %v2059 = vrot.slane %v2051, %v2058
      %v2061 = vunpack.c.l.s4 1966171168
      %v2062 = vunpack.c.0.s8 %v2061
      %v2063 = vlaneseq
      %v2064 = vshrl.u32 %v2063, 7
      %v2065 = vsub.s32 %v2062, %v2064
      %v2066 = vrot.slane %v2052, %v2065
      %v2067 = vcombine.low %v2059, %v2066
      %v2068 = vcombine.low %v996, %v1011
      %v2069 = vcombine.low %v1018, %v1019
      %v2070 = vcombine.low %v1020, %v1035
      %v2071 = vcombine.low %v1042, %v1043
      %v2073 = vunpack.c.l.s4 1966171168
      %v2074 = vunpack.c.0.s8 %v2073
      %v2075 = vlaneseq
      %v2076 = vshrl.u32 %v2075, 7
      %v2077 = vsub.s32 %v2074, %v2076
      %v2078 = vrot.slane %v2068, %v2077
      %v2080 = vunpack.c.l.s4 1966171168
      %v2081 = vunpack.c.0.s8 %v2080
      %v2082 = vlaneseq
      %v2083 = vshrl.u32 %v2082, 7
      %v2084 = vsub.s32 %v2081, %v2083
      %v2085 = vrot.slane %v2069, %v2084
      %v2087 = vunpack.c.l.s4 1966171168
      %v2088 = vunpack.c.0.s8 %v2087
      %v2089 = vlaneseq
      %v2090 = vshrl.u32 %v2089, 7
      %v2091 = vsub.s32 %v2088, %v2090
      %v2092 = vrot.slane %v2070, %v2091
      %v2094 = vunpack.c.l.s4 1966171168
      %v2095 = vunpack.c.0.s8 %v2094
      %v2096 = vlaneseq
      %v2097 = vshrl.u32 %v2096, 7
      %v2098 = vsub.s32 %v2095, %v2097
      %v2099 = vrot.slane %v2071, %v2098
      %v2100 = vcombine.low %v2078, %v2085
      %v2101 = vcombine.low %v2092, %v2099
      %v2103 = vunpack.c.l.s4 1966171168
      %v2104 = vunpack.c.0.s8 %v2103
      %v2105 = vlaneseq
      %v2106 = vshrl.u32 %v2105, 7
      %v2107 = vsub.s32 %v2104, %v2106
      %v2108 = vrot.slane %v2100, %v2107
      %v2110 = vunpack.c.l.s4 1966171168
      %v2111 = vunpack.c.0.s8 %v2110
      %v2112 = vlaneseq
      %v2113 = vshrl.u32 %v2112, 7
      %v2114 = vsub.s32 %v2111, %v2113
      %v2115 = vrot.slane %v2101, %v2114
      %v2116 = vcombine.low %v2108, %v2115
      %v2117 = vcombine.low %v1044, %v1058
      %v2118 = vcombine.low %v1073, %v1080
      %v2119 = vcombine.low %v1081, %v1082
      %v2120 = vcombine.low %v1097, %v1104
      %v2122 = vunpack.c.l.s4 1966171168
      %v2123 = vunpack.c.0.s8 %v2122
      %v2124 = vlaneseq
      %v2125 = vshrl.u32 %v2124, 7
      %v2126 = vsub.s32 %v2123, %v2125
      %v2127 = vrot.slane %v2117, %v2126
      %v2129 = vunpack.c.l.s4 1966171168
      %v2130 = vunpack.c.0.s8 %v2129
      %v2131 = vlaneseq
      %v2132 = vshrl.u32 %v2131, 7
      %v2133 = vsub.s32 %v2130, %v2132
      %v2134 = vrot.slane %v2118, %v2133
      %v2136 = vunpack.c.l.s4 1966171168
      %v2137 = vunpack.c.0.s8 %v2136
      %v2138 = vlaneseq
      %v2139 = vshrl.u32 %v2138, 7
      %v2140 = vsub.s32 %v2137, %v2139
      %v2141 = vrot.slane %v2119, %v2140
      %v2143 = vunpack.c.l.s4 1966171168
      %v2144 = vunpack.c.0.s8 %v2143
      %v2145 = vlaneseq
      %v2146 = vshrl.u32 %v2145, 7
      %v2147 = vsub.s32 %v2144, %v2146
      %v2148 = vrot.slane %v2120, %v2147
      %v2149 = vcombine.low %v2127, %v2134
      %v2150 = vcombine.low %v2141, %v2148
      %v2152 = vunpack.c.l.s4 1966171168
      %v2153 = vunpack.c.0.s8 %v2152
      %v2154 = vlaneseq
      %v2155 = vshrl.u32 %v2154, 7
      %v2156 = vsub.s32 %v2153, %v2155
      %v2157 = vrot.slane %v2149, %v2156
      %v2159 = vunpack.c.l.s4 1966171168
      %v2160 = vunpack.c.0.s8 %v2159
      %v2161 = vlaneseq
      %v2162 = vshrl.u32 %v2161, 7
      %v2163 = vsub.s32 %v2160, %v2162
      %v2164 = vrot.slane %v2150, %v2163
      %v2165 = vcombine.low %v2157, %v2164
      %v2166 = vcombine.low %v1105, %v1106
      %v2167 = vcombine.low %v1120, %v1135
      %v2168 = vcombine.low %v1142, %v1143
      %v2169 = vcombine.low %v1144, %v1159
      %v2171 = vunpack.c.l.s4 1966171168
      %v2172 = vunpack.c.0.s8 %v2171
      %v2173 = vlaneseq
      %v2174 = vshrl.u32 %v2173, 7
      %v2175 = vsub.s32 %v2172, %v2174
      %v2176 = vrot.slane %v2166, %v2175
      %v2178 = vunpack.c.l.s4 1966171168
      %v2179 = vunpack.c.0.s8 %v2178
      %v2180 = vlaneseq
      %v2181 = vshrl.u32 %v2180, 7
      %v2182 = vsub.s32 %v2179, %v2181
      %v2183 = vrot.slane %v2167, %v2182
      %v2185 = vunpack.c.l.s4 1966171168
      %v2186 = vunpack.c.0.s8 %v2185
      %v2187 = vlaneseq
      %v2188 = vshrl.u32 %v2187, 7
      %v2189 = vsub.s32 %v2186, %v2188
      %v2190 = vrot.slane %v2168, %v2189
      %v2192 = vunpack.c.l.s4 1966171168
      %v2193 = vunpack.c.0.s8 %v2192
      %v2194 = vlaneseq
      %v2195 = vshrl.u32 %v2194, 7
      %v2196 = vsub.s32 %v2193, %v2195
      %v2197 = vrot.slane %v2169, %v2196
      %v2198 = vcombine.low %v2176, %v2183
      %v2199 = vcombine.low %v2190, %v2197
      %v2201 = vunpack.c.l.s4 1966171168
      %v2202 = vunpack.c.0.s8 %v2201
      %v2203 = vlaneseq
      %v2204 = vshrl.u32 %v2203, 7
      %v2205 = vsub.s32 %v2202, %v2204
      %v2206 = vrot.slane %v2198, %v2205
      %v2208 = vunpack.c.l.s4 1966171168
      %v2209 = vunpack.c.0.s8 %v2208
      %v2210 = vlaneseq
      %v2211 = vshrl.u32 %v2210, 7
      %v2212 = vsub.s32 %v2209, %v2211
      %v2213 = vrot.slane %v2199, %v2212
      %v2214 = vcombine.low %v2206, %v2213
      %v2215 = vcombine.low %v1166, %v1167
      %v2216 = vcombine.low %v1168, %v1182
      %v2217 = vcombine.low %v1197, %v1204
      %v2218 = vcombine.low %v1205, %v1206
      %v2220 = vunpack.c.l.s4 1966171168
      %v2221 = vunpack.c.0.s8 %v2220
      %v2222 = vlaneseq
      %v2223 = vshrl.u32 %v2222, 7
      %v2224 = vsub.s32 %v2221, %v2223
      %v2225 = vrot.slane %v2215, %v2224
      %v2227 = vunpack.c.l.s4 1966171168
      %v2228 = vunpack.c.0.s8 %v2227
      %v2229 = vlaneseq
      %v2230 = vshrl.u32 %v2229, 7
      %v2231 = vsub.s32 %v2228, %v2230
      %v2232 = vrot.slane %v2216, %v2231
      %v2234 = vunpack.c.l.s4 1966171168
      %v2235 = vunpack.c.0.s8 %v2234
      %v2236 = vlaneseq
      %v2237 = vshrl.u32 %v2236, 7
      %v2238 = vsub.s32 %v2235, %v2237
      %v2239 = vrot.slane %v2217, %v2238
      %v2241 = vunpack.c.l.s4 1966171168
      %v2242 = vunpack.c.0.s8 %v2241
      %v2243 = vlaneseq
      %v2244 = vshrl.u32 %v2243, 7
      %v2245 = vsub.s32 %v2242, %v2244
      %v2246 = vrot.slane %v2218, %v2245
      %v2247 = vcombine.low %v2225, %v2232
      %v2248 = vcombine.low %v2239, %v2246
      %v2250 = vunpack.c.l.s4 1966171168
      %v2251 = vunpack.c.0.s8 %v2250
      %v2252 = vlaneseq
      %v2253 = vshrl.u32 %v2252, 7
      %v2254 = vsub.s32 %v2251, %v2253
      %v2255 = vrot.slane %v2247, %v2254
      %v2257 = vunpack.c.l.s4 1966171168
      %v2258 = vunpack.c.0.s8 %v2257
      %v2259 = vlaneseq
      %v2260 = vshrl.u32 %v2259, 7
      %v2261 = vsub.s32 %v2258, %v2260
      %v2262 = vrot.slane %v2248, %v2261
      %v2263 = vcombine.low %v2255, %v2262
      %v2264 = vcombine.low %v1221, %v1228
      %v2265 = vcombine.low %v1229, %v1230
      %v2266 = vcombine.low %v1244, %v1259
      %v2267 = vcombine.low %v1266, %v1267
      %v2269 = vunpack.c.l.s4 1966171168
      %v2270 = vunpack.c.0.s8 %v2269
      %v2271 = vlaneseq
      %v2272 = vshrl.u32 %v2271, 7
      %v2273 = vsub.s32 %v2270, %v2272
      %v2274 = vrot.slane %v2264, %v2273
      %v2276 = vunpack.c.l.s4 1966171168
      %v2277 = vunpack.c.0.s8 %v2276
      %v2278 = vlaneseq
      %v2279 = vshrl.u32 %v2278, 7
      %v2280 = vsub.s32 %v2277, %v2279
      %v2281 = vrot.slane %v2265, %v2280
      %v2283 = vunpack.c.l.s4 1966171168
      %v2284 = vunpack.c.0.s8 %v2283
      %v2285 = vlaneseq
      %v2286 = vshrl.u32 %v2285, 7
      %v2287 = vsub.s32 %v2284, %v2286
      %v2288 = vrot.slane %v2266, %v2287
      %v2290 = vunpack.c.l.s4 1966171168
      %v2291 = vunpack.c.0.s8 %v2290
      %v2292 = vlaneseq
      %v2293 = vshrl.u32 %v2292, 7
      %v2294 = vsub.s32 %v2291, %v2293
      %v2295 = vrot.slane %v2267, %v2294
      %v2296 = vcombine.low %v2274, %v2281
      %v2297 = vcombine.low %v2288, %v2295
      %v2299 = vunpack.c.l.s4 1966171168
      %v2300 = vunpack.c.0.s8 %v2299
      %v2301 = vlaneseq
      %v2302 = vshrl.u32 %v2301, 7
      %v2303 = vsub.s32 %v2300, %v2302
      %v2304 = vrot.slane %v2296, %v2303
      %v2306 = vunpack.c.l.s4 1966171168
      %v2307 = vunpack.c.0.s8 %v2306
      %v2308 = vlaneseq
      %v2309 = vshrl.u32 %v2308, 7
      %v2310 = vsub.s32 %v2307, %v2309
      %v2311 = vrot.slane %v2297, %v2310
      %v2312 = vcombine.low %v2304, %v2311
      %v2313 = vcombine.low %v1268, %v1283
      %v2314 = vcombine.low %v1290, %v1291
      %v2315 = vcombine.low %v1292, %v1306
      %v2316 = vcombine.low %v1321, %v1328
      %v2318 = vunpack.c.l.s4 1966171168
      %v2319 = vunpack.c.0.s8 %v2318
      %v2320 = vlaneseq
      %v2321 = vshrl.u32 %v2320, 7
      %v2322 = vsub.s32 %v2319, %v2321
      %v2323 = vrot.slane %v2313, %v2322
      %v2325 = vunpack.c.l.s4 1966171168
      %v2326 = vunpack.c.0.s8 %v2325
      %v2327 = vlaneseq
      %v2328 = vshrl.u32 %v2327, 7
      %v2329 = vsub.s32 %v2326, %v2328
      %v2330 = vrot.slane %v2314, %v2329
      %v2332 = vunpack.c.l.s4 1966171168
      %v2333 = vunpack.c.0.s8 %v2332
      %v2334 = vlaneseq
      %v2335 = vshrl.u32 %v2334, 7
      %v2336 = vsub.s32 %v2333, %v2335
      %v2337 = vrot.slane %v2315, %v2336
      %v2339 = vunpack.c.l.s4 1966171168
      %v2340 = vunpack.c.0.s8 %v2339
      %v2341 = vlaneseq
      %v2342 = vshrl.u32 %v2341, 7
      %v2343 = vsub.s32 %v2340, %v2342
      %v2344 = vrot.slane %v2316, %v2343
      %v2345 = vcombine.low %v2323, %v2330
      %v2346 = vcombine.low %v2337, %v2344
      %v2348 = vunpack.c.l.s4 1966171168
      %v2349 = vunpack.c.0.s8 %v2348
      %v2350 = vlaneseq
      %v2351 = vshrl.u32 %v2350, 7
      %v2352 = vsub.s32 %v2349, %v2351
      %v2353 = vrot.slane %v2345, %v2352
      %v2355 = vunpack.c.l.s4 1966171168
      %v2356 = vunpack.c.0.s8 %v2355
      %v2357 = vlaneseq
      %v2358 = vshrl.u32 %v2357, 7
      %v2359 = vsub.s32 %v2356, %v2358
      %v2360 = vrot.slane %v2346, %v2359
      %v2361 = vcombine.low %v2353, %v2360
      %v2362 = vcombine.low %v1329, %v1330
      %v2363 = vcombine.low %v1345, %v1352
      %v2364 = vcombine.low %v1353, %v1354
      %v2365 = vcombine.low %v1368, %v1383
      %v2367 = vunpack.c.l.s4 1966171168
      %v2368 = vunpack.c.0.s8 %v2367
      %v2369 = vlaneseq
      %v2370 = vshrl.u32 %v2369, 7
      %v2371 = vsub.s32 %v2368, %v2370
      %v2372 = vrot.slane %v2362, %v2371
      %v2374 = vunpack.c.l.s4 1966171168
      %v2375 = vunpack.c.0.s8 %v2374
      %v2376 = vlaneseq
      %v2377 = vshrl.u32 %v2376, 7
      %v2378 = vsub.s32 %v2375, %v2377
      %v2379 = vrot.slane %v2363, %v2378
      %v2381 = vunpack.c.l.s4 1966171168
      %v2382 = vunpack.c.0.s8 %v2381
      %v2383 = vlaneseq
      %v2384 = vshrl.u32 %v2383, 7
      %v2385 = vsub.s32 %v2382, %v2384
      %v2386 = vrot.slane %v2364, %v2385
      %v2388 = vunpack.c.l.s4 1966171168
      %v2389 = vunpack.c.0.s8 %v2388
      %v2390 = vlaneseq
      %v2391 = vshrl.u32 %v2390, 7
      %v2392 = vsub.s32 %v2389, %v2391
      %v2393 = vrot.slane %v2365, %v2392
      %v2394 = vcombine.low %v2372, %v2379
      %v2395 = vcombine.low %v2386, %v2393
      %v2397 = vunpack.c.l.s4 1966171168
      %v2398 = vunpack.c.0.s8 %v2397
      %v2399 = vlaneseq
      %v2400 = vshrl.u32 %v2399, 7
      %v2401 = vsub.s32 %v2398, %v2400
      %v2402 = vrot.slane %v2394, %v2401
      %v2404 = vunpack.c.l.s4 1966171168
      %v2405 = vunpack.c.0.s8 %v2404
      %v2406 = vlaneseq
      %v2407 = vshrl.u32 %v2406, 7
      %v2408 = vsub.s32 %v2405, %v2407
      %v2409 = vrot.slane %v2395, %v2408
      %v2410 = vcombine.low %v2402, %v2409
      %v2411 = vcombine.low %v1390, %v1391
      %v2412 = vcombine.low %v1392, %v1407
      %v2413 = vcombine.low %v1414, %v1415
      %v2414 = vcombine.low %v1416, %v1430
      %v2416 = vunpack.c.l.s4 1966171168
      %v2417 = vunpack.c.0.s8 %v2416
      %v2418 = vlaneseq
      %v2419 = vshrl.u32 %v2418, 7
      %v2420 = vsub.s32 %v2417, %v2419
      %v2421 = vrot.slane %v2411, %v2420
      %v2423 = vunpack.c.l.s4 1966171168
      %v2424 = vunpack.c.0.s8 %v2423
      %v2425 = vlaneseq
      %v2426 = vshrl.u32 %v2425, 7
      %v2427 = vsub.s32 %v2424, %v2426
      %v2428 = vrot.slane %v2412, %v2427
      %v2430 = vunpack.c.l.s4 1966171168
      %v2431 = vunpack.c.0.s8 %v2430
      %v2432 = vlaneseq
      %v2433 = vshrl.u32 %v2432, 7
      %v2434 = vsub.s32 %v2431, %v2433
      %v2435 = vrot.slane %v2413, %v2434
      %v2437 = vunpack.c.l.s4 1966171168
      %v2438 = vunpack.c.0.s8 %v2437
      %v2439 = vlaneseq
      %v2440 = vshrl.u32 %v2439, 7
      %v2441 = vsub.s32 %v2438, %v2440
      %v2442 = vrot.slane %v2414, %v2441
      %v2443 = vcombine.low %v2421, %v2428
      %v2444 = vcombine.low %v2435, %v2442
      %v2446 = vunpack.c.l.s4 1966171168
      %v2447 = vunpack.c.0.s8 %v2446
      %v2448 = vlaneseq
      %v2449 = vshrl.u32 %v2448, 7
      %v2450 = vsub.s32 %v2447, %v2449
      %v2451 = vrot.slane %v2443, %v2450
      %v2453 = vunpack.c.l.s4 1966171168
      %v2454 = vunpack.c.0.s8 %v2453
      %v2455 = vlaneseq
      %v2456 = vshrl.u32 %v2455, 7
      %v2457 = vsub.s32 %v2454, %v2456
      %v2458 = vrot.slane %v2444, %v2457
      %v2459 = vcombine.low %v2451, %v2458
      %v2460 = vcombine.low %v1445, %v1452
      %v2461 = vcombine.low %v1453, %v1454
      %v2462 = vcombine.low %v1469, %v1476
      %v2463 = vcombine.low %v1477, %v1478
      %v2465 = vunpack.c.l.s4 1966171168
      %v2466 = vunpack.c.0.s8 %v2465
      %v2467 = vlaneseq
      %v2468 = vshrl.u32 %v2467, 7
      %v2469 = vsub.s32 %v2466, %v2468
      %v2470 = vrot.slane %v2460, %v2469
      %v2472 = vunpack.c.l.s4 1966171168
      %v2473 = vunpack.c.0.s8 %v2472
      %v2474 = vlaneseq
      %v2475 = vshrl.u32 %v2474, 7
      %v2476 = vsub.s32 %v2473, %v2475
      %v2477 = vrot.slane %v2461, %v2476
      %v2479 = vunpack.c.l.s4 1966171168
      %v2480 = vunpack.c.0.s8 %v2479
      %v2481 = vlaneseq
      %v2482 = vshrl.u32 %v2481, 7
      %v2483 = vsub.s32 %v2480, %v2482
      %v2484 = vrot.slane %v2462, %v2483
      %v2486 = vunpack.c.l.s4 1966171168
      %v2487 = vunpack.c.0.s8 %v2486
      %v2488 = vlaneseq
      %v2489 = vshrl.u32 %v2488, 7
      %v2490 = vsub.s32 %v2487, %v2489
      %v2491 = vrot.slane %v2463, %v2490
      %v2492 = vcombine.low %v2470, %v2477
      %v2493 = vcombine.low %v2484, %v2491
      %v2495 = vunpack.c.l.s4 1966171168
      %v2496 = vunpack.c.0.s8 %v2495
      %v2497 = vlaneseq
      %v2498 = vshrl.u32 %v2497, 7
      %v2499 = vsub.s32 %v2496, %v2498
      %v2500 = vrot.slane %v2492, %v2499
      %v2502 = vunpack.c.l.s4 1966171168
      %v2503 = vunpack.c.0.s8 %v2502
      %v2504 = vlaneseq
      %v2505 = vshrl.u32 %v2504, 7
      %v2506 = vsub.s32 %v2503, %v2505
      %v2507 = vrot.slane %v2493, %v2506
      %v2508 = vcombine.low %v2500, %v2507
      %v2509 = vcombine.low %v1492, %v1507
      %v2510 = vcombine.low %v1514, %v1515
      %v2511 = vcombine.low %v1516, %v1531
      %v2512 = vcombine.low %v1538, %v1539
      %v2514 = vunpack.c.l.s4 1966171168
      %v2515 = vunpack.c.0.s8 %v2514
      %v2516 = vlaneseq
      %v2517 = vshrl.u32 %v2516, 7
      %v2518 = vsub.s32 %v2515, %v2517
      %v2519 = vrot.slane %v2509, %v2518
      %v2521 = vunpack.c.l.s4 1966171168
      %v2522 = vunpack.c.0.s8 %v2521
      %v2523 = vlaneseq
      %v2524 = vshrl.u32 %v2523, 7
      %v2525 = vsub.s32 %v2522, %v2524
      %v2526 = vrot.slane %v2510, %v2525
      %v2528 = vunpack.c.l.s4 1966171168
      %v2529 = vunpack.c.0.s8 %v2528
      %v2530 = vlaneseq
      %v2531 = vshrl.u32 %v2530, 7
      %v2532 = vsub.s32 %v2529, %v2531
      %v2533 = vrot.slane %v2511, %v2532
      %v2535 = vunpack.c.l.s4 1966171168
      %v2536 = vunpack.c.0.s8 %v2535
      %v2537 = vlaneseq
      %v2538 = vshrl.u32 %v2537, 7
      %v2539 = vsub.s32 %v2536, %v2538
      %v2540 = vrot.slane %v2512, %v2539
      %v2541 = vcombine.low %v2519, %v2526
      %v2542 = vcombine.low %v2533, %v2540
      %v2544 = vunpack.c.l.s4 1966171168
      %v2545 = vunpack.c.0.s8 %v2544
      %v2546 = vlaneseq
      %v2547 = vshrl.u32 %v2546, 7
      %v2548 = vsub.s32 %v2545, %v2547
      %v2549 = vrot.slane %v2541, %v2548
      %v2551 = vunpack.c.l.s4 1966171168
      %v2552 = vunpack.c.0.s8 %v2551
      %v2553 = vlaneseq
      %v2554 = vshrl.u32 %v2553, 7
      %v2555 = vsub.s32 %v2552, %v2554
      %v2556 = vrot.slane %v2542, %v2555
      %v2557 = vcombine.low %v2549, %v2556
      %v2558 = vcombine.low %v1540, %v1554
      %v2560 = vunpack.c.l.s4 1966171168
      %v2561 = vunpack.c.0.s8 %v2560
      %v2562 = vlaneseq
      %v2563 = vshrl.u32 %v2562, 7
      %v2564 = vsub.s32 %v2561, %v2563
      %v2565 = vrot.slane %v2558, %v2564
      %v2567 = vunpack.c.l.s4 1966171168
      %v2568 = vunpack.c.0.s8 %v2567
      %v2569 = vlaneseq
      %v2570 = vshrl.u32 %v2569, 7
      %v2571 = vsub.s32 %v2568, %v2570
      %v2572 = vrot.slane %v2565, %v2571
      %v2610 = vunpack.c.l.b16 %v1555
      %v2611 = vunpack.c.l.b16 %v1556
      %v2612 = vunpack.c.l.b16 %v1557
      %v2613 = vunpack.c.l.b16 %v1558
      %v2614 = vunpack.c.l.b16 %v1559
      %v2615 = vunpack.c.l.b16 %v1560
      %v2616 = vunpack.c.l.b16 %v1561
      %v2617 = vunpack.c.l.b16 %v1562
      %v2618 = vunpack.c.l.b16 %v1563
      %v2619 = vunpack.c.l.b16 %v1564
      %v2620 = vunpack.c.l.b16 %v1565
      %v2621 = vunpack.c.l.b16 %v1566
      %v2622 = vunpack.c.l.b16 %v1567
      %v2623 = vunpack.c.l.b16 %v1568
      %v2624 = vunpack.c.l.b16 %v1569
      %v2625 = vunpack.c.l.b16 %v1570
      %v2626 = vpack.c.b16 %v2611, %v2610
      %v2627 = vpack.c.b16 %v2613, %v2612
      %v2628 = vpack.c.b16 %v2615, %v2614
      %v2629 = vpack.c.b16 %v2617, %v2616
      %v2630 = vpack.c.b16 %v2619, %v2618
      %v2631 = vpack.c.b16 %v2621, %v2620
      %v2632 = vpack.c.b16 %v2623, %v2622
      %v2633 = vpack.c.b16 %v2625, %v2624
      %2642 = vmatprep.subr.bf16.mxu0 0
      %2643 = vmatpush1.bf16.msra.mxu0 %v2633
      %2644 = vmatprep.subr.bf16.mxu0 0
      %2645 = vmatpush1.bf16.msra.mxu0 %v2632
      %2646 = vmatprep.subr.bf16.mxu0 0
      %2647 = vmatpush1.bf16.msra.mxu0 %v2631
      %2648 = vmatprep.subr.bf16.mxu0 0
      %2649 = vmatpush1.bf16.msra.mxu0 %v2630
      %2650 = vmatprep.subr.bf16.mxu0 0
      %2651 = vmatpush1.bf16.msra.mxu0 %v2629
      %2652 = vmatprep.subr.bf16.mxu0 0
      %2653 = vmatpush1.bf16.msra.mxu0 %v2628
      %2654 = vmatprep.subr.bf16.mxu0 0
      %2655 = vmatpush1.bf16.msra.mxu0 %v2627
      %2656 = vmatprep.subr.bf16.mxu0 0
      %2657 = vmatpush1.bf16.msra.mxu0 %v2626
      %2658 = vmatprep.subr.bf16.mxu0 0
      %2659 = vmatpush2.bf16.msra.mxu0 0
      %2660 = vmatprep.subr.bf16.mxu0 0
      %2661 = vmatpush2.bf16.msra.mxu0 0
      %2662 = vmatprep.subr.bf16.mxu0 0
      %2663 = vmatpush2.bf16.msra.mxu0 0
      %2664 = vmatprep.subr.bf16.mxu0 0
      %2665 = vmatpush2.bf16.msra.mxu0 0
      %2666 = vmatprep.subr.bf16.mxu0 0
      %2667 = vmatpush2.bf16.msra.mxu0 0
      %2668 = vmatprep.subr.bf16.mxu0 0
      %2669 = vmatpush2.bf16.msra.mxu0 0
      %2670 = vmatprep.subr.bf16.mxu0 0
      %2671 = vmatpush2.bf16.msra.mxu0 0
      %2672 = vmatprep.subr.bf16.mxu0 0
      %2673 = vmatpush2.bf16.msra.mxu0 0
      %2674 = vmatprep.mubr.bf16.mxu0 0
      %2675 = vmatmul.mubr.bf16.gmra.mxu0 %v1626
      %v2676 = vpop.f32.mrf.mxu0
      %v2677 = vadd.f32 %v1576, %v2676
      %v2678 = vpop.f32.mrf.mxu0
      %v2679 = vpop.f32.mrf.mxu0
      %v2680 = vadd.f32 %v1576, %v2679
      %v2681 = vpop.f32.mrf.mxu0
      %2682 = vmatprep.mubr.bf16.mxu0 0
      %2683 = vmatmul.mubr.bf16.gmra.mxu0 %v1675
      %v2684 = vpop.f32.mrf.mxu0
      %v2685 = vadd.f32 %v1576, %v2684
      %v2686 = vpop.f32.mrf.mxu0
      %v2687 = vpop.f32.mrf.mxu0
      %v2688 = vadd.f32 %v1576, %v2687
      %v2689 = vpop.f32.mrf.mxu0
      %2690 = vmatprep.mubr.bf16.mxu0 0
      %2691 = vmatmul.mubr.bf16.gmra.mxu0 %v1724
      %v2692 = vpop.f32.mrf.mxu0
      %v2693 = vadd.f32 %v1576, %v2692
      %v2694 = vpop.f32.mrf.mxu0
      %v2695 = vpop.f32.mrf.mxu0
      %v2696 = vadd.f32 %v1576, %v2695
      %v2697 = vpop.f32.mrf.mxu0
      %2698 = vmatprep.mubr.bf16.mxu0 0
      %2699 = vmatmul.mubr.bf16.gmra.mxu0 %v1773
      %v2700 = vpop.f32.mrf.mxu0
      %v2701 = vadd.f32 %v1576, %v2700
      %v2702 = vpop.f32.mrf.mxu0
      %v2703 = vpop.f32.mrf.mxu0
      %v2704 = vadd.f32 %v1576, %v2703
      %v2705 = vpop.f32.mrf.mxu0
      %2706 = vmatprep.mubr.bf16.mxu0 0
      %2707 = vmatmul.mubr.bf16.gmra.mxu0 %v1822
      %v2708 = vpop.f32.mrf.mxu0
      %v2709 = vadd.f32 %v1576, %v2708
      %v2710 = vpop.f32.mrf.mxu0
      %v2711 = vpop.f32.mrf.mxu0
      %v2712 = vadd.f32 %v1576, %v2711
      %v2713 = vpop.f32.mrf.mxu0
      %2714 = vmatprep.mubr.bf16.mxu0 0
      %2715 = vmatmul.mubr.bf16.gmra.mxu0 %v1871
      %v2716 = vpop.f32.mrf.mxu0
      %v2717 = vadd.f32 %v1576, %v2716
      %v2718 = vpop.f32.mrf.mxu0
      %v2719 = vpop.f32.mrf.mxu0
      %v2720 = vadd.f32 %v1576, %v2719
      %v2721 = vpop.f32.mrf.mxu0
      %2722 = vmatprep.mubr.bf16.mxu0 0
      %2723 = vmatmul.mubr.bf16.gmra.mxu0 %v1920
      %v2724 = vpop.f32.mrf.mxu0
      %v2725 = vadd.f32 %v1576, %v2724
      %v2726 = vpop.f32.mrf.mxu0
      %v2727 = vpop.f32.mrf.mxu0
      %v2728 = vadd.f32 %v1576, %v2727
      %v2729 = vpop.f32.mrf.mxu0
      %2730 = vmatprep.mubr.bf16.mxu0 0
      %2731 = vmatmul.mubr.bf16.gmra.mxu0 %v1969
      %v2732 = vpop.f32.mrf.mxu0
      %v2733 = vadd.f32 %v1576, %v2732
      %v2734 = vpop.f32.mrf.mxu0
      %v2735 = vpop.f32.mrf.mxu0
      %v2736 = vadd.f32 %v1576, %v2735
      %v2737 = vpop.f32.mrf.mxu0
      %2738 = vmatprep.mubr.bf16.mxu0 0
      %2739 = vmatmul.mubr.bf16.gmra.mxu0 %v2018
      %v2740 = vpop.f32.mrf.mxu0
      %v2741 = vadd.f32 %v1576, %v2740
      %v2742 = vpop.f32.mrf.mxu0
      %v2743 = vpop.f32.mrf.mxu0
      %v2744 = vadd.f32 %v1576, %v2743
      %v2745 = vpop.f32.mrf.mxu0
      %2746 = vmatprep.mubr.bf16.mxu0 0
      %2747 = vmatmul.mubr.bf16.gmra.mxu0 %v2067
      %v2748 = vpop.f32.mrf.mxu0
      %v2749 = vadd.f32 %v1576, %v2748
      %v2750 = vpop.f32.mrf.mxu0
      %v2751 = vpop.f32.mrf.mxu0
      %v2752 = vadd.f32 %v1576, %v2751
      %v2753 = vpop.f32.mrf.mxu0
      %2754 = vmatprep.mubr.bf16.mxu0 0
      %2755 = vmatmul.mubr.bf16.gmra.mxu0 %v2116
      %v2756 = vpop.f32.mrf.mxu0
      %v2757 = vadd.f32 %v1576, %v2756
      %v2758 = vpop.f32.mrf.mxu0
      %v2759 = vpop.f32.mrf.mxu0
      %v2760 = vadd.f32 %v1576, %v2759
      %v2761 = vpop.f32.mrf.mxu0
      %2762 = vmatprep.mubr.bf16.mxu0 0
      %2763 = vmatmul.mubr.bf16.gmra.mxu0 %v2165
      %v2764 = vpop.f32.mrf.mxu0
      %v2765 = vadd.f32 %v1576, %v2764
      %v2766 = vpop.f32.mrf.mxu0
      %v2767 = vpop.f32.mrf.mxu0
      %v2768 = vadd.f32 %v1576, %v2767
      %v2769 = vpop.f32.mrf.mxu0
      %2770 = vmatprep.mubr.bf16.mxu0 0
      %2771 = vmatmul.mubr.bf16.gmra.mxu0 %v2214
      %v2772 = vpop.f32.mrf.mxu0
      %v2773 = vadd.f32 %v1576, %v2772
      %v2774 = vpop.f32.mrf.mxu0
      %v2775 = vpop.f32.mrf.mxu0
      %v2776 = vadd.f32 %v1576, %v2775
      %v2777 = vpop.f32.mrf.mxu0
      %2778 = vmatprep.mubr.bf16.mxu0 0
      %2779 = vmatmul.mubr.bf16.gmra.mxu0 %v2263
      %v2780 = vpop.f32.mrf.mxu0
      %v2781 = vadd.f32 %v1576, %v2780
      %v2782 = vpop.f32.mrf.mxu0
      %v2783 = vpop.f32.mrf.mxu0
      %v2784 = vadd.f32 %v1576, %v2783
      %v2785 = vpop.f32.mrf.mxu0
      %2786 = vmatprep.mubr.bf16.mxu0 0
      %2787 = vmatmul.mubr.bf16.gmra.mxu0 %v2312
      %v2788 = vpop.f32.mrf.mxu0
      %v2789 = vadd.f32 %v1576, %v2788
      %v2790 = vpop.f32.mrf.mxu0
      %v2791 = vpop.f32.mrf.mxu0
      %v2792 = vadd.f32 %v1576, %v2791
      %v2793 = vpop.f32.mrf.mxu0
      %2794 = vmatprep.mubr.bf16.mxu0 0
      %2795 = vmatmul.mubr.bf16.gmra.mxu0 %v2361
      %v2796 = vpop.f32.mrf.mxu0
      %v2797 = vadd.f32 %v1576, %v2796
      %v2798 = vpop.f32.mrf.mxu0
      %v2799 = vpop.f32.mrf.mxu0
      %v2800 = vadd.f32 %v1576, %v2799
      %v2801 = vpop.f32.mrf.mxu0
      %2802 = vmatprep.mubr.bf16.mxu0 0
      %2803 = vmatmul.mubr.bf16.gmra.mxu0 %v2410
      %v2804 = vpop.f32.mrf.mxu0
      %v2805 = vadd.f32 %v1576, %v2804
      %v2806 = vpop.f32.mrf.mxu0
      %v2807 = vpop.f32.mrf.mxu0
      %v2808 = vadd.f32 %v1576, %v2807
      %v2809 = vpop.f32.mrf.mxu0
      %2810 = vmatprep.mubr.bf16.mxu0 0
      %2811 = vmatmul.mubr.bf16.gmra.mxu0 %v2459
      %v2812 = vpop.f32.mrf.mxu0
      %v2813 = vadd.f32 %v1576, %v2812
      %v2814 = vpop.f32.mrf.mxu0
      %v2815 = vpop.f32.mrf.mxu0
      %v2816 = vadd.f32 %v1576, %v2815
      %v2817 = vpop.f32.mrf.mxu0
      %2818 = vmatprep.mubr.bf16.mxu0 0
      %2819 = vmatmul.mubr.bf16.gmra.mxu0 %v2508
      %v2820 = vpop.f32.mrf.mxu0
      %v2821 = vadd.f32 %v1576, %v2820
      %v2822 = vpop.f32.mrf.mxu0
      %v2823 = vpop.f32.mrf.mxu0
      %v2824 = vadd.f32 %v1576, %v2823
      %v2825 = vpop.f32.mrf.mxu0
      %2826 = vmatprep.mubr.bf16.mxu0 0
      %2827 = vmatmul.mubr.bf16.gmra.mxu0 %v2557
      %v2828 = vpop.f32.mrf.mxu0
      %v2829 = vadd.f32 %v1576, %v2828
      %v2830 = vpop.f32.mrf.mxu0
      %v2831 = vpop.f32.mrf.mxu0
      %v2832 = vadd.f32 %v1576, %v2831
      %v2833 = vpop.f32.mrf.mxu0
      %2834 = vmatprep.mubr.bf16.mxu0 0
      %2835 = vmatmul.mubr.bf16.gmra.mxu0 %v2572
      %v2836 = vpop.f32.mrf.mxu0
      %v2837 = vadd.f32 %v1576, %v2836
      %v2838 = vpop.f32.mrf.mxu0
      %v2839 = vpop.f32.mrf.mxu0
      %v2840 = vpop.f32.mrf.mxu0
      %2841 = vdwg.mxu0
      %v2842 = vmin.f32 %v2677, 20.0
      %v2843 = vmin.f32 %v2680, 20.0
      %v2844 = vmin.f32 %v2685, 20.0
      %v2845 = vmin.f32 %v2688, 20.0
      %v2846 = vmin.f32 %v2693, 20.0
      %v2847 = vmin.f32 %v2696, 20.0
      %v2848 = vmin.f32 %v2701, 20.0
      %v2849 = vmin.f32 %v2704, 20.0
      %v2850 = vmin.f32 %v2709, 20.0
      %v2851 = vmin.f32 %v2712, 20.0
      %v2852 = vmin.f32 %v2717, 20.0
      %v2853 = vmin.f32 %v2720, 20.0
      %v2854 = vmin.f32 %v2725, 20.0
      %v2855 = vmin.f32 %v2728, 20.0
      %v2856 = vmin.f32 %v2733, 20.0
      %v2857 = vmin.f32 %v2736, 20.0
      %v2858 = vmin.f32 %v2741, 20.0
      %v2859 = vmin.f32 %v2744, 20.0
      %v2860 = vmin.f32 %v2749, 20.0
      %v2861 = vmin.f32 %v2752, 20.0
      %v2862 = vmin.f32 %v2757, 20.0
      %v2863 = vmin.f32 %v2760, 20.0
      %v2864 = vmin.f32 %v2765, 20.0
      %v2865 = vmin.f32 %v2768, 20.0
      %v2866 = vmin.f32 %v2773, 20.0
      %v2867 = vmin.f32 %v2776, 20.0
      %v2868 = vmin.f32 %v2781, 20.0
      %v2869 = vmin.f32 %v2784, 20.0
      %v2870 = vmin.f32 %v2789, 20.0
      %v2871 = vmin.f32 %v2792, 20.0
      %v2872 = vmin.f32 %v2797, 20.0
      %v2873 = vmin.f32 %v2800, 20.0
      %v2874 = vmin.f32 %v2805, 20.0
      %v2875 = vmin.f32 %v2808, 20.0
      %v2876 = vmin.f32 %v2813, 20.0
      %v2877 = vmin.f32 %v2816, 20.0
      %v2878 = vmin.f32 %v2821, 20.0
      %v2879 = vmin.f32 %v2824, 20.0
      %v2880 = vmin.f32 %v2829, 20.0
      %v2881 = vmin.f32 %v2832, 20.0
      %v2882 = vmin.f32 %v2837, 20.0
      %v2883 = vmul.f32 %v2842, 1.442695
      %v2884 = vpow.pop %v2883
      %v2885 = vmul.f32 %v2843, 1.442695
      %v2886 = vpow.pop %v2885
      %v2887 = vmul.f32 %v2844, 1.442695
      %v2888 = vpow.pop %v2887
      %v2889 = vmul.f32 %v2845, 1.442695
      %v2890 = vpow.pop %v2889
      %v2891 = vmul.f32 %v2846, 1.442695
      %v2892 = vpow.pop %v2891
      %v2893 = vmul.f32 %v2847, 1.442695
      %v2894 = vpow.pop %v2893
      %v2895 = vmul.f32 %v2848, 1.442695
      %v2896 = vpow.pop %v2895
      %v2897 = vmul.f32 %v2849, 1.442695
      %v2898 = vpow.pop %v2897
      %v2899 = vmul.f32 %v2850, 1.442695
      %v2900 = vpow.pop %v2899
      %v2901 = vmul.f32 %v2851, 1.442695
      %v2902 = vpow.pop %v2901
      %v2903 = vmul.f32 %v2852, 1.442695
      %v2904 = vpow.pop %v2903
      %v2905 = vmul.f32 %v2853, 1.442695
      %v2906 = vpow.pop %v2905
      %v2907 = vmul.f32 %v2854, 1.442695
      %v2908 = vpow.pop %v2907
      %v2909 = vmul.f32 %v2855, 1.442695
      %v2910 = vpow.pop %v2909
      %v2911 = vmul.f32 %v2856, 1.442695
      %v2912 = vpow.pop %v2911
      %v2913 = vmul.f32 %v2857, 1.442695
      %v2914 = vpow.pop %v2913
      %v2915 = vmul.f32 %v2858, 1.442695
      %v2916 = vpow.pop %v2915
      %v2917 = vmul.f32 %v2859, 1.442695
      %v2918 = vpow.pop %v2917
      %v2919 = vmul.f32 %v2860, 1.442695
      %v2920 = vpow.pop %v2919
      %v2921 = vmul.f32 %v2861, 1.442695
      %v2922 = vpow.pop %v2921
      %v2923 = vmul.f32 %v2862, 1.442695
      %v2924 = vpow.pop %v2923
      %v2925 = vmul.f32 %v2863, 1.442695
      %v2926 = vpow.pop %v2925
      %v2927 = vmul.f32 %v2864, 1.442695
      %v2928 = vpow.pop %v2927
      %v2929 = vmul.f32 %v2865, 1.442695
      %v2930 = vpow.pop %v2929
      %v2931 = vmul.f32 %v2866, 1.442695
      %v2932 = vpow.pop %v2931
      %v2933 = vmul.f32 %v2867, 1.442695
      %v2934 = vpow.pop %v2933
      %v2935 = vmul.f32 %v2868, 1.442695
      %v2936 = vpow.pop %v2935
      %v2937 = vmul.f32 %v2869, 1.442695
      %v2938 = vpow.pop %v2937
      %v2939 = vmul.f32 %v2870, 1.442695
      %v2940 = vpow.pop %v2939
      %v2941 = vmul.f32 %v2871, 1.442695
      %v2942 = vpow.pop %v2941
      %v2943 = vmul.f32 %v2872, 1.442695
      %v2944 = vpow.pop %v2943
      %v2945 = vmul.f32 %v2873, 1.442695
      %v2946 = vpow.pop %v2945
      %v2947 = vmul.f32 %v2874, 1.442695
      %v2948 = vpow.pop %v2947
      %v2949 = vmul.f32 %v2875, 1.442695
      %v2950 = vpow.pop %v2949
      %v2951 = vmul.f32 %v2876, 1.442695
      %v2952 = vpow.pop %v2951
      %v2953 = vmul.f32 %v2877, 1.442695
      %v2954 = vpow.pop %v2953
      %v2955 = vmul.f32 %v2878, 1.442695
      %v2956 = vpow.pop %v2955
      %v2957 = vmul.f32 %v2879, 1.442695
      %v2958 = vpow.pop %v2957
      %v2959 = vmul.f32 %v2880, 1.442695
      %v2960 = vpow.pop %v2959
      %v2961 = vmul.f32 %v2881, 1.442695
      %v2962 = vpow.pop %v2961
      %v2963 = vmul.f32 %v2882, 1.442695
      %v2964 = vpow.pop %v2963
      %v2965 = vadd.f32 %v2884, 2.0
      %v2966 = vadd.f32 %v2886, 2.0
      %v2967 = vadd.f32 %v2888, 2.0
      %v2968 = vadd.f32 %v2890, 2.0
      %v2969 = vadd.f32 %v2892, 2.0
      %v2970 = vadd.f32 %v2894, 2.0
      %v2971 = vadd.f32 %v2896, 2.0
      %v2972 = vadd.f32 %v2898, 2.0
      %v2973 = vadd.f32 %v2900, 2.0
      %v2974 = vadd.f32 %v2902, 2.0
      %v2975 = vadd.f32 %v2904, 2.0
      %v2976 = vadd.f32 %v2906, 2.0
      %v2977 = vadd.f32 %v2908, 2.0
      %v2978 = vadd.f32 %v2910, 2.0
      %v2979 = vadd.f32 %v2912, 2.0
      %v2980 = vadd.f32 %v2914, 2.0
      %v2981 = vadd.f32 %v2916, 2.0
      %v2982 = vadd.f32 %v2918, 2.0
      %v2983 = vadd.f32 %v2920, 2.0
      %v2984 = vadd.f32 %v2922, 2.0
      %v2985 = vadd.f32 %v2924, 2.0
      %v2986 = vadd.f32 %v2926, 2.0
      %v2987 = vadd.f32 %v2928, 2.0
      %v2988 = vadd.f32 %v2930, 2.0
      %v2989 = vadd.f32 %v2932, 2.0
      %v2990 = vadd.f32 %v2934, 2.0
      %v2991 = vadd.f32 %v2936, 2.0
      %v2992 = vadd.f32 %v2938, 2.0
      %v2993 = vadd.f32 %v2940, 2.0
      %v2994 = vadd.f32 %v2942, 2.0
      %v2995 = vadd.f32 %v2944, 2.0
      %v2996 = vadd.f32 %v2946, 2.0
      %v2997 = vadd.f32 %v2948, 2.0
      %v2998 = vadd.f32 %v2950, 2.0
      %v2999 = vadd.f32 %v2952, 2.0
      %v3000 = vadd.f32 %v2954, 2.0
      %v3001 = vadd.f32 %v2956, 2.0
      %v3002 = vadd.f32 %v2958, 2.0
      %v3003 = vadd.f32 %v2960, 2.0
      %v3004 = vadd.f32 %v2962, 2.0
      %v3005 = vadd.f32 %v2964, 2.0
      %v3006 = vmul.f32 %v2884, %v2965
      %v3007 = vmul.f32 %v2886, %v2966
      %v3008 = vmul.f32 %v2888, %v2967
      %v3009 = vmul.f32 %v2890, %v2968
      %v3010 = vmul.f32 %v2892, %v2969
      %v3011 = vmul.f32 %v2894, %v2970
      %v3012 = vmul.f32 %v2896, %v2971
      %v3013 = vmul.f32 %v2898, %v2972
      %v3014 = vmul.f32 %v2900, %v2973
      %v3015 = vmul.f32 %v2902, %v2974
      %v3016 = vmul.f32 %v2904, %v2975
      %v3017 = vmul.f32 %v2906, %v2976
      %v3018 = vmul.f32 %v2908, %v2977
      %v3019 = vmul.f32 %v2910, %v2978
      %v3020 = vmul.f32 %v2912, %v2979
      %v3021 = vmul.f32 %v2914, %v2980
      %v3022 = vmul.f32 %v2916, %v2981
      %v3023 = vmul.f32 %v2918, %v2982
      %v3024 = vmul.f32 %v2920, %v2983
      %v3025 = vmul.f32 %v2922, %v2984
      %v3026 = vmul.f32 %v2924, %v2985
      %v3027 = vmul.f32 %v2926, %v2986
      %v3028 = vmul.f32 %v2928, %v2987
      %v3029 = vmul.f32 %v2930, %v2988
      %v3030 = vmul.f32 %v2932, %v2989
      %v3031 = vmul.f32 %v2934, %v2990
      %v3032 = vmul.f32 %v2936, %v2991
      %v3033 = vmul.f32 %v2938, %v2992
      %v3034 = vmul.f32 %v2940, %v2993
      %v3035 = vmul.f32 %v2942, %v2994
      %v3036 = vmul.f32 %v2944, %v2995
      %v3037 = vmul.f32 %v2946, %v2996
      %v3038 = vmul.f32 %v2948, %v2997
      %v3039 = vmul.f32 %v2950, %v2998
      %v3040 = vmul.f32 %v2952, %v2999
      %v3041 = vmul.f32 %v2954, %v3000
      %v3042 = vmul.f32 %v2956, %v3001
      %v3043 = vmul.f32 %v2958, %v3002
      %v3044 = vmul.f32 %v2960, %v3003
      %v3045 = vmul.f32 %v2962, %v3004
      %v3046 = vmul.f32 %v2964, %v3005
      %v3047 = vmul.f32 %v2677, %v3006
      %v3048 = vmul.f32 %v2680, %v3007
      %v3049 = vmul.f32 %v2685, %v3008
      %v3050 = vmul.f32 %v2688, %v3009
      %v3051 = vmul.f32 %v2693, %v3010
      %v3052 = vmul.f32 %v2696, %v3011
      %v3053 = vmul.f32 %v2701, %v3012
      %v3054 = vmul.f32 %v2704, %v3013
      %v3055 = vmul.f32 %v2709, %v3014
      %v3056 = vmul.f32 %v2712, %v3015
      %v3057 = vmul.f32 %v2717, %v3016
      %v3058 = vmul.f32 %v2720, %v3017
      %v3059 = vmul.f32 %v2725, %v3018
      %v3060 = vmul.f32 %v2728, %v3019
      %v3061 = vmul.f32 %v2733, %v3020
      %v3062 = vmul.f32 %v2736, %v3021
      %v3063 = vmul.f32 %v2741, %v3022
      %v3064 = vmul.f32 %v2744, %v3023
      %v3065 = vmul.f32 %v2749, %v3024
      %v3066 = vmul.f32 %v2752, %v3025
      %v3067 = vmul.f32 %v2757, %v3026
      %v3068 = vmul.f32 %v2760, %v3027
      %v3069 = vmul.f32 %v2765, %v3028
      %v3070 = vmul.f32 %v2768, %v3029
      %v3071 = vmul.f32 %v2773, %v3030
      %v3072 = vmul.f32 %v2776, %v3031
      %v3073 = vmul.f32 %v2781, %v3032
      %v3074 = vmul.f32 %v2784, %v3033
      %v3075 = vmul.f32 %v2789, %v3034
      %v3076 = vmul.f32 %v2792, %v3035
      %v3077 = vmul.f32 %v2797, %v3036
      %v3078 = vmul.f32 %v2800, %v3037
      %v3079 = vmul.f32 %v2805, %v3038
      %v3080 = vmul.f32 %v2808, %v3039
      %v3081 = vmul.f32 %v2813, %v3040
      %v3082 = vmul.f32 %v2816, %v3041
      %v3083 = vmul.f32 %v2821, %v3042
      %v3084 = vmul.f32 %v2824, %v3043
      %v3085 = vmul.f32 %v2829, %v3044
      %v3086 = vmul.f32 %v2832, %v3045
      %v3087 = vmul.f32 %v2837, %v3046
      %v3088 = vadd.f32 %v3006, 2.0
      %v3089 = vadd.f32 %v3007, 2.0
      %v3090 = vadd.f32 %v3008, 2.0
      %v3091 = vadd.f32 %v3009, 2.0
      %v3092 = vadd.f32 %v3010, 2.0
      %v3093 = vadd.f32 %v3011, 2.0
      %v3094 = vadd.f32 %v3012, 2.0
      %v3095 = vadd.f32 %v3013, 2.0
      %v3096 = vadd.f32 %v3014, 2.0
      %v3097 = vadd.f32 %v3015, 2.0
      %v3098 = vadd.f32 %v3016, 2.0
      %v3099 = vadd.f32 %v3017, 2.0
      %v3100 = vadd.f32 %v3018, 2.0
      %v3101 = vadd.f32 %v3019, 2.0
      %v3102 = vadd.f32 %v3020, 2.0
      %v3103 = vadd.f32 %v3021, 2.0
      %v3104 = vadd.f32 %v3022, 2.0
      %v3105 = vadd.f32 %v3023, 2.0
      %v3106 = vadd.f32 %v3024, 2.0
      %v3107 = vadd.f32 %v3025, 2.0
      %v3108 = vadd.f32 %v3026, 2.0
      %v3109 = vadd.f32 %v3027, 2.0
      %v3110 = vadd.f32 %v3028, 2.0
      %v3111 = vadd.f32 %v3029, 2.0
      %v3112 = vadd.f32 %v3030, 2.0
      %v3113 = vadd.f32 %v3031, 2.0
      %v3114 = vadd.f32 %v3032, 2.0
      %v3115 = vadd.f32 %v3033, 2.0
      %v3116 = vadd.f32 %v3034, 2.0
      %v3117 = vadd.f32 %v3035, 2.0
      %v3118 = vadd.f32 %v3036, 2.0
      %v3119 = vadd.f32 %v3037, 2.0
      %v3120 = vadd.f32 %v3038, 2.0
      %v3121 = vadd.f32 %v3039, 2.0
      %v3122 = vadd.f32 %v3040, 2.0
      %v3123 = vadd.f32 %v3041, 2.0
      %v3124 = vadd.f32 %v3042, 2.0
      %v3125 = vadd.f32 %v3043, 2.0
      %v3126 = vadd.f32 %v3044, 2.0
      %v3127 = vadd.f32 %v3045, 2.0
      %v3128 = vadd.f32 %v3046, 2.0
      %v3129 = vrcp.pop %v3088
      %v3130 = vrcp.pop %v3089
      %v3131 = vrcp.pop %v3090
      %v3132 = vrcp.pop %v3091
      %v3133 = vrcp.pop %v3092
      %v3134 = vrcp.pop %v3093
      %v3135 = vrcp.pop %v3094
      %v3136 = vrcp.pop %v3095
      %v3137 = vrcp.pop %v3096
      %v3138 = vrcp.pop %v3097
      %v3139 = vrcp.pop %v3098
      %v3140 = vrcp.pop %v3099
      %v3141 = vrcp.pop %v3100
      %v3142 = vrcp.pop %v3101
      %v3143 = vrcp.pop %v3102
      %v3144 = vrcp.pop %v3103
      %v3145 = vrcp.pop %v3104
      %v3146 = vrcp.pop %v3105
      %v3147 = vrcp.pop %v3106
      %v3148 = vrcp.pop %v3107
      %v3149 = vrcp.pop %v3108
      %v3150 = vrcp.pop %v3109
      %v3151 = vrcp.pop %v3110
      %v3152 = vrcp.pop %v3111
      %v3153 = vrcp.pop %v3112
      %v3154 = vrcp.pop %v3113
      %v3155 = vrcp.pop %v3114
      %v3156 = vrcp.pop %v3115
      %v3157 = vrcp.pop %v3116
      %v3158 = vrcp.pop %v3117
      %v3159 = vrcp.pop %v3118
      %v3160 = vrcp.pop %v3119
      %v3161 = vrcp.pop %v3120
      %v3162 = vrcp.pop %v3121
      %v3163 = vrcp.pop %v3122
      %v3164 = vrcp.pop %v3123
      %v3165 = vrcp.pop %v3124
      %v3166 = vrcp.pop %v3125
      %v3167 = vrcp.pop %v3126
      %v3168 = vrcp.pop %v3127
      %v3169 = vrcp.pop %v3128
      %v3170 = vmul.f32 %v3047, %v3129
      %v3171 = vmul.f32 %v3048, %v3130
      %v3172 = vmul.f32 %v3049, %v3131
      %v3173 = vmul.f32 %v3050, %v3132
      %v3174 = vmul.f32 %v3051, %v3133
      %v3175 = vmul.f32 %v3052, %v3134
      %v3176 = vmul.f32 %v3053, %v3135
      %v3177 = vmul.f32 %v3054, %v3136
      %v3178 = vmul.f32 %v3055, %v3137
      %v3179 = vmul.f32 %v3056, %v3138
      %v3180 = vmul.f32 %v3057, %v3139
      %v3181 = vmul.f32 %v3058, %v3140
      %v3182 = vmul.f32 %v3059, %v3141
      %v3183 = vmul.f32 %v3060, %v3142
      %v3184 = vmul.f32 %v3061, %v3143
      %v3185 = vmul.f32 %v3062, %v3144
      %v3186 = vmul.f32 %v3063, %v3145
      %v3187 = vmul.f32 %v3064, %v3146
      %v3188 = vmul.f32 %v3065, %v3147
      %v3189 = vmul.f32 %v3066, %v3148
      %v3190 = vmul.f32 %v3067, %v3149
      %v3191 = vmul.f32 %v3068, %v3150
      %v3192 = vmul.f32 %v3069, %v3151
      %v3193 = vmul.f32 %v3070, %v3152
      %v3194 = vmul.f32 %v3071, %v3153
      %v3195 = vmul.f32 %v3072, %v3154
      %v3196 = vmul.f32 %v3073, %v3155
      %v3197 = vmul.f32 %v3074, %v3156
      %v3198 = vmul.f32 %v3075, %v3157
      %v3199 = vmul.f32 %v3076, %v3158
      %v3200 = vmul.f32 %v3077, %v3159
      %v3201 = vmul.f32 %v3078, %v3160
      %v3202 = vmul.f32 %v3079, %v3161
      %v3203 = vmul.f32 %v3080, %v3162
      %v3204 = vmul.f32 %v3081, %v3163
      %v3205 = vmul.f32 %v3082, %v3164
      %v3206 = vmul.f32 %v3083, %v3165
      %v3207 = vmul.f32 %v3084, %v3166
      %v3208 = vmul.f32 %v3085, %v3167
      %v3209 = vmul.f32 %v3086, %v3168
      %v3210 = vmul.f32 %v3087, %v3169
      %v3252 = vcombine.high %v3170, %v3170
      %v3254 = vunpack.c.l.s4 1983009808
      %v3255 = vunpack.c.0.s8 %v3254
      %v3256 = vlaneseq
      %v3257 = vshrl.u32 %v3256, 7
      %v3258 = vsub.s32 %v3255, %v3257
      %v3259 = vrot.slane %v3170, %v3258
      %v3261 = vunpack.c.l.s4 1983009808
      %v3262 = vunpack.c.0.s8 %v3261
      %v3263 = vlaneseq
      %v3264 = vshrl.u32 %v3263, 7
      %v3265 = vsub.s32 %v3262, %v3264
      %v3266 = vrot.slane %v3252, %v3265
      %v3267 = vcombine.high %v3259, %v3259
      %v3268 = vcombine.high %v3266, %v3266
      %v3269 = vcombine.high %v3171, %v3171
      %v3271 = vunpack.c.l.s4 1983009808
      %v3272 = vunpack.c.0.s8 %v3271
      %v3273 = vlaneseq
      %v3274 = vshrl.u32 %v3273, 7
      %v3275 = vsub.s32 %v3272, %v3274
      %v3276 = vrot.slane %v3171, %v3275
      %v3278 = vunpack.c.l.s4 1983009808
      %v3279 = vunpack.c.0.s8 %v3278
      %v3280 = vlaneseq
      %v3281 = vshrl.u32 %v3280, 7
      %v3282 = vsub.s32 %v3279, %v3281
      %v3283 = vrot.slane %v3269, %v3282
      %v3284 = vcombine.high %v3276, %v3276
      %v3285 = vcombine.high %v3283, %v3283
      %v3286 = vcombine.high %v3172, %v3172
      %v3288 = vunpack.c.l.s4 1983009808
      %v3289 = vunpack.c.0.s8 %v3288
      %v3290 = vlaneseq
      %v3291 = vshrl.u32 %v3290, 7
      %v3292 = vsub.s32 %v3289, %v3291
      %v3293 = vrot.slane %v3172, %v3292
      %v3295 = vunpack.c.l.s4 1983009808
      %v3296 = vunpack.c.0.s8 %v3295
      %v3297 = vlaneseq
      %v3298 = vshrl.u32 %v3297, 7
      %v3299 = vsub.s32 %v3296, %v3298
      %v3300 = vrot.slane %v3286, %v3299
      %v3301 = vcombine.high %v3293, %v3293
      %v3302 = vcombine.high %v3300, %v3300
      %v3303 = vcombine.high %v3173, %v3173
      %v3305 = vunpack.c.l.s4 1983009808
      %v3306 = vunpack.c.0.s8 %v3305
      %v3307 = vlaneseq
      %v3308 = vshrl.u32 %v3307, 7
      %v3309 = vsub.s32 %v3306, %v3308
      %v3310 = vrot.slane %v3173, %v3309
      %v3312 = vunpack.c.l.s4 1983009808
      %v3313 = vunpack.c.0.s8 %v3312
      %v3314 = vlaneseq
      %v3315 = vshrl.u32 %v3314, 7
      %v3316 = vsub.s32 %v3313, %v3315
      %v3317 = vrot.slane %v3303, %v3316
      %v3318 = vcombine.high %v3310, %v3310
      %v3319 = vcombine.high %v3317, %v3317
      %v3320 = vcombine.high %v3174, %v3174
      %v3322 = vunpack.c.l.s4 1983009808
      %v3323 = vunpack.c.0.s8 %v3322
      %v3324 = vlaneseq
      %v3325 = vshrl.u32 %v3324, 7
      %v3326 = vsub.s32 %v3323, %v3325
      %v3327 = vrot.slane %v3174, %v3326
      %v3329 = vunpack.c.l.s4 1983009808
      %v3330 = vunpack.c.0.s8 %v3329
      %v3331 = vlaneseq
      %v3332 = vshrl.u32 %v3331, 7
      %v3333 = vsub.s32 %v3330, %v3332
      %v3334 = vrot.slane %v3320, %v3333
      %v3335 = vcombine.high %v3327, %v3327
      %v3336 = vcombine.high %v3334, %v3334
      %v3337 = vcombine.high %v3175, %v3175
      %v3339 = vunpack.c.l.s4 1983009808
      %v3340 = vunpack.c.0.s8 %v3339
      %v3341 = vlaneseq
      %v3342 = vshrl.u32 %v3341, 7
      %v3343 = vsub.s32 %v3340, %v3342
      %v3344 = vrot.slane %v3175, %v3343
      %v3346 = vunpack.c.l.s4 1983009808
      %v3347 = vunpack.c.0.s8 %v3346
      %v3348 = vlaneseq
      %v3349 = vshrl.u32 %v3348, 7
      %v3350 = vsub.s32 %v3347, %v3349
      %v3351 = vrot.slane %v3337, %v3350
      %v3352 = vcombine.high %v3344, %v3344
      %v3353 = vcombine.high %v3351, %v3351
      %v3354 = vcombine.high %v3176, %v3176
      %v3356 = vunpack.c.l.s4 1983009808
      %v3357 = vunpack.c.0.s8 %v3356
      %v3358 = vlaneseq
      %v3359 = vshrl.u32 %v3358, 7
      %v3360 = vsub.s32 %v3357, %v3359
      %v3361 = vrot.slane %v3176, %v3360
      %v3363 = vunpack.c.l.s4 1983009808
      %v3364 = vunpack.c.0.s8 %v3363
      %v3365 = vlaneseq
      %v3366 = vshrl.u32 %v3365, 7
      %v3367 = vsub.s32 %v3364, %v3366
      %v3368 = vrot.slane %v3354, %v3367
      %v3369 = vcombine.high %v3361, %v3361
      %v3370 = vcombine.high %v3368, %v3368
      %v3371 = vcombine.high %v3177, %v3177
      %v3373 = vunpack.c.l.s4 1983009808
      %v3374 = vunpack.c.0.s8 %v3373
      %v3375 = vlaneseq
      %v3376 = vshrl.u32 %v3375, 7
      %v3377 = vsub.s32 %v3374, %v3376
      %v3378 = vrot.slane %v3177, %v3377
      %v3380 = vunpack.c.l.s4 1983009808
      %v3381 = vunpack.c.0.s8 %v3380
      %v3382 = vlaneseq
      %v3383 = vshrl.u32 %v3382, 7
      %v3384 = vsub.s32 %v3381, %v3383
      %v3385 = vrot.slane %v3371, %v3384
      %v3386 = vcombine.high %v3378, %v3378
      %v3387 = vcombine.high %v3385, %v3385
      %v3388 = vcombine.high %v3178, %v3178
      %v3390 = vunpack.c.l.s4 1983009808
      %v3391 = vunpack.c.0.s8 %v3390
      %v3392 = vlaneseq
      %v3393 = vshrl.u32 %v3392, 7
      %v3394 = vsub.s32 %v3391, %v3393
      %v3395 = vrot.slane %v3178, %v3394
      %v3397 = vunpack.c.l.s4 1983009808
      %v3398 = vunpack.c.0.s8 %v3397
      %v3399 = vlaneseq
      %v3400 = vshrl.u32 %v3399, 7
      %v3401 = vsub.s32 %v3398, %v3400
      %v3402 = vrot.slane %v3388, %v3401
      %v3403 = vcombine.high %v3395, %v3395
      %v3404 = vcombine.high %v3402, %v3402
      %v3405 = vcombine.high %v3179, %v3179
      %v3407 = vunpack.c.l.s4 1983009808
      %v3408 = vunpack.c.0.s8 %v3407
      %v3409 = vlaneseq
      %v3410 = vshrl.u32 %v3409, 7
      %v3411 = vsub.s32 %v3408, %v3410
      %v3412 = vrot.slane %v3179, %v3411
      %v3414 = vunpack.c.l.s4 1983009808
      %v3415 = vunpack.c.0.s8 %v3414
      %v3416 = vlaneseq
      %v3417 = vshrl.u32 %v3416, 7
      %v3418 = vsub.s32 %v3415, %v3417
      %v3419 = vrot.slane %v3405, %v3418
      %v3420 = vcombine.high %v3412, %v3412
      %v3421 = vcombine.high %v3419, %v3419
      %v3422 = vcombine.high %v3180, %v3180
      %v3424 = vunpack.c.l.s4 1983009808
      %v3425 = vunpack.c.0.s8 %v3424
      %v3426 = vlaneseq
      %v3427 = vshrl.u32 %v3426, 7
      %v3428 = vsub.s32 %v3425, %v3427
      %v3429 = vrot.slane %v3180, %v3428
      %v3431 = vunpack.c.l.s4 1983009808
      %v3432 = vunpack.c.0.s8 %v3431
      %v3433 = vlaneseq
      %v3434 = vshrl.u32 %v3433, 7
      %v3435 = vsub.s32 %v3432, %v3434
      %v3436 = vrot.slane %v3422, %v3435
      %v3437 = vcombine.high %v3429, %v3429
      %v3438 = vcombine.high %v3436, %v3436
      %v3439 = vcombine.high %v3181, %v3181
      %v3441 = vunpack.c.l.s4 1983009808
      %v3442 = vunpack.c.0.s8 %v3441
      %v3443 = vlaneseq
      %v3444 = vshrl.u32 %v3443, 7
      %v3445 = vsub.s32 %v3442, %v3444
      %v3446 = vrot.slane %v3181, %v3445
      %v3448 = vunpack.c.l.s4 1983009808
      %v3449 = vunpack.c.0.s8 %v3448
      %v3450 = vlaneseq
      %v3451 = vshrl.u32 %v3450, 7
      %v3452 = vsub.s32 %v3449, %v3451
      %v3453 = vrot.slane %v3439, %v3452
      %v3454 = vcombine.high %v3446, %v3446
      %v3455 = vcombine.high %v3453, %v3453
      %v3456 = vcombine.high %v3182, %v3182
      %v3458 = vunpack.c.l.s4 1983009808
      %v3459 = vunpack.c.0.s8 %v3458
      %v3460 = vlaneseq
      %v3461 = vshrl.u32 %v3460, 7
      %v3462 = vsub.s32 %v3459, %v3461
      %v3463 = vrot.slane %v3182, %v3462
      %v3465 = vunpack.c.l.s4 1983009808
      %v3466 = vunpack.c.0.s8 %v3465
      %v3467 = vlaneseq
      %v3468 = vshrl.u32 %v3467, 7
      %v3469 = vsub.s32 %v3466, %v3468
      %v3470 = vrot.slane %v3456, %v3469
      %v3471 = vcombine.high %v3463, %v3463
      %v3472 = vcombine.high %v3470, %v3470
      %v3473 = vcombine.high %v3183, %v3183
      %v3475 = vunpack.c.l.s4 1983009808
      %v3476 = vunpack.c.0.s8 %v3475
      %v3477 = vlaneseq
      %v3478 = vshrl.u32 %v3477, 7
      %v3479 = vsub.s32 %v3476, %v3478
      %v3480 = vrot.slane %v3183, %v3479
      %v3482 = vunpack.c.l.s4 1983009808
      %v3483 = vunpack.c.0.s8 %v3482
      %v3484 = vlaneseq
      %v3485 = vshrl.u32 %v3484, 7
      %v3486 = vsub.s32 %v3483, %v3485
      %v3487 = vrot.slane %v3473, %v3486
      %v3488 = vcombine.high %v3480, %v3480
      %v3489 = vcombine.high %v3487, %v3487
      %v3490 = vcombine.high %v3184, %v3184
      %v3492 = vunpack.c.l.s4 1983009808
      %v3493 = vunpack.c.0.s8 %v3492
      %v3494 = vlaneseq
      %v3495 = vshrl.u32 %v3494, 7
      %v3496 = vsub.s32 %v3493, %v3495
      %v3497 = vrot.slane %v3184, %v3496
      %v3499 = vunpack.c.l.s4 1983009808
      %v3500 = vunpack.c.0.s8 %v3499
      %v3501 = vlaneseq
      %v3502 = vshrl.u32 %v3501, 7
      %v3503 = vsub.s32 %v3500, %v3502
      %v3504 = vrot.slane %v3490, %v3503
      %v3505 = vcombine.high %v3497, %v3497
      %v3506 = vcombine.high %v3504, %v3504
      %v3507 = vcombine.high %v3185, %v3185
      %v3509 = vunpack.c.l.s4 1983009808
      %v3510 = vunpack.c.0.s8 %v3509
      %v3511 = vlaneseq
      %v3512 = vshrl.u32 %v3511, 7
      %v3513 = vsub.s32 %v3510, %v3512
      %v3514 = vrot.slane %v3185, %v3513
      %v3516 = vunpack.c.l.s4 1983009808
      %v3517 = vunpack.c.0.s8 %v3516
      %v3518 = vlaneseq
      %v3519 = vshrl.u32 %v3518, 7
      %v3520 = vsub.s32 %v3517, %v3519
      %v3521 = vrot.slane %v3507, %v3520
      %v3522 = vcombine.high %v3514, %v3514
      %v3523 = vcombine.high %v3521, %v3521
      %v3524 = vcombine.high %v3186, %v3186
      %v3526 = vunpack.c.l.s4 1983009808
      %v3527 = vunpack.c.0.s8 %v3526
      %v3528 = vlaneseq
      %v3529 = vshrl.u32 %v3528, 7
      %v3530 = vsub.s32 %v3527, %v3529
      %v3531 = vrot.slane %v3186, %v3530
      %v3533 = vunpack.c.l.s4 1983009808
      %v3534 = vunpack.c.0.s8 %v3533
      %v3535 = vlaneseq
      %v3536 = vshrl.u32 %v3535, 7
      %v3537 = vsub.s32 %v3534, %v3536
      %v3538 = vrot.slane %v3524, %v3537
      %v3539 = vcombine.high %v3531, %v3531
      %v3540 = vcombine.high %v3538, %v3538
      %v3541 = vcombine.high %v3187, %v3187
      %v3543 = vunpack.c.l.s4 1983009808
      %v3544 = vunpack.c.0.s8 %v3543
      %v3545 = vlaneseq
      %v3546 = vshrl.u32 %v3545, 7
      %v3547 = vsub.s32 %v3544, %v3546
      %v3548 = vrot.slane %v3187, %v3547
      %v3550 = vunpack.c.l.s4 1983009808
      %v3551 = vunpack.c.0.s8 %v3550
      %v3552 = vlaneseq
      %v3553 = vshrl.u32 %v3552, 7
      %v3554 = vsub.s32 %v3551, %v3553
      %v3555 = vrot.slane %v3541, %v3554
      %v3556 = vcombine.high %v3548, %v3548
      %v3557 = vcombine.high %v3555, %v3555
      %v3558 = vcombine.high %v3188, %v3188
      %v3560 = vunpack.c.l.s4 1983009808
      %v3561 = vunpack.c.0.s8 %v3560
      %v3562 = vlaneseq
      %v3563 = vshrl.u32 %v3562, 7
      %v3564 = vsub.s32 %v3561, %v3563
      %v3565 = vrot.slane %v3188, %v3564
      %v3567 = vunpack.c.l.s4 1983009808
      %v3568 = vunpack.c.0.s8 %v3567
      %v3569 = vlaneseq
      %v3570 = vshrl.u32 %v3569, 7
      %v3571 = vsub.s32 %v3568, %v3570
      %v3572 = vrot.slane %v3558, %v3571
      %v3573 = vcombine.high %v3565, %v3565
      %v3574 = vcombine.high %v3572, %v3572
      %v3575 = vcombine.high %v3189, %v3189
      %v3577 = vunpack.c.l.s4 1983009808
      %v3578 = vunpack.c.0.s8 %v3577
      %v3579 = vlaneseq
      %v3580 = vshrl.u32 %v3579, 7
      %v3581 = vsub.s32 %v3578, %v3580
      %v3582 = vrot.slane %v3189, %v3581
      %v3584 = vunpack.c.l.s4 1983009808
      %v3585 = vunpack.c.0.s8 %v3584
      %v3586 = vlaneseq
      %v3587 = vshrl.u32 %v3586, 7
      %v3588 = vsub.s32 %v3585, %v3587
      %v3589 = vrot.slane %v3575, %v3588
      %v3590 = vcombine.high %v3582, %v3582
      %v3591 = vcombine.high %v3589, %v3589
      %v3592 = vcombine.high %v3190, %v3190
      %v3594 = vunpack.c.l.s4 1983009808
      %v3595 = vunpack.c.0.s8 %v3594
      %v3596 = vlaneseq
      %v3597 = vshrl.u32 %v3596, 7
      %v3598 = vsub.s32 %v3595, %v3597
      %v3599 = vrot.slane %v3190, %v3598
      %v3601 = vunpack.c.l.s4 1983009808
      %v3602 = vunpack.c.0.s8 %v3601
      %v3603 = vlaneseq
      %v3604 = vshrl.u32 %v3603, 7
      %v3605 = vsub.s32 %v3602, %v3604
      %v3606 = vrot.slane %v3592, %v3605
      %v3607 = vcombine.high %v3599, %v3599
      %v3608 = vcombine.high %v3606, %v3606
      %v3609 = vcombine.high %v3191, %v3191
      %v3611 = vunpack.c.l.s4 1983009808
      %v3612 = vunpack.c.0.s8 %v3611
      %v3613 = vlaneseq
      %v3614 = vshrl.u32 %v3613, 7
      %v3615 = vsub.s32 %v3612, %v3614
      %v3616 = vrot.slane %v3191, %v3615
      %v3618 = vunpack.c.l.s4 1983009808
      %v3619 = vunpack.c.0.s8 %v3618
      %v3620 = vlaneseq
      %v3621 = vshrl.u32 %v3620, 7
      %v3622 = vsub.s32 %v3619, %v3621
      %v3623 = vrot.slane %v3609, %v3622
      %v3624 = vcombine.high %v3616, %v3616
      %v3625 = vcombine.high %v3623, %v3623
      %v3626 = vcombine.high %v3192, %v3192
      %v3628 = vunpack.c.l.s4 1983009808
      %v3629 = vunpack.c.0.s8 %v3628
      %v3630 = vlaneseq
      %v3631 = vshrl.u32 %v3630, 7
      %v3632 = vsub.s32 %v3629, %v3631
      %v3633 = vrot.slane %v3192, %v3632
      %v3635 = vunpack.c.l.s4 1983009808
      %v3636 = vunpack.c.0.s8 %v3635
      %v3637 = vlaneseq
      %v3638 = vshrl.u32 %v3637, 7
      %v3639 = vsub.s32 %v3636, %v3638
      %v3640 = vrot.slane %v3626, %v3639
      %v3641 = vcombine.high %v3633, %v3633
      %v3642 = vcombine.high %v3640, %v3640
      %v3643 = vcombine.high %v3193, %v3193
      %v3645 = vunpack.c.l.s4 1983009808
      %v3646 = vunpack.c.0.s8 %v3645
      %v3647 = vlaneseq
      %v3648 = vshrl.u32 %v3647, 7
      %v3649 = vsub.s32 %v3646, %v3648
      %v3650 = vrot.slane %v3193, %v3649
      %v3652 = vunpack.c.l.s4 1983009808
      %v3653 = vunpack.c.0.s8 %v3652
      %v3654 = vlaneseq
      %v3655 = vshrl.u32 %v3654, 7
      %v3656 = vsub.s32 %v3653, %v3655
      %v3657 = vrot.slane %v3643, %v3656
      %v3658 = vcombine.high %v3650, %v3650
      %v3659 = vcombine.high %v3657, %v3657
      %v3660 = vcombine.high %v3194, %v3194
      %v3662 = vunpack.c.l.s4 1983009808
      %v3663 = vunpack.c.0.s8 %v3662
      %v3664 = vlaneseq
      %v3665 = vshrl.u32 %v3664, 7
      %v3666 = vsub.s32 %v3663, %v3665
      %v3667 = vrot.slane %v3194, %v3666
      %v3669 = vunpack.c.l.s4 1983009808
      %v3670 = vunpack.c.0.s8 %v3669
      %v3671 = vlaneseq
      %v3672 = vshrl.u32 %v3671, 7
      %v3673 = vsub.s32 %v3670, %v3672
      %v3674 = vrot.slane %v3660, %v3673
      %v3675 = vcombine.high %v3667, %v3667
      %v3676 = vcombine.high %v3674, %v3674
      %v3677 = vcombine.high %v3195, %v3195
      %v3679 = vunpack.c.l.s4 1983009808
      %v3680 = vunpack.c.0.s8 %v3679
      %v3681 = vlaneseq
      %v3682 = vshrl.u32 %v3681, 7
      %v3683 = vsub.s32 %v3680, %v3682
      %v3684 = vrot.slane %v3195, %v3683
      %v3686 = vunpack.c.l.s4 1983009808
      %v3687 = vunpack.c.0.s8 %v3686
      %v3688 = vlaneseq
      %v3689 = vshrl.u32 %v3688, 7
      %v3690 = vsub.s32 %v3687, %v3689
      %v3691 = vrot.slane %v3677, %v3690
      %v3692 = vcombine.high %v3684, %v3684
      %v3693 = vcombine.high %v3691, %v3691
      %v3694 = vcombine.high %v3196, %v3196
      %v3696 = vunpack.c.l.s4 1983009808
      %v3697 = vunpack.c.0.s8 %v3696
      %v3698 = vlaneseq
      %v3699 = vshrl.u32 %v3698, 7
      %v3700 = vsub.s32 %v3697, %v3699
      %v3701 = vrot.slane %v3196, %v3700
      %v3703 = vunpack.c.l.s4 1983009808
      %v3704 = vunpack.c.0.s8 %v3703
      %v3705 = vlaneseq
      %v3706 = vshrl.u32 %v3705, 7
      %v3707 = vsub.s32 %v3704, %v3706
      %v3708 = vrot.slane %v3694, %v3707
      %v3709 = vcombine.high %v3701, %v3701
      %v3710 = vcombine.high %v3708, %v3708
      %v3711 = vcombine.high %v3197, %v3197
      %v3713 = vunpack.c.l.s4 1983009808
      %v3714 = vunpack.c.0.s8 %v3713
      %v3715 = vlaneseq
      %v3716 = vshrl.u32 %v3715, 7
      %v3717 = vsub.s32 %v3714, %v3716
      %v3718 = vrot.slane %v3197, %v3717
      %v3720 = vunpack.c.l.s4 1983009808
      %v3721 = vunpack.c.0.s8 %v3720
      %v3722 = vlaneseq
      %v3723 = vshrl.u32 %v3722, 7
      %v3724 = vsub.s32 %v3721, %v3723
      %v3725 = vrot.slane %v3711, %v3724
      %v3726 = vcombine.high %v3718, %v3718
      %v3727 = vcombine.high %v3725, %v3725
      %v3728 = vcombine.high %v3198, %v3198
      %v3730 = vunpack.c.l.s4 1983009808
      %v3731 = vunpack.c.0.s8 %v3730
      %v3732 = vlaneseq
      %v3733 = vshrl.u32 %v3732, 7
      %v3734 = vsub.s32 %v3731, %v3733
      %v3735 = vrot.slane %v3198, %v3734
      %v3737 = vunpack.c.l.s4 1983009808
      %v3738 = vunpack.c.0.s8 %v3737
      %v3739 = vlaneseq
      %v3740 = vshrl.u32 %v3739, 7
      %v3741 = vsub.s32 %v3738, %v3740
      %v3742 = vrot.slane %v3728, %v3741
      %v3743 = vcombine.high %v3735, %v3735
      %v3744 = vcombine.high %v3742, %v3742
      %v3745 = vcombine.high %v3199, %v3199
      %v3747 = vunpack.c.l.s4 1983009808
      %v3748 = vunpack.c.0.s8 %v3747
      %v3749 = vlaneseq
      %v3750 = vshrl.u32 %v3749, 7
      %v3751 = vsub.s32 %v3748, %v3750
      %v3752 = vrot.slane %v3199, %v3751
      %v3754 = vunpack.c.l.s4 1983009808
      %v3755 = vunpack.c.0.s8 %v3754
      %v3756 = vlaneseq
      %v3757 = vshrl.u32 %v3756, 7
      %v3758 = vsub.s32 %v3755, %v3757
      %v3759 = vrot.slane %v3745, %v3758
      %v3760 = vcombine.high %v3752, %v3752
      %v3761 = vcombine.high %v3759, %v3759
      %v3762 = vcombine.high %v3200, %v3200
      %v3764 = vunpack.c.l.s4 1983009808
      %v3765 = vunpack.c.0.s8 %v3764
      %v3766 = vlaneseq
      %v3767 = vshrl.u32 %v3766, 7
      %v3768 = vsub.s32 %v3765, %v3767
      %v3769 = vrot.slane %v3200, %v3768
      %v3771 = vunpack.c.l.s4 1983009808
      %v3772 = vunpack.c.0.s8 %v3771
      %v3773 = vlaneseq
      %v3774 = vshrl.u32 %v3773, 7
      %v3775 = vsub.s32 %v3772, %v3774
      %v3776 = vrot.slane %v3762, %v3775
      %v3777 = vcombine.high %v3769, %v3769
      %v3778 = vcombine.high %v3776, %v3776
      %v3779 = vcombine.high %v3201, %v3201
      %v3781 = vunpack.c.l.s4 1983009808
      %v3782 = vunpack.c.0.s8 %v3781
      %v3783 = vlaneseq
      %v3784 = vshrl.u32 %v3783, 7
      %v3785 = vsub.s32 %v3782, %v3784
      %v3786 = vrot.slane %v3201, %v3785
      %v3788 = vunpack.c.l.s4 1983009808
      %v3789 = vunpack.c.0.s8 %v3788
      %v3790 = vlaneseq
      %v3791 = vshrl.u32 %v3790, 7
      %v3792 = vsub.s32 %v3789, %v3791
      %v3793 = vrot.slane %v3779, %v3792
      %v3794 = vcombine.high %v3786, %v3786
      %v3795 = vcombine.high %v3793, %v3793
      %v3796 = vcombine.high %v3202, %v3202
      %v3798 = vunpack.c.l.s4 1983009808
      %v3799 = vunpack.c.0.s8 %v3798
      %v3800 = vlaneseq
      %v3801 = vshrl.u32 %v3800, 7
      %v3802 = vsub.s32 %v3799, %v3801
      %v3803 = vrot.slane %v3202, %v3802
      %v3805 = vunpack.c.l.s4 1983009808
      %v3806 = vunpack.c.0.s8 %v3805
      %v3807 = vlaneseq
      %v3808 = vshrl.u32 %v3807, 7
      %v3809 = vsub.s32 %v3806, %v3808
      %v3810 = vrot.slane %v3796, %v3809
      %v3811 = vcombine.high %v3803, %v3803
      %v3812 = vcombine.high %v3810, %v3810
      %v3813 = vcombine.high %v3203, %v3203
      %v3815 = vunpack.c.l.s4 1983009808
      %v3816 = vunpack.c.0.s8 %v3815
      %v3817 = vlaneseq
      %v3818 = vshrl.u32 %v3817, 7
      %v3819 = vsub.s32 %v3816, %v3818
      %v3820 = vrot.slane %v3203, %v3819
      %v3822 = vunpack.c.l.s4 1983009808
      %v3823 = vunpack.c.0.s8 %v3822
      %v3824 = vlaneseq
      %v3825 = vshrl.u32 %v3824, 7
      %v3826 = vsub.s32 %v3823, %v3825
      %v3827 = vrot.slane %v3813, %v3826
      %v3828 = vcombine.high %v3820, %v3820
      %v3829 = vcombine.high %v3827, %v3827
      %v3830 = vcombine.high %v3204, %v3204
      %v3832 = vunpack.c.l.s4 1983009808
      %v3833 = vunpack.c.0.s8 %v3832
      %v3834 = vlaneseq
      %v3835 = vshrl.u32 %v3834, 7
      %v3836 = vsub.s32 %v3833, %v3835
      %v3837 = vrot.slane %v3204, %v3836
      %v3839 = vunpack.c.l.s4 1983009808
      %v3840 = vunpack.c.0.s8 %v3839
      %v3841 = vlaneseq
      %v3842 = vshrl.u32 %v3841, 7
      %v3843 = vsub.s32 %v3840, %v3842
      %v3844 = vrot.slane %v3830, %v3843
      %v3845 = vcombine.high %v3837, %v3837
      %v3846 = vcombine.high %v3844, %v3844
      %v3847 = vcombine.high %v3205, %v3205
      %v3849 = vunpack.c.l.s4 1983009808
      %v3850 = vunpack.c.0.s8 %v3849
      %v3851 = vlaneseq
      %v3852 = vshrl.u32 %v3851, 7
      %v3853 = vsub.s32 %v3850, %v3852
      %v3854 = vrot.slane %v3205, %v3853
      %v3856 = vunpack.c.l.s4 1983009808
      %v3857 = vunpack.c.0.s8 %v3856
      %v3858 = vlaneseq
      %v3859 = vshrl.u32 %v3858, 7
      %v3860 = vsub.s32 %v3857, %v3859
      %v3861 = vrot.slane %v3847, %v3860
      %v3862 = vcombine.high %v3854, %v3854
      %v3863 = vcombine.high %v3861, %v3861
      %v3864 = vcombine.high %v3206, %v3206
      %v3866 = vunpack.c.l.s4 1983009808
      %v3867 = vunpack.c.0.s8 %v3866
      %v3868 = vlaneseq
      %v3869 = vshrl.u32 %v3868, 7
      %v3870 = vsub.s32 %v3867, %v3869
      %v3871 = vrot.slane %v3206, %v3870
      %v3873 = vunpack.c.l.s4 1983009808
      %v3874 = vunpack.c.0.s8 %v3873
      %v3875 = vlaneseq
      %v3876 = vshrl.u32 %v3875, 7
      %v3877 = vsub.s32 %v3874, %v3876
      %v3878 = vrot.slane %v3864, %v3877
      %v3879 = vcombine.high %v3871, %v3871
      %v3880 = vcombine.high %v3878, %v3878
      %v3881 = vcombine.high %v3207, %v3207
      %v3883 = vunpack.c.l.s4 1983009808
      %v3884 = vunpack.c.0.s8 %v3883
      %v3885 = vlaneseq
      %v3886 = vshrl.u32 %v3885, 7
      %v3887 = vsub.s32 %v3884, %v3886
      %v3888 = vrot.slane %v3207, %v3887
      %v3890 = vunpack.c.l.s4 1983009808
      %v3891 = vunpack.c.0.s8 %v3890
      %v3892 = vlaneseq
      %v3893 = vshrl.u32 %v3892, 7
      %v3894 = vsub.s32 %v3891, %v3893
      %v3895 = vrot.slane %v3881, %v3894
      %v3896 = vcombine.high %v3888, %v3888
      %v3897 = vcombine.high %v3895, %v3895
      %v3898 = vcombine.high %v3208, %v3208
      %v3900 = vunpack.c.l.s4 1983009808
      %v3901 = vunpack.c.0.s8 %v3900
      %v3902 = vlaneseq
      %v3903 = vshrl.u32 %v3902, 7
      %v3904 = vsub.s32 %v3901, %v3903
      %v3905 = vrot.slane %v3208, %v3904
      %v3907 = vunpack.c.l.s4 1983009808
      %v3908 = vunpack.c.0.s8 %v3907
      %v3909 = vlaneseq
      %v3910 = vshrl.u32 %v3909, 7
      %v3911 = vsub.s32 %v3908, %v3910
      %v3912 = vrot.slane %v3898, %v3911
      %v3913 = vcombine.high %v3905, %v3905
      %v3914 = vcombine.high %v3912, %v3912
      %v3915 = vcombine.high %v3209, %v3209
      %v3917 = vunpack.c.l.s4 1983009808
      %v3918 = vunpack.c.0.s8 %v3917
      %v3919 = vlaneseq
      %v3920 = vshrl.u32 %v3919, 7
      %v3921 = vsub.s32 %v3918, %v3920
      %v3922 = vrot.slane %v3209, %v3921
      %v3924 = vunpack.c.l.s4 1983009808
      %v3925 = vunpack.c.0.s8 %v3924
      %v3926 = vlaneseq
      %v3927 = vshrl.u32 %v3926, 7
      %v3928 = vsub.s32 %v3925, %v3927
      %v3929 = vrot.slane %v3915, %v3928
      %v3930 = vcombine.high %v3922, %v3922
      %v3931 = vcombine.high %v3929, %v3929
      %v3933 = vunpack.c.l.s4 1983009808
      %v3934 = vunpack.c.0.s8 %v3933
      %v3935 = vlaneseq
      %v3936 = vshrl.u32 %v3935, 7
      %v3937 = vsub.s32 %v3934, %v3936
      %v3938 = vrot.slane %v3210, %v3937
      %v3939 = vcombine.high %v3938, %v3938
      %s3940 = smul.u32 %s22, 16
      %v3941 = vstv %s3940
      %v3942 = vadd.s32 %v3941, 2
      %v3943 = vadd.s32 %v3941, 3
      %v3944 = vadd.s32 %v3941, 4
      %v3945 = vadd.s32 %v3941, 5
      %v3946 = vadd.s32 %v3941, 6
      %v3947 = vadd.s32 %v3941, 7
      %v3948 = vadd.s32 %v3941, 8
      %v3949 = vadd.s32 %v3941, 9
      %v3950 = vadd.s32 %v3941, 10
      %v3951 = vadd.s32 %v3941, 11
      %v3952 = vadd.s32 %v3941, 12
      %v3953 = vadd.s32 %v3941, 13
      %v3954 = vadd.s32 %v3941, 14
      %v3955 = vadd.s32 %v3941, 15
      %v3956 = vadd.s32 %v3941, 16
      %v3957 = vadd.s32 %v3941, 17
      %v3958 = vsub.s32 %v3941, 1
      %v3959 = vsub.s32 %v3942, 1
      %v3960 = vsub.s32 %v3943, 1
      %v3961 = vsub.s32 %v3944, 1
      %v3962 = vsub.s32 %v3945, 1
      %v3963 = vsub.s32 %v3946, 1
      %v3964 = vsub.s32 %v3947, 1
      %v3965 = vsub.s32 %v3948, 1
      %v3966 = vsub.s32 %v3949, 1
      %v3967 = vsub.s32 %v3950, 1
      %v3968 = vsub.s32 %v3951, 1
      %v3969 = vsub.s32 %v3952, 1
      %v3970 = vsub.s32 %v3953, 1
      %v3971 = vsub.s32 %v3954, 1
      %v3972 = vsub.s32 %v3955, 1
      %v3973 = vsub.s32 %v3956, 1
      %v3974 = vsub.s32 %v3957, 1
      %v3975 = vlaneseq
      %v3976 = vshrl.u32 %v3975, 7
      %v3977 = vadd.s32 %v3976, 8
      %v3978 = vadd.s32 %v3976, 16
      %v3979 = vsub.s32 %v3976, 1
      %v3980 = vsub.s32 %v3977, 1
      %v3981 = vsub.s32 %v3978, 1
      %vm3982 = vcmp.ge.s32.totalorder %v3958, 0
      %vm3983 = vcmp.ge.s32.totalorder %v3941, 0
      %vm3984 = vcmp.ge.s32.totalorder %v3959, 0
      %vm3985 = vcmp.ge.s32.totalorder %v3960, 0
      %vm3986 = vcmp.ge.s32.totalorder %v3961, 0
      %vm3987 = vcmp.ge.s32.totalorder %v3962, 0
      %vm3988 = vcmp.ge.s32.totalorder %v3963, 0
      %vm3989 = vcmp.ge.s32.totalorder %v3964, 0
      %vm3990 = vcmp.ge.s32.totalorder %v3965, 0
      %vm3991 = vcmp.ge.s32.totalorder %v3966, 0
      %vm3992 = vcmp.ge.s32.totalorder %v3967, 0
      %vm3993 = vcmp.ge.s32.totalorder %v3968, 0
      %vm3994 = vcmp.ge.s32.totalorder %v3969, 0
      %vm3995 = vcmp.ge.s32.totalorder %v3970, 0
      %vm3996 = vcmp.ge.s32.totalorder %v3971, 0
      %vm3997 = vcmp.ge.s32.totalorder %v3972, 0
      %vm3998 = vcmp.ge.s32.totalorder %v3973, 0
      %vm3999 = vcmp.ge.s32.totalorder %v3974, 0
      %vm4000 = vcmp.lt.s32.totalorder %v3958, 16
      %vm4001 = vcmp.lt.s32.totalorder %v3941, 16
      %vm4002 = vcmp.lt.s32.totalorder %v3959, 16
      %vm4003 = vcmp.lt.s32.totalorder %v3960, 16
      %vm4004 = vcmp.lt.s32.totalorder %v3961, 16
      %vm4005 = vcmp.lt.s32.totalorder %v3962, 16
      %vm4006 = vcmp.lt.s32.totalorder %v3963, 16
      %vm4007 = vcmp.lt.s32.totalorder %v3964, 16
      %vm4008 = vcmp.lt.s32.totalorder %v3965, 16
      %vm4009 = vcmp.lt.s32.totalorder %v3966, 16
      %vm4010 = vcmp.lt.s32.totalorder %v3967, 16
      %vm4011 = vcmp.lt.s32.totalorder %v3968, 16
      %vm4012 = vcmp.lt.s32.totalorder %v3969, 16
      %vm4013 = vcmp.lt.s32.totalorder %v3970, 16
      %vm4014 = vcmp.lt.s32.totalorder %v3971, 16
      %vm4015 = vcmp.lt.s32.totalorder %v3972, 16
      %vm4016 = vcmp.lt.s32.totalorder %v3973, 16
      %vm4017 = vcmp.lt.s32.totalorder %v3974, 16
      %vm4018 = vmand %vm3982, %vm4000
      %vm4019 = vmand %vm3983, %vm4001
      %vm4020 = vmand %vm3984, %vm4002
      %vm4021 = vmand %vm3985, %vm4003
      %vm4022 = vmand %vm3986, %vm4004
      %vm4023 = vmand %vm3987, %vm4005
      %vm4024 = vmand %vm3988, %vm4006
      %vm4025 = vmand %vm3989, %vm4007
      %vm4026 = vmand %vm3990, %vm4008
      %vm4027 = vmand %vm3991, %vm4009
      %vm4028 = vmand %vm3992, %vm4010
      %vm4029 = vmand %vm3993, %vm4011
      %vm4030 = vmand %vm3994, %vm4012
      %vm4031 = vmand %vm3995, %vm4013
      %vm4032 = vmand %vm3996, %vm4014
      %vm4033 = vmand %vm3997, %vm4015
      %vm4034 = vmand %vm3998, %vm4016
      %vm4035 = vmand %vm3999, %vm4017
      %vm4036 = vcmp.ge.s32.totalorder %v3979, 0
      %vm4037 = vcmp.ge.s32.totalorder %v3980, 0
      %vm4038 = vcmp.ge.s32.totalorder %v3981, 0
      %vm4039 = vmand %vm4018, %vm4036
      %vm4040 = vmand %vm4018, %vm4037
      %vm4041 = vmand %vm4018, %vm4038
      %vm4042 = vmand %vm4019, %vm4036
      %vm4043 = vmand %vm4019, %vm4037
      %vm4044 = vmand %vm4019, %vm4038
      %vm4045 = vmand %vm4020, %vm4036
      %vm4046 = vmand %vm4020, %vm4037
      %vm4047 = vmand %vm4020, %vm4038
      %vm4048 = vmand %vm4021, %vm4036
      %vm4049 = vmand %vm4021, %vm4037
      %vm4050 = vmand %vm4021, %vm4038
      %vm4051 = vmand %vm4022, %vm4036
      %vm4052 = vmand %vm4022, %vm4037
      %vm4053 = vmand %vm4022, %vm4038
      %vm4054 = vmand %vm4023, %vm4036
      %vm4055 = vmand %vm4023, %vm4037
      %vm4056 = vmand %vm4023, %vm4038
      %vm4057 = vmand %vm4024, %vm4036
      %vm4058 = vmand %vm4024, %vm4037
      %vm4059 = vmand %vm4024, %vm4038
      %vm4060 = vmand %vm4025, %vm4036
      %vm4061 = vmand %vm4025, %vm4037
      %vm4062 = vmand %vm4025, %vm4038
      %vm4063 = vmand %vm4026, %vm4036
      %vm4064 = vmand %vm4026, %vm4037
      %vm4065 = vmand %vm4026, %vm4038
      %vm4066 = vmand %vm4027, %vm4036
      %vm4067 = vmand %vm4027, %vm4037
      %vm4068 = vmand %vm4027, %vm4038
      %vm4069 = vmand %vm4028, %vm4036
      %vm4070 = vmand %vm4028, %vm4037
      %vm4071 = vmand %vm4028, %vm4038
      %vm4072 = vmand %vm4029, %vm4036
      %vm4073 = vmand %vm4029, %vm4037
      %vm4074 = vmand %vm4029, %vm4038
      %vm4075 = vmand %vm4030, %vm4036
      %vm4076 = vmand %vm4030, %vm4037
      %vm4077 = vmand %vm4030, %vm4038
      %vm4078 = vmand %vm4031, %vm4036
      %vm4079 = vmand %vm4031, %vm4037
      %vm4080 = vmand %vm4031, %vm4038
      %vm4081 = vmand %vm4032, %vm4036
      %vm4082 = vmand %vm4032, %vm4037
      %vm4083 = vmand %vm4032, %vm4038
      %vm4084 = vmand %vm4033, %vm4036
      %vm4085 = vmand %vm4033, %vm4037
      %vm4086 = vmand %vm4033, %vm4038
      %vm4087 = vmand %vm4034, %vm4036
      %vm4088 = vmand %vm4034, %vm4037
      %vm4089 = vmand %vm4034, %vm4038
      %vm4090 = vmand %vm4035, %vm4036
      %vm4091 = vmand %vm4035, %vm4037
      %vm4092 = vmand %vm4035, %vm4038
      %vm4093 = vcmp.lt.s32.totalorder %v3979, 16
      %vm4094 = vcmp.lt.s32.totalorder %v3980, 16
      %vm4095 = vcmp.lt.s32.totalorder %v3981, 16
      %vm4096 = vmand %vm4039, %vm4093
      %vm4097 = vmand %vm4040, %vm4094
      %vm4098 = vmand %vm4041, %vm4095
      %vm4099 = vmand %vm4042, %vm4093
      %vm4100 = vmand %vm4043, %vm4094
      %vm4101 = vmand %vm4044, %vm4095
      %vm4102 = vmand %vm4045, %vm4093
      %vm4103 = vmand %vm4046, %vm4094
      %vm4104 = vmand %vm4047, %vm4095
      %vm4105 = vmand %vm4048, %vm4093
      %vm4106 = vmand %vm4049, %vm4094
      %vm4107 = vmand %vm4050, %vm4095
      %vm4108 = vmand %vm4051, %vm4093
      %vm4109 = vmand %vm4052, %vm4094
      %vm4110 = vmand %vm4053, %vm4095
      %vm4111 = vmand %vm4054, %vm4093
      %vm4112 = vmand %vm4055, %vm4094
      %vm4113 = vmand %vm4056, %vm4095
      %vm4114 = vmand %vm4057, %vm4093
      %vm4115 = vmand %vm4058, %vm4094
      %vm4116 = vmand %vm4059, %vm4095
      %vm4117 = vmand %vm4060, %vm4093
      %vm4118 = vmand %vm4061, %vm4094
      %vm4119 = vmand %vm4062, %vm4095
      %vm4120 = vmand %vm4063, %vm4093
      %vm4121 = vmand %vm4064, %vm4094
      %vm4122 = vmand %vm4065, %vm4095
      %vm4123 = vmand %vm4066, %vm4093
      %vm4124 = vmand %vm4067, %vm4094
      %vm4125 = vmand %vm4068, %vm4095
      %vm4126 = vmand %vm4069, %vm4093
      %vm4127 = vmand %vm4070, %vm4094
      %vm4128 = vmand %vm4071, %vm4095
      %vm4129 = vmand %vm4072, %vm4093
      %vm4130 = vmand %vm4073, %vm4094
      %vm4131 = vmand %vm4074, %vm4095
      %vm4132 = vmand %vm4075, %vm4093
      %vm4133 = vmand %vm4076, %vm4094
      %vm4134 = vmand %vm4077, %vm4095
      %vm4135 = vmand %vm4078, %vm4093
      %vm4136 = vmand %vm4079, %vm4094
      %vm4137 = vmand %vm4080, %vm4095
      %vm4138 = vmand %vm4081, %vm4093
      %vm4139 = vmand %vm4082, %vm4094
      %vm4140 = vmand %vm4083, %vm4095
      %vm4141 = vmand %vm4084, %vm4093
      %vm4142 = vmand %vm4085, %vm4094
      %vm4143 = vmand %vm4086, %vm4095
      %vm4144 = vmand %vm4087, %vm4093
      %vm4145 = vmand %vm4088, %vm4094
      %vm4146 = vmand %vm4089, %vm4095
      %vm4147 = vmand %vm4090, %vm4093
      %vm4148 = vmand %vm4091, %vm4094
      %vm4149 = vmand %vm4092, %vm4095
      %v4150 = vsel %vm4096, 1, 0
      %v4151 = vsel %vm4097, 1, 0
      %v4152 = vsel %vm4098, 1, 0
      %v4153 = vsel %vm4099, 1, 0
      %v4154 = vsel %vm4100, 1, 0
      %v4155 = vsel %vm4101, 1, 0
      %v4156 = vsel %vm4102, 1, 0
      %v4157 = vsel %vm4103, 1, 0
      %v4158 = vsel %vm4104, 1, 0
      %v4159 = vsel %vm4105, 1, 0
      %v4160 = vsel %vm4106, 1, 0
      %v4161 = vsel %vm4107, 1, 0
      %v4162 = vsel %vm4108, 1, 0
      %v4163 = vsel %vm4109, 1, 0
      %v4164 = vsel %vm4110, 1, 0
      %v4165 = vsel %vm4111, 1, 0
      %v4166 = vsel %vm4112, 1, 0
      %v4167 = vsel %vm4113, 1, 0
      %v4168 = vsel %vm4114, 1, 0
      %v4169 = vsel %vm4115, 1, 0
      %v4170 = vsel %vm4116, 1, 0
      %v4171 = vsel %vm4117, 1, 0
      %v4172 = vsel %vm4118, 1, 0
      %v4173 = vsel %vm4119, 1, 0
      %v4174 = vsel %vm4120, 1, 0
      %v4175 = vsel %vm4121, 1, 0
      %v4176 = vsel %vm4122, 1, 0
      %v4177 = vsel %vm4123, 1, 0
      %v4178 = vsel %vm4124, 1, 0
      %v4179 = vsel %vm4125, 1, 0
      %v4180 = vsel %vm4126, 1, 0
      %v4181 = vsel %vm4127, 1, 0
      %v4182 = vsel %vm4128, 1, 0
      %v4183 = vsel %vm4129, 1, 0
      %v4184 = vsel %vm4130, 1, 0
      %v4185 = vsel %vm4131, 1, 0
      %v4186 = vsel %vm4132, 1, 0
      %v4187 = vsel %vm4133, 1, 0
      %v4188 = vsel %vm4134, 1, 0
      %v4189 = vsel %vm4135, 1, 0
      %v4190 = vsel %vm4136, 1, 0
      %v4191 = vsel %vm4137, 1, 0
      %v4192 = vsel %vm4138, 1, 0
      %v4193 = vsel %vm4139, 1, 0
      %v4194 = vsel %vm4140, 1, 0
      %v4195 = vsel %vm4141, 1, 0
      %v4196 = vsel %vm4142, 1, 0
      %v4197 = vsel %vm4143, 1, 0
      %v4198 = vsel %vm4144, 1, 0
      %v4199 = vsel %vm4145, 1, 0
      %v4200 = vsel %vm4146, 1, 0
      %v4201 = vsel %vm4147, 1, 0
      %v4202 = vsel %vm4148, 1, 0
      %v4203 = vsel %vm4149, 1, 0
      %vm4204 = vcmp.eq.s32.totalorder %v4150, 1
      %vm4205 = vcmp.eq.s32.totalorder %v4151, 1
      %vm4206 = vcmp.eq.s32.totalorder %v4152, 1
      %vm4207 = vcmp.eq.s32.totalorder %v4153, 1
      %vm4208 = vcmp.eq.s32.totalorder %v4154, 1
      %vm4209 = vcmp.eq.s32.totalorder %v4155, 1
      %vm4210 = vcmp.eq.s32.totalorder %v4156, 1
      %vm4211 = vcmp.eq.s32.totalorder %v4157, 1
      %vm4212 = vcmp.eq.s32.totalorder %v4158, 1
      %vm4213 = vcmp.eq.s32.totalorder %v4159, 1
      %vm4214 = vcmp.eq.s32.totalorder %v4160, 1
      %vm4215 = vcmp.eq.s32.totalorder %v4161, 1
      %vm4216 = vcmp.eq.s32.totalorder %v4162, 1
      %vm4217 = vcmp.eq.s32.totalorder %v4163, 1
      %vm4218 = vcmp.eq.s32.totalorder %v4164, 1
      %vm4219 = vcmp.eq.s32.totalorder %v4165, 1
      %vm4220 = vcmp.eq.s32.totalorder %v4166, 1
      %vm4221 = vcmp.eq.s32.totalorder %v4167, 1
      %vm4222 = vcmp.eq.s32.totalorder %v4168, 1
      %vm4223 = vcmp.eq.s32.totalorder %v4169, 1
      %vm4224 = vcmp.eq.s32.totalorder %v4170, 1
      %vm4225 = vcmp.eq.s32.totalorder %v4171, 1
      %vm4226 = vcmp.eq.s32.totalorder %v4172, 1
      %vm4227 = vcmp.eq.s32.totalorder %v4173, 1
      %vm4228 = vcmp.eq.s32.totalorder %v4174, 1
      %vm4229 = vcmp.eq.s32.totalorder %v4175, 1
      %vm4230 = vcmp.eq.s32.totalorder %v4176, 1
      %vm4231 = vcmp.eq.s32.totalorder %v4177, 1
      %vm4232 = vcmp.eq.s32.totalorder %v4178, 1
      %vm4233 = vcmp.eq.s32.totalorder %v4179, 1
      %vm4234 = vcmp.eq.s32.totalorder %v4180, 1
      %vm4235 = vcmp.eq.s32.totalorder %v4181, 1
      %vm4236 = vcmp.eq.s32.totalorder %v4182, 1
      %vm4237 = vcmp.eq.s32.totalorder %v4183, 1
      %vm4238 = vcmp.eq.s32.totalorder %v4184, 1
      %vm4239 = vcmp.eq.s32.totalorder %v4185, 1
      %vm4240 = vcmp.eq.s32.totalorder %v4186, 1
      %vm4241 = vcmp.eq.s32.totalorder %v4187, 1
      %vm4242 = vcmp.eq.s32.totalorder %v4188, 1
      %vm4243 = vcmp.eq.s32.totalorder %v4189, 1
      %vm4244 = vcmp.eq.s32.totalorder %v4190, 1
      %vm4245 = vcmp.eq.s32.totalorder %v4191, 1
      %vm4246 = vcmp.eq.s32.totalorder %v4192, 1
      %vm4247 = vcmp.eq.s32.totalorder %v4193, 1
      %vm4248 = vcmp.eq.s32.totalorder %v4194, 1
      %vm4249 = vcmp.eq.s32.totalorder %v4195, 1
      %vm4250 = vcmp.eq.s32.totalorder %v4196, 1
      %vm4251 = vcmp.eq.s32.totalorder %v4197, 1
      %vm4252 = vcmp.eq.s32.totalorder %v4198, 1
      %vm4253 = vcmp.eq.s32.totalorder %v4199, 1
      %vm4254 = vcmp.eq.s32.totalorder %v4200, 1
      %vm4255 = vcmp.eq.s32.totalorder %v4201, 1
      %vm4256 = vcmp.eq.s32.totalorder %v4202, 1
      %vm4257 = vcmp.eq.s32.totalorder %v4203, 1
      %v4258 = vcombine.low %v3259, %v3267
      %v4259 = vcombine.low %v3266, %v3268
      %v4261 = vunpack.c.l.s4 1983009808
      %v4262 = vunpack.c.0.s8 %v4261
      %v4263 = vlaneseq
      %v4264 = vshrl.u32 %v4263, 7
      %v4265 = vsub.s32 %v4262, %v4264
      %v4266 = vrot.slane %v4258, %v4265
      %v4268 = vunpack.c.l.s4 1983009808
      %v4269 = vunpack.c.0.s8 %v4268
      %v4270 = vlaneseq
      %v4271 = vshrl.u32 %v4270, 7
      %v4272 = vsub.s32 %v4269, %v4271
      %v4273 = vrot.slane %v4259, %v4272
      %v4274 = vcombine.low %v4266, %v4273
      %v4275 = vcombine.low %v3276, %v3284
      %v4276 = vcombine.low %v3283, %v3285
      %v4278 = vunpack.c.l.s4 1983009808
      %v4279 = vunpack.c.0.s8 %v4278
      %v4280 = vlaneseq
      %v4281 = vshrl.u32 %v4280, 7
      %v4282 = vsub.s32 %v4279, %v4281
      %v4283 = vrot.slane %v4275, %v4282
      %v4285 = vunpack.c.l.s4 1983009808
      %v4286 = vunpack.c.0.s8 %v4285
      %v4287 = vlaneseq
      %v4288 = vshrl.u32 %v4287, 7
      %v4289 = vsub.s32 %v4286, %v4288
      %v4290 = vrot.slane %v4276, %v4289
      %v4291 = vcombine.low %v4283, %v4290
      %v4293 = vunpack.c.l.s4 1983009808
      %v4294 = vunpack.c.0.s8 %v4293
      %v4295 = vlaneseq
      %v4296 = vshrl.u32 %v4295, 7
      %v4297 = vsub.s32 %v4294, %v4296
      %v4298 = vrot.slane %v3293, %v4297
      %v4299 = vcombine.low %v3301, %v3300
      %v4300 = vcombine.low %v3302, %v3310
      %v4302 = vunpack.c.l.s4 1983009808
      %v4303 = vunpack.c.0.s8 %v4302
      %v4304 = vlaneseq
      %v4305 = vshrl.u32 %v4304, 7
      %v4306 = vsub.s32 %v4303, %v4305
      %v4307 = vrot.slane %v4299, %v4306
      %v4309 = vunpack.c.l.s4 1983009808
      %v4310 = vunpack.c.0.s8 %v4309
      %v4311 = vlaneseq
      %v4312 = vshrl.u32 %v4311, 7
      %v4313 = vsub.s32 %v4310, %v4312
      %v4314 = vrot.slane %v4300, %v4313
      %v4315 = vcombine.low %v4307, %v4314
      %v4316 = vcombine.low %v3318, %v3317
      %v4317 = vcombine.low %v3319, %v3327
      %v4319 = vunpack.c.l.s4 1983009808
      %v4320 = vunpack.c.0.s8 %v4319
      %v4321 = vlaneseq
      %v4322 = vshrl.u32 %v4321, 7
      %v4323 = vsub.s32 %v4320, %v4322
      %v4324 = vrot.slane %v4316, %v4323
      %v4326 = vunpack.c.l.s4 1983009808
      %v4327 = vunpack.c.0.s8 %v4326
      %v4328 = vlaneseq
      %v4329 = vshrl.u32 %v4328, 7
      %v4330 = vsub.s32 %v4327, %v4329
      %v4331 = vrot.slane %v4317, %v4330
      %v4332 = vcombine.low %v4324, %v4331
      %v4334 = vunpack.c.l.s4 1983009808
      %v4335 = vunpack.c.0.s8 %v4334
      %v4336 = vlaneseq
      %v4337 = vshrl.u32 %v4336, 7
      %v4338 = vsub.s32 %v4335, %v4337
      %v4339 = vrot.slane %v3335, %v4338
      %v4340 = vcombine.low %v3334, %v3336
      %v4341 = vcombine.low %v3344, %v3352
      %v4343 = vunpack.c.l.s4 1983009808
      %v4344 = vunpack.c.0.s8 %v4343
      %v4345 = vlaneseq
      %v4346 = vshrl.u32 %v4345, 7
      %v4347 = vsub.s32 %v4344, %v4346
      %v4348 = vrot.slane %v4340, %v4347
      %v4350 = vunpack.c.l.s4 1983009808
      %v4351 = vunpack.c.0.s8 %v4350
      %v4352 = vlaneseq
      %v4353 = vshrl.u32 %v4352, 7
      %v4354 = vsub.s32 %v4351, %v4353
      %v4355 = vrot.slane %v4341, %v4354
      %v4356 = vcombine.low %v4348, %v4355
      %v4357 = vcombine.low %v3351, %v3353
      %v4358 = vcombine.low %v3361, %v3369
      %v4360 = vunpack.c.l.s4 1983009808
      %v4361 = vunpack.c.0.s8 %v4360
      %v4362 = vlaneseq
      %v4363 = vshrl.u32 %v4362, 7
      %v4364 = vsub.s32 %v4361, %v4363
      %v4365 = vrot.slane %v4357, %v4364
      %v4367 = vunpack.c.l.s4 1983009808
      %v4368 = vunpack.c.0.s8 %v4367
      %v4369 = vlaneseq
      %v4370 = vshrl.u32 %v4369, 7
      %v4371 = vsub.s32 %v4368, %v4370
      %v4372 = vrot.slane %v4358, %v4371
      %v4373 = vcombine.low %v4365, %v4372
      %v4375 = vunpack.c.l.s4 1983009808
      %v4376 = vunpack.c.0.s8 %v4375
      %v4377 = vlaneseq
      %v4378 = vshrl.u32 %v4377, 7
      %v4379 = vsub.s32 %v4376, %v4378
      %v4380 = vrot.slane %v3368, %v4379
      %v4381 = vcombine.low %v3370, %v3378
      %v4382 = vcombine.low %v3386, %v3385
      %v4384 = vunpack.c.l.s4 1983009808
      %v4385 = vunpack.c.0.s8 %v4384
      %v4386 = vlaneseq
      %v4387 = vshrl.u32 %v4386, 7
      %v4388 = vsub.s32 %v4385, %v4387
      %v4389 = vrot.slane %v4381, %v4388
      %v4391 = vunpack.c.l.s4 1983009808
      %v4392 = vunpack.c.0.s8 %v4391
      %v4393 = vlaneseq
      %v4394 = vshrl.u32 %v4393, 7
      %v4395 = vsub.s32 %v4392, %v4394
      %v4396 = vrot.slane %v4382, %v4395
      %v4397 = vcombine.low %v4389, %v4396
      %v4398 = vcombine.low %v3387, %v3395
      %v4399 = vcombine.low %v3403, %v3402
      %v4401 = vunpack.c.l.s4 1983009808
      %v4402 = vunpack.c.0.s8 %v4401
      %v4403 = vlaneseq
      %v4404 = vshrl.u32 %v4403, 7
      %v4405 = vsub.s32 %v4402, %v4404
      %v4406 = vrot.slane %v4398, %v4405
      %v4408 = vunpack.c.l.s4 1983009808
      %v4409 = vunpack.c.0.s8 %v4408
      %v4410 = vlaneseq
      %v4411 = vshrl.u32 %v4410, 7
      %v4412 = vsub.s32 %v4409, %v4411
      %v4413 = vrot.slane %v4399, %v4412
      %v4414 = vcombine.low %v4406, %v4413
      %v4416 = vunpack.c.l.s4 1983009808
      %v4417 = vunpack.c.0.s8 %v4416
      %v4418 = vlaneseq
      %v4419 = vshrl.u32 %v4418, 7
      %v4420 = vsub.s32 %v4417, %v4419
      %v4421 = vrot.slane %v3404, %v4420
      %v4422 = vcombine.low %v3412, %v3420
      %v4423 = vcombine.low %v3419, %v3421
      %v4425 = vunpack.c.l.s4 1983009808
      %v4426 = vunpack.c.0.s8 %v4425
      %v4427 = vlaneseq
      %v4428 = vshrl.u32 %v4427, 7
      %v4429 = vsub.s32 %v4426, %v4428
      %v4430 = vrot.slane %v4422, %v4429
      %v4432 = vunpack.c.l.s4 1983009808
      %v4433 = vunpack.c.0.s8 %v4432
      %v4434 = vlaneseq
      %v4435 = vshrl.u32 %v4434, 7
      %v4436 = vsub.s32 %v4433, %v4435
      %v4437 = vrot.slane %v4423, %v4436
      %v4438 = vcombine.low %v4430, %v4437
      %v4439 = vcombine.low %v3429, %v3437
      %v4440 = vcombine.low %v3436, %v3438
      %v4442 = vunpack.c.l.s4 1983009808
      %v4443 = vunpack.c.0.s8 %v4442
      %v4444 = vlaneseq
      %v4445 = vshrl.u32 %v4444, 7
      %v4446 = vsub.s32 %v4443, %v4445
      %v4447 = vrot.slane %v4439, %v4446
      %v4449 = vunpack.c.l.s4 1983009808
      %v4450 = vunpack.c.0.s8 %v4449
      %v4451 = vlaneseq
      %v4452 = vshrl.u32 %v4451, 7
      %v4453 = vsub.s32 %v4450, %v4452
      %v4454 = vrot.slane %v4440, %v4453
      %v4455 = vcombine.low %v4447, %v4454
      %v4457 = vunpack.c.l.s4 1983009808
      %v4458 = vunpack.c.0.s8 %v4457
      %v4459 = vlaneseq
      %v4460 = vshrl.u32 %v4459, 7
      %v4461 = vsub.s32 %v4458, %v4460
      %v4462 = vrot.slane %v3446, %v4461
      %v4463 = vcombine.low %v3454, %v3453
      %v4464 = vcombine.low %v3455, %v3463
      %v4466 = vunpack.c.l.s4 1983009808
      %v4467 = vunpack.c.0.s8 %v4466
      %v4468 = vlaneseq
      %v4469 = vshrl.u32 %v4468, 7
      %v4470 = vsub.s32 %v4467, %v4469
      %v4471 = vrot.slane %v4463, %v4470
      %v4473 = vunpack.c.l.s4 1983009808
      %v4474 = vunpack.c.0.s8 %v4473
      %v4475 = vlaneseq
      %v4476 = vshrl.u32 %v4475, 7
      %v4477 = vsub.s32 %v4474, %v4476
      %v4478 = vrot.slane %v4464, %v4477
      %v4479 = vcombine.low %v4471, %v4478
      %v4480 = vcombine.low %v3471, %v3470
      %v4481 = vcombine.low %v3472, %v3480
      %v4483 = vunpack.c.l.s4 1983009808
      %v4484 = vunpack.c.0.s8 %v4483
      %v4485 = vlaneseq
      %v4486 = vshrl.u32 %v4485, 7
      %v4487 = vsub.s32 %v4484, %v4486
      %v4488 = vrot.slane %v4480, %v4487
      %v4490 = vunpack.c.l.s4 1983009808
      %v4491 = vunpack.c.0.s8 %v4490
      %v4492 = vlaneseq
      %v4493 = vshrl.u32 %v4492, 7
      %v4494 = vsub.s32 %v4491, %v4493
      %v4495 = vrot.slane %v4481, %v4494
      %v4496 = vcombine.low %v4488, %v4495
      %v4498 = vunpack.c.l.s4 1983009808
      %v4499 = vunpack.c.0.s8 %v4498
      %v4500 = vlaneseq
      %v4501 = vshrl.u32 %v4500, 7
      %v4502 = vsub.s32 %v4499, %v4501
      %v4503 = vrot.slane %v3488, %v4502
      %v4504 = vcombine.low %v3487, %v3489
      %v4505 = vcombine.low %v3497, %v3505
      %v4507 = vunpack.c.l.s4 1983009808
      %v4508 = vunpack.c.0.s8 %v4507
      %v4509 = vlaneseq
      %v4510 = vshrl.u32 %v4509, 7
      %v4511 = vsub.s32 %v4508, %v4510
      %v4512 = vrot.slane %v4504, %v4511
      %v4514 = vunpack.c.l.s4 1983009808
      %v4515 = vunpack.c.0.s8 %v4514
      %v4516 = vlaneseq
      %v4517 = vshrl.u32 %v4516, 7
      %v4518 = vsub.s32 %v4515, %v4517
      %v4519 = vrot.slane %v4505, %v4518
      %v4520 = vcombine.low %v4512, %v4519
      %v4521 = vcombine.low %v3504, %v3506
      %v4522 = vcombine.low %v3514, %v3522
      %v4524 = vunpack.c.l.s4 1983009808
      %v4525 = vunpack.c.0.s8 %v4524
      %v4526 = vlaneseq
      %v4527 = vshrl.u32 %v4526, 7
      %v4528 = vsub.s32 %v4525, %v4527
      %v4529 = vrot.slane %v4521, %v4528
      %v4531 = vunpack.c.l.s4 1983009808
      %v4532 = vunpack.c.0.s8 %v4531
      %v4533 = vlaneseq
      %v4534 = vshrl.u32 %v4533, 7
      %v4535 = vsub.s32 %v4532, %v4534
      %v4536 = vrot.slane %v4522, %v4535
      %v4537 = vcombine.low %v4529, %v4536
      %v4539 = vunpack.c.l.s4 1983009808
      %v4540 = vunpack.c.0.s8 %v4539
      %v4541 = vlaneseq
      %v4542 = vshrl.u32 %v4541, 7
      %v4543 = vsub.s32 %v4540, %v4542
      %v4544 = vrot.slane %v3521, %v4543
      %v4545 = vcombine.low %v3523, %v3531
      %v4546 = vcombine.low %v3539, %v3538
      %v4548 = vunpack.c.l.s4 1983009808
      %v4549 = vunpack.c.0.s8 %v4548
      %v4550 = vlaneseq
      %v4551 = vshrl.u32 %v4550, 7
      %v4552 = vsub.s32 %v4549, %v4551
      %v4553 = vrot.slane %v4545, %v4552
      %v4555 = vunpack.c.l.s4 1983009808
      %v4556 = vunpack.c.0.s8 %v4555
      %v4557 = vlaneseq
      %v4558 = vshrl.u32 %v4557, 7
      %v4559 = vsub.s32 %v4556, %v4558
      %v4560 = vrot.slane %v4546, %v4559
      %v4561 = vcombine.low %v4553, %v4560
      %v4562 = vcombine.low %v3540, %v3548
      %v4563 = vcombine.low %v3556, %v3555
      %v4565 = vunpack.c.l.s4 1983009808
      %v4566 = vunpack.c.0.s8 %v4565
      %v4567 = vlaneseq
      %v4568 = vshrl.u32 %v4567, 7
      %v4569 = vsub.s32 %v4566, %v4568
      %v4570 = vrot.slane %v4562, %v4569
      %v4572 = vunpack.c.l.s4 1983009808
      %v4573 = vunpack.c.0.s8 %v4572
      %v4574 = vlaneseq
      %v4575 = vshrl.u32 %v4574, 7
      %v4576 = vsub.s32 %v4573, %v4575
      %v4577 = vrot.slane %v4563, %v4576
      %v4578 = vcombine.low %v4570, %v4577
      %v4580 = vunpack.c.l.s4 1983009808
      %v4581 = vunpack.c.0.s8 %v4580
      %v4582 = vlaneseq
      %v4583 = vshrl.u32 %v4582, 7
      %v4584 = vsub.s32 %v4581, %v4583
      %v4585 = vrot.slane %v3557, %v4584
      %v4586 = vcombine.low %v3565, %v3573
      %v4587 = vcombine.low %v3572, %v3574
      %v4589 = vunpack.c.l.s4 1983009808
      %v4590 = vunpack.c.0.s8 %v4589
      %v4591 = vlaneseq
      %v4592 = vshrl.u32 %v4591, 7
      %v4593 = vsub.s32 %v4590, %v4592
      %v4594 = vrot.slane %v4586, %v4593
      %v4596 = vunpack.c.l.s4 1983009808
      %v4597 = vunpack.c.0.s8 %v4596
      %v4598 = vlaneseq
      %v4599 = vshrl.u32 %v4598, 7
      %v4600 = vsub.s32 %v4597, %v4599
      %v4601 = vrot.slane %v4587, %v4600
      %v4602 = vcombine.low %v4594, %v4601
      %v4603 = vcombine.low %v3582, %v3590
      %v4604 = vcombine.low %v3589, %v3591
      %v4606 = vunpack.c.l.s4 1983009808
      %v4607 = vunpack.c.0.s8 %v4606
      %v4608 = vlaneseq
      %v4609 = vshrl.u32 %v4608, 7
      %v4610 = vsub.s32 %v4607, %v4609
      %v4611 = vrot.slane %v4603, %v4610
      %v4613 = vunpack.c.l.s4 1983009808
      %v4614 = vunpack.c.0.s8 %v4613
      %v4615 = vlaneseq
      %v4616 = vshrl.u32 %v4615, 7
      %v4617 = vsub.s32 %v4614, %v4616
      %v4618 = vrot.slane %v4604, %v4617
      %v4619 = vcombine.low %v4611, %v4618
      %v4621 = vunpack.c.l.s4 1983009808
      %v4622 = vunpack.c.0.s8 %v4621
      %v4623 = vlaneseq
      %v4624 = vshrl.u32 %v4623, 7
      %v4625 = vsub.s32 %v4622, %v4624
      %v4626 = vrot.slane %v3599, %v4625
      %v4627 = vcombine.low %v3607, %v3606
      %v4628 = vcombine.low %v3608, %v3616
      %v4630 = vunpack.c.l.s4 1983009808
      %v4631 = vunpack.c.0.s8 %v4630
      %v4632 = vlaneseq
      %v4633 = vshrl.u32 %v4632, 7
      %v4634 = vsub.s32 %v4631, %v4633
      %v4635 = vrot.slane %v4627, %v4634
      %v4637 = vunpack.c.l.s4 1983009808
      %v4638 = vunpack.c.0.s8 %v4637
      %v4639 = vlaneseq
      %v4640 = vshrl.u32 %v4639, 7
      %v4641 = vsub.s32 %v4638, %v4640
      %v4642 = vrot.slane %v4628, %v4641
      %v4643 = vcombine.low %v4635, %v4642
      %v4644 = vcombine.low %v3624, %v3623
      %v4645 = vcombine.low %v3625, %v3633
      %v4647 = vunpack.c.l.s4 1983009808
      %v4648 = vunpack.c.0.s8 %v4647
      %v4649 = vlaneseq
      %v4650 = vshrl.u32 %v4649, 7
      %v4651 = vsub.s32 %v4648, %v4650
      %v4652 = vrot.slane %v4644, %v4651
      %v4654 = vunpack.c.l.s4 1983009808
      %v4655 = vunpack.c.0.s8 %v4654
      %v4656 = vlaneseq
      %v4657 = vshrl.u32 %v4656, 7
      %v4658 = vsub.s32 %v4655, %v4657
      %v4659 = vrot.slane %v4645, %v4658
      %v4660 = vcombine.low %v4652, %v4659
      %v4662 = vunpack.c.l.s4 1983009808
      %v4663 = vunpack.c.0.s8 %v4662
      %v4664 = vlaneseq
      %v4665 = vshrl.u32 %v4664, 7
      %v4666 = vsub.s32 %v4663, %v4665
      %v4667 = vrot.slane %v3641, %v4666
      %v4668 = vcombine.low %v3640, %v3642
      %v4669 = vcombine.low %v3650, %v3658
      %v4671 = vunpack.c.l.s4 1983009808
      %v4672 = vunpack.c.0.s8 %v4671
      %v4673 = vlaneseq
      %v4674 = vshrl.u32 %v4673, 7
      %v4675 = vsub.s32 %v4672, %v4674
      %v4676 = vrot.slane %v4668, %v4675
      %v4678 = vunpack.c.l.s4 1983009808
      %v4679 = vunpack.c.0.s8 %v4678
      %v4680 = vlaneseq
      %v4681 = vshrl.u32 %v4680, 7
      %v4682 = vsub.s32 %v4679, %v4681
      %v4683 = vrot.slane %v4669, %v4682
      %v4684 = vcombine.low %v4676, %v4683
      %v4685 = vcombine.low %v3657, %v3659
      %v4686 = vcombine.low %v3667, %v3675
      %v4688 = vunpack.c.l.s4 1983009808
      %v4689 = vunpack.c.0.s8 %v4688
      %v4690 = vlaneseq
      %v4691 = vshrl.u32 %v4690, 7
      %v4692 = vsub.s32 %v4689, %v4691
      %v4693 = vrot.slane %v4685, %v4692
      %v4695 = vunpack.c.l.s4 1983009808
      %v4696 = vunpack.c.0.s8 %v4695
      %v4697 = vlaneseq
      %v4698 = vshrl.u32 %v4697, 7
      %v4699 = vsub.s32 %v4696, %v4698
      %v4700 = vrot.slane %v4686, %v4699
      %v4701 = vcombine.low %v4693, %v4700
      %v4703 = vunpack.c.l.s4 1983009808
      %v4704 = vunpack.c.0.s8 %v4703
      %v4705 = vlaneseq
      %v4706 = vshrl.u32 %v4705, 7
      %v4707 = vsub.s32 %v4704, %v4706
      %v4708 = vrot.slane %v3674, %v4707
      %v4709 = vcombine.low %v3676, %v3684
      %v4710 = vcombine.low %v3692, %v3691
      %v4712 = vunpack.c.l.s4 1983009808
      %v4713 = vunpack.c.0.s8 %v4712
      %v4714 = vlaneseq
      %v4715 = vshrl.u32 %v4714, 7
      %v4716 = vsub.s32 %v4713, %v4715
      %v4717 = vrot.slane %v4709, %v4716
      %v4719 = vunpack.c.l.s4 1983009808
      %v4720 = vunpack.c.0.s8 %v4719
      %v4721 = vlaneseq
      %v4722 = vshrl.u32 %v4721, 7
      %v4723 = vsub.s32 %v4720, %v4722
      %v4724 = vrot.slane %v4710, %v4723
      %v4725 = vcombine.low %v4717, %v4724
      %v4726 = vcombine.low %v3693, %v3701
      %v4727 = vcombine.low %v3709, %v3708
      %v4729 = vunpack.c.l.s4 1983009808
      %v4730 = vunpack.c.0.s8 %v4729
      %v4731 = vlaneseq
      %v4732 = vshrl.u32 %v4731, 7
      %v4733 = vsub.s32 %v4730, %v4732
      %v4734 = vrot.slane %v4726, %v4733
      %v4736 = vunpack.c.l.s4 1983009808
      %v4737 = vunpack.c.0.s8 %v4736
      %v4738 = vlaneseq
      %v4739 = vshrl.u32 %v4738, 7
      %v4740 = vsub.s32 %v4737, %v4739
      %v4741 = vrot.slane %v4727, %v4740
      %v4742 = vcombine.low %v4734, %v4741
      %v4744 = vunpack.c.l.s4 1983009808
      %v4745 = vunpack.c.0.s8 %v4744
      %v4746 = vlaneseq
      %v4747 = vshrl.u32 %v4746, 7
      %v4748 = vsub.s32 %v4745, %v4747
      %v4749 = vrot.slane %v3710, %v4748
      %v4750 = vcombine.low %v3718, %v3726
      %v4751 = vcombine.low %v3725, %v3727
      %v4753 = vunpack.c.l.s4 1983009808
      %v4754 = vunpack.c.0.s8 %v4753
      %v4755 = vlaneseq
      %v4756 = vshrl.u32 %v4755, 7
      %v4757 = vsub.s32 %v4754, %v4756
      %v4758 = vrot.slane %v4750, %v4757
      %v4760 = vunpack.c.l.s4 1983009808
      %v4761 = vunpack.c.0.s8 %v4760
      %v4762 = vlaneseq
      %v4763 = vshrl.u32 %v4762, 7
      %v4764 = vsub.s32 %v4761, %v4763
      %v4765 = vrot.slane %v4751, %v4764
      %v4766 = vcombine.low %v4758, %v4765
      %v4767 = vcombine.low %v3735, %v3743
      %v4768 = vcombine.low %v3742, %v3744
      %v4770 = vunpack.c.l.s4 1983009808
      %v4771 = vunpack.c.0.s8 %v4770
      %v4772 = vlaneseq
      %v4773 = vshrl.u32 %v4772, 7
      %v4774 = vsub.s32 %v4771, %v4773
      %v4775 = vrot.slane %v4767, %v4774
      %v4777 = vunpack.c.l.s4 1983009808
      %v4778 = vunpack.c.0.s8 %v4777
      %v4779 = vlaneseq
      %v4780 = vshrl.u32 %v4779, 7
      %v4781 = vsub.s32 %v4778, %v4780
      %v4782 = vrot.slane %v4768, %v4781
      %v4783 = vcombine.low %v4775, %v4782
      %v4785 = vunpack.c.l.s4 1983009808
      %v4786 = vunpack.c.0.s8 %v4785
      %v4787 = vlaneseq
      %v4788 = vshrl.u32 %v4787, 7
      %v4789 = vsub.s32 %v4786, %v4788
      %v4790 = vrot.slane %v3752, %v4789
      %v4791 = vcombine.low %v3760, %v3759
      %v4792 = vcombine.low %v3761, %v3769
      %v4794 = vunpack.c.l.s4 1983009808
      %v4795 = vunpack.c.0.s8 %v4794
      %v4796 = vlaneseq
      %v4797 = vshrl.u32 %v4796, 7
      %v4798 = vsub.s32 %v4795, %v4797
      %v4799 = vrot.slane %v4791, %v4798
      %v4801 = vunpack.c.l.s4 1983009808
      %v4802 = vunpack.c.0.s8 %v4801
      %v4803 = vlaneseq
      %v4804 = vshrl.u32 %v4803, 7
      %v4805 = vsub.s32 %v4802, %v4804
      %v4806 = vrot.slane %v4792, %v4805
      %v4807 = vcombine.low %v4799, %v4806
      %v4808 = vcombine.low %v3777, %v3776
      %v4809 = vcombine.low %v3778, %v3786
      %v4811 = vunpack.c.l.s4 1983009808
      %v4812 = vunpack.c.0.s8 %v4811
      %v4813 = vlaneseq
      %v4814 = vshrl.u32 %v4813, 7
      %v4815 = vsub.s32 %v4812, %v4814
      %v4816 = vrot.slane %v4808, %v4815
      %v4818 = vunpack.c.l.s4 1983009808
      %v4819 = vunpack.c.0.s8 %v4818
      %v4820 = vlaneseq
      %v4821 = vshrl.u32 %v4820, 7
      %v4822 = vsub.s32 %v4819, %v4821
      %v4823 = vrot.slane %v4809, %v4822
      %v4824 = vcombine.low %v4816, %v4823
      %v4826 = vunpack.c.l.s4 1983009808
      %v4827 = vunpack.c.0.s8 %v4826
      %v4828 = vlaneseq
      %v4829 = vshrl.u32 %v4828, 7
      %v4830 = vsub.s32 %v4827, %v4829
      %v4831 = vrot.slane %v3794, %v4830
      %v4832 = vcombine.low %v3793, %v3795
      %v4833 = vcombine.low %v3803, %v3811
      %v4835 = vunpack.c.l.s4 1983009808
      %v4836 = vunpack.c.0.s8 %v4835
      %v4837 = vlaneseq
      %v4838 = vshrl.u32 %v4837, 7
      %v4839 = vsub.s32 %v4836, %v4838
      %v4840 = vrot.slane %v4832, %v4839
      %v4842 = vunpack.c.l.s4 1983009808
      %v4843 = vunpack.c.0.s8 %v4842
      %v4844 = vlaneseq
      %v4845 = vshrl.u32 %v4844, 7
      %v4846 = vsub.s32 %v4843, %v4845
      %v4847 = vrot.slane %v4833, %v4846
      %v4848 = vcombine.low %v4840, %v4847
      %v4849 = vcombine.low %v3810, %v3812
      %v4850 = vcombine.low %v3820, %v3828
      %v4852 = vunpack.c.l.s4 1983009808
      %v4853 = vunpack.c.0.s8 %v4852
      %v4854 = vlaneseq
      %v4855 = vshrl.u32 %v4854, 7
      %v4856 = vsub.s32 %v4853, %v4855
      %v4857 = vrot.slane %v4849, %v4856
      %v4859 = vunpack.c.l.s4 1983009808
      %v4860 = vunpack.c.0.s8 %v4859
      %v4861 = vlaneseq
      %v4862 = vshrl.u32 %v4861, 7
      %v4863 = vsub.s32 %v4860, %v4862
      %v4864 = vrot.slane %v4850, %v4863
      %v4865 = vcombine.low %v4857, %v4864
      %v4867 = vunpack.c.l.s4 1983009808
      %v4868 = vunpack.c.0.s8 %v4867
      %v4869 = vlaneseq
      %v4870 = vshrl.u32 %v4869, 7
      %v4871 = vsub.s32 %v4868, %v4870
      %v4872 = vrot.slane %v3827, %v4871
      %v4873 = vcombine.low %v3829, %v3837
      %v4874 = vcombine.low %v3845, %v3844
      %v4876 = vunpack.c.l.s4 1983009808
      %v4877 = vunpack.c.0.s8 %v4876
      %v4878 = vlaneseq
      %v4879 = vshrl.u32 %v4878, 7
      %v4880 = vsub.s32 %v4877, %v4879
      %v4881 = vrot.slane %v4873, %v4880
      %v4883 = vunpack.c.l.s4 1983009808
      %v4884 = vunpack.c.0.s8 %v4883
      %v4885 = vlaneseq
      %v4886 = vshrl.u32 %v4885, 7
      %v4887 = vsub.s32 %v4884, %v4886
      %v4888 = vrot.slane %v4874, %v4887
      %v4889 = vcombine.low %v4881, %v4888
      %v4890 = vcombine.low %v3846, %v3854
      %v4891 = vcombine.low %v3862, %v3861
      %v4893 = vunpack.c.l.s4 1983009808
      %v4894 = vunpack.c.0.s8 %v4893
      %v4895 = vlaneseq
      %v4896 = vshrl.u32 %v4895, 7
      %v4897 = vsub.s32 %v4894, %v4896
      %v4898 = vrot.slane %v4890, %v4897
      %v4900 = vunpack.c.l.s4 1983009808
      %v4901 = vunpack.c.0.s8 %v4900
      %v4902 = vlaneseq
      %v4903 = vshrl.u32 %v4902, 7
      %v4904 = vsub.s32 %v4901, %v4903
      %v4905 = vrot.slane %v4891, %v4904
      %v4906 = vcombine.low %v4898, %v4905
      %v4908 = vunpack.c.l.s4 1983009808
      %v4909 = vunpack.c.0.s8 %v4908
      %v4910 = vlaneseq
      %v4911 = vshrl.u32 %v4910, 7
      %v4912 = vsub.s32 %v4909, %v4911
      %v4913 = vrot.slane %v3863, %v4912
      %v4914 = vcombine.low %v3871, %v3879
      %v4915 = vcombine.low %v3878, %v3880
      %v4917 = vunpack.c.l.s4 1983009808
      %v4918 = vunpack.c.0.s8 %v4917
      %v4919 = vlaneseq
      %v4920 = vshrl.u32 %v4919, 7
      %v4921 = vsub.s32 %v4918, %v4920
      %v4922 = vrot.slane %v4914, %v4921
      %v4924 = vunpack.c.l.s4 1983009808
      %v4925 = vunpack.c.0.s8 %v4924
      %v4926 = vlaneseq
      %v4927 = vshrl.u32 %v4926, 7
      %v4928 = vsub.s32 %v4925, %v4927
      %v4929 = vrot.slane %v4915, %v4928
      %v4930 = vcombine.low %v4922, %v4929
      %v4931 = vcombine.low %v3888, %v3896
      %v4932 = vcombine.low %v3895, %v3897
      %v4934 = vunpack.c.l.s4 1983009808
      %v4935 = vunpack.c.0.s8 %v4934
      %v4936 = vlaneseq
      %v4937 = vshrl.u32 %v4936, 7
      %v4938 = vsub.s32 %v4935, %v4937
      %v4939 = vrot.slane %v4931, %v4938
      %v4941 = vunpack.c.l.s4 1983009808
      %v4942 = vunpack.c.0.s8 %v4941
      %v4943 = vlaneseq
      %v4944 = vshrl.u32 %v4943, 7
      %v4945 = vsub.s32 %v4942, %v4944
      %v4946 = vrot.slane %v4932, %v4945
      %v4947 = vcombine.low %v4939, %v4946
      %v4949 = vunpack.c.l.s4 1983009808
      %v4950 = vunpack.c.0.s8 %v4949
      %v4951 = vlaneseq
      %v4952 = vshrl.u32 %v4951, 7
      %v4953 = vsub.s32 %v4950, %v4952
      %v4954 = vrot.slane %v3905, %v4953
      %v4955 = vcombine.low %v3913, %v3912
      %v4956 = vcombine.low %v3914, %v3922
      %v4958 = vunpack.c.l.s4 1983009808
      %v4959 = vunpack.c.0.s8 %v4958
      %v4960 = vlaneseq
      %v4961 = vshrl.u32 %v4960, 7
      %v4962 = vsub.s32 %v4959, %v4961
      %v4963 = vrot.slane %v4955, %v4962
      %v4965 = vunpack.c.l.s4 1983009808
      %v4966 = vunpack.c.0.s8 %v4965
      %v4967 = vlaneseq
      %v4968 = vshrl.u32 %v4967, 7
      %v4969 = vsub.s32 %v4966, %v4968
      %v4970 = vrot.slane %v4956, %v4969
      %v4971 = vcombine.low %v4963, %v4970
      %v4972 = vcombine.low %v3930, %v3929
      %v4973 = vcombine.low %v3931, %v3938
      %v4975 = vunpack.c.l.s4 1983009808
      %v4976 = vunpack.c.0.s8 %v4975
      %v4977 = vlaneseq
      %v4978 = vshrl.u32 %v4977, 7
      %v4979 = vsub.s32 %v4976, %v4978
      %v4980 = vrot.slane %v4972, %v4979
      %v4982 = vunpack.c.l.s4 1983009808
      %v4983 = vunpack.c.0.s8 %v4982
      %v4984 = vlaneseq
      %v4985 = vshrl.u32 %v4984, 7
      %v4986 = vsub.s32 %v4983, %v4985
      %v4987 = vrot.slane %v4973, %v4986
      %v4988 = vcombine.low %v4980, %v4987
      %v4990 = vunpack.c.l.s4 1983009808
      %v4991 = vunpack.c.0.s8 %v4990
      %v4992 = vlaneseq
      %v4993 = vshrl.u32 %v4992, 7
      %v4994 = vsub.s32 %v4991, %v4993
      %v4995 = vrot.slane %v3939, %v4994
      %v5050 = vsel %vm4204, %v4274, 0.0
      %v5051 = vsel %vm4205, %v4291, 0.0
      %v5052 = vsel %vm4206, %v4298, 0.0
      %v5053 = vsel %vm4207, %v4315, 0.0
      %v5054 = vsel %vm4208, %v4332, 0.0
      %v5055 = vsel %vm4209, %v4339, 0.0
      %v5056 = vsel %vm4210, %v4356, 0.0
      %v5057 = vsel %vm4211, %v4373, 0.0
      %v5058 = vsel %vm4212, %v4380, 0.0
      %v5059 = vsel %vm4213, %v4397, 0.0
      %v5060 = vsel %vm4214, %v4414, 0.0
      %v5061 = vsel %vm4215, %v4421, 0.0
      %v5062 = vsel %vm4216, %v4438, 0.0
      %v5063 = vsel %vm4217, %v4455, 0.0
      %v5064 = vsel %vm4218, %v4462, 0.0
      %v5065 = vsel %vm4219, %v4479, 0.0
      %v5066 = vsel %vm4220, %v4496, 0.0
      %v5067 = vsel %vm4221, %v4503, 0.0
      %v5068 = vsel %vm4222, %v4520, 0.0
      %v5069 = vsel %vm4223, %v4537, 0.0
      %v5070 = vsel %vm4224, %v4544, 0.0
      %v5071 = vsel %vm4225, %v4561, 0.0
      %v5072 = vsel %vm4226, %v4578, 0.0
      %v5073 = vsel %vm4227, %v4585, 0.0
      %v5074 = vsel %vm4228, %v4602, 0.0
      %v5075 = vsel %vm4229, %v4619, 0.0
      %v5076 = vsel %vm4230, %v4626, 0.0
      %v5077 = vsel %vm4231, %v4643, 0.0
      %v5078 = vsel %vm4232, %v4660, 0.0
      %v5079 = vsel %vm4233, %v4667, 0.0
      %v5080 = vsel %vm4234, %v4684, 0.0
      %v5081 = vsel %vm4235, %v4701, 0.0
      %v5082 = vsel %vm4236, %v4708, 0.0
      %v5083 = vsel %vm4237, %v4725, 0.0
      %v5084 = vsel %vm4238, %v4742, 0.0
      %v5085 = vsel %vm4239, %v4749, 0.0
      %v5086 = vsel %vm4240, %v4766, 0.0
      %v5087 = vsel %vm4241, %v4783, 0.0
      %v5088 = vsel %vm4242, %v4790, 0.0
      %v5089 = vsel %vm4243, %v4807, 0.0
      %v5090 = vsel %vm4244, %v4824, 0.0
      %v5091 = vsel %vm4245, %v4831, 0.0
      %v5092 = vsel %vm4246, %v4848, 0.0
      %v5093 = vsel %vm4247, %v4865, 0.0
      %v5094 = vsel %vm4248, %v4872, 0.0
      %v5095 = vsel %vm4249, %v4889, 0.0
      %v5096 = vsel %vm4250, %v4906, 0.0
      %v5097 = vsel %vm4251, %v4913, 0.0
      %v5098 = vsel %vm4252, %v4930, 0.0
      %v5099 = vsel %vm4253, %v4947, 0.0
      %v5100 = vsel %vm4254, %v4954, 0.0
      %v5101 = vsel %vm4255, %v4971, 0.0
      %v5102 = vsel %vm4256, %v4988, 0.0
      %v5103 = vsel %vm4257, %v4995, 0.0
      %v5104 = vpack.c.bf16 %v5051, %v5050
      %v5105 = vpack.c.bf16 %v5052, %v5052
      %v5106 = vpack.c.bf16 %v5054, %v5053
      %v5107 = vpack.c.bf16 %v5055, %v5055
      %v5108 = vpack.c.bf16 %v5057, %v5056
      %v5109 = vpack.c.bf16 %v5058, %v5058
      %v5110 = vpack.c.bf16 %v5060, %v5059
      %v5111 = vpack.c.bf16 %v5061, %v5061
      %v5112 = vpack.c.bf16 %v5063, %v5062
      %v5113 = vpack.c.bf16 %v5064, %v5064
      %v5114 = vpack.c.bf16 %v5066, %v5065
      %v5115 = vpack.c.bf16 %v5067, %v5067
      %v5116 = vpack.c.bf16 %v5069, %v5068
      %v5117 = vpack.c.bf16 %v5070, %v5070
      %v5118 = vpack.c.bf16 %v5072, %v5071
      %v5119 = vpack.c.bf16 %v5073, %v5073
      %v5120 = vpack.c.bf16 %v5075, %v5074
      %v5121 = vpack.c.bf16 %v5076, %v5076
      %v5122 = vpack.c.bf16 %v5078, %v5077
      %v5123 = vpack.c.bf16 %v5079, %v5079
      %v5124 = vpack.c.bf16 %v5081, %v5080
      %v5125 = vpack.c.bf16 %v5082, %v5082
      %v5126 = vpack.c.bf16 %v5084, %v5083
      %v5127 = vpack.c.bf16 %v5085, %v5085
      %v5128 = vpack.c.bf16 %v5087, %v5086
      %v5129 = vpack.c.bf16 %v5088, %v5088
      %v5130 = vpack.c.bf16 %v5090, %v5089
      %v5131 = vpack.c.bf16 %v5091, %v5091
      %v5132 = vpack.c.bf16 %v5093, %v5092
      %v5133 = vpack.c.bf16 %v5094, %v5094
      %v5134 = vpack.c.bf16 %v5096, %v5095
      %v5135 = vpack.c.bf16 %v5097, %v5097
      %v5136 = vpack.c.bf16 %v5099, %v5098
      %v5137 = vpack.c.bf16 %v5100, %v5100
      %v5138 = vpack.c.bf16 %v5102, %v5101
      %v5139 = vpack.c.bf16 %v5103, %v5103
      %vm5140 = vsmask.f32 7424
      %v5142 = vshrl.u32 %v5104, 16
      %v5144 = vshll.u32 %v5104, 16
      %v5146 = vrot.slane %v5144, 1
      %v5147 = vor.u32 %v5142, %v5146
      %v5149 = vshll.u32 %v5105, 16
      %v5151 = vrot.slane %v5149, 1
      %v5152 = vsel %vm5140, %v5147, %v5151
      %v5154 = vshrl.u32 %v5106, 16
      %v5156 = vshll.u32 %v5106, 16
      %v5158 = vrot.slane %v5156, 1
      %v5159 = vor.u32 %v5154, %v5158
      %v5161 = vshll.u32 %v5107, 16
      %v5163 = vrot.slane %v5161, 1
      %v5164 = vsel %vm5140, %v5159, %v5163
      %v5166 = vshrl.u32 %v5108, 16
      %v5168 = vshll.u32 %v5108, 16
      %v5170 = vrot.slane %v5168, 1
      %v5171 = vor.u32 %v5166, %v5170
      %v5173 = vshll.u32 %v5109, 16
      %v5175 = vrot.slane %v5173, 1
      %v5176 = vsel %vm5140, %v5171, %v5175
      %v5178 = vshrl.u32 %v5110, 16
      %v5180 = vshll.u32 %v5110, 16
      %v5182 = vrot.slane %v5180, 1
      %v5183 = vor.u32 %v5178, %v5182
      %v5185 = vshll.u32 %v5111, 16
      %v5187 = vrot.slane %v5185, 1
      %v5188 = vsel %vm5140, %v5183, %v5187
      %v5190 = vshrl.u32 %v5112, 16
      %v5192 = vshll.u32 %v5112, 16
      %v5194 = vrot.slane %v5192, 1
      %v5195 = vor.u32 %v5190, %v5194
      %v5197 = vshll.u32 %v5113, 16
      %v5199 = vrot.slane %v5197, 1
      %v5200 = vsel %vm5140, %v5195, %v5199
      %v5202 = vshrl.u32 %v5114, 16
      %v5204 = vshll.u32 %v5114, 16
      %v5206 = vrot.slane %v5204, 1
      %v5207 = vor.u32 %v5202, %v5206
      %v5209 = vshll.u32 %v5115, 16
      %v5211 = vrot.slane %v5209, 1
      %v5212 = vsel %vm5140, %v5207, %v5211
      %v5214 = vshrl.u32 %v5116, 16
      %v5216 = vshll.u32 %v5116, 16
      %v5218 = vrot.slane %v5216, 1
      %v5219 = vor.u32 %v5214, %v5218
      %v5221 = vshll.u32 %v5117, 16
      %v5223 = vrot.slane %v5221, 1
      %v5224 = vsel %vm5140, %v5219, %v5223
      %v5226 = vshrl.u32 %v5118, 16
      %v5228 = vshll.u32 %v5118, 16
      %v5230 = vrot.slane %v5228, 1
      %v5231 = vor.u32 %v5226, %v5230
      %v5233 = vshll.u32 %v5119, 16
      %v5235 = vrot.slane %v5233, 1
      %v5236 = vsel %vm5140, %v5231, %v5235
      %v5238 = vshrl.u32 %v5120, 16
      %v5240 = vshll.u32 %v5120, 16
      %v5242 = vrot.slane %v5240, 1
      %v5243 = vor.u32 %v5238, %v5242
      %v5245 = vshll.u32 %v5121, 16
      %v5247 = vrot.slane %v5245, 1
      %v5248 = vsel %vm5140, %v5243, %v5247
      %v5250 = vshrl.u32 %v5122, 16
      %v5252 = vshll.u32 %v5122, 16
      %v5254 = vrot.slane %v5252, 1
      %v5255 = vor.u32 %v5250, %v5254
      %v5257 = vshll.u32 %v5123, 16
      %v5259 = vrot.slane %v5257, 1
      %v5260 = vsel %vm5140, %v5255, %v5259
      %v5262 = vshrl.u32 %v5124, 16
      %v5264 = vshll.u32 %v5124, 16
      %v5266 = vrot.slane %v5264, 1
      %v5267 = vor.u32 %v5262, %v5266
      %v5269 = vshll.u32 %v5125, 16
      %v5271 = vrot.slane %v5269, 1
      %v5272 = vsel %vm5140, %v5267, %v5271
      %v5274 = vshrl.u32 %v5126, 16
      %v5276 = vshll.u32 %v5126, 16
      %v5278 = vrot.slane %v5276, 1
      %v5279 = vor.u32 %v5274, %v5278
      %v5281 = vshll.u32 %v5127, 16
      %v5283 = vrot.slane %v5281, 1
      %v5284 = vsel %vm5140, %v5279, %v5283
      %v5286 = vshrl.u32 %v5128, 16
      %v5288 = vshll.u32 %v5128, 16
      %v5290 = vrot.slane %v5288, 1
      %v5291 = vor.u32 %v5286, %v5290
      %v5293 = vshll.u32 %v5129, 16
      %v5295 = vrot.slane %v5293, 1
      %v5296 = vsel %vm5140, %v5291, %v5295
      %v5298 = vshrl.u32 %v5130, 16
      %v5300 = vshll.u32 %v5130, 16
      %v5302 = vrot.slane %v5300, 1
      %v5303 = vor.u32 %v5298, %v5302
      %v5305 = vshll.u32 %v5131, 16
      %v5307 = vrot.slane %v5305, 1
      %v5308 = vsel %vm5140, %v5303, %v5307
      %v5310 = vshrl.u32 %v5132, 16
      %v5312 = vshll.u32 %v5132, 16
      %v5314 = vrot.slane %v5312, 1
      %v5315 = vor.u32 %v5310, %v5314
      %v5317 = vshll.u32 %v5133, 16
      %v5319 = vrot.slane %v5317, 1
      %v5320 = vsel %vm5140, %v5315, %v5319
      %v5322 = vshrl.u32 %v5134, 16
      %v5324 = vshll.u32 %v5134, 16
      %v5326 = vrot.slane %v5324, 1
      %v5327 = vor.u32 %v5322, %v5326
      %v5329 = vshll.u32 %v5135, 16
      %v5331 = vrot.slane %v5329, 1
      %v5332 = vsel %vm5140, %v5327, %v5331
      %vm5381 = vcmask 1046528
      %v5382 = vrot.slane %v5104, 1
      %v5383 = vrot.slane %v5105, 1
      %v5384 = vsel %vm5381, %v5382, %v5383
      %v5385 = vrot.slane %v5106, 1
      %v5386 = vrot.slane %v5107, 1
      %v5387 = vsel %vm5381, %v5385, %v5386
      %v5388 = vrot.slane %v5108, 1
      %v5389 = vrot.slane %v5109, 1
      %v5390 = vsel %vm5381, %v5388, %v5389
      %v5391 = vrot.slane %v5110, 1
      %v5392 = vrot.slane %v5111, 1
      %v5393 = vsel %vm5381, %v5391, %v5392
      %v5394 = vrot.slane %v5112, 1
      %v5395 = vrot.slane %v5113, 1
      %v5396 = vsel %vm5381, %v5394, %v5395
      %v5397 = vrot.slane %v5114, 1
      %v5398 = vrot.slane %v5115, 1
      %v5399 = vsel %vm5381, %v5397, %v5398
      %v5400 = vrot.slane %v5116, 1
      %v5401 = vrot.slane %v5117, 1
      %v5402 = vsel %vm5381, %v5400, %v5401
      %v5403 = vrot.slane %v5118, 1
      %v5404 = vrot.slane %v5119, 1
      %v5405 = vsel %vm5381, %v5403, %v5404
      %v5406 = vrot.slane %v5120, 1
      %v5407 = vrot.slane %v5121, 1
      %v5408 = vsel %vm5381, %v5406, %v5407
      %v5409 = vrot.slane %v5122, 1
      %v5410 = vrot.slane %v5123, 1
      %v5411 = vsel %vm5381, %v5409, %v5410
      %v5412 = vrot.slane %v5124, 1
      %v5413 = vrot.slane %v5125, 1
      %v5414 = vsel %vm5381, %v5412, %v5413
      %v5415 = vrot.slane %v5126, 1
      %v5416 = vrot.slane %v5127, 1
      %v5417 = vsel %vm5381, %v5415, %v5416
      %v5418 = vrot.slane %v5128, 1
      %v5419 = vrot.slane %v5129, 1
      %v5420 = vsel %vm5381, %v5418, %v5419
      %v5421 = vrot.slane %v5130, 1
      %v5422 = vrot.slane %v5131, 1
      %v5423 = vsel %vm5381, %v5421, %v5422
      %v5424 = vrot.slane %v5132, 1
      %v5425 = vrot.slane %v5133, 1
      %v5426 = vsel %vm5381, %v5424, %v5425
      %v5427 = vrot.slane %v5134, 1
      %v5428 = vrot.slane %v5135, 1
      %v5429 = vsel %vm5381, %v5427, %v5428
      %v5447 = vshrl.u32 %v5136, 16
      %v5449 = vshll.u32 %v5136, 16
      %v5451 = vrot.slane %v5449, 1
      %v5452 = vor.u32 %v5447, %v5451
      %v5454 = vshll.u32 %v5137, 16
      %v5456 = vrot.slane %v5454, 1
      %v5457 = vsel %vm5140, %v5452, %v5456
      %v5461 = vrot.slane %v5136, 1
      %v5462 = vrot.slane %v5137, 1
      %v5463 = vsel %vm5381, %v5461, %v5462
      %v5466 = vshrl.u32 %v5138, 16
      %v5468 = vshll.u32 %v5138, 16
      %v5470 = vrot.slane %v5468, 1
      %v5471 = vor.u32 %v5466, %v5470
      %v5473 = vshll.u32 %v5139, 16
      %v5475 = vrot.slane %v5473, 1
      %v5476 = vsel %vm5140, %v5471, %v5475
      %v5480 = vrot.slane %v5138, 1
      %v5481 = vrot.slane %v5139, 1
      %v5482 = vsel %vm5381, %v5480, %v5481
      %v5484 = vld [vmem:[%s4] sm:$0xf]
      %v5485 = vld [vmem:[%s4 + $0x4] sm:$0xf]
      %v5486 = vld [vmem:[%s4 + $0x8] sm:$0xf]
      %v5487 = vld [vmem:[%s4 + $0xc] sm:$0xf]
      %v5488 = vld [vmem:[%s4 + $0x10] sm:$0xf]
      %v5489 = vld [vmem:[%s4 + $0x14] sm:$0xf]
      %v5490 = vld [vmem:[%s4 + $0x18] sm:$0xf]
      %v5491 = vld [vmem:[%s4 + $0x1c] sm:$0xf]
      %v5492 = vld [vmem:[%s4 + $0x20] sm:$0xf]
      %v5493 = vld [vmem:[%s4 + $0x24] sm:$0xf]
      %v5494 = vld [vmem:[%s4 + $0x28] sm:$0xf]
      %v5495 = vld [vmem:[%s4 + $0x2c] sm:$0xf]
      %v5496 = vld [vmem:[%s4 + $0x30] sm:$0xf]
      %v5497 = vld [vmem:[%s4 + $0x34] sm:$0xf]
      %v5498 = vld [vmem:[%s4 + $0x38] sm:$0xf]
      %v5499 = vld [vmem:[%s4 + $0x3c] sm:$0xf]
      %v5500 = vld [vmem:[%s4 + $0x40] sm:$0xf]
      %v5501 = vld [vmem:[%s4 + $0x44] sm:$0xf]
      %v5502 = vld [vmem:[%s4 + $0x48] sm:$0xf]
      %v5503 = vld [vmem:[%s4 + $0x4c] sm:$0xf]
      %v5504 = vld [vmem:[%s4 + $0x50] sm:$0xf]
      %v5505 = vld [vmem:[%s4 + $0x54] sm:$0xf]
      %v5506 = vld [vmem:[%s4 + $0x58] sm:$0xf]
      %v5507 = vld [vmem:[%s4 + $0x5c] sm:$0xf]
      %v5508 = vld [vmem:[%s4 + $0x60] sm:$0xf]
      %v5509 = vld [vmem:[%s4 + $0x64] sm:$0xf]
      %v5510 = vld [vmem:[%s4 + $0x68] sm:$0xf]
      %v5511 = vld [vmem:[%s4 + $0x6c] sm:$0xf]
      %v5512 = vld [vmem:[%s4 + $0x70] sm:$0xf]
      %v5513 = vld [vmem:[%s4 + $0x74] sm:$0xf]
      %v5514 = vld [vmem:[%s4 + $0x78] sm:$0xf]
      %v5515 = vld [vmem:[%s4 + $0x7c] sm:$0xf]
      %v5516 = vld [vmem:[%s4 + $0x80] sm:$0xf]
      %v5517 = vld [vmem:[%s4 + $0x84] sm:$0xf]
      %v5518 = vld [vmem:[%s4 + $0x88] sm:$0xf]
      %v5519 = vld [vmem:[%s4 + $0x8c] sm:$0xf]
      %v5520 = vld [vmem:[%s4 + $0x90] sm:$0xf]
      %v5521 = vld [vmem:[%s4 + $0x94] sm:$0xf]
      %v5522 = vld [vmem:[%s4 + $0x98] sm:$0xf]
      %v5523 = vld [vmem:[%s4 + $0x9c] sm:$0xf]
      %v5524 = vld [vmem:[%s4 + $0xa0] sm:$0xf]
      %v5525 = vld [vmem:[%s4 + $0xa4] sm:$0xf]
      %v5526 = vld [vmem:[%s4 + $0xa8] sm:$0xf]
      %v5527 = vld [vmem:[%s4 + $0xac] sm:$0xf]
      %v5528 = vld [vmem:[%s4 + $0xb0] sm:$0xf]
      %v5529 = vld [vmem:[%s4 + $0xb4] sm:$0xf]
      %v5530 = vld [vmem:[%s4 + $0xb8] sm:$0xf]
      %v5531 = vld [vmem:[%s4 + $0xbc] sm:$0xf]
      %v5532 = vld [vmem:[%s4 + $0xc0] sm:$0xf]
      %v5533 = vld [vmem:[%s4 + $0xc4] sm:$0xf]
      %v5534 = vld [vmem:[%s4 + $0xc8] sm:$0xf]
      %v5535 = vld [vmem:[%s4 + $0xcc] sm:$0xf]
      %v5536 = vld [vmem:[%s4 + $0xd0] sm:$0xf]
      %v5537 = vld [vmem:[%s4 + $0xd4] sm:$0xf]
      %v5538 = vld [vmem:[%s4 + $0xd8] sm:$0xf]
      %v5539 = vld [vmem:[%s4 + $0xdc] sm:$0xf]
      %v5540 = vld [vmem:[%s4 + $0xe0] sm:$0xf]
      %v5541 = vld [vmem:[%s4 + $0xe4] sm:$0xf]
      %v5542 = vld [vmem:[%s4 + $0xe8] sm:$0xf]
      %v5543 = vld [vmem:[%s4 + $0xec] sm:$0xf]
      %v5544 = vld [vmem:[%s4 + $0xf0] sm:$0xf]
      %v5545 = vld [vmem:[%s4 + $0xf4] sm:$0xf]
      %v5546 = vld [vmem:[%s4 + $0xf8] sm:$0xf]
      %v5547 = vld [vmem:[%s4 + $0xfc] sm:$0xf]
      %v5548 = vld [vmem:[%s4 + $0x100] sm:$0xf]
      %v5549 = vld [vmem:[%s4 + $0x104] sm:$0xf]
      %v5550 = vld [vmem:[%s4 + $0x108] sm:$0xf]
      %v5551 = vld [vmem:[%s4 + $0x10c] sm:$0xf]
      %v5552 = vld [vmem:[%s4 + $0x110] sm:$0xf]
      %v5553 = vld [vmem:[%s4 + $0x114] sm:$0xf]
      %v5554 = vld [vmem:[%s4 + $0x118] sm:$0xf]
      %v5555 = vld [vmem:[%s4 + $0x11c] sm:$0xf]
      %v5556 = vld [vmem:[%s4 + $0x120] sm:$0xf]
      %v5557 = vld [vmem:[%s4 + $0x124] sm:$0xf]
      %v5558 = vld [vmem:[%s4 + $0x128] sm:$0xf]
      %v5559 = vld [vmem:[%s4 + $0x12c] sm:$0xf]
      %v5560 = vld [vmem:[%s4 + $0x130] sm:$0xf]
      %v5561 = vld [vmem:[%s4 + $0x134] sm:$0xf]
      %v5562 = vld [vmem:[%s4 + $0x138] sm:$0xf]
      %v5563 = vld [vmem:[%s4 + $0x13c] sm:$0xf]
      %v5564 = vld [vmem:[%s4 + $0x140] sm:$0xf]
      %v5565 = vld [vmem:[%s4 + $0x144] sm:$0xf]
      %v5566 = vld [vmem:[%s4 + $0x148] sm:$0xf]
      %v5567 = vld [vmem:[%s4 + $0x14c] sm:$0xf]
      %v5568 = vld [vmem:[%s4 + $0x150] sm:$0xf]
      %v5569 = vld [vmem:[%s4 + $0x154] sm:$0xf]
      %v5570 = vld [vmem:[%s4 + $0x158] sm:$0xf]
      %v5571 = vld [vmem:[%s4 + $0x15c] sm:$0xf]
      %v5572 = vld [vmem:[%s4 + $0x160] sm:$0xf]
      %v5573 = vld [vmem:[%s4 + $0x164] sm:$0xf]
      %v5574 = vld [vmem:[%s4 + $0x168] sm:$0xf]
      %v5575 = vld [vmem:[%s4 + $0x16c] sm:$0xf]
      %v5576 = vld [vmem:[%s4 + $0x170] sm:$0xf]
      %v5577 = vld [vmem:[%s4 + $0x174] sm:$0xf]
      %v5578 = vld [vmem:[%s4 + $0x178] sm:$0xf]
      %v5579 = vld [vmem:[%s4 + $0x17c] sm:$0xf]
      %v5580 = vld [vmem:[%s4 + $0x180] sm:$0xf]
      %v5581 = vld [vmem:[%s4 + $0x184] sm:$0xf]
      %v5582 = vld [vmem:[%s4 + $0x188] sm:$0xf]
      %v5583 = vld [vmem:[%s4 + $0x18c] sm:$0xf]
      %v5584 = vld [vmem:[%s4 + $0x190] sm:$0xf]
      %v5585 = vld [vmem:[%s4 + $0x194] sm:$0xf]
      %v5586 = vld [vmem:[%s4 + $0x198] sm:$0xf]
      %v5587 = vld [vmem:[%s4 + $0x19c] sm:$0xf]
      %v5588 = vld [vmem:[%s4 + $0x1a0] sm:$0xf]
      %v5589 = vld [vmem:[%s4 + $0x1a4] sm:$0xf]
      %v5590 = vld [vmem:[%s4 + $0x1a8] sm:$0xf]
      %v5591 = vld [vmem:[%s4 + $0x1ac] sm:$0xf]
      %v5592 = vld [vmem:[%s4 + $0x1b0] sm:$0xf]
      %v5593 = vld [vmem:[%s4 + $0x1b4] sm:$0xf]
      %v5594 = vld [vmem:[%s4 + $0x1b8] sm:$0xf]
      %v5595 = vld [vmem:[%s4 + $0x1bc] sm:$0xf]
      %v5596 = vld [vmem:[%s4 + $0x1c0] sm:$0xf]
      %v5597 = vld [vmem:[%s4 + $0x1c4] sm:$0xf]
      %v5598 = vld [vmem:[%s4 + $0x1c8] sm:$0xf]
      %v5599 = vld [vmem:[%s4 + $0x1cc] sm:$0xf]
      %v5600 = vld [vmem:[%s4 + $0x1d0] sm:$0xf]
      %v5601 = vld [vmem:[%s4 + $0x1d4] sm:$0xf]
      %v5602 = vld [vmem:[%s4 + $0x1d8] sm:$0xf]
      %v5603 = vld [vmem:[%s4 + $0x1dc] sm:$0xf]
      %v5604 = vld [vmem:[%s4 + $0x1e0] sm:$0xf]
      %v5605 = vld [vmem:[%s4 + $0x1e4] sm:$0xf]
      %v5606 = vld [vmem:[%s4 + $0x1e8] sm:$0xf]
      %v5607 = vld [vmem:[%s4 + $0x1ec] sm:$0xf]
      %v5608 = vld [vmem:[%s4 + $0x1f0] sm:$0xf]
      %v5609 = vld [vmem:[%s4 + $0x1f4] sm:$0xf]
      %v5610 = vld [vmem:[%s4 + $0x1f8] sm:$0xf]
      %v5611 = vld [vmem:[%s4 + $0x1fc] sm:$0xf]
      %v5612 = vld [vmem:[%s4 + $0x200] sm:$0xf]
      %v5613 = vld [vmem:[%s4 + $0x204] sm:$0xf]
      %v5614 = vld [vmem:[%s4 + $0x208] sm:$0xf]
      %v5615 = vld [vmem:[%s4 + $0x20c] sm:$0xf]
      %v5616 = vld [vmem:[%s4 + $0x210] sm:$0xf]
      %v5617 = vld [vmem:[%s4 + $0x214] sm:$0xf]
      %v5618 = vld [vmem:[%s4 + $0x218] sm:$0xf]
      %v5619 = vld [vmem:[%s4 + $0x21c] sm:$0xf]
      %v5620 = vld [vmem:[%s4 + $0x220] sm:$0xf]
      %v5621 = vld [vmem:[%s4 + $0x224] sm:$0xf]
      %v5622 = vld [vmem:[%s4 + $0x228] sm:$0xf]
      %v5623 = vld [vmem:[%s4 + $0x22c] sm:$0xf]
      %v5624 = vld [vmem:[%s4 + $0x230] sm:$0xf]
      %v5625 = vld [vmem:[%s4 + $0x234] sm:$0xf]
      %v5626 = vld [vmem:[%s4 + $0x238] sm:$0xf]
      %v5627 = vld [vmem:[%s4 + $0x23c] sm:$0xf]
      %v5628 = vld [vmem:[%s5] sm:$0x1]
      %v5630 = vlaneseq
      %v5631 = vshrl.u32 %v5630, 7
      %v5632 = vsub.s32 0, %v5631
      %v5633 = vrot.slane %v5628, %v5632
      %v5779 = vunpack.c.l.b16 %v5484
      %v5780 = vunpack.c.l.b16 %v5485
      %v5781 = vunpack.c.l.b16 %v5486
      %v5782 = vunpack.c.l.b16 %v5487
      %v5783 = vunpack.c.l.b16 %v5488
      %v5784 = vunpack.c.l.b16 %v5489
      %v5785 = vunpack.c.l.b16 %v5490
      %v5786 = vunpack.c.l.b16 %v5491
      %v5787 = vunpack.c.l.b16 %v5492
      %v5788 = vunpack.c.l.b16 %v5493
      %v5789 = vunpack.c.l.b16 %v5494
      %v5790 = vunpack.c.l.b16 %v5495
      %v5791 = vunpack.c.l.b16 %v5496
      %v5792 = vunpack.c.l.b16 %v5497
      %v5793 = vunpack.c.l.b16 %v5498
      %v5794 = vunpack.c.l.b16 %v5499
      %v5795 = vunpack.c.l.b16 %v5500
      %v5796 = vunpack.c.l.b16 %v5501
      %v5797 = vunpack.c.l.b16 %v5502
      %v5798 = vunpack.c.l.b16 %v5503
      %v5799 = vunpack.c.l.b16 %v5504
      %v5800 = vunpack.c.l.b16 %v5505
      %v5801 = vunpack.c.l.b16 %v5506
      %v5802 = vunpack.c.l.b16 %v5507
      %v5803 = vunpack.c.l.b16 %v5508
      %v5804 = vunpack.c.l.b16 %v5509
      %v5805 = vunpack.c.l.b16 %v5510
      %v5806 = vunpack.c.l.b16 %v5511
      %v5807 = vunpack.c.l.b16 %v5512
      %v5808 = vunpack.c.l.b16 %v5513
      %v5809 = vunpack.c.l.b16 %v5514
      %v5810 = vunpack.c.l.b16 %v5515
      %v5811 = vunpack.c.l.b16 %v5516
      %v5812 = vunpack.c.l.b16 %v5517
      %v5813 = vunpack.c.l.b16 %v5518
      %v5814 = vunpack.c.l.b16 %v5519
      %v5815 = vunpack.c.l.b16 %v5520
      %v5816 = vunpack.c.l.b16 %v5521
      %v5817 = vunpack.c.l.b16 %v5522
      %v5818 = vunpack.c.l.b16 %v5523
      %v5819 = vunpack.c.l.b16 %v5524
      %v5820 = vunpack.c.l.b16 %v5525
      %v5821 = vunpack.c.l.b16 %v5526
      %v5822 = vunpack.c.l.b16 %v5527
      %v5823 = vunpack.c.l.b16 %v5528
      %v5824 = vunpack.c.l.b16 %v5529
      %v5825 = vunpack.c.l.b16 %v5530
      %v5826 = vunpack.c.l.b16 %v5531
      %v5827 = vunpack.c.l.b16 %v5532
      %v5828 = vunpack.c.l.b16 %v5533
      %v5829 = vunpack.c.l.b16 %v5534
      %v5830 = vunpack.c.l.b16 %v5535
      %v5831 = vunpack.c.l.b16 %v5536
      %v5832 = vunpack.c.l.b16 %v5537
      %v5833 = vunpack.c.l.b16 %v5538
      %v5834 = vunpack.c.l.b16 %v5539
      %v5835 = vunpack.c.l.b16 %v5540
      %v5836 = vunpack.c.l.b16 %v5541
      %v5837 = vunpack.c.l.b16 %v5542
      %v5838 = vunpack.c.l.b16 %v5543
      %v5839 = vunpack.c.l.b16 %v5544
      %v5840 = vunpack.c.l.b16 %v5545
      %v5841 = vunpack.c.l.b16 %v5546
      %v5842 = vunpack.c.l.b16 %v5547
      %v5843 = vunpack.c.l.b16 %v5548
      %v5844 = vunpack.c.l.b16 %v5549
      %v5845 = vunpack.c.l.b16 %v5550
      %v5846 = vunpack.c.l.b16 %v5551
      %v5847 = vunpack.c.l.b16 %v5552
      %v5848 = vunpack.c.l.b16 %v5553
      %v5849 = vunpack.c.l.b16 %v5554
      %v5850 = vunpack.c.l.b16 %v5555
      %v5851 = vunpack.c.l.b16 %v5556
      %v5852 = vunpack.c.l.b16 %v5557
      %v5853 = vunpack.c.l.b16 %v5558
      %v5854 = vunpack.c.l.b16 %v5559
      %v5855 = vunpack.c.l.b16 %v5560
      %v5856 = vunpack.c.l.b16 %v5561
      %v5857 = vunpack.c.l.b16 %v5562
      %v5858 = vunpack.c.l.b16 %v5563
      %v5859 = vunpack.c.l.b16 %v5564
      %v5860 = vunpack.c.l.b16 %v5565
      %v5861 = vunpack.c.l.b16 %v5566
      %v5862 = vunpack.c.l.b16 %v5567
      %v5863 = vunpack.c.l.b16 %v5568
      %v5864 = vunpack.c.l.b16 %v5569
      %v5865 = vunpack.c.l.b16 %v5570
      %v5866 = vunpack.c.l.b16 %v5571
      %v5867 = vunpack.c.l.b16 %v5572
      %v5868 = vunpack.c.l.b16 %v5573
      %v5869 = vunpack.c.l.b16 %v5574
      %v5870 = vunpack.c.l.b16 %v5575
      %v5871 = vunpack.c.l.b16 %v5576
      %v5872 = vunpack.c.l.b16 %v5577
      %v5873 = vunpack.c.l.b16 %v5578
      %v5874 = vunpack.c.l.b16 %v5579
      %v5875 = vunpack.c.l.b16 %v5580
      %v5876 = vunpack.c.l.b16 %v5581
      %v5877 = vunpack.c.l.b16 %v5582
      %v5878 = vunpack.c.l.b16 %v5583
      %v5879 = vunpack.c.l.b16 %v5584
      %v5880 = vunpack.c.l.b16 %v5585
      %v5881 = vunpack.c.l.b16 %v5586
      %v5882 = vunpack.c.l.b16 %v5587
      %v5883 = vunpack.c.l.b16 %v5588
      %v5884 = vunpack.c.l.b16 %v5589
      %v5885 = vunpack.c.l.b16 %v5590
      %v5886 = vunpack.c.l.b16 %v5591
      %v5887 = vunpack.c.l.b16 %v5592
      %v5888 = vunpack.c.l.b16 %v5593
      %v5889 = vunpack.c.l.b16 %v5594
      %v5890 = vunpack.c.l.b16 %v5595
      %v5891 = vunpack.c.l.b16 %v5596
      %v5892 = vunpack.c.l.b16 %v5597
      %v5893 = vunpack.c.l.b16 %v5598
      %v5894 = vunpack.c.l.b16 %v5599
      %v5895 = vunpack.c.l.b16 %v5600
      %v5896 = vunpack.c.l.b16 %v5601
      %v5897 = vunpack.c.l.b16 %v5602
      %v5898 = vunpack.c.l.b16 %v5603
      %v5899 = vunpack.c.l.b16 %v5604
      %v5900 = vunpack.c.l.b16 %v5605
      %v5901 = vunpack.c.l.b16 %v5606
      %v5902 = vunpack.c.l.b16 %v5607
      %v5903 = vunpack.c.l.b16 %v5608
      %v5904 = vunpack.c.l.b16 %v5609
      %v5905 = vunpack.c.l.b16 %v5610
      %v5906 = vunpack.c.l.b16 %v5611
      %v5907 = vunpack.c.l.b16 %v5612
      %v5908 = vunpack.c.l.b16 %v5613
      %v5909 = vunpack.c.l.b16 %v5614
      %v5910 = vunpack.c.l.b16 %v5615
      %v5911 = vunpack.c.l.b16 %v5616
      %v5912 = vunpack.c.l.b16 %v5617
      %v5913 = vunpack.c.l.b16 %v5618
      %v5914 = vunpack.c.l.b16 %v5619
      %v5915 = vunpack.c.l.b16 %v5620
      %v5916 = vunpack.c.l.b16 %v5621
      %v5917 = vunpack.c.l.b16 %v5622
      %v5918 = vunpack.c.l.b16 %v5623
      %v5919 = vunpack.c.l.b16 %v5624
      %v5920 = vunpack.c.l.b16 %v5625
      %v5921 = vunpack.c.l.b16 %v5626
      %v5922 = vunpack.c.l.b16 %v5627
      %v5923 = vpack.c.b16 %v5780, %v5779
      %v5924 = vpack.c.b16 %v5782, %v5781
      %v5925 = vpack.c.b16 %v5784, %v5783
      %v5926 = vpack.c.b16 %v5786, %v5785
      %v5927 = vpack.c.b16 %v5788, %v5787
      %v5928 = vpack.c.b16 %v5790, %v5789
      %v5929 = vpack.c.b16 %v5792, %v5791
      %v5930 = vpack.c.b16 %v5794, %v5793
      %v5931 = vpack.c.b16 %v5796, %v5795
      %v5932 = vpack.c.b16 %v5798, %v5797
      %v5933 = vpack.c.b16 %v5800, %v5799
      %v5934 = vpack.c.b16 %v5802, %v5801
      %v5935 = vpack.c.b16 %v5804, %v5803
      %v5936 = vpack.c.b16 %v5806, %v5805
      %v5937 = vpack.c.b16 %v5808, %v5807
      %v5938 = vpack.c.b16 %v5810, %v5809
      %v5939 = vpack.c.b16 %v5812, %v5811
      %v5940 = vpack.c.b16 %v5814, %v5813
      %v5941 = vpack.c.b16 %v5816, %v5815
      %v5942 = vpack.c.b16 %v5818, %v5817
      %v5943 = vpack.c.b16 %v5820, %v5819
      %v5944 = vpack.c.b16 %v5822, %v5821
      %v5945 = vpack.c.b16 %v5824, %v5823
      %v5946 = vpack.c.b16 %v5826, %v5825
      %v5947 = vpack.c.b16 %v5828, %v5827
      %v5948 = vpack.c.b16 %v5830, %v5829
      %v5949 = vpack.c.b16 %v5832, %v5831
      %v5950 = vpack.c.b16 %v5834, %v5833
      %v5951 = vpack.c.b16 %v5836, %v5835
      %v5952 = vpack.c.b16 %v5838, %v5837
      %v5953 = vpack.c.b16 %v5840, %v5839
      %v5954 = vpack.c.b16 %v5842, %v5841
      %v5955 = vpack.c.b16 %v5844, %v5843
      %v5956 = vpack.c.b16 %v5846, %v5845
      %v5957 = vpack.c.b16 %v5848, %v5847
      %v5958 = vpack.c.b16 %v5850, %v5849
      %v5959 = vpack.c.b16 %v5852, %v5851
      %v5960 = vpack.c.b16 %v5854, %v5853
      %v5961 = vpack.c.b16 %v5856, %v5855
      %v5962 = vpack.c.b16 %v5858, %v5857
      %v5963 = vpack.c.b16 %v5860, %v5859
      %v5964 = vpack.c.b16 %v5862, %v5861
      %v5965 = vpack.c.b16 %v5864, %v5863
      %v5966 = vpack.c.b16 %v5866, %v5865
      %v5967 = vpack.c.b16 %v5868, %v5867
      %v5968 = vpack.c.b16 %v5870, %v5869
      %v5969 = vpack.c.b16 %v5872, %v5871
      %v5970 = vpack.c.b16 %v5874, %v5873
      %v5971 = vpack.c.b16 %v5876, %v5875
      %v5972 = vpack.c.b16 %v5878, %v5877
      %v5973 = vpack.c.b16 %v5880, %v5879
      %v5974 = vpack.c.b16 %v5882, %v5881
      %v5975 = vpack.c.b16 %v5884, %v5883
      %v5976 = vpack.c.b16 %v5886, %v5885
      %v5977 = vpack.c.b16 %v5888, %v5887
      %v5978 = vpack.c.b16 %v5890, %v5889
      %v5979 = vpack.c.b16 %v5892, %v5891
      %v5980 = vpack.c.b16 %v5894, %v5893
      %v5981 = vpack.c.b16 %v5896, %v5895
      %v5982 = vpack.c.b16 %v5898, %v5897
      %v5983 = vpack.c.b16 %v5900, %v5899
      %v5984 = vpack.c.b16 %v5902, %v5901
      %v5985 = vpack.c.b16 %v5904, %v5903
      %v5986 = vpack.c.b16 %v5906, %v5905
      %v5987 = vpack.c.b16 %v5908, %v5907
      %v5988 = vpack.c.b16 %v5910, %v5909
      %v5989 = vpack.c.b16 %v5912, %v5911
      %v5990 = vpack.c.b16 %v5914, %v5913
      %v5991 = vpack.c.b16 %v5916, %v5915
      %v5992 = vpack.c.b16 %v5918, %v5917
      %v5993 = vpack.c.b16 %v5920, %v5919
      %v5994 = vpack.c.b16 %v5922, %v5921
      %6067 = vmatprep.subr.bf16.mxu0 0
      %6068 = vmatpush1.bf16.msra.mxu0 %v5930
      %6069 = vmatprep.subr.bf16.mxu0 0
      %6070 = vmatpush1.bf16.msra.mxu0 %v5929
      %6071 = vmatprep.subr.bf16.mxu0 0
      %6072 = vmatpush1.bf16.msra.mxu0 %v5928
      %6073 = vmatprep.subr.bf16.mxu0 0
      %6074 = vmatpush1.bf16.msra.mxu0 %v5927
      %6075 = vmatprep.subr.bf16.mxu0 0
      %6076 = vmatpush1.bf16.msra.mxu0 %v5926
      %6077 = vmatprep.subr.bf16.mxu0 0
      %6078 = vmatpush1.bf16.msra.mxu0 %v5925
      %6079 = vmatprep.subr.bf16.mxu0 0
      %6080 = vmatpush1.bf16.msra.mxu0 %v5924
      %6081 = vmatprep.subr.bf16.mxu0 0
      %6082 = vmatpush1.bf16.msra.mxu0 %v5923
      %6083 = vmatprep.subr.bf16.mxu0 0
      %6084 = vmatpush2.bf16.msra.mxu0 %v5938
      %6085 = vmatprep.subr.bf16.mxu0 0
      %6086 = vmatpush2.bf16.msra.mxu0 %v5937
      %6087 = vmatprep.subr.bf16.mxu0 0
      %6088 = vmatpush2.bf16.msra.mxu0 %v5936
      %6089 = vmatprep.subr.bf16.mxu0 0
      %6090 = vmatpush2.bf16.msra.mxu0 %v5935
      %6091 = vmatprep.subr.bf16.mxu0 0
      %6092 = vmatpush2.bf16.msra.mxu0 %v5934
      %6093 = vmatprep.subr.bf16.mxu0 0
      %6094 = vmatpush2.bf16.msra.mxu0 %v5933
      %6095 = vmatprep.subr.bf16.mxu0 0
      %6096 = vmatpush2.bf16.msra.mxu0 %v5932
      %6097 = vmatprep.subr.bf16.mxu0 0
      %6098 = vmatpush2.bf16.msra.mxu0 %v5931
      %6099 = vmatprep.mubr.bf16.mxu0 %v5152
      %6100 = vmatmul.mubr.bf16.gmra.mxu0 %v5104
      %v6101 = vpop.f32.mrf.mxu0
      %v6102 = vadd.f32 %v5633, %v6101
      %v6103 = vpop.f32.mrf.mxu0
      %v6104 = vpop.f32.mrf.mxu0
      %v6105 = vadd.f32 %v5633, %v6104
      %v6106 = vpop.f32.mrf.mxu0
      %6107 = vmatprep.mubr.bf16.mxu0 %v5164
      %6108 = vmatmul.mubr.bf16.gmra.mxu0 %v5106
      %v6109 = vpop.f32.mrf.mxu0
      %v6110 = vadd.f32 %v5633, %v6109
      %v6111 = vpop.f32.mrf.mxu0
      %v6112 = vpop.f32.mrf.mxu0
      %v6113 = vadd.f32 %v5633, %v6112
      %v6114 = vpop.f32.mrf.mxu0
      %6115 = vmatprep.mubr.bf16.mxu0 %v5176
      %6116 = vmatmul.mubr.bf16.gmra.mxu0 %v5108
      %v6117 = vpop.f32.mrf.mxu0
      %v6118 = vadd.f32 %v5633, %v6117
      %v6119 = vpop.f32.mrf.mxu0
      %v6120 = vpop.f32.mrf.mxu0
      %v6121 = vadd.f32 %v5633, %v6120
      %v6122 = vpop.f32.mrf.mxu0
      %6123 = vmatprep.mubr.bf16.mxu0 %v5188
      %6124 = vmatmul.mubr.bf16.gmra.mxu0 %v5110
      %v6125 = vpop.f32.mrf.mxu0
      %v6126 = vadd.f32 %v5633, %v6125
      %v6127 = vpop.f32.mrf.mxu0
      %v6128 = vpop.f32.mrf.mxu0
      %v6129 = vadd.f32 %v5633, %v6128
      %v6130 = vpop.f32.mrf.mxu0
      %6131 = vmatprep.mubr.bf16.mxu0 %v5200
      %6132 = vmatmul.mubr.bf16.gmra.mxu0 %v5112
      %v6133 = vpop.f32.mrf.mxu0
      %v6134 = vadd.f32 %v5633, %v6133
      %v6135 = vpop.f32.mrf.mxu0
      %v6136 = vpop.f32.mrf.mxu0
      %v6137 = vadd.f32 %v5633, %v6136
      %v6138 = vpop.f32.mrf.mxu0
      %6139 = vmatprep.mubr.bf16.mxu0 %v5212
      %6140 = vmatmul.mubr.bf16.gmra.mxu0 %v5114
      %v6141 = vpop.f32.mrf.mxu0
      %v6142 = vadd.f32 %v5633, %v6141
      %v6143 = vpop.f32.mrf.mxu0
      %v6144 = vpop.f32.mrf.mxu0
      %v6145 = vadd.f32 %v5633, %v6144
      %v6146 = vpop.f32.mrf.mxu0
      %6147 = vmatprep.mubr.bf16.mxu0 %v5224
      %6148 = vmatmul.mubr.bf16.gmra.mxu0 %v5116
      %v6149 = vpop.f32.mrf.mxu0
      %v6150 = vadd.f32 %v5633, %v6149
      %v6151 = vpop.f32.mrf.mxu0
      %v6152 = vpop.f32.mrf.mxu0
      %v6153 = vadd.f32 %v5633, %v6152
      %v6154 = vpop.f32.mrf.mxu0
      %6155 = vmatprep.mubr.bf16.mxu0 %v5236
      %6156 = vmatmul.mubr.bf16.gmra.mxu0 %v5118
      %v6157 = vpop.f32.mrf.mxu0
      %v6158 = vadd.f32 %v5633, %v6157
      %v6159 = vpop.f32.mrf.mxu0
      %v6160 = vpop.f32.mrf.mxu0
      %v6161 = vadd.f32 %v5633, %v6160
      %v6162 = vpop.f32.mrf.mxu0
      %6163 = vmatprep.mubr.bf16.mxu0 %v5248
      %6164 = vmatmul.mubr.bf16.gmra.mxu0 %v5120
      %v6165 = vpop.f32.mrf.mxu0
      %v6166 = vadd.f32 %v5633, %v6165
      %v6167 = vpop.f32.mrf.mxu0
      %v6168 = vpop.f32.mrf.mxu0
      %v6169 = vadd.f32 %v5633, %v6168
      %v6170 = vpop.f32.mrf.mxu0
      %6171 = vmatprep.mubr.bf16.mxu0 %v5260
      %6172 = vmatmul.mubr.bf16.gmra.mxu0 %v5122
      %v6173 = vpop.f32.mrf.mxu0
      %v6174 = vadd.f32 %v5633, %v6173
      %v6175 = vpop.f32.mrf.mxu0
      %v6176 = vpop.f32.mrf.mxu0
      %v6177 = vadd.f32 %v5633, %v6176
      %v6178 = vpop.f32.mrf.mxu0
      %6179 = vmatprep.mubr.bf16.mxu0 %v5272
      %6180 = vmatmul.mubr.bf16.gmra.mxu0 %v5124
      %v6181 = vpop.f32.mrf.mxu0
      %v6182 = vadd.f32 %v5633, %v6181
      %v6183 = vpop.f32.mrf.mxu0
      %v6184 = vpop.f32.mrf.mxu0
      %v6185 = vadd.f32 %v5633, %v6184
      %v6186 = vpop.f32.mrf.mxu0
      %6187 = vmatprep.mubr.bf16.mxu0 %v5284
      %6188 = vmatmul.mubr.bf16.gmra.mxu0 %v5126
      %v6189 = vpop.f32.mrf.mxu0
      %v6190 = vadd.f32 %v5633, %v6189
      %v6191 = vpop.f32.mrf.mxu0
      %v6192 = vpop.f32.mrf.mxu0
      %v6193 = vadd.f32 %v5633, %v6192
      %v6194 = vpop.f32.mrf.mxu0
      %6195 = vmatprep.mubr.bf16.mxu0 %v5296
      %6196 = vmatmul.mubr.bf16.gmra.mxu0 %v5128
      %v6197 = vpop.f32.mrf.mxu0
      %v6198 = vadd.f32 %v5633, %v6197
      %v6199 = vpop.f32.mrf.mxu0
      %v6200 = vpop.f32.mrf.mxu0
      %v6201 = vadd.f32 %v5633, %v6200
      %v6202 = vpop.f32.mrf.mxu0
      %6203 = vmatprep.mubr.bf16.mxu0 %v5308
      %6204 = vmatmul.mubr.bf16.gmra.mxu0 %v5130
      %v6205 = vpop.f32.mrf.mxu0
      %v6206 = vadd.f32 %v5633, %v6205
      %v6207 = vpop.f32.mrf.mxu0
      %v6208 = vpop.f32.mrf.mxu0
      %v6209 = vadd.f32 %v5633, %v6208
      %v6210 = vpop.f32.mrf.mxu0
      %6211 = vmatprep.mubr.bf16.mxu0 %v5320
      %6212 = vmatmul.mubr.bf16.gmra.mxu0 %v5132
      %v6213 = vpop.f32.mrf.mxu0
      %v6214 = vadd.f32 %v5633, %v6213
      %v6215 = vpop.f32.mrf.mxu0
      %v6216 = vpop.f32.mrf.mxu0
      %v6217 = vadd.f32 %v5633, %v6216
      %v6218 = vpop.f32.mrf.mxu0
      %6219 = vmatprep.mubr.bf16.mxu0 %v5332
      %6220 = vmatmul.mubr.bf16.gmra.mxu0 %v5134
      %v6221 = vpop.f32.mrf.mxu0
      %v6222 = vadd.f32 %v5633, %v6221
      %v6223 = vpop.f32.mrf.mxu0
      %v6224 = vpop.f32.mrf.mxu0
      %v6225 = vadd.f32 %v5633, %v6224
      %v6226 = vpop.f32.mrf.mxu0
      %6227 = vdwg.mxu0
      %6228 = vmatprep.subr.bf16.mxu0 0
      %6229 = vmatpush1.bf16.msra.mxu0 %v5946
      %6230 = vmatprep.subr.bf16.mxu0 0
      %6231 = vmatpush1.bf16.msra.mxu0 %v5945
      %6232 = vmatprep.subr.bf16.mxu0 0
      %6233 = vmatpush1.bf16.msra.mxu0 %v5944
      %6234 = vmatprep.subr.bf16.mxu0 0
      %6235 = vmatpush1.bf16.msra.mxu0 %v5943
      %6236 = vmatprep.subr.bf16.mxu0 0
      %6237 = vmatpush1.bf16.msra.mxu0 %v5942
      %6238 = vmatprep.subr.bf16.mxu0 0
      %6239 = vmatpush1.bf16.msra.mxu0 %v5941
      %6240 = vmatprep.subr.bf16.mxu0 0
      %6241 = vmatpush1.bf16.msra.mxu0 %v5940
      %6242 = vmatprep.subr.bf16.mxu0 0
      %6243 = vmatpush1.bf16.msra.mxu0 %v5939
      %6244 = vmatprep.subr.bf16.mxu0 0
      %6245 = vmatpush2.bf16.msra.mxu0 %v5954
      %6246 = vmatprep.subr.bf16.mxu0 0
      %6247 = vmatpush2.bf16.msra.mxu0 %v5953
      %6248 = vmatprep.subr.bf16.mxu0 0
      %6249 = vmatpush2.bf16.msra.mxu0 %v5952
      %6250 = vmatprep.subr.bf16.mxu0 0
      %6251 = vmatpush2.bf16.msra.mxu0 %v5951
      %6252 = vmatprep.subr.bf16.mxu0 0
      %6253 = vmatpush2.bf16.msra.mxu0 %v5950
      %6254 = vmatprep.subr.bf16.mxu0 0
      %6255 = vmatpush2.bf16.msra.mxu0 %v5949
      %6256 = vmatprep.subr.bf16.mxu0 0
      %6257 = vmatpush2.bf16.msra.mxu0 %v5948
      %6258 = vmatprep.subr.bf16.mxu0 0
      %6259 = vmatpush2.bf16.msra.mxu0 %v5947
      %6260 = vmatprep.mubr.bf16.mxu0 %v5106
      %6261 = vmatmul.mubr.bf16.gmra.mxu0 %v5384
      %v6262 = vpop.f32.mrf.mxu0
      %v6263 = vadd.f32 %v6102, %v6262
      %v6264 = vpop.f32.mrf.mxu0
      %v6265 = vpop.f32.mrf.mxu0
      %v6266 = vadd.f32 %v6105, %v6265
      %v6267 = vpop.f32.mrf.mxu0
      %6268 = vmatprep.mubr.bf16.mxu0 %v5108
      %6269 = vmatmul.mubr.bf16.gmra.mxu0 %v5387
      %v6270 = vpop.f32.mrf.mxu0
      %v6271 = vadd.f32 %v6110, %v6270
      %v6272 = vpop.f32.mrf.mxu0
      %v6273 = vpop.f32.mrf.mxu0
      %v6274 = vadd.f32 %v6113, %v6273
      %v6275 = vpop.f32.mrf.mxu0
      %6276 = vmatprep.mubr.bf16.mxu0 %v5110
      %6277 = vmatmul.mubr.bf16.gmra.mxu0 %v5390
      %v6278 = vpop.f32.mrf.mxu0
      %v6279 = vadd.f32 %v6118, %v6278
      %v6280 = vpop.f32.mrf.mxu0
      %v6281 = vpop.f32.mrf.mxu0
      %v6282 = vadd.f32 %v6121, %v6281
      %v6283 = vpop.f32.mrf.mxu0
      %6284 = vmatprep.mubr.bf16.mxu0 %v5112
      %6285 = vmatmul.mubr.bf16.gmra.mxu0 %v5393
      %v6286 = vpop.f32.mrf.mxu0
      %v6287 = vadd.f32 %v6126, %v6286
      %v6288 = vpop.f32.mrf.mxu0
      %v6289 = vpop.f32.mrf.mxu0
      %v6290 = vadd.f32 %v6129, %v6289
      %v6291 = vpop.f32.mrf.mxu0
      %6292 = vmatprep.mubr.bf16.mxu0 %v5114
      %6293 = vmatmul.mubr.bf16.gmra.mxu0 %v5396
      %v6294 = vpop.f32.mrf.mxu0
      %v6295 = vadd.f32 %v6134, %v6294
      %v6296 = vpop.f32.mrf.mxu0
      %v6297 = vpop.f32.mrf.mxu0
      %v6298 = vadd.f32 %v6137, %v6297
      %v6299 = vpop.f32.mrf.mxu0
      %6300 = vmatprep.mubr.bf16.mxu0 %v5116
      %6301 = vmatmul.mubr.bf16.gmra.mxu0 %v5399
      %v6302 = vpop.f32.mrf.mxu0
      %v6303 = vadd.f32 %v6142, %v6302
      %v6304 = vpop.f32.mrf.mxu0
      %v6305 = vpop.f32.mrf.mxu0
      %v6306 = vadd.f32 %v6145, %v6305
      %v6307 = vpop.f32.mrf.mxu0
      %6308 = vmatprep.mubr.bf16.mxu0 %v5118
      %6309 = vmatmul.mubr.bf16.gmra.mxu0 %v5402
      %v6310 = vpop.f32.mrf.mxu0
      %v6311 = vadd.f32 %v6150, %v6310
      %v6312 = vpop.f32.mrf.mxu0
      %v6313 = vpop.f32.mrf.mxu0
      %v6314 = vadd.f32 %v6153, %v6313
      %v6315 = vpop.f32.mrf.mxu0
      %6316 = vmatprep.mubr.bf16.mxu0 %v5120
      %6317 = vmatmul.mubr.bf16.gmra.mxu0 %v5405
      %v6318 = vpop.f32.mrf.mxu0
      %v6319 = vadd.f32 %v6158, %v6318
      %v6320 = vpop.f32.mrf.mxu0
      %v6321 = vpop.f32.mrf.mxu0
      %v6322 = vadd.f32 %v6161, %v6321
      %v6323 = vpop.f32.mrf.mxu0
      %6324 = vmatprep.mubr.bf16.mxu0 %v5122
      %6325 = vmatmul.mubr.bf16.gmra.mxu0 %v5408
      %v6326 = vpop.f32.mrf.mxu0
      %v6327 = vadd.f32 %v6166, %v6326
      %v6328 = vpop.f32.mrf.mxu0
      %v6329 = vpop.f32.mrf.mxu0
      %v6330 = vadd.f32 %v6169, %v6329
      %v6331 = vpop.f32.mrf.mxu0
      %6332 = vmatprep.mubr.bf16.mxu0 %v5124
      %6333 = vmatmul.mubr.bf16.gmra.mxu0 %v5411
      %v6334 = vpop.f32.mrf.mxu0
      %v6335 = vadd.f32 %v6174, %v6334
      %v6336 = vpop.f32.mrf.mxu0
      %v6337 = vpop.f32.mrf.mxu0
      %v6338 = vadd.f32 %v6177, %v6337
      %v6339 = vpop.f32.mrf.mxu0
      %6340 = vmatprep.mubr.bf16.mxu0 %v5126
      %6341 = vmatmul.mubr.bf16.gmra.mxu0 %v5414
      %v6342 = vpop.f32.mrf.mxu0
      %v6343 = vadd.f32 %v6182, %v6342
      %v6344 = vpop.f32.mrf.mxu0
      %v6345 = vpop.f32.mrf.mxu0
      %v6346 = vadd.f32 %v6185, %v6345
      %v6347 = vpop.f32.mrf.mxu0
      %6348 = vmatprep.mubr.bf16.mxu0 %v5128
      %6349 = vmatmul.mubr.bf16.gmra.mxu0 %v5417
      %v6350 = vpop.f32.mrf.mxu0
      %v6351 = vadd.f32 %v6190, %v6350
      %v6352 = vpop.f32.mrf.mxu0
      %v6353 = vpop.f32.mrf.mxu0
      %v6354 = vadd.f32 %v6193, %v6353
      %v6355 = vpop.f32.mrf.mxu0
      %6356 = vmatprep.mubr.bf16.mxu0 %v5130
      %6357 = vmatmul.mubr.bf16.gmra.mxu0 %v5420
      %v6358 = vpop.f32.mrf.mxu0
      %v6359 = vadd.f32 %v6198, %v6358
      %v6360 = vpop.f32.mrf.mxu0
      %v6361 = vpop.f32.mrf.mxu0
      %v6362 = vadd.f32 %v6201, %v6361
      %v6363 = vpop.f32.mrf.mxu0
      %6364 = vmatprep.mubr.bf16.mxu0 %v5132
      %6365 = vmatmul.mubr.bf16.gmra.mxu0 %v5423
      %v6366 = vpop.f32.mrf.mxu0
      %v6367 = vadd.f32 %v6206, %v6366
      %v6368 = vpop.f32.mrf.mxu0
      %v6369 = vpop.f32.mrf.mxu0
      %v6370 = vadd.f32 %v6209, %v6369
      %v6371 = vpop.f32.mrf.mxu0
      %6372 = vmatprep.mubr.bf16.mxu0 %v5134
      %6373 = vmatmul.mubr.bf16.gmra.mxu0 %v5426
      %v6374 = vpop.f32.mrf.mxu0
      %v6375 = vadd.f32 %v6214, %v6374
      %v6376 = vpop.f32.mrf.mxu0
      %v6377 = vpop.f32.mrf.mxu0
      %v6378 = vadd.f32 %v6217, %v6377
      %v6379 = vpop.f32.mrf.mxu0
      %6380 = vmatprep.mubr.bf16.mxu0 %v5136
      %6381 = vmatmul.mubr.bf16.gmra.mxu0 %v5429
      %v6382 = vpop.f32.mrf.mxu0
      %v6383 = vadd.f32 %v6222, %v6382
      %v6384 = vpop.f32.mrf.mxu0
      %v6385 = vpop.f32.mrf.mxu0
      %v6386 = vadd.f32 %v6225, %v6385
      %v6387 = vpop.f32.mrf.mxu0
      %6388 = vdwg.mxu0
      %6389 = vmatprep.subr.bf16.mxu0 0
      %6390 = vmatpush1.bf16.msra.mxu0 %v5962
      %6391 = vmatprep.subr.bf16.mxu0 0
      %6392 = vmatpush1.bf16.msra.mxu0 %v5961
      %6393 = vmatprep.subr.bf16.mxu0 0
      %6394 = vmatpush1.bf16.msra.mxu0 %v5960
      %6395 = vmatprep.subr.bf16.mxu0 0
      %6396 = vmatpush1.bf16.msra.mxu0 %v5959
      %6397 = vmatprep.subr.bf16.mxu0 0
      %6398 = vmatpush1.bf16.msra.mxu0 %v5958
      %6399 = vmatprep.subr.bf16.mxu0 0
      %6400 = vmatpush1.bf16.msra.mxu0 %v5957
      %6401 = vmatprep.subr.bf16.mxu0 0
      %6402 = vmatpush1.bf16.msra.mxu0 %v5956
      %6403 = vmatprep.subr.bf16.mxu0 0
      %6404 = vmatpush1.bf16.msra.mxu0 %v5955
      %6405 = vmatprep.subr.bf16.mxu0 0
      %6406 = vmatpush2.bf16.msra.mxu0 %v5970
      %6407 = vmatprep.subr.bf16.mxu0 0
      %6408 = vmatpush2.bf16.msra.mxu0 %v5969
      %6409 = vmatprep.subr.bf16.mxu0 0
      %6410 = vmatpush2.bf16.msra.mxu0 %v5968
      %6411 = vmatprep.subr.bf16.mxu0 0
      %6412 = vmatpush2.bf16.msra.mxu0 %v5967
      %6413 = vmatprep.subr.bf16.mxu0 0
      %6414 = vmatpush2.bf16.msra.mxu0 %v5966
      %6415 = vmatprep.subr.bf16.mxu0 0
      %6416 = vmatpush2.bf16.msra.mxu0 %v5965
      %6417 = vmatprep.subr.bf16.mxu0 0
      %6418 = vmatpush2.bf16.msra.mxu0 %v5964
      %6419 = vmatprep.subr.bf16.mxu0 0
      %6420 = vmatpush2.bf16.msra.mxu0 %v5963
      %6421 = vmatprep.mubr.bf16.mxu0 %v5387
      %6422 = vmatmul.mubr.bf16.gmra.mxu0 %v5164
      %v6423 = vpop.f32.mrf.mxu0
      %v6424 = vadd.f32 %v6263, %v6423
      %v6425 = vpop.f32.mrf.mxu0
      %v6426 = vpop.f32.mrf.mxu0
      %v6427 = vadd.f32 %v6266, %v6426
      %v6428 = vpop.f32.mrf.mxu0
      %6429 = vmatprep.mubr.bf16.mxu0 %v5390
      %6430 = vmatmul.mubr.bf16.gmra.mxu0 %v5176
      %v6431 = vpop.f32.mrf.mxu0
      %v6432 = vadd.f32 %v6271, %v6431
      %v6433 = vpop.f32.mrf.mxu0
      %v6434 = vpop.f32.mrf.mxu0
      %v6435 = vadd.f32 %v6274, %v6434
      %v6436 = vpop.f32.mrf.mxu0
      %6437 = vmatprep.mubr.bf16.mxu0 %v5393
      %6438 = vmatmul.mubr.bf16.gmra.mxu0 %v5188
      %v6439 = vpop.f32.mrf.mxu0
      %v6440 = vadd.f32 %v6279, %v6439
      %v6441 = vpop.f32.mrf.mxu0
      %v6442 = vpop.f32.mrf.mxu0
      %v6443 = vadd.f32 %v6282, %v6442
      %v6444 = vpop.f32.mrf.mxu0
      %6445 = vmatprep.mubr.bf16.mxu0 %v5396
      %6446 = vmatmul.mubr.bf16.gmra.mxu0 %v5200
      %v6447 = vpop.f32.mrf.mxu0
      %v6448 = vadd.f32 %v6287, %v6447
      %v6449 = vpop.f32.mrf.mxu0
      %v6450 = vpop.f32.mrf.mxu0
      %v6451 = vadd.f32 %v6290, %v6450
      %v6452 = vpop.f32.mrf.mxu0
      %6453 = vmatprep.mubr.bf16.mxu0 %v5399
      %6454 = vmatmul.mubr.bf16.gmra.mxu0 %v5212
      %v6455 = vpop.f32.mrf.mxu0
      %v6456 = vadd.f32 %v6295, %v6455
      %v6457 = vpop.f32.mrf.mxu0
      %v6458 = vpop.f32.mrf.mxu0
      %v6459 = vadd.f32 %v6298, %v6458
      %v6460 = vpop.f32.mrf.mxu0
      %6461 = vmatprep.mubr.bf16.mxu0 %v5402
      %6462 = vmatmul.mubr.bf16.gmra.mxu0 %v5224
      %v6463 = vpop.f32.mrf.mxu0
      %v6464 = vadd.f32 %v6303, %v6463
      %v6465 = vpop.f32.mrf.mxu0
      %v6466 = vpop.f32.mrf.mxu0
      %v6467 = vadd.f32 %v6306, %v6466
      %v6468 = vpop.f32.mrf.mxu0
      %6469 = vmatprep.mubr.bf16.mxu0 %v5405
      %6470 = vmatmul.mubr.bf16.gmra.mxu0 %v5236
      %v6471 = vpop.f32.mrf.mxu0
      %v6472 = vadd.f32 %v6311, %v6471
      %v6473 = vpop.f32.mrf.mxu0
      %v6474 = vpop.f32.mrf.mxu0
      %v6475 = vadd.f32 %v6314, %v6474
      %v6476 = vpop.f32.mrf.mxu0
      %6477 = vmatprep.mubr.bf16.mxu0 %v5408
      %6478 = vmatmul.mubr.bf16.gmra.mxu0 %v5248
      %v6479 = vpop.f32.mrf.mxu0
      %v6480 = vadd.f32 %v6319, %v6479
      %v6481 = vpop.f32.mrf.mxu0
      %v6482 = vpop.f32.mrf.mxu0
      %v6483 = vadd.f32 %v6322, %v6482
      %v6484 = vpop.f32.mrf.mxu0
      %6485 = vmatprep.mubr.bf16.mxu0 %v5411
      %6486 = vmatmul.mubr.bf16.gmra.mxu0 %v5260
      %v6487 = vpop.f32.mrf.mxu0
      %v6488 = vadd.f32 %v6327, %v6487
      %v6489 = vpop.f32.mrf.mxu0
      %v6490 = vpop.f32.mrf.mxu0
      %v6491 = vadd.f32 %v6330, %v6490
      %v6492 = vpop.f32.mrf.mxu0
      %6493 = vmatprep.mubr.bf16.mxu0 %v5414
      %6494 = vmatmul.mubr.bf16.gmra.mxu0 %v5272
      %v6495 = vpop.f32.mrf.mxu0
      %v6496 = vadd.f32 %v6335, %v6495
      %v6497 = vpop.f32.mrf.mxu0
      %v6498 = vpop.f32.mrf.mxu0
      %v6499 = vadd.f32 %v6338, %v6498
      %v6500 = vpop.f32.mrf.mxu0
      %6501 = vmatprep.mubr.bf16.mxu0 %v5417
      %6502 = vmatmul.mubr.bf16.gmra.mxu0 %v5284
      %v6503 = vpop.f32.mrf.mxu0
      %v6504 = vadd.f32 %v6343, %v6503
      %v6505 = vpop.f32.mrf.mxu0
      %v6506 = vpop.f32.mrf.mxu0
      %v6507 = vadd.f32 %v6346, %v6506
      %v6508 = vpop.f32.mrf.mxu0
      %6509 = vmatprep.mubr.bf16.mxu0 %v5420
      %6510 = vmatmul.mubr.bf16.gmra.mxu0 %v5296
      %v6511 = vpop.f32.mrf.mxu0
      %v6512 = vadd.f32 %v6351, %v6511
      %v6513 = vpop.f32.mrf.mxu0
      %v6514 = vpop.f32.mrf.mxu0
      %v6515 = vadd.f32 %v6354, %v6514
      %v6516 = vpop.f32.mrf.mxu0
      %6517 = vmatprep.mubr.bf16.mxu0 %v5423
      %6518 = vmatmul.mubr.bf16.gmra.mxu0 %v5308
      %v6519 = vpop.f32.mrf.mxu0
      %v6520 = vadd.f32 %v6359, %v6519
      %v6521 = vpop.f32.mrf.mxu0
      %v6522 = vpop.f32.mrf.mxu0
      %v6523 = vadd.f32 %v6362, %v6522
      %v6524 = vpop.f32.mrf.mxu0
      %6525 = vmatprep.mubr.bf16.mxu0 %v5426
      %6526 = vmatmul.mubr.bf16.gmra.mxu0 %v5320
      %v6527 = vpop.f32.mrf.mxu0
      %v6528 = vadd.f32 %v6367, %v6527
      %v6529 = vpop.f32.mrf.mxu0
      %v6530 = vpop.f32.mrf.mxu0
      %v6531 = vadd.f32 %v6370, %v6530
      %v6532 = vpop.f32.mrf.mxu0
      %6533 = vmatprep.mubr.bf16.mxu0 %v5429
      %6534 = vmatmul.mubr.bf16.gmra.mxu0 %v5332
      %v6535 = vpop.f32.mrf.mxu0
      %v6536 = vadd.f32 %v6375, %v6535
      %v6537 = vpop.f32.mrf.mxu0
      %v6538 = vpop.f32.mrf.mxu0
      %v6539 = vadd.f32 %v6378, %v6538
      %v6540 = vpop.f32.mrf.mxu0
      %6541 = vmatprep.mubr.bf16.mxu0 %v5463
      %6542 = vmatmul.mubr.bf16.gmra.mxu0 %v5457
      %v6543 = vpop.f32.mrf.mxu0
      %v6544 = vadd.f32 %v6383, %v6543
      %v6545 = vpop.f32.mrf.mxu0
      %v6546 = vpop.f32.mrf.mxu0
      %v6547 = vadd.f32 %v6386, %v6546
      %v6548 = vpop.f32.mrf.mxu0
      %6549 = vdwg.mxu0
      %6550 = vmatprep.subr.bf16.mxu0 0
      %6551 = vmatpush1.bf16.msra.mxu0 %v5978
      %6552 = vmatprep.subr.bf16.mxu0 0
      %6553 = vmatpush1.bf16.msra.mxu0 %v5977
      %6554 = vmatprep.subr.bf16.mxu0 0
      %6555 = vmatpush1.bf16.msra.mxu0 %v5976
      %6556 = vmatprep.subr.bf16.mxu0 0
      %6557 = vmatpush1.bf16.msra.mxu0 %v5975
      %6558 = vmatprep.subr.bf16.mxu0 0
      %6559 = vmatpush1.bf16.msra.mxu0 %v5974
      %6560 = vmatprep.subr.bf16.mxu0 0
      %6561 = vmatpush1.bf16.msra.mxu0 %v5973
      %6562 = vmatprep.subr.bf16.mxu0 0
      %6563 = vmatpush1.bf16.msra.mxu0 %v5972
      %6564 = vmatprep.subr.bf16.mxu0 0
      %6565 = vmatpush1.bf16.msra.mxu0 %v5971
      %6566 = vmatprep.subr.bf16.mxu0 0
      %6567 = vmatpush2.bf16.msra.mxu0 %v5986
      %6568 = vmatprep.subr.bf16.mxu0 0
      %6569 = vmatpush2.bf16.msra.mxu0 %v5985
      %6570 = vmatprep.subr.bf16.mxu0 0
      %6571 = vmatpush2.bf16.msra.mxu0 %v5984
      %6572 = vmatprep.subr.bf16.mxu0 0
      %6573 = vmatpush2.bf16.msra.mxu0 %v5983
      %6574 = vmatprep.subr.bf16.mxu0 0
      %6575 = vmatpush2.bf16.msra.mxu0 %v5982
      %6576 = vmatprep.subr.bf16.mxu0 0
      %6577 = vmatpush2.bf16.msra.mxu0 %v5981
      %6578 = vmatprep.subr.bf16.mxu0 0
      %6579 = vmatpush2.bf16.msra.mxu0 %v5980
      %6580 = vmatprep.subr.bf16.mxu0 0
      %6581 = vmatpush2.bf16.msra.mxu0 %v5979
      %6582 = vmatprep.mubr.bf16.mxu0 %v5176
      %6583 = vmatmul.mubr.bf16.gmra.mxu0 %v5108
      %v6584 = vpop.f32.mrf.mxu0
      %v6585 = vadd.f32 %v6424, %v6584
      %v6586 = vpop.f32.mrf.mxu0
      %v6587 = vpop.f32.mrf.mxu0
      %v6588 = vadd.f32 %v6427, %v6587
      %v6589 = vpop.f32.mrf.mxu0
      %6590 = vmatprep.mubr.bf16.mxu0 %v5188
      %6591 = vmatmul.mubr.bf16.gmra.mxu0 %v5110
      %v6592 = vpop.f32.mrf.mxu0
      %v6593 = vadd.f32 %v6432, %v6592
      %v6594 = vpop.f32.mrf.mxu0
      %v6595 = vpop.f32.mrf.mxu0
      %v6596 = vadd.f32 %v6435, %v6595
      %v6597 = vpop.f32.mrf.mxu0
      %6598 = vmatprep.mubr.bf16.mxu0 %v5200
      %6599 = vmatmul.mubr.bf16.gmra.mxu0 %v5112
      %v6600 = vpop.f32.mrf.mxu0
      %v6601 = vadd.f32 %v6440, %v6600
      %v6602 = vpop.f32.mrf.mxu0
      %v6603 = vpop.f32.mrf.mxu0
      %v6604 = vadd.f32 %v6443, %v6603
      %v6605 = vpop.f32.mrf.mxu0
      %6606 = vmatprep.mubr.bf16.mxu0 %v5212
      %6607 = vmatmul.mubr.bf16.gmra.mxu0 %v5114
      %v6608 = vpop.f32.mrf.mxu0
      %v6609 = vadd.f32 %v6448, %v6608
      %v6610 = vpop.f32.mrf.mxu0
      %v6611 = vpop.f32.mrf.mxu0
      %v6612 = vadd.f32 %v6451, %v6611
      %v6613 = vpop.f32.mrf.mxu0
      %6614 = vmatprep.mubr.bf16.mxu0 %v5224
      %6615 = vmatmul.mubr.bf16.gmra.mxu0 %v5116
      %v6616 = vpop.f32.mrf.mxu0
      %v6617 = vadd.f32 %v6456, %v6616
      %v6618 = vpop.f32.mrf.mxu0
      %v6619 = vpop.f32.mrf.mxu0
      %v6620 = vadd.f32 %v6459, %v6619
      %v6621 = vpop.f32.mrf.mxu0
      %6622 = vmatprep.mubr.bf16.mxu0 %v5236
      %6623 = vmatmul.mubr.bf16.gmra.mxu0 %v5118
      %v6624 = vpop.f32.mrf.mxu0
      %v6625 = vadd.f32 %v6464, %v6624
      %v6626 = vpop.f32.mrf.mxu0
      %v6627 = vpop.f32.mrf.mxu0
      %v6628 = vadd.f32 %v6467, %v6627
      %v6629 = vpop.f32.mrf.mxu0
      %6630 = vmatprep.mubr.bf16.mxu0 %v5248
      %6631 = vmatmul.mubr.bf16.gmra.mxu0 %v5120
      %v6632 = vpop.f32.mrf.mxu0
      %v6633 = vadd.f32 %v6472, %v6632
      %v6634 = vpop.f32.mrf.mxu0
      %v6635 = vpop.f32.mrf.mxu0
      %v6636 = vadd.f32 %v6475, %v6635
      %v6637 = vpop.f32.mrf.mxu0
      %6638 = vmatprep.mubr.bf16.mxu0 %v5260
      %6639 = vmatmul.mubr.bf16.gmra.mxu0 %v5122
      %v6640 = vpop.f32.mrf.mxu0
      %v6641 = vadd.f32 %v6480, %v6640
      %v6642 = vpop.f32.mrf.mxu0
      %v6643 = vpop.f32.mrf.mxu0
      %v6644 = vadd.f32 %v6483, %v6643
      %v6645 = vpop.f32.mrf.mxu0
      %6646 = vmatprep.mubr.bf16.mxu0 %v5272
      %6647 = vmatmul.mubr.bf16.gmra.mxu0 %v5124
      %v6648 = vpop.f32.mrf.mxu0
      %v6649 = vadd.f32 %v6488, %v6648
      %v6650 = vpop.f32.mrf.mxu0
      %v6651 = vpop.f32.mrf.mxu0
      %v6652 = vadd.f32 %v6491, %v6651
      %v6653 = vpop.f32.mrf.mxu0
      %6654 = vmatprep.mubr.bf16.mxu0 %v5284
      %6655 = vmatmul.mubr.bf16.gmra.mxu0 %v5126
      %v6656 = vpop.f32.mrf.mxu0
      %v6657 = vadd.f32 %v6496, %v6656
      %v6658 = vpop.f32.mrf.mxu0
      %v6659 = vpop.f32.mrf.mxu0
      %v6660 = vadd.f32 %v6499, %v6659
      %v6661 = vpop.f32.mrf.mxu0
      %6662 = vmatprep.mubr.bf16.mxu0 %v5296
      %6663 = vmatmul.mubr.bf16.gmra.mxu0 %v5128
      %v6664 = vpop.f32.mrf.mxu0
      %v6665 = vadd.f32 %v6504, %v6664
      %v6666 = vpop.f32.mrf.mxu0
      %v6667 = vpop.f32.mrf.mxu0
      %v6668 = vadd.f32 %v6507, %v6667
      %v6669 = vpop.f32.mrf.mxu0
      %6670 = vmatprep.mubr.bf16.mxu0 %v5308
      %6671 = vmatmul.mubr.bf16.gmra.mxu0 %v5130
      %v6672 = vpop.f32.mrf.mxu0
      %v6673 = vadd.f32 %v6512, %v6672
      %v6674 = vpop.f32.mrf.mxu0
      %v6675 = vpop.f32.mrf.mxu0
      %v6676 = vadd.f32 %v6515, %v6675
      %v6677 = vpop.f32.mrf.mxu0
      %6678 = vmatprep.mubr.bf16.mxu0 %v5320
      %6679 = vmatmul.mubr.bf16.gmra.mxu0 %v5132
      %v6680 = vpop.f32.mrf.mxu0
      %v6681 = vadd.f32 %v6520, %v6680
      %v6682 = vpop.f32.mrf.mxu0
      %v6683 = vpop.f32.mrf.mxu0
      %v6684 = vadd.f32 %v6523, %v6683
      %v6685 = vpop.f32.mrf.mxu0
      %6686 = vmatprep.mubr.bf16.mxu0 %v5332
      %6687 = vmatmul.mubr.bf16.gmra.mxu0 %v5134
      %v6688 = vpop.f32.mrf.mxu0
      %v6689 = vadd.f32 %v6528, %v6688
      %v6690 = vpop.f32.mrf.mxu0
      %v6691 = vpop.f32.mrf.mxu0
      %v6692 = vadd.f32 %v6531, %v6691
      %v6693 = vpop.f32.mrf.mxu0
      %6694 = vmatprep.mubr.bf16.mxu0 %v5457
      %6695 = vmatmul.mubr.bf16.gmra.mxu0 %v5136
      %v6696 = vpop.f32.mrf.mxu0
      %v6697 = vadd.f32 %v6536, %v6696
      %v6698 = vpop.f32.mrf.mxu0
      %v6699 = vpop.f32.mrf.mxu0
      %v6700 = vadd.f32 %v6539, %v6699
      %v6701 = vpop.f32.mrf.mxu0
      %6702 = vmatprep.mubr.bf16.mxu0 %v5476
      %6703 = vmatmul.mubr.bf16.gmra.mxu0 %v5138
      %v6704 = vpop.f32.mrf.mxu0
      %v6705 = vadd.f32 %v6544, %v6704
      %v6706 = vpop.f32.mrf.mxu0
      %v6707 = vpop.f32.mrf.mxu0
      %v6708 = vadd.f32 %v6547, %v6707
      %v6709 = vpop.f32.mrf.mxu0
      %6710 = vdwg.mxu0
      %6711 = vmatprep.subr.bf16.mxu0 0
      %6712 = vmatpush1.bf16.msra.mxu0 %v5994
      %6713 = vmatprep.subr.bf16.mxu0 0
      %6714 = vmatpush1.bf16.msra.mxu0 %v5993
      %6715 = vmatprep.subr.bf16.mxu0 0
      %6716 = vmatpush1.bf16.msra.mxu0 %v5992
      %6717 = vmatprep.subr.bf16.mxu0 0
      %6718 = vmatpush1.bf16.msra.mxu0 %v5991
      %6719 = vmatprep.subr.bf16.mxu0 0
      %6720 = vmatpush1.bf16.msra.mxu0 %v5990
      %6721 = vmatprep.subr.bf16.mxu0 0
      %6722 = vmatpush1.bf16.msra.mxu0 %v5989
      %6723 = vmatprep.subr.bf16.mxu0 0
      %6724 = vmatpush1.bf16.msra.mxu0 %v5988
      %6725 = vmatprep.subr.bf16.mxu0 0
      %6726 = vmatpush1.bf16.msra.mxu0 %v5987
      %6727 = vmatprep.subr.bf16.mxu0 0
      %6728 = vmatpush2.bf16.msra.mxu0 0
      %6729 = vmatprep.subr.bf16.mxu0 0
      %6730 = vmatpush2.bf16.msra.mxu0 0
      %6731 = vmatprep.subr.bf16.mxu0 0
      %6732 = vmatpush2.bf16.msra.mxu0 0
      %6733 = vmatprep.subr.bf16.mxu0 0
      %6734 = vmatpush2.bf16.msra.mxu0 0
      %6735 = vmatprep.subr.bf16.mxu0 0
      %6736 = vmatpush2.bf16.msra.mxu0 0
      %6737 = vmatprep.subr.bf16.mxu0 0
      %6738 = vmatpush2.bf16.msra.mxu0 0
      %6739 = vmatprep.subr.bf16.mxu0 0
      %6740 = vmatpush2.bf16.msra.mxu0 0
      %6741 = vmatprep.subr.bf16.mxu0 0
      %6742 = vmatpush2.bf16.msra.mxu0 0
      %6743 = vmatprep.mubr.bf16.mxu0 0
      %6744 = vmatmul.mubr.bf16.gmra.mxu0 %v5390
      %v6745 = vpop.f32.mrf.mxu0
      %v6746 = vadd.f32 %v6585, %v6745
      %v6747 = vpop.f32.mrf.mxu0
      %v6748 = vpop.f32.mrf.mxu0
      %v6749 = vadd.f32 %v6588, %v6748
      %v6750 = vpop.f32.mrf.mxu0
      %6751 = vmatprep.mubr.bf16.mxu0 0
      %6752 = vmatmul.mubr.bf16.gmra.mxu0 %v5393
      %v6753 = vpop.f32.mrf.mxu0
      %v6754 = vadd.f32 %v6593, %v6753
      %v6755 = vpop.f32.mrf.mxu0
      %v6756 = vpop.f32.mrf.mxu0
      %v6757 = vadd.f32 %v6596, %v6756
      %v6758 = vpop.f32.mrf.mxu0
      %6759 = vmatprep.mubr.bf16.mxu0 0
      %6760 = vmatmul.mubr.bf16.gmra.mxu0 %v5396
      %v6761 = vpop.f32.mrf.mxu0
      %v6762 = vadd.f32 %v6601, %v6761
      %v6763 = vpop.f32.mrf.mxu0
      %v6764 = vpop.f32.mrf.mxu0
      %v6765 = vadd.f32 %v6604, %v6764
      %v6766 = vpop.f32.mrf.mxu0
      %6767 = vmatprep.mubr.bf16.mxu0 0
      %6768 = vmatmul.mubr.bf16.gmra.mxu0 %v5399
      %v6769 = vpop.f32.mrf.mxu0
      %v6770 = vadd.f32 %v6609, %v6769
      %v6771 = vpop.f32.mrf.mxu0
      %v6772 = vpop.f32.mrf.mxu0
      %v6773 = vadd.f32 %v6612, %v6772
      %v6774 = vpop.f32.mrf.mxu0
      %6775 = vmatprep.mubr.bf16.mxu0 0
      %6776 = vmatmul.mubr.bf16.gmra.mxu0 %v5402
      %v6777 = vpop.f32.mrf.mxu0
      %v6778 = vadd.f32 %v6617, %v6777
      %v6779 = vpop.f32.mrf.mxu0
      %v6780 = vpop.f32.mrf.mxu0
      %v6781 = vadd.f32 %v6620, %v6780
      %v6782 = vpop.f32.mrf.mxu0
      %6783 = vmatprep.mubr.bf16.mxu0 0
      %6784 = vmatmul.mubr.bf16.gmra.mxu0 %v5405
      %v6785 = vpop.f32.mrf.mxu0
      %v6786 = vadd.f32 %v6625, %v6785
      %v6787 = vpop.f32.mrf.mxu0
      %v6788 = vpop.f32.mrf.mxu0
      %v6789 = vadd.f32 %v6628, %v6788
      %v6790 = vpop.f32.mrf.mxu0
      %6791 = vmatprep.mubr.bf16.mxu0 0
      %6792 = vmatmul.mubr.bf16.gmra.mxu0 %v5408
      %v6793 = vpop.f32.mrf.mxu0
      %v6794 = vadd.f32 %v6633, %v6793
      %v6795 = vpop.f32.mrf.mxu0
      %v6796 = vpop.f32.mrf.mxu0
      %v6797 = vadd.f32 %v6636, %v6796
      %v6798 = vpop.f32.mrf.mxu0
      %6799 = vmatprep.mubr.bf16.mxu0 0
      %6800 = vmatmul.mubr.bf16.gmra.mxu0 %v5411
      %v6801 = vpop.f32.mrf.mxu0
      %v6802 = vadd.f32 %v6641, %v6801
      %v6803 = vpop.f32.mrf.mxu0
      %v6804 = vpop.f32.mrf.mxu0
      %v6805 = vadd.f32 %v6644, %v6804
      %v6806 = vpop.f32.mrf.mxu0
      %6807 = vmatprep.mubr.bf16.mxu0 0
      %6808 = vmatmul.mubr.bf16.gmra.mxu0 %v5414
      %v6809 = vpop.f32.mrf.mxu0
      %v6810 = vadd.f32 %v6649, %v6809
      %v6811 = vpop.f32.mrf.mxu0
      %v6812 = vpop.f32.mrf.mxu0
      %v6813 = vadd.f32 %v6652, %v6812
      %v6814 = vpop.f32.mrf.mxu0
      %6815 = vmatprep.mubr.bf16.mxu0 0
      %6816 = vmatmul.mubr.bf16.gmra.mxu0 %v5417
      %v6817 = vpop.f32.mrf.mxu0
      %v6818 = vadd.f32 %v6657, %v6817
      %v6819 = vpop.f32.mrf.mxu0
      %v6820 = vpop.f32.mrf.mxu0
      %v6821 = vadd.f32 %v6660, %v6820
      %v6822 = vpop.f32.mrf.mxu0
      %6823 = vmatprep.mubr.bf16.mxu0 0
      %6824 = vmatmul.mubr.bf16.gmra.mxu0 %v5420
      %v6825 = vpop.f32.mrf.mxu0
      %v6826 = vadd.f32 %v6665, %v6825
      %v6827 = vpop.f32.mrf.mxu0
      %v6828 = vpop.f32.mrf.mxu0
      %v6829 = vadd.f32 %v6668, %v6828
      %v6830 = vpop.f32.mrf.mxu0
      %6831 = vmatprep.mubr.bf16.mxu0 0
      %6832 = vmatmul.mubr.bf16.gmra.mxu0 %v5423
      %v6833 = vpop.f32.mrf.mxu0
      %v6834 = vadd.f32 %v6673, %v6833
      %v6835 = vpop.f32.mrf.mxu0
      %v6836 = vpop.f32.mrf.mxu0
      %v6837 = vadd.f32 %v6676, %v6836
      %v6838 = vpop.f32.mrf.mxu0
      %6839 = vmatprep.mubr.bf16.mxu0 0
      %6840 = vmatmul.mubr.bf16.gmra.mxu0 %v5426
      %v6841 = vpop.f32.mrf.mxu0
      %v6842 = vadd.f32 %v6681, %v6841
      %v6843 = vpop.f32.mrf.mxu0
      %v6844 = vpop.f32.mrf.mxu0
      %v6845 = vadd.f32 %v6684, %v6844
      %v6846 = vpop.f32.mrf.mxu0
      %6847 = vmatprep.mubr.bf16.mxu0 0
      %6848 = vmatmul.mubr.bf16.gmra.mxu0 %v5429
      %v6849 = vpop.f32.mrf.mxu0
      %v6850 = vadd.f32 %v6689, %v6849
      %v6851 = vpop.f32.mrf.mxu0
      %v6852 = vpop.f32.mrf.mxu0
      %v6853 = vadd.f32 %v6692, %v6852
      %v6854 = vpop.f32.mrf.mxu0
      %6855 = vmatprep.mubr.bf16.mxu0 0
      %6856 = vmatmul.mubr.bf16.gmra.mxu0 %v5463
      %v6857 = vpop.f32.mrf.mxu0
      %v6858 = vadd.f32 %v6697, %v6857
      %v6859 = vpop.f32.mrf.mxu0
      %v6860 = vpop.f32.mrf.mxu0
      %v6861 = vadd.f32 %v6700, %v6860
      %v6862 = vpop.f32.mrf.mxu0
      %6863 = vmatprep.mubr.bf16.mxu0 0
      %6864 = vmatmul.mubr.bf16.gmra.mxu0 %v5482
      %v6865 = vpop.f32.mrf.mxu0
      %v6866 = vadd.f32 %v6705, %v6865
      %v6867 = vpop.f32.mrf.mxu0
      %v6868 = vpop.f32.mrf.mxu0
      %v6869 = vadd.f32 %v6708, %v6868
      %v6870 = vpop.f32.mrf.mxu0
      %6871 = vdwg.mxu0
      %v6872 = vmin.f32 %v6746, 20.0
      %v6873 = vmin.f32 %v6749, 20.0
      %v6874 = vmin.f32 %v6754, 20.0
      %v6875 = vmin.f32 %v6757, 20.0
      %v6876 = vmin.f32 %v6762, 20.0
      %v6877 = vmin.f32 %v6765, 20.0
      %v6878 = vmin.f32 %v6770, 20.0
      %v6879 = vmin.f32 %v6773, 20.0
      %v6880 = vmin.f32 %v6778, 20.0
      %v6881 = vmin.f32 %v6781, 20.0
      %v6882 = vmin.f32 %v6786, 20.0
      %v6883 = vmin.f32 %v6789, 20.0
      %v6884 = vmin.f32 %v6794, 20.0
      %v6885 = vmin.f32 %v6797, 20.0
      %v6886 = vmin.f32 %v6802, 20.0
      %v6887 = vmin.f32 %v6805, 20.0
      %v6888 = vmin.f32 %v6810, 20.0
      %v6889 = vmin.f32 %v6813, 20.0
      %v6890 = vmin.f32 %v6818, 20.0
      %v6891 = vmin.f32 %v6821, 20.0
      %v6892 = vmin.f32 %v6826, 20.0
      %v6893 = vmin.f32 %v6829, 20.0
      %v6894 = vmin.f32 %v6834, 20.0
      %v6895 = vmin.f32 %v6837, 20.0
      %v6896 = vmin.f32 %v6842, 20.0
      %v6897 = vmin.f32 %v6845, 20.0
      %v6898 = vmin.f32 %v6850, 20.0
      %v6899 = vmin.f32 %v6853, 20.0
      %v6900 = vmin.f32 %v6858, 20.0
      %v6901 = vmin.f32 %v6861, 20.0
      %v6902 = vmin.f32 %v6866, 20.0
      %v6903 = vmin.f32 %v6869, 20.0
      %v6904 = vmul.f32 %v6872, 1.442695
      %v6905 = vpow.pop %v6904
      %v6906 = vmul.f32 %v6873, 1.442695
      %v6907 = vpow.pop %v6906
      %v6908 = vmul.f32 %v6874, 1.442695
      %v6909 = vpow.pop %v6908
      %v6910 = vmul.f32 %v6875, 1.442695
      %v6911 = vpow.pop %v6910
      %v6912 = vmul.f32 %v6876, 1.442695
      %v6913 = vpow.pop %v6912
      %v6914 = vmul.f32 %v6877, 1.442695
      %v6915 = vpow.pop %v6914
      %v6916 = vmul.f32 %v6878, 1.442695
      %v6917 = vpow.pop %v6916
      %v6918 = vmul.f32 %v6879, 1.442695
      %v6919 = vpow.pop %v6918
      %v6920 = vmul.f32 %v6880, 1.442695
      %v6921 = vpow.pop %v6920
      %v6922 = vmul.f32 %v6881, 1.442695
      %v6923 = vpow.pop %v6922
      %v6924 = vmul.f32 %v6882, 1.442695
      %v6925 = vpow.pop %v6924
      %v6926 = vmul.f32 %v6883, 1.442695
      %v6927 = vpow.pop %v6926
      %v6928 = vmul.f32 %v6884, 1.442695
      %v6929 = vpow.pop %v6928
      %v6930 = vmul.f32 %v6885, 1.442695
      %v6931 = vpow.pop %v6930
      %v6932 = vmul.f32 %v6886, 1.442695
      %v6933 = vpow.pop %v6932
      %v6934 = vmul.f32 %v6887, 1.442695
      %v6935 = vpow.pop %v6934
      %v6936 = vmul.f32 %v6888, 1.442695
      %v6937 = vpow.pop %v6936
      %v6938 = vmul.f32 %v6889, 1.442695
      %v6939 = vpow.pop %v6938
      %v6940 = vmul.f32 %v6890, 1.442695
      %v6941 = vpow.pop %v6940
      %v6942 = vmul.f32 %v6891, 1.442695
      %v6943 = vpow.pop %v6942
      %v6944 = vmul.f32 %v6892, 1.442695
      %v6945 = vpow.pop %v6944
      %v6946 = vmul.f32 %v6893, 1.442695
      %v6947 = vpow.pop %v6946
      %v6948 = vmul.f32 %v6894, 1.442695
      %v6949 = vpow.pop %v6948
      %v6950 = vmul.f32 %v6895, 1.442695
      %v6951 = vpow.pop %v6950
      %v6952 = vmul.f32 %v6896, 1.442695
      %v6953 = vpow.pop %v6952
      %v6954 = vmul.f32 %v6897, 1.442695
      %v6955 = vpow.pop %v6954
      %v6956 = vmul.f32 %v6898, 1.442695
      %v6957 = vpow.pop %v6956
      %v6958 = vmul.f32 %v6899, 1.442695
      %v6959 = vpow.pop %v6958
      %v6960 = vmul.f32 %v6900, 1.442695
      %v6961 = vpow.pop %v6960
      %v6962 = vmul.f32 %v6901, 1.442695
      %v6963 = vpow.pop %v6962
      %v6964 = vmul.f32 %v6902, 1.442695
      %v6965 = vpow.pop %v6964
      %v6966 = vmul.f32 %v6903, 1.442695
      %v6967 = vpow.pop %v6966
      %v6968 = vadd.f32 %v6905, 2.0
      %v6969 = vadd.f32 %v6907, 2.0
      %v6970 = vadd.f32 %v6909, 2.0
      %v6971 = vadd.f32 %v6911, 2.0
      %v6972 = vadd.f32 %v6913, 2.0
      %v6973 = vadd.f32 %v6915, 2.0
      %v6974 = vadd.f32 %v6917, 2.0
      %v6975 = vadd.f32 %v6919, 2.0
      %v6976 = vadd.f32 %v6921, 2.0
      %v6977 = vadd.f32 %v6923, 2.0
      %v6978 = vadd.f32 %v6925, 2.0
      %v6979 = vadd.f32 %v6927, 2.0
      %v6980 = vadd.f32 %v6929, 2.0
      %v6981 = vadd.f32 %v6931, 2.0
      %v6982 = vadd.f32 %v6933, 2.0
      %v6983 = vadd.f32 %v6935, 2.0
      %v6984 = vadd.f32 %v6937, 2.0
      %v6985 = vadd.f32 %v6939, 2.0
      %v6986 = vadd.f32 %v6941, 2.0
      %v6987 = vadd.f32 %v6943, 2.0
      %v6988 = vadd.f32 %v6945, 2.0
      %v6989 = vadd.f32 %v6947, 2.0
      %v6990 = vadd.f32 %v6949, 2.0
      %v6991 = vadd.f32 %v6951, 2.0
      %v6992 = vadd.f32 %v6953, 2.0
      %v6993 = vadd.f32 %v6955, 2.0
      %v6994 = vadd.f32 %v6957, 2.0
      %v6995 = vadd.f32 %v6959, 2.0
      %v6996 = vadd.f32 %v6961, 2.0
      %v6997 = vadd.f32 %v6963, 2.0
      %v6998 = vadd.f32 %v6965, 2.0
      %v6999 = vadd.f32 %v6967, 2.0
      %v7000 = vmul.f32 %v6905, %v6968
      %v7001 = vmul.f32 %v6907, %v6969
      %v7002 = vmul.f32 %v6909, %v6970
      %v7003 = vmul.f32 %v6911, %v6971
      %v7004 = vmul.f32 %v6913, %v6972
      %v7005 = vmul.f32 %v6915, %v6973
      %v7006 = vmul.f32 %v6917, %v6974
      %v7007 = vmul.f32 %v6919, %v6975
      %v7008 = vmul.f32 %v6921, %v6976
      %v7009 = vmul.f32 %v6923, %v6977
      %v7010 = vmul.f32 %v6925, %v6978
      %v7011 = vmul.f32 %v6927, %v6979
      %v7012 = vmul.f32 %v6929, %v6980
      %v7013 = vmul.f32 %v6931, %v6981
      %v7014 = vmul.f32 %v6933, %v6982
      %v7015 = vmul.f32 %v6935, %v6983
      %v7016 = vmul.f32 %v6937, %v6984
      %v7017 = vmul.f32 %v6939, %v6985
      %v7018 = vmul.f32 %v6941, %v6986
      %v7019 = vmul.f32 %v6943, %v6987
      %v7020 = vmul.f32 %v6945, %v6988
      %v7021 = vmul.f32 %v6947, %v6989
      %v7022 = vmul.f32 %v6949, %v6990
      %v7023 = vmul.f32 %v6951, %v6991
      %v7024 = vmul.f32 %v6953, %v6992
      %v7025 = vmul.f32 %v6955, %v6993
      %v7026 = vmul.f32 %v6957, %v6994
      %v7027 = vmul.f32 %v6959, %v6995
      %v7028 = vmul.f32 %v6961, %v6996
      %v7029 = vmul.f32 %v6963, %v6997
      %v7030 = vmul.f32 %v6965, %v6998
      %v7031 = vmul.f32 %v6967, %v6999
      %v7032 = vmul.f32 %v6746, %v7000
      %v7033 = vmul.f32 %v6749, %v7001
      %v7034 = vmul.f32 %v6754, %v7002
      %v7035 = vmul.f32 %v6757, %v7003
      %v7036 = vmul.f32 %v6762, %v7004
      %v7037 = vmul.f32 %v6765, %v7005
      %v7038 = vmul.f32 %v6770, %v7006
      %v7039 = vmul.f32 %v6773, %v7007
      %v7040 = vmul.f32 %v6778, %v7008
      %v7041 = vmul.f32 %v6781, %v7009
      %v7042 = vmul.f32 %v6786, %v7010
      %v7043 = vmul.f32 %v6789, %v7011
      %v7044 = vmul.f32 %v6794, %v7012
      %v7045 = vmul.f32 %v6797, %v7013
      %v7046 = vmul.f32 %v6802, %v7014
      %v7047 = vmul.f32 %v6805, %v7015
      %v7048 = vmul.f32 %v6810, %v7016
      %v7049 = vmul.f32 %v6813, %v7017
      %v7050 = vmul.f32 %v6818, %v7018
      %v7051 = vmul.f32 %v6821, %v7019
      %v7052 = vmul.f32 %v6826, %v7020
      %v7053 = vmul.f32 %v6829, %v7021
      %v7054 = vmul.f32 %v6834, %v7022
      %v7055 = vmul.f32 %v6837, %v7023
      %v7056 = vmul.f32 %v6842, %v7024
      %v7057 = vmul.f32 %v6845, %v7025
      %v7058 = vmul.f32 %v6850, %v7026
      %v7059 = vmul.f32 %v6853, %v7027
      %v7060 = vmul.f32 %v6858, %v7028
      %v7061 = vmul.f32 %v6861, %v7029
      %v7062 = vmul.f32 %v6866, %v7030
      %v7063 = vmul.f32 %v6869, %v7031
      %v7064 = vadd.f32 %v7000, 2.0
      %v7065 = vadd.f32 %v7001, 2.0
      %v7066 = vadd.f32 %v7002, 2.0
      %v7067 = vadd.f32 %v7003, 2.0
      %v7068 = vadd.f32 %v7004, 2.0
      %v7069 = vadd.f32 %v7005, 2.0
      %v7070 = vadd.f32 %v7006, 2.0
      %v7071 = vadd.f32 %v7007, 2.0
      %v7072 = vadd.f32 %v7008, 2.0
      %v7073 = vadd.f32 %v7009, 2.0
      %v7074 = vadd.f32 %v7010, 2.0
      %v7075 = vadd.f32 %v7011, 2.0
      %v7076 = vadd.f32 %v7012, 2.0
      %v7077 = vadd.f32 %v7013, 2.0
      %v7078 = vadd.f32 %v7014, 2.0
      %v7079 = vadd.f32 %v7015, 2.0
      %v7080 = vadd.f32 %v7016, 2.0
      %v7081 = vadd.f32 %v7017, 2.0
      %v7082 = vadd.f32 %v7018, 2.0
      %v7083 = vadd.f32 %v7019, 2.0
      %v7084 = vadd.f32 %v7020, 2.0
      %v7085 = vadd.f32 %v7021, 2.0
      %v7086 = vadd.f32 %v7022, 2.0
      %v7087 = vadd.f32 %v7023, 2.0
      %v7088 = vadd.f32 %v7024, 2.0
      %v7089 = vadd.f32 %v7025, 2.0
      %v7090 = vadd.f32 %v7026, 2.0
      %v7091 = vadd.f32 %v7027, 2.0
      %v7092 = vadd.f32 %v7028, 2.0
      %v7093 = vadd.f32 %v7029, 2.0
      %v7094 = vadd.f32 %v7030, 2.0
      %v7095 = vadd.f32 %v7031, 2.0
      %v7096 = vrcp.pop %v7064
      %v7097 = vrcp.pop %v7065
      %v7098 = vrcp.pop %v7066
      %v7099 = vrcp.pop %v7067
      %v7100 = vrcp.pop %v7068
      %v7101 = vrcp.pop %v7069
      %v7102 = vrcp.pop %v7070
      %v7103 = vrcp.pop %v7071
      %v7104 = vrcp.pop %v7072
      %v7105 = vrcp.pop %v7073
      %v7106 = vrcp.pop %v7074
      %v7107 = vrcp.pop %v7075
      %v7108 = vrcp.pop %v7076
      %v7109 = vrcp.pop %v7077
      %v7110 = vrcp.pop %v7078
      %v7111 = vrcp.pop %v7079
      %v7112 = vrcp.pop %v7080
      %v7113 = vrcp.pop %v7081
      %v7114 = vrcp.pop %v7082
      %v7115 = vrcp.pop %v7083
      %v7116 = vrcp.pop %v7084
      %v7117 = vrcp.pop %v7085
      %v7118 = vrcp.pop %v7086
      %v7119 = vrcp.pop %v7087
      %v7120 = vrcp.pop %v7088
      %v7121 = vrcp.pop %v7089
      %v7122 = vrcp.pop %v7090
      %v7123 = vrcp.pop %v7091
      %v7124 = vrcp.pop %v7092
      %v7125 = vrcp.pop %v7093
      %v7126 = vrcp.pop %v7094
      %v7127 = vrcp.pop %v7095
      %v7128 = vmul.f32 %v7032, %v7096
      %v7129 = vmul.f32 %v7033, %v7097
      %v7130 = vmul.f32 %v7034, %v7098
      %v7131 = vmul.f32 %v7035, %v7099
      %v7132 = vmul.f32 %v7036, %v7100
      %v7133 = vmul.f32 %v7037, %v7101
      %v7134 = vmul.f32 %v7038, %v7102
      %v7135 = vmul.f32 %v7039, %v7103
      %v7136 = vmul.f32 %v7040, %v7104
      %v7137 = vmul.f32 %v7041, %v7105
      %v7138 = vmul.f32 %v7042, %v7106
      %v7139 = vmul.f32 %v7043, %v7107
      %v7140 = vmul.f32 %v7044, %v7108
      %v7141 = vmul.f32 %v7045, %v7109
      %v7142 = vmul.f32 %v7046, %v7110
      %v7143 = vmul.f32 %v7047, %v7111
      %v7144 = vmul.f32 %v7048, %v7112
      %v7145 = vmul.f32 %v7049, %v7113
      %v7146 = vmul.f32 %v7050, %v7114
      %v7147 = vmul.f32 %v7051, %v7115
      %v7148 = vmul.f32 %v7052, %v7116
      %v7149 = vmul.f32 %v7053, %v7117
      %v7150 = vmul.f32 %v7054, %v7118
      %v7151 = vmul.f32 %v7055, %v7119
      %v7152 = vmul.f32 %v7056, %v7120
      %v7153 = vmul.f32 %v7057, %v7121
      %v7154 = vmul.f32 %v7058, %v7122
      %v7155 = vmul.f32 %v7059, %v7123
      %v7156 = vmul.f32 %v7060, %v7124
      %v7157 = vmul.f32 %v7061, %v7125
      %v7158 = vmul.f32 %v7062, %v7126
      %v7159 = vmul.f32 %v7063, %v7127
      %v7160 = vunpack.c.l.bf16 %v331
      %v7161 = vunpack.c.l.bf16 %v332
      %v7162 = vunpack.c.l.bf16 %v333
      %v7163 = vunpack.c.l.bf16 %v334
      %v7164 = vunpack.c.l.bf16 %v335
      %v7165 = vunpack.c.l.bf16 %v336
      %v7166 = vunpack.c.l.bf16 %v337
      %v7167 = vunpack.c.l.bf16 %v338
      %v7168 = vunpack.c.l.bf16 %v339
      %v7169 = vunpack.c.l.bf16 %v340
      %v7170 = vunpack.c.l.bf16 %v341
      %v7171 = vunpack.c.l.bf16 %v342
      %v7172 = vunpack.c.l.bf16 %v343
      %v7173 = vunpack.c.l.bf16 %v344
      %v7174 = vunpack.c.l.bf16 %v345
      %v7175 = vunpack.c.l.bf16 %v346
      %v7176 = vunpack.c.l.bf16 %v347
      %v7177 = vunpack.c.l.bf16 %v348
      %v7178 = vunpack.c.l.bf16 %v349
      %v7179 = vunpack.c.l.bf16 %v350
      %v7180 = vunpack.c.l.bf16 %v351
      %v7181 = vunpack.c.l.bf16 %v352
      %v7182 = vunpack.c.l.bf16 %v353
      %v7183 = vunpack.c.l.bf16 %v354
      %v7184 = vunpack.c.l.bf16 %v355
      %v7185 = vunpack.c.l.bf16 %v356
      %v7186 = vunpack.c.l.bf16 %v357
      %v7187 = vunpack.c.l.bf16 %v358
      %v7188 = vunpack.c.l.bf16 %v359
      %v7189 = vunpack.c.l.bf16 %v360
      %v7190 = vunpack.c.l.bf16 %v361
      %v7191 = vunpack.c.l.bf16 %v362
      %v7192 = vunpack.c.l.bf16 %v363
      %v7193 = vunpack.c.l.bf16 %v364
      %v7194 = vunpack.c.l.bf16 %v365
      %v7195 = vunpack.c.l.bf16 %v366
      %v7196 = vunpack.c.l.bf16 %v367
      %v7197 = vunpack.c.l.bf16 %v368
      %v7198 = vunpack.c.l.bf16 %v369
      %v7199 = vunpack.c.l.bf16 %v370
      %v7200 = vunpack.c.l.bf16 %v371
      %v7201 = vunpack.c.l.bf16 %v372
      %v7202 = vunpack.c.l.bf16 %v373
      %v7203 = vunpack.c.l.bf16 %v374
      %v7204 = vunpack.c.l.bf16 %v375
      %v7205 = vunpack.c.l.bf16 %v376
      %v7206 = vunpack.c.l.bf16 %v377
      %v7207 = vunpack.c.l.bf16 %v378
      %vm7240 = vcmask 1040384
      %v7241 = vrot.slane %v7128, 7
      %v7242 = vrot.slane %v7129, 7
      %v7243 = vsel %vm7240, %v7241, %v7242
      %v7244 = vrot.slane %v7130, 7
      %v7245 = vrot.slane %v7131, 7
      %v7246 = vsel %vm7240, %v7244, %v7245
      %v7247 = vrot.slane %v7132, 7
      %v7248 = vrot.slane %v7133, 7
      %v7249 = vsel %vm7240, %v7247, %v7248
      %v7250 = vrot.slane %v7134, 7
      %v7251 = vrot.slane %v7135, 7
      %v7252 = vsel %vm7240, %v7250, %v7251
      %v7253 = vrot.slane %v7136, 7
      %v7254 = vrot.slane %v7137, 7
      %v7255 = vsel %vm7240, %v7253, %v7254
      %v7256 = vrot.slane %v7138, 7
      %v7257 = vrot.slane %v7139, 7
      %v7258 = vsel %vm7240, %v7256, %v7257
      %v7259 = vrot.slane %v7140, 7
      %v7260 = vrot.slane %v7141, 7
      %v7261 = vsel %vm7240, %v7259, %v7260
      %v7262 = vrot.slane %v7142, 7
      %v7263 = vrot.slane %v7143, 7
      %v7264 = vsel %vm7240, %v7262, %v7263
      %v7265 = vrot.slane %v7144, 7
      %v7266 = vrot.slane %v7145, 7
      %v7267 = vsel %vm7240, %v7265, %v7266
      %v7268 = vrot.slane %v7146, 7
      %v7269 = vrot.slane %v7147, 7
      %v7270 = vsel %vm7240, %v7268, %v7269
      %v7271 = vrot.slane %v7148, 7
      %v7272 = vrot.slane %v7149, 7
      %v7273 = vsel %vm7240, %v7271, %v7272
      %v7274 = vrot.slane %v7150, 7
      %v7275 = vrot.slane %v7151, 7
      %v7276 = vsel %vm7240, %v7274, %v7275
      %v7277 = vrot.slane %v7152, 7
      %v7278 = vrot.slane %v7153, 7
      %v7279 = vsel %vm7240, %v7277, %v7278
      %v7280 = vrot.slane %v7154, 7
      %v7281 = vrot.slane %v7155, 7
      %v7282 = vsel %vm7240, %v7280, %v7281
      %v7283 = vrot.slane %v7156, 7
      %v7284 = vrot.slane %v7157, 7
      %v7285 = vsel %vm7240, %v7283, %v7284
      %v7286 = vrot.slane %v7158, 7
      %v7287 = vrot.slane %v7159, 7
      %v7288 = vsel %vm7240, %v7286, %v7287
      %v7337 = vadd.f32 %v7160, %v7241
      %v7338 = vadd.f32 %v7161, %v7243
      %v7339 = vadd.f32 %v7162, %v7242
      %v7340 = vadd.f32 %v7163, %v7244
      %v7341 = vadd.f32 %v7164, %v7246
      %v7342 = vadd.f32 %v7165, %v7245
      %v7343 = vadd.f32 %v7166, %v7247
      %v7344 = vadd.f32 %v7167, %v7249
      %v7345 = vadd.f32 %v7168, %v7248
      %v7346 = vadd.f32 %v7169, %v7250
      %v7347 = vadd.f32 %v7170, %v7252
      %v7348 = vadd.f32 %v7171, %v7251
      %v7349 = vadd.f32 %v7172, %v7253
      %v7350 = vadd.f32 %v7173, %v7255
      %v7351 = vadd.f32 %v7174, %v7254
      %v7352 = vadd.f32 %v7175, %v7256
      %v7353 = vadd.f32 %v7176, %v7258
      %v7354 = vadd.f32 %v7177, %v7257
      %v7355 = vadd.f32 %v7178, %v7259
      %v7356 = vadd.f32 %v7179, %v7261
      %v7357 = vadd.f32 %v7180, %v7260
      %v7358 = vadd.f32 %v7181, %v7262
      %v7359 = vadd.f32 %v7182, %v7264
      %v7360 = vadd.f32 %v7183, %v7263
      %v7361 = vadd.f32 %v7184, %v7265
      %v7362 = vadd.f32 %v7185, %v7267
      %v7363 = vadd.f32 %v7186, %v7266
      %v7364 = vadd.f32 %v7187, %v7268
      %v7365 = vadd.f32 %v7188, %v7270
      %v7366 = vadd.f32 %v7189, %v7269
      %v7367 = vadd.f32 %v7190, %v7271
      %v7368 = vadd.f32 %v7191, %v7273
      %v7369 = vadd.f32 %v7192, %v7272
      %v7370 = vadd.f32 %v7193, %v7274
      %v7371 = vadd.f32 %v7194, %v7276
      %v7372 = vadd.f32 %v7195, %v7275
      %v7373 = vadd.f32 %v7196, %v7277
      %v7374 = vadd.f32 %v7197, %v7279
      %v7375 = vadd.f32 %v7198, %v7278
      %v7376 = vadd.f32 %v7199, %v7280
      %v7377 = vadd.f32 %v7200, %v7282
      %v7378 = vadd.f32 %v7201, %v7281
      %v7379 = vadd.f32 %v7202, %v7283
      %v7380 = vadd.f32 %v7203, %v7285
      %v7381 = vadd.f32 %v7204, %v7284
      %v7382 = vadd.f32 %v7205, %v7286
      %v7383 = vadd.f32 %v7206, %v7288
      %v7384 = vadd.f32 %v7207, %v7287
      %v7385 = vpack.c.bf16 %v7338, %v7337
      %v7386 = vpack.c.bf16 %v7339, %v7339
      %v7387 = vpack.c.bf16 %v7341, %v7340
      %v7388 = vpack.c.bf16 %v7342, %v7342
      %v7389 = vpack.c.bf16 %v7344, %v7343
      %v7390 = vpack.c.bf16 %v7345, %v7345
      %v7391 = vpack.c.bf16 %v7347, %v7346
      %v7392 = vpack.c.bf16 %v7348, %v7348
      %v7393 = vpack.c.bf16 %v7350, %v7349
      %v7394 = vpack.c.bf16 %v7351, %v7351
      %v7395 = vpack.c.bf16 %v7353, %v7352
      %v7396 = vpack.c.bf16 %v7354, %v7354
      %v7397 = vpack.c.bf16 %v7356, %v7355
      %v7398 = vpack.c.bf16 %v7357, %v7357
      %v7399 = vpack.c.bf16 %v7359, %v7358
      %v7400 = vpack.c.bf16 %v7360, %v7360
      %v7401 = vpack.c.bf16 %v7362, %v7361
      %v7402 = vpack.c.bf16 %v7363, %v7363
      %v7403 = vpack.c.bf16 %v7365, %v7364
      %v7404 = vpack.c.bf16 %v7366, %v7366
      %v7405 = vpack.c.bf16 %v7368, %v7367
      %v7406 = vpack.c.bf16 %v7369, %v7369
      %v7407 = vpack.c.bf16 %v7371, %v7370
      %v7408 = vpack.c.bf16 %v7372, %v7372
      %v7409 = vpack.c.bf16 %v7374, %v7373
      %v7410 = vpack.c.bf16 %v7375, %v7375
      %v7411 = vpack.c.bf16 %v7377, %v7376
      %v7412 = vpack.c.bf16 %v7378, %v7378
      %v7413 = vpack.c.bf16 %v7380, %v7379
      %v7414 = vpack.c.bf16 %v7381, %v7381
      %v7415 = vpack.c.bf16 %v7383, %v7382
      %v7416 = vpack.c.bf16 %v7384, %v7384
      %v7449 = vunpack.c.l.b16 %v7385
      %v7450 = vunpack.c.h.b16 %v7385
      %v7451 = vunpack.c.l.b16 %v7386
      %v7452 = vunpack.c.l.b16 %v7387
      %v7453 = vunpack.c.h.b16 %v7387
      %v7454 = vunpack.c.l.b16 %v7388
      %v7455 = vunpack.c.l.b16 %v7389
      %v7456 = vunpack.c.h.b16 %v7389
      %v7457 = vunpack.c.l.b16 %v7390
      %v7458 = vunpack.c.l.b16 %v7391
      %v7459 = vunpack.c.h.b16 %v7391
      %v7460 = vunpack.c.l.b16 %v7392
      %v7461 = vunpack.c.l.b16 %v7393
      %v7462 = vunpack.c.h.b16 %v7393
      %v7463 = vunpack.c.l.b16 %v7394
      %v7464 = vunpack.c.l.b16 %v7395
      %v7465 = vunpack.c.h.b16 %v7395
      %v7466 = vunpack.c.l.b16 %v7396
      %v7467 = vunpack.c.l.b16 %v7397
      %v7468 = vunpack.c.h.b16 %v7397
      %v7469 = vunpack.c.l.b16 %v7398
      %v7470 = vunpack.c.l.b16 %v7399
      %v7471 = vunpack.c.h.b16 %v7399
      %v7472 = vunpack.c.l.b16 %v7400
      %v7473 = vunpack.c.l.b16 %v7401
      %v7474 = vunpack.c.h.b16 %v7401
      %v7475 = vunpack.c.l.b16 %v7402
      %v7476 = vunpack.c.l.b16 %v7403
      %v7477 = vunpack.c.h.b16 %v7403
      %v7478 = vunpack.c.l.b16 %v7404
      %v7479 = vunpack.c.l.b16 %v7405
      %v7480 = vunpack.c.h.b16 %v7405
      %v7481 = vunpack.c.l.b16 %v7406
      %v7482 = vunpack.c.l.b16 %v7407
      %v7483 = vunpack.c.h.b16 %v7407
      %v7484 = vunpack.c.l.b16 %v7408
      %v7485 = vunpack.c.l.b16 %v7409
      %v7486 = vunpack.c.h.b16 %v7409
      %v7487 = vunpack.c.l.b16 %v7410
      %v7488 = vunpack.c.l.b16 %v7411
      %v7489 = vunpack.c.h.b16 %v7411
      %v7490 = vunpack.c.l.b16 %v7412
      %v7491 = vunpack.c.l.b16 %v7413
      %v7492 = vunpack.c.h.b16 %v7413
      %v7493 = vunpack.c.l.b16 %v7414
      %v7494 = vunpack.c.l.b16 %v7415
      %v7495 = vunpack.c.h.b16 %v7415
      %v7496 = vunpack.c.l.b16 %v7416
      %v7497 = vpack.c.b16 %v7449, %v7449
      %v7498 = vpack.c.b16 %v7450, %v7450
      %v7499 = vpack.c.b16 %v7451, %v7451
      %v7500 = vpack.c.b16 %v7452, %v7452
      %v7501 = vpack.c.b16 %v7453, %v7453
      %v7502 = vpack.c.b16 %v7454, %v7454
      %v7503 = vpack.c.b16 %v7455, %v7455
      %v7504 = vpack.c.b16 %v7456, %v7456
      %v7505 = vpack.c.b16 %v7457, %v7457
      %v7506 = vpack.c.b16 %v7458, %v7458
      %v7507 = vpack.c.b16 %v7459, %v7459
      %v7508 = vpack.c.b16 %v7460, %v7460
      %v7509 = vpack.c.b16 %v7461, %v7461
      %v7510 = vpack.c.b16 %v7462, %v7462
      %v7511 = vpack.c.b16 %v7463, %v7463
      %v7512 = vpack.c.b16 %v7464, %v7464
      %v7513 = vpack.c.b16 %v7465, %v7465
      %v7514 = vpack.c.b16 %v7466, %v7466
      %v7515 = vpack.c.b16 %v7467, %v7467
      %v7516 = vpack.c.b16 %v7468, %v7468
      %v7517 = vpack.c.b16 %v7469, %v7469
      %v7518 = vpack.c.b16 %v7470, %v7470
      %v7519 = vpack.c.b16 %v7471, %v7471
      %v7520 = vpack.c.b16 %v7472, %v7472
      %v7521 = vpack.c.b16 %v7473, %v7473
      %v7522 = vpack.c.b16 %v7474, %v7474
      %v7523 = vpack.c.b16 %v7475, %v7475
      %v7524 = vpack.c.b16 %v7476, %v7476
      %v7525 = vpack.c.b16 %v7477, %v7477
      %v7526 = vpack.c.b16 %v7478, %v7478
      %v7527 = vpack.c.b16 %v7479, %v7479
      %v7528 = vpack.c.b16 %v7480, %v7480
      %v7529 = vpack.c.b16 %v7481, %v7481
      %v7530 = vpack.c.b16 %v7482, %v7482
      %v7531 = vpack.c.b16 %v7483, %v7483
      %v7532 = vpack.c.b16 %v7484, %v7484
      %v7533 = vpack.c.b16 %v7485, %v7485
      %v7534 = vpack.c.b16 %v7486, %v7486
      %v7535 = vpack.c.b16 %v7487, %v7487
      %v7536 = vpack.c.b16 %v7488, %v7488
      %v7537 = vpack.c.b16 %v7489, %v7489
      %v7538 = vpack.c.b16 %v7490, %v7490
      %v7539 = vpack.c.b16 %v7491, %v7491
      %v7540 = vpack.c.b16 %v7492, %v7492
      %v7541 = vpack.c.b16 %v7493, %v7493
      %v7542 = vpack.c.b16 %v7494, %v7494
      %v7543 = vpack.c.b16 %v7495, %v7495
      %v7544 = vpack.c.b16 %v7496, %v7496
      %vm7545 = vsmask.f32 3328
      %vm7546 = vsmask.f32 7440
      %vm7547 = vmor %vm7545, %vm7546
      %v7549 = vshrl.u32 %v7497, 16
      %v7551 = vrot.slane %v7549, 4
      %v7552 = vshll.u32 %v7497, 16
      %v7554 = vrot.slane %v7552, 5
      %v7555 = vor.u32 %v7551, %v7554
      %v7556 = vrot.slane %v7555, 4
      %v7558 = vshll.u32 %v7498, 16
      %v7560 = vrot.slane %v7558, 5
      %v7561 = vsel %vm7547, %v7556, %v7560
      %v7562 = vshrl.u32 %v7498, 16
      %v7564 = vrot.slane %v7562, 4
      %v7565 = vor.u32 %v7564, %v7560
      %v7566 = vrot.slane %v7565, 4
      %v7568 = vshll.u32 %v7499, 16
      %v7570 = vrot.slane %v7568, 5
      %v7571 = vsel %vm7547, %v7566, %v7570
      %v7573 = vshrl.u32 %v7500, 16
      %v7575 = vrot.slane %v7573, 4
      %v7576 = vshll.u32 %v7500, 16
      %v7578 = vrot.slane %v7576, 5
      %v7579 = vor.u32 %v7575, %v7578
      %v7580 = vrot.slane %v7579, 4
      %v7582 = vshll.u32 %v7501, 16
      %v7584 = vrot.slane %v7582, 5
      %v7585 = vsel %vm7547, %v7580, %v7584
      %v7586 = vshrl.u32 %v7501, 16
      %v7588 = vrot.slane %v7586, 4
      %v7589 = vor.u32 %v7588, %v7584
      %v7590 = vrot.slane %v7589, 4
      %v7592 = vshll.u32 %v7502, 16
      %v7594 = vrot.slane %v7592, 5
      %v7595 = vsel %vm7547, %v7590, %v7594
      %v7597 = vshrl.u32 %v7503, 16
      %v7599 = vrot.slane %v7597, 4
      %v7600 = vshll.u32 %v7503, 16
      %v7602 = vrot.slane %v7600, 5
      %v7603 = vor.u32 %v7599, %v7602
      %v7604 = vrot.slane %v7603, 4
      %v7606 = vshll.u32 %v7504, 16
      %v7608 = vrot.slane %v7606, 5
      %v7609 = vsel %vm7547, %v7604, %v7608
      %v7610 = vshrl.u32 %v7504, 16
      %v7612 = vrot.slane %v7610, 4
      %v7613 = vor.u32 %v7612, %v7608
      %v7614 = vrot.slane %v7613, 4
      %v7616 = vshll.u32 %v7505, 16
      %v7618 = vrot.slane %v7616, 5
      %v7619 = vsel %vm7547, %v7614, %v7618
      %v7621 = vshrl.u32 %v7506, 16
      %v7623 = vrot.slane %v7621, 4
      %v7624 = vshll.u32 %v7506, 16
      %v7626 = vrot.slane %v7624, 5
      %v7627 = vor.u32 %v7623, %v7626
      %v7628 = vrot.slane %v7627, 4
      %v7630 = vshll.u32 %v7507, 16
      %v7632 = vrot.slane %v7630, 5
      %v7633 = vsel %vm7547, %v7628, %v7632
      %v7634 = vshrl.u32 %v7507, 16
      %v7636 = vrot.slane %v7634, 4
      %v7637 = vor.u32 %v7636, %v7632
      %v7638 = vrot.slane %v7637, 4
      %v7640 = vshll.u32 %v7508, 16
      %v7642 = vrot.slane %v7640, 5
      %v7643 = vsel %vm7547, %v7638, %v7642
      %v7645 = vshrl.u32 %v7509, 16
      %v7647 = vrot.slane %v7645, 4
      %v7648 = vshll.u32 %v7509, 16
      %v7650 = vrot.slane %v7648, 5
      %v7651 = vor.u32 %v7647, %v7650
      %v7652 = vrot.slane %v7651, 4
      %v7654 = vshll.u32 %v7510, 16
      %v7656 = vrot.slane %v7654, 5
      %v7657 = vsel %vm7547, %v7652, %v7656
      %v7658 = vshrl.u32 %v7510, 16
      %v7660 = vrot.slane %v7658, 4
      %v7661 = vor.u32 %v7660, %v7656
      %v7662 = vrot.slane %v7661, 4
      %v7664 = vshll.u32 %v7511, 16
      %v7666 = vrot.slane %v7664, 5
      %v7667 = vsel %vm7547, %v7662, %v7666
      %v7669 = vshrl.u32 %v7512, 16
      %v7671 = vrot.slane %v7669, 4
      %v7672 = vshll.u32 %v7512, 16
      %v7674 = vrot.slane %v7672, 5
      %v7675 = vor.u32 %v7671, %v7674
      %v7676 = vrot.slane %v7675, 4
      %v7678 = vshll.u32 %v7513, 16
      %v7680 = vrot.slane %v7678, 5
      %v7681 = vsel %vm7547, %v7676, %v7680
      %v7682 = vshrl.u32 %v7513, 16
      %v7684 = vrot.slane %v7682, 4
      %v7685 = vor.u32 %v7684, %v7680
      %v7686 = vrot.slane %v7685, 4
      %v7688 = vshll.u32 %v7514, 16
      %v7690 = vrot.slane %v7688, 5
      %v7691 = vsel %vm7547, %v7686, %v7690
      %v7693 = vshrl.u32 %v7515, 16
      %v7695 = vrot.slane %v7693, 4
      %v7696 = vshll.u32 %v7515, 16
      %v7698 = vrot.slane %v7696, 5
      %v7699 = vor.u32 %v7695, %v7698
      %v7700 = vrot.slane %v7699, 4
      %v7702 = vshll.u32 %v7516, 16
      %v7704 = vrot.slane %v7702, 5
      %v7705 = vsel %vm7547, %v7700, %v7704
      %v7706 = vshrl.u32 %v7516, 16
      %v7708 = vrot.slane %v7706, 4
      %v7709 = vor.u32 %v7708, %v7704
      %v7710 = vrot.slane %v7709, 4
      %v7712 = vshll.u32 %v7517, 16
      %v7714 = vrot.slane %v7712, 5
      %v7715 = vsel %vm7547, %v7710, %v7714
      %v7717 = vshrl.u32 %v7518, 16
      %v7719 = vrot.slane %v7717, 4
      %v7720 = vshll.u32 %v7518, 16
      %v7722 = vrot.slane %v7720, 5
      %v7723 = vor.u32 %v7719, %v7722
      %v7724 = vrot.slane %v7723, 4
      %v7726 = vshll.u32 %v7519, 16
      %v7728 = vrot.slane %v7726, 5
      %v7729 = vsel %vm7547, %v7724, %v7728
      %v7730 = vshrl.u32 %v7519, 16
      %v7732 = vrot.slane %v7730, 4
      %v7733 = vor.u32 %v7732, %v7728
      %v7734 = vrot.slane %v7733, 4
      %v7736 = vshll.u32 %v7520, 16
      %v7738 = vrot.slane %v7736, 5
      %v7739 = vsel %vm7547, %v7734, %v7738
      %v7741 = vshrl.u32 %v7521, 16
      %v7743 = vrot.slane %v7741, 4
      %v7744 = vshll.u32 %v7521, 16
      %v7746 = vrot.slane %v7744, 5
      %v7747 = vor.u32 %v7743, %v7746
      %v7748 = vrot.slane %v7747, 4
      %v7750 = vshll.u32 %v7522, 16
      %v7752 = vrot.slane %v7750, 5
      %v7753 = vsel %vm7547, %v7748, %v7752
      %v7754 = vshrl.u32 %v7522, 16
      %v7756 = vrot.slane %v7754, 4
      %v7757 = vor.u32 %v7756, %v7752
      %v7758 = vrot.slane %v7757, 4
      %v7760 = vshll.u32 %v7523, 16
      %v7762 = vrot.slane %v7760, 5
      %v7763 = vsel %vm7547, %v7758, %v7762
      %v7765 = vshrl.u32 %v7524, 16
      %v7767 = vrot.slane %v7765, 4
      %v7768 = vshll.u32 %v7524, 16
      %v7770 = vrot.slane %v7768, 5
      %v7771 = vor.u32 %v7767, %v7770
      %v7772 = vrot.slane %v7771, 4
      %v7774 = vshll.u32 %v7525, 16
      %v7776 = vrot.slane %v7774, 5
      %v7777 = vsel %vm7547, %v7772, %v7776
      %v7778 = vshrl.u32 %v7525, 16
      %v7780 = vrot.slane %v7778, 4
      %v7781 = vor.u32 %v7780, %v7776
      %v7782 = vrot.slane %v7781, 4
      %v7784 = vshll.u32 %v7526, 16
      %v7786 = vrot.slane %v7784, 5
      %v7787 = vsel %vm7547, %v7782, %v7786
      %v7789 = vshrl.u32 %v7527, 16
      %v7791 = vrot.slane %v7789, 4
      %v7792 = vshll.u32 %v7527, 16
      %v7794 = vrot.slane %v7792, 5
      %v7795 = vor.u32 %v7791, %v7794
      %v7796 = vrot.slane %v7795, 4
      %v7798 = vshll.u32 %v7528, 16
      %v7800 = vrot.slane %v7798, 5
      %v7801 = vsel %vm7547, %v7796, %v7800
      %v7802 = vshrl.u32 %v7528, 16
      %v7804 = vrot.slane %v7802, 4
      %v7805 = vor.u32 %v7804, %v7800
      %v7806 = vrot.slane %v7805, 4
      %v7808 = vshll.u32 %v7529, 16
      %v7810 = vrot.slane %v7808, 5
      %v7811 = vsel %vm7547, %v7806, %v7810
      %v7813 = vshrl.u32 %v7530, 16
      %v7815 = vrot.slane %v7813, 4
      %v7816 = vshll.u32 %v7530, 16
      %v7818 = vrot.slane %v7816, 5
      %v7819 = vor.u32 %v7815, %v7818
      %v7820 = vrot.slane %v7819, 4
      %v7822 = vshll.u32 %v7531, 16
      %v7824 = vrot.slane %v7822, 5
      %v7825 = vsel %vm7547, %v7820, %v7824
      %v7826 = vshrl.u32 %v7531, 16
      %v7828 = vrot.slane %v7826, 4
      %v7829 = vor.u32 %v7828, %v7824
      %v7830 = vrot.slane %v7829, 4
      %v7832 = vshll.u32 %v7532, 16
      %v7834 = vrot.slane %v7832, 5
      %v7835 = vsel %vm7547, %v7830, %v7834
      %v7837 = vshrl.u32 %v7533, 16
      %v7839 = vrot.slane %v7837, 4
      %v7840 = vshll.u32 %v7533, 16
      %v7842 = vrot.slane %v7840, 5
      %v7843 = vor.u32 %v7839, %v7842
      %v7844 = vrot.slane %v7843, 4
      %v7846 = vshll.u32 %v7534, 16
      %v7848 = vrot.slane %v7846, 5
      %v7849 = vsel %vm7547, %v7844, %v7848
      %v7850 = vshrl.u32 %v7534, 16
      %v7852 = vrot.slane %v7850, 4
      %v7853 = vor.u32 %v7852, %v7848
      %v7854 = vrot.slane %v7853, 4
      %v7856 = vshll.u32 %v7535, 16
      %v7858 = vrot.slane %v7856, 5
      %v7859 = vsel %vm7547, %v7854, %v7858
      %v7861 = vshrl.u32 %v7536, 16
      %v7863 = vrot.slane %v7861, 4
      %v7864 = vshll.u32 %v7536, 16
      %v7866 = vrot.slane %v7864, 5
      %v7867 = vor.u32 %v7863, %v7866
      %v7868 = vrot.slane %v7867, 4
      %v7870 = vshll.u32 %v7537, 16
      %v7872 = vrot.slane %v7870, 5
      %v7873 = vsel %vm7547, %v7868, %v7872
      %v7874 = vshrl.u32 %v7537, 16
      %v7876 = vrot.slane %v7874, 4
      %v7877 = vor.u32 %v7876, %v7872
      %v7878 = vrot.slane %v7877, 4
      %v7880 = vshll.u32 %v7538, 16
      %v7882 = vrot.slane %v7880, 5
      %v7883 = vsel %vm7547, %v7878, %v7882
      %v7885 = vshrl.u32 %v7539, 16
      %v7887 = vrot.slane %v7885, 4
      %v7888 = vshll.u32 %v7539, 16
      %v7890 = vrot.slane %v7888, 5
      %v7891 = vor.u32 %v7887, %v7890
      %v7892 = vrot.slane %v7891, 4
      %v7894 = vshll.u32 %v7540, 16
      %v7896 = vrot.slane %v7894, 5
      %v7897 = vsel %vm7547, %v7892, %v7896
      %v7898 = vshrl.u32 %v7540, 16
      %v7900 = vrot.slane %v7898, 4
      %v7901 = vor.u32 %v7900, %v7896
      %v7902 = vrot.slane %v7901, 4
      %v7904 = vshll.u32 %v7541, 16
      %v7906 = vrot.slane %v7904, 5
      %v7907 = vsel %vm7547, %v7902, %v7906
      %v7909 = vshrl.u32 %v7542, 16
      %v7911 = vrot.slane %v7909, 4
      %v7912 = vshll.u32 %v7542, 16
      %v7914 = vrot.slane %v7912, 5
      %v7915 = vor.u32 %v7911, %v7914
      %v7916 = vrot.slane %v7915, 4
      %v7918 = vshll.u32 %v7543, 16
      %v7920 = vrot.slane %v7918, 5
      %v7921 = vsel %vm7547, %v7916, %v7920
      %v7922 = vshrl.u32 %v7543, 16
      %v7924 = vrot.slane %v7922, 4
      %v7925 = vor.u32 %v7924, %v7920
      %v7926 = vrot.slane %v7925, 4
      %v7928 = vshll.u32 %v7544, 16
      %v7930 = vrot.slane %v7928, 5
      %v7931 = vsel %vm7547, %v7926, %v7930
      %7964 = vst [vmem:[%s328] sm:$0xf] %v7561
      %7965 = vst [vmem:[%s328 + $0x4] sm:$0xf] %v7571
      %7966 = vst [vmem:[%s328 + $0x8] sm:$0xf] %v7585
      %7967 = vst [vmem:[%s328 + $0xc] sm:$0xf] %v7595
      %7968 = vst [vmem:[%s328 + $0x10] sm:$0xf] %v7609
      %7969 = vst [vmem:[%s328 + $0x14] sm:$0xf] %v7619
      %7970 = vst [vmem:[%s328 + $0x18] sm:$0xf] %v7633
      %7971 = vst [vmem:[%s328 + $0x1c] sm:$0xf] %v7643
      %7972 = vst [vmem:[%s328 + $0x20] sm:$0xf] %v7657
      %7973 = vst [vmem:[%s328 + $0x24] sm:$0xf] %v7667
      %7974 = vst [vmem:[%s328 + $0x28] sm:$0xf] %v7681
      %7975 = vst [vmem:[%s328 + $0x2c] sm:$0xf] %v7691
      %7976 = vst [vmem:[%s328 + $0x30] sm:$0xf] %v7705
      %7977 = vst [vmem:[%s328 + $0x34] sm:$0xf] %v7715
      %7978 = vst [vmem:[%s328 + $0x38] sm:$0xf] %v7729
      %7979 = vst [vmem:[%s328 + $0x3c] sm:$0xf] %v7739
      %7980 = vst [vmem:[%s328 + $0x40] sm:$0xf] %v7753
      %7981 = vst [vmem:[%s328 + $0x44] sm:$0xf] %v7763
      %7982 = vst [vmem:[%s328 + $0x48] sm:$0xf] %v7777
      %7983 = vst [vmem:[%s328 + $0x4c] sm:$0xf] %v7787
      %7984 = vst [vmem:[%s328 + $0x50] sm:$0xf] %v7801
      %7985 = vst [vmem:[%s328 + $0x54] sm:$0xf] %v7811
      %7986 = vst [vmem:[%s328 + $0x58] sm:$0xf] %v7825
      %7987 = vst [vmem:[%s328 + $0x5c] sm:$0xf] %v7835
      %7988 = vst [vmem:[%s328 + $0x60] sm:$0xf] %v7849
      %7989 = vst [vmem:[%s328 + $0x64] sm:$0xf] %v7859
      %7990 = vst [vmem:[%s328 + $0x68] sm:$0xf] %v7873
      %7991 = vst [vmem:[%s328 + $0x6c] sm:$0xf] %v7883
      %7992 = vst [vmem:[%s328 + $0x70] sm:$0xf] %v7897
      %7993 = vst [vmem:[%s328 + $0x74] sm:$0xf] %v7907
      %7994 = vst [vmem:[%s328 + $0x78] sm:$0xf] %v7921
      %7995 = vst [vmem:[%s328 + $0x7c] sm:$0xf] %v7931
      %s7996 = smul.u32 16, %s22
      %p7997 = scmp.lt.s32.totalorder %s21, 1
      %s7998 = scalar_select %p7997, %s21, 1
      %p7999 = scmp.lt.s32.totalorder %s7996, 15
      %s8000 = scalar_select %p7999, %s7996, 15
      %s8001 = smul.addr %s8000, 2
      %s8002 = smul.addr %s7998, 32
      %s8003 = sadd.s32 %s8001, %s8002
      %s8004 = smul.addr %s8003, 4
      %s8005 = scalar_lea.vmem %s6, %s8004
      // Predicated region
      $region45: #{residual_block_pallas.1} parent=43 // pred_check
        %p8006 = pneg %p189
      $region46: #{residual_block_pallas.1} parent=43 // pred_check_branch
        %8008 = sbr.rel (%p8006) target = $region48
      $region47: #{residual_block_pallas.1} parent=43 // pred_region
        %s8009 = smul.u32 16, %s22
      $region48: #{residual_block_pallas.1} parent=43 // pred_fallthru
        _
    $region44: #{residual_block_pallas.1} parent=5 // pred_fallthru
      _
    %p8010 = scmp.le.s32.totalorder 2, %s12
    // Predicated region
    $region49: #{residual_block_pallas.1} parent=5 // pred_check
      %p8011 = pneg %p8010
    $region50: #{residual_block_pallas.1} parent=5 // pred_check_branch
      %8013 = sbr.rel (%p8011) target = $region52
    $region51: #{residual_block_pallas.1} parent=5 // pred_region
      %s8014 = ssub.s32 %s12, 2
      // Predicated region
      $region53: #{residual_block_pallas.1} parent=51 // pred_check
        %p8015 = pneg %p195
      $region54: #{residual_block_pallas.1} parent=51 // pred_check_branch
        %8017 = sbr.rel (%p8015) target = $region56
      $region55: #{residual_block_pallas.1} parent=51 // pred_region
        %s8018 = smul.u32 16, %s24
        %p8019 = scmp.lt.s32.totalorder %s23, 1
        %s8020 = scalar_select %p8019, %s23, 1
        %p8021 = scmp.lt.s32.totalorder %s8018, 15
        %s8022 = scalar_select %p8021, %s8018, 15
        %s8023 = smul.addr %s8022, 2
        %s8024 = smul.addr %s8020, 32
        %s8025 = sadd.s32 %s8023, %s8024
        %s8026 = smul.addr %s8025, 4
        %s8027 = scalar_lea.vmem %s6, %s8026
      $region56: #{residual_block_pallas.1} parent=51 // pred_fallthru
        _
    $region52: #{residual_block_pallas.1} parent=5 // pred_fallthru
      _
  $region6: #{residual_block_pallas.1} parent=0 // loop_footer
    %s16 = sadd.s32 1, %s12
  $region7: #{residual_block_pallas.1} parent=0 // loop_footer_branch
    %11 = sbr.rel target = $region3
  $region8: #{residual_block_pallas.1} parent=0 // loop_exit
    _

</llo_original>
